<compile_context>
chip_gen: v6e
topology: v6e:2x2x1
jax: 0.10.0
libtpu: 0.0.40
codegen_flags: <defaults>
</compile_context>

<pallas_src>
import math
import jax
import jax.numpy as jnp
from jax.experimental import pallas as pl
from jax.experimental.pallas import tpu as pltpu

D = 32             # maxsat_model.hidden_dim
MLP_LAYERS = 2     # maxsat_model.mlp_layers
ITERS = 4          # maxsat_model.rnn_iters
FORGET_BIAS = 1.0  # maxsat_model.forget_bias
LN_EPS = 1e-5

# NOTE: on v6e/v7x, casting MXU operands to bf16 (keeping
# preferred_element_type=f32 accumulation) would roughly double MXU throughput;
# kept f32 here to preserve the reference numerics exactly.


# ----------------------------- in-kernel helpers ------------------------------

def _mlp(x, Ws, bs):
    """x: (N, D); Ws: (MLP_LAYERS, D, D); bs: (MLP_LAYERS, D). relu(x @ W + b)."""
    h = x
    for l in range(MLP_LAYERS):
        h = jnp.dot(h, Ws[l], preferred_element_type=jnp.float32) + bs[l:l + 1, :]
        h = jnp.maximum(h, 0.0)
    return h


def _layer_norm(x, gamma, beta):
    mu = jnp.mean(x, axis=-1, keepdims=True)
    xc = x - mu
    var = jnp.mean(xc * xc, axis=-1, keepdims=True)
    return xc * jax.lax.rsqrt(var + LN_EPS) * gamma + beta


def _ln_lstm(pre, c, gamma, beta, gc, bc):
    """pre: (N, 4D) fused pre-activations (x@Wih + h@Whh + bias), gates [i,f,g,o]."""
    gs = []
    for k in range(4):
        sl = slice(k * D, (k + 1) * D)
        gs.append(_layer_norm(pre[:, sl], gamma[:, sl], beta[:, sl]))
    i = jax.nn.sigmoid(gs[0])
    f = jax.nn.sigmoid(gs[1] + FORGET_BIAS)
    g = jnp.tanh(gs[2])
    o = jax.nn.sigmoid(gs[3])
    c_new = f * c + i * g
    h_new = o * jnp.tanh(_layer_norm(c_new, gc, bc))
    return h_new, c_new


# ----------------------------- the fused kernel --------------------------------

def fused_kernel(cnt_ref,                       # scalar-prefetch: (B,) int32 in SMEM
                 adj_ref,                       # (1, L, C)
                 lpos_ref, lneg_ref, cinit_ref, # (1, D) each
                 lcW_ref, lcb_ref, clW_ref, clb_ref,
                 c_wih_ref, c_whh_ref, c_b_ref, c_g_ref, c_be_ref, c_gc_ref, c_bc_ref,
                 l_wih_ref, l_whh_ref, l_b_ref, l_g_ref, l_be_ref, l_gc_ref, l_bc_ref,
                 rankw_ref,
                 out_ref):                      # (1, L//2, 2)
    b = pl.program_id(0)
    n = cnt_ref[b]                              # number of literals in this instance
    half = jax.lax.div(n, jnp.array(2, jnp.int32))

    adj = adj_ref[0]                            # (L, C)
    L_rows, C_rows = adj.shape                  # static python ints

    # ---- initial states (held in vregs/VMEM for all ITERS iterations) --------
    ridx_L = jax.lax.broadcasted_iota(jnp.int32, (L_rows, D), 0)
    L_h = jnp.where(ridx_L < (L_rows // 2),
                    jnp.broadcast_to(lpos_ref[...], (L_rows, D)),
                    jnp.broadcast_to(lneg_ref[...], (L_rows, D)))
    C_h = jnp.broadcast_to(cinit_ref[...], (C_rows, D))
    L_c = jnp.zeros((L_rows, D), jnp.float32)
    C_c = jnp.zeros((C_rows, D), jnp.float32)

    # ---- in-register flip permutation (replaces the host (B, L, L) matrix) ---
    # flipped[i] = L_h[i + half] for i < half, L_h[i - half] for half <= i < n,
    # and 0 for padded rows i >= n (identical to the reference batched_flip).
    row = jax.lax.broadcasted_iota(jnp.int32, (L_rows, L_rows), 0)
    col = jax.lax.broadcasted_iota(jnp.int32, (L_rows, L_rows), 1)
    flip = jnp.where(((row < half) & (col == row + half))
                     | ((row >= half) & (row < n) & (col == row - half)),
                     1.0, 0.0)
    # TODO(synk): for large L replace this one-hot matmul with a dynamic
    # pltpu.roll over the sublane axis (shift = n // 2) plus a validity mask.

    # ---- load small shared weights once --------------------------------------
    lcW = lcW_ref[...]; lcb = lcb_ref[...]
    clW = clW_ref[...]; clb = clb_ref[...]
    c_wih = c_wih_ref[...]; c_whh = c_whh_ref[...]
    c_bias = c_b_ref[...]; c_gamma = c_g_ref[...]; c_beta = c_be_ref[...]
    c_gc = c_gc_ref[...]; c_bc = c_bc_ref[...]
    l_wih = l_wih_ref[...]; l_whh = l_whh_ref[...]
    l_bias = l_b_ref[...]; l_gamma = l_g_ref[...]; l_beta = l_be_ref[...]
    l_gc = l_gc_ref[...]; l_bc = l_bc_ref[...]
    l_wih_cl = l_wih[:D]            # (D, 4D)  — acts on CL messages
    l_wih_fl = l_wih[D:2 * D]       # (D, 4D)  — acts on flipped literals

    # ---- message-passing iterations (small static trip count -> unrolled) ----
    for _ in range(ITERS):
        # LC_messages = A^T @ MLP_LC(L_h)                 -> (C, D)
        lc = jax.lax.dot_general(adj, _mlp(L_h, lcW, lcb),
                                 (((0,), (0,)), ((), ())),
                                 preferred_element_type=jnp.float32)
        pre_c = (jnp.dot(lc, c_wih, preferred_element_type=jnp.float32)
                 + jnp.dot(C_h, c_whh, preferred_element_type=jnp.float32)
                 + c_bias)
        C_h, C_c = _ln_lstm(pre_c, C_c, c_gamma, c_beta, c_gc, c_bc)

        # CL_messages = A @ MLP_CL(C_h)                   -> (L, D)
        cl = jnp.dot(adj, _mlp(C_h, clW, clb), preferred_element_type=jnp.float32)
        flipped = jnp.dot(flip, L_h, preferred_element_type=jnp.float32)
        # L-update input is [CL_messages, flipped]; concat avoided by splitting Wih.
        pre_l = (jnp.dot(cl, l_wih_cl, preferred_element_type=jnp.float32)
                 + jnp.dot(flipped, l_wih_fl, preferred_element_type=jnp.float32)
                 + jnp.dot(L_h, l_whh, preferred_element_type=jnp.float32)
                 + l_bias)
        L_h, L_c = _ln_lstm(pre_l, L_c, l_gamma, l_beta, l_gc, l_bc)

    # ---- readout + DirectRanker epilogue (fused, no extra launch) ------------
    ridx = jax.lax.broadcasted_iota(jnp.int32, (L_rows // 2, D), 0)
    pos_m = (ridx < half).astype(jnp.float32)                     # i <  n//2
    neg_m = ((ridx >= half) & (ridx < n)).astype(jnp.float32)     # n//2 <= i < n
    top = L_h[:L_rows // 2]                                       # (L//2, D)
    w = rankw_ref[...]                                            # (1, D)
    sp = jnp.sum(top * pos_m * w, axis=-1, keepdims=True)         # (L//2, 1)
    sn = jnp.sum(top * neg_m * w, axis=-1, keepdims=True)
    pm1 = pos_m[:, 0:1]
    diff = jnp.tanh(0.5 * (sp - sn)) * pm1
    pv = sp * pm1
    # pack [diff | pos_val] onto the lane axis with a select (no concat needed)
    col2 = jax.lax.broadcasted_iota(jnp.int32, (L_rows // 2, 2), 1)
    out_ref[0] = jnp.where(col2 == 0, diff, pv)


# ----------------------------- host-side wrapper -------------------------------

def neuro_maxsat_forward(adjacency, batch_lit_counts, params):
    B, L, C = adjacency.shape
    counts = jnp.asarray(batch_lit_counts, jnp.int32)

    def wspec(shape):
        nd = len(shape)
        return pl.BlockSpec(tuple(shape), lambda b, cnt, _nd=nd: (0,) * _nd)

    Cp = params["C_update"]
    Lp = params["L_update"]
    args = (adjacency,
            params["L_pos_init"], params["L_neg_init"], params["C_init"],
            params["lc_W"], params["lc_b"], params["cl_W"], params["cl_b"],
            Cp["wih"], Cp["whh"], Cp["bias"], Cp["gamma"], Cp["beta"], Cp["gc"], Cp["bc"],
            Lp["wih"], Lp["whh"], Lp["bias"], Lp["gamma"], Lp["beta"], Lp["gc"], Lp["bc"],
            params["rank_w"])

    in_specs = ([pl.BlockSpec((1, L, C), lambda b, cnt: (b, 0, 0))]
                + [wspec(a.shape) for a in args[1:]])

    out = pl.pallas_call(
        fused_kernel,
        out_shape=jax.ShapeDtypeStruct((B, L // 2, 2), jnp.float32),
        grid_spec=pltpu.PrefetchScalarGridSpec(
            num_scalar_prefetch=1,
            grid=(B,),
            in_specs=in_specs,
            out_specs=pl.BlockSpec((1, L // 2, 2), lambda b, cnt: (b, 0, 0)),
        ),
        compiler_params=pltpu.CompilerParams(dimension_semantics=("parallel",)),
    )(counts, *args)

    lit_diffs = out[:, :, 0:1]
    pos_vals = out[:, :, 1:2]
    return lit_diffs, pos_vals


# ----------------------------- deterministic params ----------------------------

def init_params(key):
    ks = jax.random.split(key, 8)
    s = 1.0 / math.sqrt(D)
    xav = math.sqrt(2.0 / (D + D))

    def lstm_params(k, in_dim):
        # fused-gate layout: columns are [i | f | g | o], each D wide
        k1, k2 = jax.random.split(k)
        return {
            "wih": jax.random.normal(k1, (in_dim, 4 * D), jnp.float32) / math.sqrt(in_dim),
            "whh": jax.random.normal(k2, (D, 4 * D), jnp.float32) / math.sqrt(D),
            "bias": jnp.zeros((1, 4 * D), jnp.float32),
            "gamma": jnp.ones((1, 4 * D), jnp.float32),
            "beta": jnp.zeros((1, 4 * D), jnp.float32),
            "gc": jnp.ones((1, D), jnp.float32),
            "bc": jnp.zeros((1, D), jnp.float32),
        }

    return {
        "L_pos_init": jax.random.normal(ks[0], (1, D), jnp.float32) * s,
        "L_neg_init": jax.random.normal(ks[1], (1, D), jnp.float32) * s,
        "C_init": jax.random.normal(ks[2], (1, D), jnp.float32) * s,
        "lc_W": jax.random.normal(ks[3], (MLP_LAYERS, D, D), jnp.float32) * xav,
        "lc_b": jnp.zeros((MLP_LAYERS, D), jnp.float32),
        "cl_W": jax.random.normal(ks[4], (MLP_LAYERS, D, D), jnp.float32) * xav,
        "cl_b": jnp.zeros((MLP_LAYERS, D), jnp.float32),
        "C_update": lstm_params(ks[5], D),
        "L_update": lstm_params(ks[6], 2 * D),
        "rank_w": jax.random.normal(ks[7], (1, D), jnp.float32) * s,
    }


if __name__ == "__main__":
    key = jax.random.PRNGKey(0)
    pkey, akey = jax.random.split(key)
    params = init_params(pkey)

    B, L, C = 2, 16, 8
    adjacency = jax.random.bernoulli(akey, 0.3, (B, L, C)).astype(jnp.float32)
    # per-instance literal counts (even, max == L), carried as an int32 array and
    # scalar-prefetched into SMEM — no host-side flip matrices / masks needed.
    batch_lit_counts = [16, 12]

    lit_diffs, pos_vals = neuro_maxsat_forward(adjacency, batch_lit_counts, params)
    jax.block_until_ready((lit_diffs, pos_vals))
    assert lit_diffs.shape == (B, L // 2, 1) and pos_vals.shape == (B, L // 2, 1)
    assert bool(jnp.all(jnp.isfinite(lit_diffs))) and bool(jnp.all(jnp.isfinite(pos_vals)))
    print("KERNEL_OK")
</pallas_src>

<mosaic_0001>
module attributes {stable_mosaic.version = 11 : i64} {
  func.func @fused_kernel(%arg0: i32, %arg1: memref<2xi32, #tpu.memory_space<smem>>, %arg2: memref<1x16x8xf32, #tpu.memory_space<vmem>>, %arg3: memref<1x32xf32, #tpu.memory_space<vmem>>, %arg4: memref<1x32xf32, #tpu.memory_space<vmem>>, %arg5: memref<1x32xf32, #tpu.memory_space<vmem>>, %arg6: memref<2x32x32xf32, #tpu.memory_space<vmem>>, %arg7: memref<2x32xf32, #tpu.memory_space<vmem>>, %arg8: memref<2x32x32xf32, #tpu.memory_space<vmem>>, %arg9: memref<2x32xf32, #tpu.memory_space<vmem>>, %arg10: memref<32x128xf32, #tpu.memory_space<vmem>>, %arg11: memref<32x128xf32, #tpu.memory_space<vmem>>, %arg12: memref<1x128xf32, #tpu.memory_space<vmem>>, %arg13: memref<1x128xf32, #tpu.memory_space<vmem>>, %arg14: memref<1x128xf32, #tpu.memory_space<vmem>>, %arg15: memref<1x32xf32, #tpu.memory_space<vmem>>, %arg16: memref<1x32xf32, #tpu.memory_space<vmem>>, %arg17: memref<64x128xf32, #tpu.memory_space<vmem>>, %arg18: memref<32x128xf32, #tpu.memory_space<vmem>>, %arg19: memref<1x128xf32, #tpu.memory_space<vmem>>, %arg20: memref<1x128xf32, #tpu.memory_space<vmem>>, %arg21: memref<1x128xf32, #tpu.memory_space<vmem>>, %arg22: memref<1x32xf32, #tpu.memory_space<vmem>>, %arg23: memref<1x32xf32, #tpu.memory_space<vmem>>, %arg24: memref<1x32xf32, #tpu.memory_space<vmem>>, %arg25: memref<1x8x2xf32, #tpu.memory_space<vmem>>) attributes {dimension_semantics = [#tpu.dimension_semantics<parallel>], iteration_bounds = array<i64: 2>, scalar_prefetch = 1 : i64, scratch_operands = 0 : i64, tpu.core_type = #tpu.core_type<tc>, window_params = [{transform_indices = @transform_0, window_bounds = array<i64: 1, 16, 8>}, {pipeline_mode = #tpu.pipeline_mode<synchronous>, transform_indices = @transform_1, window_bounds = array<i64: 1, 32>}, {pipeline_mode = #tpu.pipeline_mode<synchronous>, transform_indices = @transform_2, window_bounds = array<i64: 1, 32>}, {pipeline_mode = #tpu.pipeline_mode<synchronous>, transform_indices = @transform_3, window_bounds = array<i64: 1, 32>}, {pipeline_mode = #tpu.pipeline_mode<synchronous>, transform_indices = @transform_4, window_bounds = array<i64: 2, 32, 32>}, {pipeline_mode = #tpu.pipeline_mode<synchronous>, transform_indices = @transform_5, window_bounds = array<i64: 2, 32>}, {pipeline_mode = #tpu.pipeline_mode<synchronous>, transform_indices = @transform_6, window_bounds = array<i64: 2, 32, 32>}, {pipeline_mode = #tpu.pipeline_mode<synchronous>, transform_indices = @transform_7, window_bounds = array<i64: 2, 32>}, {pipeline_mode = #tpu.pipeline_mode<synchronous>, transform_indices = @transform_8, window_bounds = array<i64: 32, 128>}, {pipeline_mode = #tpu.pipeline_mode<synchronous>, transform_indices = @transform_9, window_bounds = array<i64: 32, 128>}, {pipeline_mode = #tpu.pipeline_mode<synchronous>, transform_indices = @transform_10, window_bounds = array<i64: 1, 128>}, {pipeline_mode = #tpu.pipeline_mode<synchronous>, transform_indices = @transform_11, window_bounds = array<i64: 1, 128>}, {pipeline_mode = #tpu.pipeline_mode<synchronous>, transform_indices = @transform_12, window_bounds = array<i64: 1, 128>}, {pipeline_mode = #tpu.pipeline_mode<synchronous>, transform_indices = @transform_13, window_bounds = array<i64: 1, 32>}, {pipeline_mode = #tpu.pipeline_mode<synchronous>, transform_indices = @transform_14, window_bounds = array<i64: 1, 32>}, {pipeline_mode = #tpu.pipeline_mode<synchronous>, transform_indices = @transform_15, window_bounds = array<i64: 64, 128>}, {pipeline_mode = #tpu.pipeline_mode<synchronous>, transform_indices = @transform_16, window_bounds = array<i64: 32, 128>}, {pipeline_mode = #tpu.pipeline_mode<synchronous>, transform_indices = @transform_17, window_bounds = array<i64: 1, 128>}, {pipeline_mode = #tpu.pipeline_mode<synchronous>, transform_indices = @transform_18, window_bounds = array<i64: 1, 128>}, {pipeline_mode = #tpu.pipeline_mode<synchronous>, transform_indices = @transform_19, window_bounds = array<i64: 1, 128>}, {pipeline_mode = #tpu.pipeline_mode<synchronous>, transform_indices = @transform_20, window_bounds = array<i64: 1, 32>}, {pipeline_mode = #tpu.pipeline_mode<synchronous>, transform_indices = @transform_21, window_bounds = array<i64: 1, 32>}, {pipeline_mode = #tpu.pipeline_mode<synchronous>, transform_indices = @transform_22, window_bounds = array<i64: 1, 32>}, {transform_indices = @transform_23, window_bounds = array<i64: 1, 8, 2>}]} {
    %0 = arith.index_cast %arg0 : i32 to index
    %1 = memref.load %arg1[%0] : memref<2xi32, #tpu.memory_space<smem>>
    %c2_i32 = arith.constant 2 : i32
    %2 = arith.divsi %1, %c2_i32 : i32
    %c0 = arith.constant 0 : index
    %c0_0 = arith.constant 0 : index
    %c0_1 = arith.constant 0 : index
    %3 = vector.load %arg2[%c0, %c0_0, %c0_1] : memref<1x16x8xf32, #tpu.memory_space<vmem>>, vector<1x16x8xf32>
    %4 = vector.shape_cast %3 : vector<1x16x8xf32> to vector<16x8xf32>
    %5 = tpu.iota {dimensions = array<i32: 0>} : vector<16x32xi32>
    %c8_i32 = arith.constant 8 : i32
    %6 = vector.broadcast %c8_i32 : i32 to vector<16x32xi32>
    %7 = arith.cmpi slt, %5, %6 : vector<16x32xi32>
    %c0_2 = arith.constant 0 : index
    %c0_3 = arith.constant 0 : index
    %8 = vector.load %arg3[%c0_2, %c0_3] : memref<1x32xf32, #tpu.memory_space<vmem>>, vector<1x32xf32>
    %9 = vector.shape_cast %8 : vector<1x32xf32> to vector<1x32xf32>
    %10 = vector.broadcast %9 : vector<1x32xf32> to vector<16x32xf32>
    %c0_4 = arith.constant 0 : index
    %c0_5 = arith.constant 0 : index
    %11 = vector.load %arg4[%c0_4, %c0_5] : memref<1x32xf32, #tpu.memory_space<vmem>>, vector<1x32xf32>
    %12 = vector.shape_cast %11 : vector<1x32xf32> to vector<1x32xf32>
    %13 = vector.broadcast %12 : vector<1x32xf32> to vector<16x32xf32>
    %14 = arith.select %7, %10, %13 : vector<16x32xi1>, vector<16x32xf32>
    %c0_6 = arith.constant 0 : index
    %c0_7 = arith.constant 0 : index
    %15 = vector.load %arg5[%c0_6, %c0_7] : memref<1x32xf32, #tpu.memory_space<vmem>>, vector<1x32xf32>
    %16 = vector.shape_cast %15 : vector<1x32xf32> to vector<1x32xf32>
    %17 = vector.broadcast %16 : vector<1x32xf32> to vector<8x32xf32>
    %cst = arith.constant 0.000000e+00 : f32
    %18 = vector.broadcast %cst : f32 to vector<16x32xf32>
    %cst_8 = arith.constant 0.000000e+00 : f32
    %19 = vector.broadcast %cst_8 : f32 to vector<8x32xf32>
    %20 = tpu.iota {dimensions = array<i32: 0>} : vector<16x16xi32>
    %21 = tpu.iota {dimensions = array<i32: 1>} : vector<16x16xi32>
    %22 = vector.broadcast %2 : i32 to vector<16x16xi32>
    %23 = arith.cmpi slt, %20, %22 : vector<16x16xi32>
    %24 = vector.broadcast %2 : i32 to vector<16x16xi32>
    %25 = arith.addi %20, %24 : vector<16x16xi32>
    %26 = arith.cmpi eq, %21, %25 : vector<16x16xi32>
    %27 = arith.andi %23, %26 : vector<16x16xi1>
    %28 = vector.broadcast %2 : i32 to vector<16x16xi32>
    %29 = arith.cmpi sge, %20, %28 : vector<16x16xi32>
    %30 = vector.broadcast %1 : i32 to vector<16x16xi32>
    %31 = arith.cmpi slt, %20, %30 : vector<16x16xi32>
    %32 = arith.andi %29, %31 : vector<16x16xi1>
    %33 = vector.broadcast %2 : i32 to vector<16x16xi32>
    %34 = arith.subi %20, %33 : vector<16x16xi32>
    %35 = arith.cmpi eq, %21, %34 : vector<16x16xi32>
    %36 = arith.andi %32, %35 : vector<16x16xi1>
    %37 = arith.ori %27, %36 : vector<16x16xi1>
    %cst_9 = arith.constant 1.000000e+00 : f32
    %cst_10 = arith.constant 0.000000e+00 : f32
    %38 = vector.broadcast %cst_9 : f32 to vector<16x16xf32>
    %39 = vector.broadcast %cst_10 : f32 to vector<16x16xf32>
    %40 = arith.select %37, %38, %39 : vector<16x16xi1>, vector<16x16xf32>
    %c0_11 = arith.constant 0 : index
    %c0_12 = arith.constant 0 : index
    %c0_13 = arith.constant 0 : index
    %41 = vector.load %arg6[%c0_11, %c0_12, %c0_13] : memref<2x32x32xf32, #tpu.memory_space<vmem>>, vector<2x32x32xf32>
    %c0_14 = arith.constant 0 : index
    %c0_15 = arith.constant 0 : index
    %42 = vector.load %arg7[%c0_14, %c0_15] : memref<2x32xf32, #tpu.memory_space<vmem>>, vector<2x32xf32>
    %c0_16 = arith.constant 0 : index
    %c0_17 = arith.constant 0 : index
    %c0_18 = arith.constant 0 : index
    %43 = vector.load %arg8[%c0_16, %c0_17, %c0_18] : memref<2x32x32xf32, #tpu.memory_space<vmem>>, vector<2x32x32xf32>
    %c0_19 = arith.constant 0 : index
    %c0_20 = arith.constant 0 : index
    %44 = vector.load %arg9[%c0_19, %c0_20] : memref<2x32xf32, #tpu.memory_space<vmem>>, vector<2x32xf32>
    %c0_21 = arith.constant 0 : index
    %c0_22 = arith.constant 0 : index
    %45 = vector.load %arg10[%c0_21, %c0_22] : memref<32x128xf32, #tpu.memory_space<vmem>>, vector<32x128xf32>
    %c0_23 = arith.constant 0 : index
    %c0_24 = arith.constant 0 : index
    %46 = vector.load %arg11[%c0_23, %c0_24] : memref<32x128xf32, #tpu.memory_space<vmem>>, vector<32x128xf32>
    %c0_25 = arith.constant 0 : index
    %c0_26 = arith.constant 0 : index
    %47 = vector.load %arg12[%c0_25, %c0_26] : memref<1x128xf32, #tpu.memory_space<vmem>>, vector<1x128xf32>
    %c0_27 = arith.constant 0 : index
    %c0_28 = arith.constant 0 : index
    %48 = vector.load %arg13[%c0_27, %c0_28] : memref<1x128xf32, #tpu.memory_space<vmem>>, vector<1x128xf32>
    %c0_29 = arith.constant 0 : index
    %c0_30 = arith.constant 0 : index
    %49 = vector.load %arg14[%c0_29, %c0_30] : memref<1x128xf32, #tpu.memory_space<vmem>>, vector<1x128xf32>
    %c0_31 = arith.constant 0 : index
    %c0_32 = arith.constant 0 : index
    %50 = vector.load %arg15[%c0_31, %c0_32] : memref<1x32xf32, #tpu.memory_space<vmem>>, vector<1x32xf32>
    %c0_33 = arith.constant 0 : index
    %c0_34 = arith.constant 0 : index
    %51 = vector.load %arg16[%c0_33, %c0_34] : memref<1x32xf32, #tpu.memory_space<vmem>>, vector<1x32xf32>
    %c0_35 = arith.constant 0 : index
    %c0_36 = arith.constant 0 : index
    %52 = vector.load %arg17[%c0_35, %c0_36] : memref<64x128xf32, #tpu.memory_space<vmem>>, vector<64x128xf32>
    %c0_37 = arith.constant 0 : index
    %c0_38 = arith.constant 0 : index
    %53 = vector.load %arg18[%c0_37, %c0_38] : memref<32x128xf32, #tpu.memory_space<vmem>>, vector<32x128xf32>
    %c0_39 = arith.constant 0 : index
    %c0_40 = arith.constant 0 : index
    %54 = vector.load %arg19[%c0_39, %c0_40] : memref<1x128xf32, #tpu.memory_space<vmem>>, vector<1x128xf32>
    %c0_41 = arith.constant 0 : index
    %c0_42 = arith.constant 0 : index
    %55 = vector.load %arg20[%c0_41, %c0_42] : memref<1x128xf32, #tpu.memory_space<vmem>>, vector<1x128xf32>
    %c0_43 = arith.constant 0 : index
    %c0_44 = arith.constant 0 : index
    %56 = vector.load %arg21[%c0_43, %c0_44] : memref<1x128xf32, #tpu.memory_space<vmem>>, vector<1x128xf32>
    %c0_45 = arith.constant 0 : index
    %c0_46 = arith.constant 0 : index
    %57 = vector.load %arg22[%c0_45, %c0_46] : memref<1x32xf32, #tpu.memory_space<vmem>>, vector<1x32xf32>
    %c0_47 = arith.constant 0 : index
    %c0_48 = arith.constant 0 : index
    %58 = vector.load %arg23[%c0_47, %c0_48] : memref<1x32xf32, #tpu.memory_space<vmem>>, vector<1x32xf32>
    %59 = vector.extract_strided_slice %52 {offsets = [0, 0], sizes = [32, 128], strides = [1, 1]} : vector<64x128xf32> to vector<32x128xf32>
    %60 = vector.extract_strided_slice %52 {offsets = [32, 0], sizes = [32, 128], strides = [1, 1]} : vector<64x128xf32> to vector<32x128xf32>
    %61 = vector.extract_strided_slice %41 {offsets = [0, 0, 0], sizes = [1, 32, 32], strides = [1, 1, 1]} : vector<2x32x32xf32> to vector<1x32x32xf32>
    %62 = vector.shape_cast %61 : vector<1x32x32xf32> to vector<32x32xf32>
    %cst_49 = arith.constant dense<0.000000e+00> : vector<16x32xf32>
    %63 = tpu.matmul %14, %62, %cst_49 {dimension_numbers = #tpu.dot_dimension_numbers<[1], [0], [0], [1], [0, 0, 1, 1], [], []>} : vector<16x32xf32>, vector<32x32xf32>, vector<16x32xf32> -> vector<16x32xf32>
    %64 = vector.extract_strided_slice %42 {offsets = [0, 0], sizes = [1, 32], strides = [1, 1]} : vector<2x32xf32> to vector<1x32xf32>
    %65 = vector.broadcast %64 : vector<1x32xf32> to vector<16x32xf32>
    %66 = arith.addf %63, %65 : vector<16x32xf32>
    %cst_50 = arith.constant 0.000000e+00 : f32
    %67 = vector.broadcast %cst_50 : f32 to vector<16x32xf32>
    %68 = arith.maximumf %66, %67 : vector<16x32xf32>
    %69 = vector.extract_strided_slice %41 {offsets = [1, 0, 0], sizes = [1, 32, 32], strides = [1, 1, 1]} : vector<2x32x32xf32> to vector<1x32x32xf32>
    %70 = vector.shape_cast %69 : vector<1x32x32xf32> to vector<32x32xf32>
    %cst_51 = arith.constant dense<0.000000e+00> : vector<16x32xf32>
    %71 = tpu.matmul %68, %70, %cst_51 {dimension_numbers = #tpu.dot_dimension_numbers<[1], [0], [0], [1], [0, 0, 1, 1], [], []>} : vector<16x32xf32>, vector<32x32xf32>, vector<16x32xf32> -> vector<16x32xf32>
    %72 = vector.extract_strided_slice %42 {offsets = [1, 0], sizes = [1, 32], strides = [1, 1]} : vector<2x32xf32> to vector<1x32xf32>
    %73 = vector.broadcast %72 : vector<1x32xf32> to vector<16x32xf32>
    %74 = arith.addf %71, %73 : vector<16x32xf32>
    %cst_52 = arith.constant 0.000000e+00 : f32
    %75 = vector.broadcast %cst_52 : f32 to vector<16x32xf32>
    %76 = arith.maximumf %74, %75 : vector<16x32xf32>
    %cst_53 = arith.constant dense<0.000000e+00> : vector<8x32xf32>
    %77 = tpu.matmul %4, %76, %cst_53 {dimension_numbers = #tpu.dot_dimension_numbers<[0], [0], [1], [1], [0, 1, 1, 1], [], []>} : vector<16x8xf32>, vector<16x32xf32>, vector<8x32xf32> -> vector<8x32xf32>
    %cst_54 = arith.constant dense<0.000000e+00> : vector<8x128xf32>
    %78 = tpu.matmul %77, %45, %cst_54 {dimension_numbers = #tpu.dot_dimension_numbers<[1], [0], [0], [1], [0, 0, 1, 1], [], []>} : vector<8x32xf32>, vector<32x128xf32>, vector<8x128xf32> -> vector<8x128xf32>
    %cst_55 = arith.constant dense<0.000000e+00> : vector<8x128xf32>
    %79 = tpu.matmul %17, %46, %cst_55 {dimension_numbers = #tpu.dot_dimension_numbers<[1], [0], [0], [1], [0, 0, 1, 1], [], []>} : vector<8x32xf32>, vector<32x128xf32>, vector<8x128xf32> -> vector<8x128xf32>
    %80 = arith.addf %78, %79 : vector<8x128xf32>
    %81 = vector.broadcast %47 : vector<1x128xf32> to vector<8x128xf32>
    %82 = arith.addf %80, %81 : vector<8x128xf32>
    %83 = vector.extract_strided_slice %82 {offsets = [0, 0], sizes = [8, 32], strides = [1, 1]} : vector<8x128xf32> to vector<8x32xf32>
    %84 = vector.extract_strided_slice %48 {offsets = [0, 0], sizes = [1, 32], strides = [1, 1]} : vector<1x128xf32> to vector<1x32xf32>
    %85 = vector.extract_strided_slice %49 {offsets = [0, 0], sizes = [1, 32], strides = [1, 1]} : vector<1x128xf32> to vector<1x32xf32>
    %cst_56 = arith.constant dense<0.000000e+00> : vector<8xf32>
    %86 = vector.multi_reduction <add>, %83, %cst_56 [1] : vector<8x32xf32> to vector<8xf32>
    %87 = vector.shape_cast %86 : vector<8xf32> to vector<8x1xf32>
    %cst_57 = arith.constant 3.200000e+01 : f32
    %88 = vector.broadcast %cst_57 : f32 to vector<8x1xf32>
    %89 = arith.divf %87, %88 : vector<8x1xf32>
    %90 = vector.broadcast %89 : vector<8x1xf32> to vector<8x32xf32>
    %91 = arith.subf %83, %90 : vector<8x32xf32>
    %92 = arith.mulf %91, %91 : vector<8x32xf32>
    %cst_58 = arith.constant dense<0.000000e+00> : vector<8xf32>
    %93 = vector.multi_reduction <add>, %92, %cst_58 [1] : vector<8x32xf32> to vector<8xf32>
    %94 = vector.shape_cast %93 : vector<8xf32> to vector<8x1xf32>
    %cst_59 = arith.constant 3.200000e+01 : f32
    %95 = vector.broadcast %cst_59 : f32 to vector<8x1xf32>
    %96 = arith.divf %94, %95 : vector<8x1xf32>
    %cst_60 = arith.constant 9.99999974E-6 : f32
    %97 = vector.broadcast %cst_60 : f32 to vector<8x1xf32>
    %98 = arith.addf %96, %97 : vector<8x1xf32>
    %99 = math.rsqrt %98 : vector<8x1xf32>
    %100 = vector.broadcast %99 : vector<8x1xf32> to vector<8x32xf32>
    %101 = arith.mulf %91, %100 : vector<8x32xf32>
    %102 = vector.broadcast %84 : vector<1x32xf32> to vector<8x32xf32>
    %103 = arith.mulf %101, %102 : vector<8x32xf32>
    %104 = vector.broadcast %85 : vector<1x32xf32> to vector<8x32xf32>
    %105 = arith.addf %103, %104 : vector<8x32xf32>
    %106 = vector.extract_strided_slice %82 {offsets = [0, 32], sizes = [8, 32], strides = [1, 1]} : vector<8x128xf32> to vector<8x32xf32>
    %107 = vector.extract_strided_slice %48 {offsets = [0, 32], sizes = [1, 32], strides = [1, 1]} : vector<1x128xf32> to vector<1x32xf32>
    %108 = vector.extract_strided_slice %49 {offsets = [0, 32], sizes = [1, 32], strides = [1, 1]} : vector<1x128xf32> to vector<1x32xf32>
    %cst_61 = arith.constant dense<0.000000e+00> : vector<8xf32>
    %109 = vector.multi_reduction <add>, %106, %cst_61 [1] : vector<8x32xf32> to vector<8xf32>
    %110 = vector.shape_cast %109 : vector<8xf32> to vector<8x1xf32>
    %cst_62 = arith.constant 3.200000e+01 : f32
    %111 = vector.broadcast %cst_62 : f32 to vector<8x1xf32>
    %112 = arith.divf %110, %111 : vector<8x1xf32>
    %113 = vector.broadcast %112 : vector<8x1xf32> to vector<8x32xf32>
    %114 = arith.subf %106, %113 : vector<8x32xf32>
    %115 = arith.mulf %114, %114 : vector<8x32xf32>
    %cst_63 = arith.constant dense<0.000000e+00> : vector<8xf32>
    %116 = vector.multi_reduction <add>, %115, %cst_63 [1] : vector<8x32xf32> to vector<8xf32>
    %117 = vector.shape_cast %116 : vector<8xf32> to vector<8x1xf32>
    %cst_64 = arith.constant 3.200000e+01 : f32
    %118 = vector.broadcast %cst_64 : f32 to vector<8x1xf32>
    %119 = arith.divf %117, %118 : vector<8x1xf32>
    %cst_65 = arith.constant 9.99999974E-6 : f32
    %120 = vector.broadcast %cst_65 : f32 to vector<8x1xf32>
    %121 = arith.addf %119, %120 : vector<8x1xf32>
    %122 = math.rsqrt %121 : vector<8x1xf32>
    %123 = vector.broadcast %122 : vector<8x1xf32> to vector<8x32xf32>
    %124 = arith.mulf %114, %123 : vector<8x32xf32>
    %125 = vector.broadcast %107 : vector<1x32xf32> to vector<8x32xf32>
    %126 = arith.mulf %124, %125 : vector<8x32xf32>
    %127 = vector.broadcast %108 : vector<1x32xf32> to vector<8x32xf32>
    %128 = arith.addf %126, %127 : vector<8x32xf32>
    %129 = vector.extract_strided_slice %82 {offsets = [0, 64], sizes = [8, 32], strides = [1, 1]} : vector<8x128xf32> to vector<8x32xf32>
    %130 = vector.extract_strided_slice %48 {offsets = [0, 64], sizes = [1, 32], strides = [1, 1]} : vector<1x128xf32> to vector<1x32xf32>
    %131 = vector.extract_strided_slice %49 {offsets = [0, 64], sizes = [1, 32], strides = [1, 1]} : vector<1x128xf32> to vector<1x32xf32>
    %cst_66 = arith.constant dense<0.000000e+00> : vector<8xf32>
    %132 = vector.multi_reduction <add>, %129, %cst_66 [1] : vector<8x32xf32> to vector<8xf32>
    %133 = vector.shape_cast %132 : vector<8xf32> to vector<8x1xf32>
    %cst_67 = arith.constant 3.200000e+01 : f32
    %134 = vector.broadcast %cst_67 : f32 to vector<8x1xf32>
    %135 = arith.divf %133, %134 : vector<8x1xf32>
    %136 = vector.broadcast %135 : vector<8x1xf32> to vector<8x32xf32>
    %137 = arith.subf %129, %136 : vector<8x32xf32>
    %138 = arith.mulf %137, %137 : vector<8x32xf32>
    %cst_68 = arith.constant dense<0.000000e+00> : vector<8xf32>
    %139 = vector.multi_reduction <add>, %138, %cst_68 [1] : vector<8x32xf32> to vector<8xf32>
    %140 = vector.shape_cast %139 : vector<8xf32> to vector<8x1xf32>
    %cst_69 = arith.constant 3.200000e+01 : f32
    %141 = vector.broadcast %cst_69 : f32 to vector<8x1xf32>
    %142 = arith.divf %140, %141 : vector<8x1xf32>
    %cst_70 = arith.constant 9.99999974E-6 : f32
    %143 = vector.broadcast %cst_70 : f32 to vector<8x1xf32>
    %144 = arith.addf %142, %143 : vector<8x1xf32>
    %145 = math.rsqrt %144 : vector<8x1xf32>
    %146 = vector.broadcast %145 : vector<8x1xf32> to vector<8x32xf32>
    %147 = arith.mulf %137, %146 : vector<8x32xf32>
    %148 = vector.broadcast %130 : vector<1x32xf32> to vector<8x32xf32>
    %149 = arith.mulf %147, %148 : vector<8x32xf32>
    %150 = vector.broadcast %131 : vector<1x32xf32> to vector<8x32xf32>
    %151 = arith.addf %149, %150 : vector<8x32xf32>
    %152 = vector.extract_strided_slice %82 {offsets = [0, 96], sizes = [8, 32], strides = [1, 1]} : vector<8x128xf32> to vector<8x32xf32>
    %153 = vector.extract_strided_slice %48 {offsets = [0, 96], sizes = [1, 32], strides = [1, 1]} : vector<1x128xf32> to vector<1x32xf32>
    %154 = vector.extract_strided_slice %49 {offsets = [0, 96], sizes = [1, 32], strides = [1, 1]} : vector<1x128xf32> to vector<1x32xf32>
    %cst_71 = arith.constant dense<0.000000e+00> : vector<8xf32>
    %155 = vector.multi_reduction <add>, %152, %cst_71 [1] : vector<8x32xf32> to vector<8xf32>
    %156 = vector.shape_cast %155 : vector<8xf32> to vector<8x1xf32>
    %cst_72 = arith.constant 3.200000e+01 : f32
    %157 = vector.broadcast %cst_72 : f32 to vector<8x1xf32>
    %158 = arith.divf %156, %157 : vector<8x1xf32>
    %159 = vector.broadcast %158 : vector<8x1xf32> to vector<8x32xf32>
    %160 = arith.subf %152, %159 : vector<8x32xf32>
    %161 = arith.mulf %160, %160 : vector<8x32xf32>
    %cst_73 = arith.constant dense<0.000000e+00> : vector<8xf32>
    %162 = vector.multi_reduction <add>, %161, %cst_73 [1] : vector<8x32xf32> to vector<8xf32>
    %163 = vector.shape_cast %162 : vector<8xf32> to vector<8x1xf32>
    %cst_74 = arith.constant 3.200000e+01 : f32
    %164 = vector.broadcast %cst_74 : f32 to vector<8x1xf32>
    %165 = arith.divf %163, %164 : vector<8x1xf32>
    %cst_75 = arith.constant 9.99999974E-6 : f32
    %166 = vector.broadcast %cst_75 : f32 to vector<8x1xf32>
    %167 = arith.addf %165, %166 : vector<8x1xf32>
    %168 = math.rsqrt %167 : vector<8x1xf32>
    %169 = vector.broadcast %168 : vector<8x1xf32> to vector<8x32xf32>
    %170 = arith.mulf %160, %169 : vector<8x32xf32>
    %171 = vector.broadcast %153 : vector<1x32xf32> to vector<8x32xf32>
    %172 = arith.mulf %170, %171 : vector<8x32xf32>
    %173 = vector.broadcast %154 : vector<1x32xf32> to vector<8x32xf32>
    %174 = arith.addf %172, %173 : vector<8x32xf32>
    %175 = arith.negf %105 : vector<8x32xf32>
    %176 = math.exp %175 : vector<8x32xf32>
    %cst_76 = arith.constant 1.000000e+00 : f32
    %177 = vector.broadcast %cst_76 : f32 to vector<8x32xf32>
    %178 = arith.addf %177, %176 : vector<8x32xf32>
    %179 = arith.divf %177, %178 : vector<8x32xf32>
    %cst_77 = arith.constant 1.000000e+00 : f32
    %180 = vector.broadcast %cst_77 : f32 to vector<8x32xf32>
    %181 = arith.addf %128, %180 : vector<8x32xf32>
    %182 = arith.negf %181 : vector<8x32xf32>
    %183 = math.exp %182 : vector<8x32xf32>
    %cst_78 = arith.constant 1.000000e+00 : f32
    %184 = vector.broadcast %cst_78 : f32 to vector<8x32xf32>
    %185 = arith.addf %184, %183 : vector<8x32xf32>
    %186 = arith.divf %184, %185 : vector<8x32xf32>
    %187 = math.tanh %151 : vector<8x32xf32>
    %188 = arith.negf %174 : vector<8x32xf32>
    %189 = math.exp %188 : vector<8x32xf32>
    %cst_79 = arith.constant 1.000000e+00 : f32
    %190 = vector.broadcast %cst_79 : f32 to vector<8x32xf32>
    %191 = arith.addf %190, %189 : vector<8x32xf32>
    %192 = arith.divf %190, %191 : vector<8x32xf32>
    %193 = arith.mulf %186, %19 : vector<8x32xf32>
    %194 = arith.mulf %179, %187 : vector<8x32xf32>
    %195 = arith.addf %193, %194 : vector<8x32xf32>
    %cst_80 = arith.constant dense<0.000000e+00> : vector<8xf32>
    %196 = vector.multi_reduction <add>, %195, %cst_80 [1] : vector<8x32xf32> to vector<8xf32>
    %197 = vector.shape_cast %196 : vector<8xf32> to vector<8x1xf32>
    %cst_81 = arith.constant 3.200000e+01 : f32
    %198 = vector.broadcast %cst_81 : f32 to vector<8x1xf32>
    %199 = arith.divf %197, %198 : vector<8x1xf32>
    %200 = vector.broadcast %199 : vector<8x1xf32> to vector<8x32xf32>
    %201 = arith.subf %195, %200 : vector<8x32xf32>
    %202 = arith.mulf %201, %201 : vector<8x32xf32>
    %cst_82 = arith.constant dense<0.000000e+00> : vector<8xf32>
    %203 = vector.multi_reduction <add>, %202, %cst_82 [1] : vector<8x32xf32> to vector<8xf32>
    %204 = vector.shape_cast %203 : vector<8xf32> to vector<8x1xf32>
    %cst_83 = arith.constant 3.200000e+01 : f32
    %205 = vector.broadcast %cst_83 : f32 to vector<8x1xf32>
    %206 = arith.divf %204, %205 : vector<8x1xf32>
    %cst_84 = arith.constant 9.99999974E-6 : f32
    %207 = vector.broadcast %cst_84 : f32 to vector<8x1xf32>
    %208 = arith.addf %206, %207 : vector<8x1xf32>
    %209 = math.rsqrt %208 : vector<8x1xf32>
    %210 = vector.broadcast %209 : vector<8x1xf32> to vector<8x32xf32>
    %211 = arith.mulf %201, %210 : vector<8x32xf32>
    %212 = vector.broadcast %50 : vector<1x32xf32> to vector<8x32xf32>
    %213 = arith.mulf %211, %212 : vector<8x32xf32>
    %214 = vector.broadcast %51 : vector<1x32xf32> to vector<8x32xf32>
    %215 = arith.addf %213, %214 : vector<8x32xf32>
    %216 = math.tanh %215 : vector<8x32xf32>
    %217 = arith.mulf %192, %216 : vector<8x32xf32>
    %218 = vector.extract_strided_slice %43 {offsets = [0, 0, 0], sizes = [1, 32, 32], strides = [1, 1, 1]} : vector<2x32x32xf32> to vector<1x32x32xf32>
    %219 = vector.shape_cast %218 : vector<1x32x32xf32> to vector<32x32xf32>
    %cst_85 = arith.constant dense<0.000000e+00> : vector<8x32xf32>
    %220 = tpu.matmul %217, %219, %cst_85 {dimension_numbers = #tpu.dot_dimension_numbers<[1], [0], [0], [1], [0, 0, 1, 1], [], []>} : vector<8x32xf32>, vector<32x32xf32>, vector<8x32xf32> -> vector<8x32xf32>
    %221 = vector.extract_strided_slice %44 {offsets = [0, 0], sizes = [1, 32], strides = [1, 1]} : vector<2x32xf32> to vector<1x32xf32>
    %222 = vector.broadcast %221 : vector<1x32xf32> to vector<8x32xf32>
    %223 = arith.addf %220, %222 : vector<8x32xf32>
    %cst_86 = arith.constant 0.000000e+00 : f32
    %224 = vector.broadcast %cst_86 : f32 to vector<8x32xf32>
    %225 = arith.maximumf %223, %224 : vector<8x32xf32>
    %226 = vector.extract_strided_slice %43 {offsets = [1, 0, 0], sizes = [1, 32, 32], strides = [1, 1, 1]} : vector<2x32x32xf32> to vector<1x32x32xf32>
    %227 = vector.shape_cast %226 : vector<1x32x32xf32> to vector<32x32xf32>
    %cst_87 = arith.constant dense<0.000000e+00> : vector<8x32xf32>
    %228 = tpu.matmul %225, %227, %cst_87 {dimension_numbers = #tpu.dot_dimension_numbers<[1], [0], [0], [1], [0, 0, 1, 1], [], []>} : vector<8x32xf32>, vector<32x32xf32>, vector<8x32xf32> -> vector<8x32xf32>
    %229 = vector.extract_strided_slice %44 {offsets = [1, 0], sizes = [1, 32], strides = [1, 1]} : vector<2x32xf32> to vector<1x32xf32>
    %230 = vector.broadcast %229 : vector<1x32xf32> to vector<8x32xf32>
    %231 = arith.addf %228, %230 : vector<8x32xf32>
    %cst_88 = arith.constant 0.000000e+00 : f32
    %232 = vector.broadcast %cst_88 : f32 to vector<8x32xf32>
    %233 = arith.maximumf %231, %232 : vector<8x32xf32>
    %cst_89 = arith.constant dense<0.000000e+00> : vector<16x32xf32>
    %234 = tpu.matmul %4, %233, %cst_89 {dimension_numbers = #tpu.dot_dimension_numbers<[1], [0], [0], [1], [0, 0, 1, 1], [], []>} : vector<16x8xf32>, vector<8x32xf32>, vector<16x32xf32> -> vector<16x32xf32>
    %cst_90 = arith.constant dense<0.000000e+00> : vector<16x32xf32>
    %235 = tpu.matmul %40, %14, %cst_90 {dimension_numbers = #tpu.dot_dimension_numbers<[1], [0], [0], [1], [0, 0, 1, 1], [], []>} : vector<16x16xf32>, vector<16x32xf32>, vector<16x32xf32> -> vector<16x32xf32>
    %cst_91 = arith.constant dense<0.000000e+00> : vector<16x128xf32>
    %236 = tpu.matmul %234, %59, %cst_91 {dimension_numbers = #tpu.dot_dimension_numbers<[1], [0], [0], [1], [0, 0, 1, 1], [], []>} : vector<16x32xf32>, vector<32x128xf32>, vector<16x128xf32> -> vector<16x128xf32>
    %cst_92 = arith.constant dense<0.000000e+00> : vector<16x128xf32>
    %237 = tpu.matmul %235, %60, %cst_92 {dimension_numbers = #tpu.dot_dimension_numbers<[1], [0], [0], [1], [0, 0, 1, 1], [], []>} : vector<16x32xf32>, vector<32x128xf32>, vector<16x128xf32> -> vector<16x128xf32>
    %238 = arith.addf %236, %237 : vector<16x128xf32>
    %cst_93 = arith.constant dense<0.000000e+00> : vector<16x128xf32>
    %239 = tpu.matmul %14, %53, %cst_93 {dimension_numbers = #tpu.dot_dimension_numbers<[1], [0], [0], [1], [0, 0, 1, 1], [], []>} : vector<16x32xf32>, vector<32x128xf32>, vector<16x128xf32> -> vector<16x128xf32>
    %240 = arith.addf %238, %239 : vector<16x128xf32>
    %241 = vector.broadcast %54 : vector<1x128xf32> to vector<16x128xf32>
    %242 = arith.addf %240, %241 : vector<16x128xf32>
    %243 = vector.extract_strided_slice %242 {offsets = [0, 0], sizes = [16, 32], strides = [1, 1]} : vector<16x128xf32> to vector<16x32xf32>
    %244 = vector.extract_strided_slice %55 {offsets = [0, 0], sizes = [1, 32], strides = [1, 1]} : vector<1x128xf32> to vector<1x32xf32>
    %245 = vector.extract_strided_slice %56 {offsets = [0, 0], sizes = [1, 32], strides = [1, 1]} : vector<1x128xf32> to vector<1x32xf32>
    %cst_94 = arith.constant dense<0.000000e+00> : vector<16xf32>
    %246 = vector.multi_reduction <add>, %243, %cst_94 [1] : vector<16x32xf32> to vector<16xf32>
    %247 = vector.shape_cast %246 : vector<16xf32> to vector<16x1xf32>
    %cst_95 = arith.constant 3.200000e+01 : f32
    %248 = vector.broadcast %cst_95 : f32 to vector<16x1xf32>
    %249 = arith.divf %247, %248 : vector<16x1xf32>
    %250 = vector.broadcast %249 : vector<16x1xf32> to vector<16x32xf32>
    %251 = arith.subf %243, %250 : vector<16x32xf32>
    %252 = arith.mulf %251, %251 : vector<16x32xf32>
    %cst_96 = arith.constant dense<0.000000e+00> : vector<16xf32>
    %253 = vector.multi_reduction <add>, %252, %cst_96 [1] : vector<16x32xf32> to vector<16xf32>
    %254 = vector.shape_cast %253 : vector<16xf32> to vector<16x1xf32>
    %cst_97 = arith.constant 3.200000e+01 : f32
    %255 = vector.broadcast %cst_97 : f32 to vector<16x1xf32>
    %256 = arith.divf %254, %255 : vector<16x1xf32>
    %cst_98 = arith.constant 9.99999974E-6 : f32
    %257 = vector.broadcast %cst_98 : f32 to vector<16x1xf32>
    %258 = arith.addf %256, %257 : vector<16x1xf32>
    %259 = math.rsqrt %258 : vector<16x1xf32>
    %260 = vector.broadcast %259 : vector<16x1xf32> to vector<16x32xf32>
    %261 = arith.mulf %251, %260 : vector<16x32xf32>
    %262 = vector.broadcast %244 : vector<1x32xf32> to vector<16x32xf32>
    %263 = arith.mulf %261, %262 : vector<16x32xf32>
    %264 = vector.broadcast %245 : vector<1x32xf32> to vector<16x32xf32>
    %265 = arith.addf %263, %264 : vector<16x32xf32>
    %266 = vector.extract_strided_slice %242 {offsets = [0, 32], sizes = [16, 32], strides = [1, 1]} : vector<16x128xf32> to vector<16x32xf32>
    %267 = vector.extract_strided_slice %55 {offsets = [0, 32], sizes = [1, 32], strides = [1, 1]} : vector<1x128xf32> to vector<1x32xf32>
    %268 = vector.extract_strided_slice %56 {offsets = [0, 32], sizes = [1, 32], strides = [1, 1]} : vector<1x128xf32> to vector<1x32xf32>
    %cst_99 = arith.constant dense<0.000000e+00> : vector<16xf32>
    %269 = vector.multi_reduction <add>, %266, %cst_99 [1] : vector<16x32xf32> to vector<16xf32>
    %270 = vector.shape_cast %269 : vector<16xf32> to vector<16x1xf32>
    %cst_100 = arith.constant 3.200000e+01 : f32
    %271 = vector.broadcast %cst_100 : f32 to vector<16x1xf32>
    %272 = arith.divf %270, %271 : vector<16x1xf32>
    %273 = vector.broadcast %272 : vector<16x1xf32> to vector<16x32xf32>
    %274 = arith.subf %266, %273 : vector<16x32xf32>
    %275 = arith.mulf %274, %274 : vector<16x32xf32>
    %cst_101 = arith.constant dense<0.000000e+00> : vector<16xf32>
    %276 = vector.multi_reduction <add>, %275, %cst_101 [1] : vector<16x32xf32> to vector<16xf32>
    %277 = vector.shape_cast %276 : vector<16xf32> to vector<16x1xf32>
    %cst_102 = arith.constant 3.200000e+01 : f32
    %278 = vector.broadcast %cst_102 : f32 to vector<16x1xf32>
    %279 = arith.divf %277, %278 : vector<16x1xf32>
    %cst_103 = arith.constant 9.99999974E-6 : f32
    %280 = vector.broadcast %cst_103 : f32 to vector<16x1xf32>
    %281 = arith.addf %279, %280 : vector<16x1xf32>
    %282 = math.rsqrt %281 : vector<16x1xf32>
    %283 = vector.broadcast %282 : vector<16x1xf32> to vector<16x32xf32>
    %284 = arith.mulf %274, %283 : vector<16x32xf32>
    %285 = vector.broadcast %267 : vector<1x32xf32> to vector<16x32xf32>
    %286 = arith.mulf %284, %285 : vector<16x32xf32>
    %287 = vector.broadcast %268 : vector<1x32xf32> to vector<16x32xf32>
    %288 = arith.addf %286, %287 : vector<16x32xf32>
    %289 = vector.extract_strided_slice %242 {offsets = [0, 64], sizes = [16, 32], strides = [1, 1]} : vector<16x128xf32> to vector<16x32xf32>
    %290 = vector.extract_strided_slice %55 {offsets = [0, 64], sizes = [1, 32], strides = [1, 1]} : vector<1x128xf32> to vector<1x32xf32>
    %291 = vector.extract_strided_slice %56 {offsets = [0, 64], sizes = [1, 32], strides = [1, 1]} : vector<1x128xf32> to vector<1x32xf32>
    %cst_104 = arith.constant dense<0.000000e+00> : vector<16xf32>
    %292 = vector.multi_reduction <add>, %289, %cst_104 [1] : vector<16x32xf32> to vector<16xf32>
    %293 = vector.shape_cast %292 : vector<16xf32> to vector<16x1xf32>
    %cst_105 = arith.constant 3.200000e+01 : f32
    %294 = vector.broadcast %cst_105 : f32 to vector<16x1xf32>
    %295 = arith.divf %293, %294 : vector<16x1xf32>
    %296 = vector.broadcast %295 : vector<16x1xf32> to vector<16x32xf32>
    %297 = arith.subf %289, %296 : vector<16x32xf32>
    %298 = arith.mulf %297, %297 : vector<16x32xf32>
    %cst_106 = arith.constant dense<0.000000e+00> : vector<16xf32>
    %299 = vector.multi_reduction <add>, %298, %cst_106 [1] : vector<16x32xf32> to vector<16xf32>
    %300 = vector.shape_cast %299 : vector<16xf32> to vector<16x1xf32>
    %cst_107 = arith.constant 3.200000e+01 : f32
    %301 = vector.broadcast %cst_107 : f32 to vector<16x1xf32>
    %302 = arith.divf %300, %301 : vector<16x1xf32>
    %cst_108 = arith.constant 9.99999974E-6 : f32
    %303 = vector.broadcast %cst_108 : f32 to vector<16x1xf32>
    %304 = arith.addf %302, %303 : vector<16x1xf32>
    %305 = math.rsqrt %304 : vector<16x1xf32>
    %306 = vector.broadcast %305 : vector<16x1xf32> to vector<16x32xf32>
    %307 = arith.mulf %297, %306 : vector<16x32xf32>
    %308 = vector.broadcast %290 : vector<1x32xf32> to vector<16x32xf32>
    %309 = arith.mulf %307, %308 : vector<16x32xf32>
    %310 = vector.broadcast %291 : vector<1x32xf32> to vector<16x32xf32>
    %311 = arith.addf %309, %310 : vector<16x32xf32>
    %312 = vector.extract_strided_slice %242 {offsets = [0, 96], sizes = [16, 32], strides = [1, 1]} : vector<16x128xf32> to vector<16x32xf32>
    %313 = vector.extract_strided_slice %55 {offsets = [0, 96], sizes = [1, 32], strides = [1, 1]} : vector<1x128xf32> to vector<1x32xf32>
    %314 = vector.extract_strided_slice %56 {offsets = [0, 96], sizes = [1, 32], strides = [1, 1]} : vector<1x128xf32> to vector<1x32xf32>
    %cst_109 = arith.constant dense<0.000000e+00> : vector<16xf32>
    %315 = vector.multi_reduction <add>, %312, %cst_109 [1] : vector<16x32xf32> to vector<16xf32>
    %316 = vector.shape_cast %315 : vector<16xf32> to vector<16x1xf32>
    %cst_110 = arith.constant 3.200000e+01 : f32
    %317 = vector.broadcast %cst_110 : f32 to vector<16x1xf32>
    %318 = arith.divf %316, %317 : vector<16x1xf32>
    %319 = vector.broadcast %318 : vector<16x1xf32> to vector<16x32xf32>
    %320 = arith.subf %312, %319 : vector<16x32xf32>
    %321 = arith.mulf %320, %320 : vector<16x32xf32>
    %cst_111 = arith.constant dense<0.000000e+00> : vector<16xf32>
    %322 = vector.multi_reduction <add>, %321, %cst_111 [1] : vector<16x32xf32> to vector<16xf32>
    %323 = vector.shape_cast %322 : vector<16xf32> to vector<16x1xf32>
    %cst_112 = arith.constant 3.200000e+01 : f32
    %324 = vector.broadcast %cst_112 : f32 to vector<16x1xf32>
    %325 = arith.divf %323, %324 : vector<16x1xf32>
    %cst_113 = arith.constant 9.99999974E-6 : f32
    %326 = vector.broadcast %cst_113 : f32 to vector<16x1xf32>
    %327 = arith.addf %325, %326 : vector<16x1xf32>
    %328 = math.rsqrt %327 : vector<16x1xf32>
    %329 = vector.broadcast %328 : vector<16x1xf32> to vector<16x32xf32>
    %330 = arith.mulf %320, %329 : vector<16x32xf32>
    %331 = vector.broadcast %313 : vector<1x32xf32> to vector<16x32xf32>
    %332 = arith.mulf %330, %331 : vector<16x32xf32>
    %333 = vector.broadcast %314 : vector<1x32xf32> to vector<16x32xf32>
    %334 = arith.addf %332, %333 : vector<16x32xf32>
    %335 = arith.negf %265 : vector<16x32xf32>
    %336 = math.exp %335 : vector<16x32xf32>
    %cst_114 = arith.constant 1.000000e+00 : f32
    %337 = vector.broadcast %cst_114 : f32 to vector<16x32xf32>
    %338 = arith.addf %337, %336 : vector<16x32xf32>
    %339 = arith.divf %337, %338 : vector<16x32xf32>
    %cst_115 = arith.constant 1.000000e+00 : f32
    %340 = vector.broadcast %cst_115 : f32 to vector<16x32xf32>
    %341 = arith.addf %288, %340 : vector<16x32xf32>
    %342 = arith.negf %341 : vector<16x32xf32>
    %343 = math.exp %342 : vector<16x32xf32>
    %cst_116 = arith.constant 1.000000e+00 : f32
    %344 = vector.broadcast %cst_116 : f32 to vector<16x32xf32>
    %345 = arith.addf %344, %343 : vector<16x32xf32>
    %346 = arith.divf %344, %345 : vector<16x32xf32>
    %347 = math.tanh %311 : vector<16x32xf32>
    %348 = arith.negf %334 : vector<16x32xf32>
    %349 = math.exp %348 : vector<16x32xf32>
    %cst_117 = arith.constant 1.000000e+00 : f32
    %350 = vector.broadcast %cst_117 : f32 to vector<16x32xf32>
    %351 = arith.addf %350, %349 : vector<16x32xf32>
    %352 = arith.divf %350, %351 : vector<16x32xf32>
    %353 = arith.mulf %346, %18 : vector<16x32xf32>
    %354 = arith.mulf %339, %347 : vector<16x32xf32>
    %355 = arith.addf %353, %354 : vector<16x32xf32>
    %cst_118 = arith.constant dense<0.000000e+00> : vector<16xf32>
    %356 = vector.multi_reduction <add>, %355, %cst_118 [1] : vector<16x32xf32> to vector<16xf32>
    %357 = vector.shape_cast %356 : vector<16xf32> to vector<16x1xf32>
    %cst_119 = arith.constant 3.200000e+01 : f32
    %358 = vector.broadcast %cst_119 : f32 to vector<16x1xf32>
    %359 = arith.divf %357, %358 : vector<16x1xf32>
    %360 = vector.broadcast %359 : vector<16x1xf32> to vector<16x32xf32>
    %361 = arith.subf %355, %360 : vector<16x32xf32>
    %362 = arith.mulf %361, %361 : vector<16x32xf32>
    %cst_120 = arith.constant dense<0.000000e+00> : vector<16xf32>
    %363 = vector.multi_reduction <add>, %362, %cst_120 [1] : vector<16x32xf32> to vector<16xf32>
    %364 = vector.shape_cast %363 : vector<16xf32> to vector<16x1xf32>
    %cst_121 = arith.constant 3.200000e+01 : f32
    %365 = vector.broadcast %cst_121 : f32 to vector<16x1xf32>
    %366 = arith.divf %364, %365 : vector<16x1xf32>
    %cst_122 = arith.constant 9.99999974E-6 : f32
    %367 = vector.broadcast %cst_122 : f32 to vector<16x1xf32>
    %368 = arith.addf %366, %367 : vector<16x1xf32>
    %369 = math.rsqrt %368 : vector<16x1xf32>
    %370 = vector.broadcast %369 : vector<16x1xf32> to vector<16x32xf32>
    %371 = arith.mulf %361, %370 : vector<16x32xf32>
    %372 = vector.broadcast %57 : vector<1x32xf32> to vector<16x32xf32>
    %373 = arith.mulf %371, %372 : vector<16x32xf32>
    %374 = vector.broadcast %58 : vector<1x32xf32> to vector<16x32xf32>
    %375 = arith.addf %373, %374 : vector<16x32xf32>
    %376 = math.tanh %375 : vector<16x32xf32>
    %377 = arith.mulf %352, %376 : vector<16x32xf32>
    %378 = vector.extract_strided_slice %41 {offsets = [0, 0, 0], sizes = [1, 32, 32], strides = [1, 1, 1]} : vector<2x32x32xf32> to vector<1x32x32xf32>
    %379 = vector.shape_cast %378 : vector<1x32x32xf32> to vector<32x32xf32>
    %cst_123 = arith.constant dense<0.000000e+00> : vector<16x32xf32>
    %380 = tpu.matmul %377, %379, %cst_123 {dimension_numbers = #tpu.dot_dimension_numbers<[1], [0], [0], [1], [0, 0, 1, 1], [], []>} : vector<16x32xf32>, vector<32x32xf32>, vector<16x32xf32> -> vector<16x32xf32>
    %381 = vector.extract_strided_slice %42 {offsets = [0, 0], sizes = [1, 32], strides = [1, 1]} : vector<2x32xf32> to vector<1x32xf32>
    %382 = vector.broadcast %381 : vector<1x32xf32> to vector<16x32xf32>
    %383 = arith.addf %380, %382 : vector<16x32xf32>
    %cst_124 = arith.constant 0.000000e+00 : f32
    %384 = vector.broadcast %cst_124 : f32 to vector<16x32xf32>
    %385 = arith.maximumf %383, %384 : vector<16x32xf32>
    %386 = vector.extract_strided_slice %41 {offsets = [1, 0, 0], sizes = [1, 32, 32], strides = [1, 1, 1]} : vector<2x32x32xf32> to vector<1x32x32xf32>
    %387 = vector.shape_cast %386 : vector<1x32x32xf32> to vector<32x32xf32>
    %cst_125 = arith.constant dense<0.000000e+00> : vector<16x32xf32>
    %388 = tpu.matmul %385, %387, %cst_125 {dimension_numbers = #tpu.dot_dimension_numbers<[1], [0], [0], [1], [0, 0, 1, 1], [], []>} : vector<16x32xf32>, vector<32x32xf32>, vector<16x32xf32> -> vector<16x32xf32>
    %389 = vector.extract_strided_slice %42 {offsets = [1, 0], sizes = [1, 32], strides = [1, 1]} : vector<2x32xf32> to vector<1x32xf32>
    %390 = vector.broadcast %389 : vector<1x32xf32> to vector<16x32xf32>
    %391 = arith.addf %388, %390 : vector<16x32xf32>
    %cst_126 = arith.constant 0.000000e+00 : f32
    %392 = vector.broadcast %cst_126 : f32 to vector<16x32xf32>
    %393 = arith.maximumf %391, %392 : vector<16x32xf32>
    %cst_127 = arith.constant dense<0.000000e+00> : vector<8x32xf32>
    %394 = tpu.matmul %4, %393, %cst_127 {dimension_numbers = #tpu.dot_dimension_numbers<[0], [0], [1], [1], [0, 1, 1, 1], [], []>} : vector<16x8xf32>, vector<16x32xf32>, vector<8x32xf32> -> vector<8x32xf32>
    %cst_128 = arith.constant dense<0.000000e+00> : vector<8x128xf32>
    %395 = tpu.matmul %394, %45, %cst_128 {dimension_numbers = #tpu.dot_dimension_numbers<[1], [0], [0], [1], [0, 0, 1, 1], [], []>} : vector<8x32xf32>, vector<32x128xf32>, vector<8x128xf32> -> vector<8x128xf32>
    %cst_129 = arith.constant dense<0.000000e+00> : vector<8x128xf32>
    %396 = tpu.matmul %217, %46, %cst_129 {dimension_numbers = #tpu.dot_dimension_numbers<[1], [0], [0], [1], [0, 0, 1, 1], [], []>} : vector<8x32xf32>, vector<32x128xf32>, vector<8x128xf32> -> vector<8x128xf32>
    %397 = arith.addf %395, %396 : vector<8x128xf32>
    %398 = vector.broadcast %47 : vector<1x128xf32> to vector<8x128xf32>
    %399 = arith.addf %397, %398 : vector<8x128xf32>
    %400 = vector.extract_strided_slice %399 {offsets = [0, 0], sizes = [8, 32], strides = [1, 1]} : vector<8x128xf32> to vector<8x32xf32>
    %401 = vector.extract_strided_slice %48 {offsets = [0, 0], sizes = [1, 32], strides = [1, 1]} : vector<1x128xf32> to vector<1x32xf32>
    %402 = vector.extract_strided_slice %49 {offsets = [0, 0], sizes = [1, 32], strides = [1, 1]} : vector<1x128xf32> to vector<1x32xf32>
    %cst_130 = arith.constant dense<0.000000e+00> : vector<8xf32>
    %403 = vector.multi_reduction <add>, %400, %cst_130 [1] : vector<8x32xf32> to vector<8xf32>
    %404 = vector.shape_cast %403 : vector<8xf32> to vector<8x1xf32>
    %cst_131 = arith.constant 3.200000e+01 : f32
    %405 = vector.broadcast %cst_131 : f32 to vector<8x1xf32>
    %406 = arith.divf %404, %405 : vector<8x1xf32>
    %407 = vector.broadcast %406 : vector<8x1xf32> to vector<8x32xf32>
    %408 = arith.subf %400, %407 : vector<8x32xf32>
    %409 = arith.mulf %408, %408 : vector<8x32xf32>
    %cst_132 = arith.constant dense<0.000000e+00> : vector<8xf32>
    %410 = vector.multi_reduction <add>, %409, %cst_132 [1] : vector<8x32xf32> to vector<8xf32>
    %411 = vector.shape_cast %410 : vector<8xf32> to vector<8x1xf32>
    %cst_133 = arith.constant 3.200000e+01 : f32
    %412 = vector.broadcast %cst_133 : f32 to vector<8x1xf32>
    %413 = arith.divf %411, %412 : vector<8x1xf32>
    %cst_134 = arith.constant 9.99999974E-6 : f32
    %414 = vector.broadcast %cst_134 : f32 to vector<8x1xf32>
    %415 = arith.addf %413, %414 : vector<8x1xf32>
    %416 = math.rsqrt %415 : vector<8x1xf32>
    %417 = vector.broadcast %416 : vector<8x1xf32> to vector<8x32xf32>
    %418 = arith.mulf %408, %417 : vector<8x32xf32>
    %419 = vector.broadcast %401 : vector<1x32xf32> to vector<8x32xf32>
    %420 = arith.mulf %418, %419 : vector<8x32xf32>
    %421 = vector.broadcast %402 : vector<1x32xf32> to vector<8x32xf32>
    %422 = arith.addf %420, %421 : vector<8x32xf32>
    %423 = vector.extract_strided_slice %399 {offsets = [0, 32], sizes = [8, 32], strides = [1, 1]} : vector<8x128xf32> to vector<8x32xf32>
    %424 = vector.extract_strided_slice %48 {offsets = [0, 32], sizes = [1, 32], strides = [1, 1]} : vector<1x128xf32> to vector<1x32xf32>
    %425 = vector.extract_strided_slice %49 {offsets = [0, 32], sizes = [1, 32], strides = [1, 1]} : vector<1x128xf32> to vector<1x32xf32>
    %cst_135 = arith.constant dense<0.000000e+00> : vector<8xf32>
    %426 = vector.multi_reduction <add>, %423, %cst_135 [1] : vector<8x32xf32> to vector<8xf32>
    %427 = vector.shape_cast %426 : vector<8xf32> to vector<8x1xf32>
    %cst_136 = arith.constant 3.200000e+01 : f32
    %428 = vector.broadcast %cst_136 : f32 to vector<8x1xf32>
    %429 = arith.divf %427, %428 : vector<8x1xf32>
    %430 = vector.broadcast %429 : vector<8x1xf32> to vector<8x32xf32>
    %431 = arith.subf %423, %430 : vector<8x32xf32>
    %432 = arith.mulf %431, %431 : vector<8x32xf32>
    %cst_137 = arith.constant dense<0.000000e+00> : vector<8xf32>
    %433 = vector.multi_reduction <add>, %432, %cst_137 [1] : vector<8x32xf32> to vector<8xf32>
    %434 = vector.shape_cast %433 : vector<8xf32> to vector<8x1xf32>
    %cst_138 = arith.constant 3.200000e+01 : f32
    %435 = vector.broadcast %cst_138 : f32 to vector<8x1xf32>
    %436 = arith.divf %434, %435 : vector<8x1xf32>
    %cst_139 = arith.constant 9.99999974E-6 : f32
    %437 = vector.broadcast %cst_139 : f32 to vector<8x1xf32>
    %438 = arith.addf %436, %437 : vector<8x1xf32>
    %439 = math.rsqrt %438 : vector<8x1xf32>
    %440 = vector.broadcast %439 : vector<8x1xf32> to vector<8x32xf32>
    %441 = arith.mulf %431, %440 : vector<8x32xf32>
    %442 = vector.broadcast %424 : vector<1x32xf32> to vector<8x32xf32>
    %443 = arith.mulf %441, %442 : vector<8x32xf32>
    %444 = vector.broadcast %425 : vector<1x32xf32> to vector<8x32xf32>
    %445 = arith.addf %443, %444 : vector<8x32xf32>
    %446 = vector.extract_strided_slice %399 {offsets = [0, 64], sizes = [8, 32], strides = [1, 1]} : vector<8x128xf32> to vector<8x32xf32>
    %447 = vector.extract_strided_slice %48 {offsets = [0, 64], sizes = [1, 32], strides = [1, 1]} : vector<1x128xf32> to vector<1x32xf32>
    %448 = vector.extract_strided_slice %49 {offsets = [0, 64], sizes = [1, 32], strides = [1, 1]} : vector<1x128xf32> to vector<1x32xf32>
    %cst_140 = arith.constant dense<0.000000e+00> : vector<8xf32>
    %449 = vector.multi_reduction <add>, %446, %cst_140 [1] : vector<8x32xf32> to vector<8xf32>
    %450 = vector.shape_cast %449 : vector<8xf32> to vector<8x1xf32>
    %cst_141 = arith.constant 3.200000e+01 : f32
    %451 = vector.broadcast %cst_141 : f32 to vector<8x1xf32>
    %452 = arith.divf %450, %451 : vector<8x1xf32>
    %453 = vector.broadcast %452 : vector<8x1xf32> to vector<8x32xf32>
    %454 = arith.subf %446, %453 : vector<8x32xf32>
    %455 = arith.mulf %454, %454 : vector<8x32xf32>
    %cst_142 = arith.constant dense<0.000000e+00> : vector<8xf32>
    %456 = vector.multi_reduction <add>, %455, %cst_142 [1] : vector<8x32xf32> to vector<8xf32>
    %457 = vector.shape_cast %456 : vector<8xf32> to vector<8x1xf32>
    %cst_143 = arith.constant 3.200000e+01 : f32
    %458 = vector.broadcast %cst_143 : f32 to vector<8x1xf32>
    %459 = arith.divf %457, %458 : vector<8x1xf32>
    %cst_144 = arith.constant 9.99999974E-6 : f32
    %460 = vector.broadcast %cst_144 : f32 to vector<8x1xf32>
    %461 = arith.addf %459, %460 : vector<8x1xf32>
    %462 = math.rsqrt %461 : vector<8x1xf32>
    %463 = vector.broadcast %462 : vector<8x1xf32> to vector<8x32xf32>
    %464 = arith.mulf %454, %463 : vector<8x32xf32>
    %465 = vector.broadcast %447 : vector<1x32xf32> to vector<8x32xf32>
    %466 = arith.mulf %464, %465 : vector<8x32xf32>
    %467 = vector.broadcast %448 : vector<1x32xf32> to vector<8x32xf32>
    %468 = arith.addf %466, %467 : vector<8x32xf32>
    %469 = vector.extract_strided_slice %399 {offsets = [0, 96], sizes = [8, 32], strides = [1, 1]} : vector<8x128xf32> to vector<8x32xf32>
    %470 = vector.extract_strided_slice %48 {offsets = [0, 96], sizes = [1, 32], strides = [1, 1]} : vector<1x128xf32> to vector<1x32xf32>
    %471 = vector.extract_strided_slice %49 {offsets = [0, 96], sizes = [1, 32], strides = [1, 1]} : vector<1x128xf32> to vector<1x32xf32>
    %cst_145 = arith.constant dense<0.000000e+00> : vector<8xf32>
    %472 = vector.multi_reduction <add>, %469, %cst_145 [1] : vector<8x32xf32> to vector<8xf32>
    %473 = vector.shape_cast %472 : vector<8xf32> to vector<8x1xf32>
    %cst_146 = arith.constant 3.200000e+01 : f32
    %474 = vector.broadcast %cst_146 : f32 to vector<8x1xf32>
    %475 = arith.divf %473, %474 : vector<8x1xf32>
    %476 = vector.broadcast %475 : vector<8x1xf32> to vector<8x32xf32>
    %477 = arith.subf %469, %476 : vector<8x32xf32>
    %478 = arith.mulf %477, %477 : vector<8x32xf32>
    %cst_147 = arith.constant dense<0.000000e+00> : vector<8xf32>
    %479 = vector.multi_reduction <add>, %478, %cst_147 [1] : vector<8x32xf32> to vector<8xf32>
    %480 = vector.shape_cast %479 : vector<8xf32> to vector<8x1xf32>
    %cst_148 = arith.constant 3.200000e+01 : f32
    %481 = vector.broadcast %cst_148 : f32 to vector<8x1xf32>
    %482 = arith.divf %480, %481 : vector<8x1xf32>
    %cst_149 = arith.constant 9.99999974E-6 : f32
    %483 = vector.broadcast %cst_149 : f32 to vector<8x1xf32>
    %484 = arith.addf %482, %483 : vector<8x1xf32>
    %485 = math.rsqrt %484 : vector<8x1xf32>
    %486 = vector.broadcast %485 : vector<8x1xf32> to vector<8x32xf32>
    %487 = arith.mulf %477, %486 : vector<8x32xf32>
    %488 = vector.broadcast %470 : vector<1x32xf32> to vector<8x32xf32>
    %489 = arith.mulf %487, %488 : vector<8x32xf32>
    %490 = vector.broadcast %471 : vector<1x32xf32> to vector<8x32xf32>
    %491 = arith.addf %489, %490 : vector<8x32xf32>
    %492 = arith.negf %422 : vector<8x32xf32>
    %493 = math.exp %492 : vector<8x32xf32>
    %cst_150 = arith.constant 1.000000e+00 : f32
    %494 = vector.broadcast %cst_150 : f32 to vector<8x32xf32>
    %495 = arith.addf %494, %493 : vector<8x32xf32>
    %496 = arith.divf %494, %495 : vector<8x32xf32>
    %cst_151 = arith.constant 1.000000e+00 : f32
    %497 = vector.broadcast %cst_151 : f32 to vector<8x32xf32>
    %498 = arith.addf %445, %497 : vector<8x32xf32>
    %499 = arith.negf %498 : vector<8x32xf32>
    %500 = math.exp %499 : vector<8x32xf32>
    %cst_152 = arith.constant 1.000000e+00 : f32
    %501 = vector.broadcast %cst_152 : f32 to vector<8x32xf32>
    %502 = arith.addf %501, %500 : vector<8x32xf32>
    %503 = arith.divf %501, %502 : vector<8x32xf32>
    %504 = math.tanh %468 : vector<8x32xf32>
    %505 = arith.negf %491 : vector<8x32xf32>
    %506 = math.exp %505 : vector<8x32xf32>
    %cst_153 = arith.constant 1.000000e+00 : f32
    %507 = vector.broadcast %cst_153 : f32 to vector<8x32xf32>
    %508 = arith.addf %507, %506 : vector<8x32xf32>
    %509 = arith.divf %507, %508 : vector<8x32xf32>
    %510 = arith.mulf %503, %195 : vector<8x32xf32>
    %511 = arith.mulf %496, %504 : vector<8x32xf32>
    %512 = arith.addf %510, %511 : vector<8x32xf32>
    %cst_154 = arith.constant dense<0.000000e+00> : vector<8xf32>
    %513 = vector.multi_reduction <add>, %512, %cst_154 [1] : vector<8x32xf32> to vector<8xf32>
    %514 = vector.shape_cast %513 : vector<8xf32> to vector<8x1xf32>
    %cst_155 = arith.constant 3.200000e+01 : f32
    %515 = vector.broadcast %cst_155 : f32 to vector<8x1xf32>
    %516 = arith.divf %514, %515 : vector<8x1xf32>
    %517 = vector.broadcast %516 : vector<8x1xf32> to vector<8x32xf32>
    %518 = arith.subf %512, %517 : vector<8x32xf32>
    %519 = arith.mulf %518, %518 : vector<8x32xf32>
    %cst_156 = arith.constant dense<0.000000e+00> : vector<8xf32>
    %520 = vector.multi_reduction <add>, %519, %cst_156 [1] : vector<8x32xf32> to vector<8xf32>
    %521 = vector.shape_cast %520 : vector<8xf32> to vector<8x1xf32>
    %cst_157 = arith.constant 3.200000e+01 : f32
    %522 = vector.broadcast %cst_157 : f32 to vector<8x1xf32>
    %523 = arith.divf %521, %522 : vector<8x1xf32>
    %cst_158 = arith.constant 9.99999974E-6 : f32
    %524 = vector.broadcast %cst_158 : f32 to vector<8x1xf32>
    %525 = arith.addf %523, %524 : vector<8x1xf32>
    %526 = math.rsqrt %525 : vector<8x1xf32>
    %527 = vector.broadcast %526 : vector<8x1xf32> to vector<8x32xf32>
    %528 = arith.mulf %518, %527 : vector<8x32xf32>
    %529 = vector.broadcast %50 : vector<1x32xf32> to vector<8x32xf32>
    %530 = arith.mulf %528, %529 : vector<8x32xf32>
    %531 = vector.broadcast %51 : vector<1x32xf32> to vector<8x32xf32>
    %532 = arith.addf %530, %531 : vector<8x32xf32>
    %533 = math.tanh %532 : vector<8x32xf32>
    %534 = arith.mulf %509, %533 : vector<8x32xf32>
    %535 = vector.extract_strided_slice %43 {offsets = [0, 0, 0], sizes = [1, 32, 32], strides = [1, 1, 1]} : vector<2x32x32xf32> to vector<1x32x32xf32>
    %536 = vector.shape_cast %535 : vector<1x32x32xf32> to vector<32x32xf32>
    %cst_159 = arith.constant dense<0.000000e+00> : vector<8x32xf32>
    %537 = tpu.matmul %534, %536, %cst_159 {dimension_numbers = #tpu.dot_dimension_numbers<[1], [0], [0], [1], [0, 0, 1, 1], [], []>} : vector<8x32xf32>, vector<32x32xf32>, vector<8x32xf32> -> vector<8x32xf32>
    %538 = vector.extract_strided_slice %44 {offsets = [0, 0], sizes = [1, 32], strides = [1, 1]} : vector<2x32xf32> to vector<1x32xf32>
    %539 = vector.broadcast %538 : vector<1x32xf32> to vector<8x32xf32>
    %540 = arith.addf %537, %539 : vector<8x32xf32>
    %cst_160 = arith.constant 0.000000e+00 : f32
    %541 = vector.broadcast %cst_160 : f32 to vector<8x32xf32>
    %542 = arith.maximumf %540, %541 : vector<8x32xf32>
    %543 = vector.extract_strided_slice %43 {offsets = [1, 0, 0], sizes = [1, 32, 32], strides = [1, 1, 1]} : vector<2x32x32xf32> to vector<1x32x32xf32>
    %544 = vector.shape_cast %543 : vector<1x32x32xf32> to vector<32x32xf32>
    %cst_161 = arith.constant dense<0.000000e+00> : vector<8x32xf32>
    %545 = tpu.matmul %542, %544, %cst_161 {dimension_numbers = #tpu.dot_dimension_numbers<[1], [0], [0], [1], [0, 0, 1, 1], [], []>} : vector<8x32xf32>, vector<32x32xf32>, vector<8x32xf32> -> vector<8x32xf32>
    %546 = vector.extract_strided_slice %44 {offsets = [1, 0], sizes = [1, 32], strides = [1, 1]} : vector<2x32xf32> to vector<1x32xf32>
    %547 = vector.broadcast %546 : vector<1x32xf32> to vector<8x32xf32>
    %548 = arith.addf %545, %547 : vector<8x32xf32>
    %cst_162 = arith.constant 0.000000e+00 : f32
    %549 = vector.broadcast %cst_162 : f32 to vector<8x32xf32>
    %550 = arith.maximumf %548, %549 : vector<8x32xf32>
    %cst_163 = arith.constant dense<0.000000e+00> : vector<16x32xf32>
    %551 = tpu.matmul %4, %550, %cst_163 {dimension_numbers = #tpu.dot_dimension_numbers<[1], [0], [0], [1], [0, 0, 1, 1], [], []>} : vector<16x8xf32>, vector<8x32xf32>, vector<16x32xf32> -> vector<16x32xf32>
    %cst_164 = arith.constant dense<0.000000e+00> : vector<16x32xf32>
    %552 = tpu.matmul %40, %377, %cst_164 {dimension_numbers = #tpu.dot_dimension_numbers<[1], [0], [0], [1], [0, 0, 1, 1], [], []>} : vector<16x16xf32>, vector<16x32xf32>, vector<16x32xf32> -> vector<16x32xf32>
    %cst_165 = arith.constant dense<0.000000e+00> : vector<16x128xf32>
    %553 = tpu.matmul %551, %59, %cst_165 {dimension_numbers = #tpu.dot_dimension_numbers<[1], [0], [0], [1], [0, 0, 1, 1], [], []>} : vector<16x32xf32>, vector<32x128xf32>, vector<16x128xf32> -> vector<16x128xf32>
    %cst_166 = arith.constant dense<0.000000e+00> : vector<16x128xf32>
    %554 = tpu.matmul %552, %60, %cst_166 {dimension_numbers = #tpu.dot_dimension_numbers<[1], [0], [0], [1], [0, 0, 1, 1], [], []>} : vector<16x32xf32>, vector<32x128xf32>, vector<16x128xf32> -> vector<16x128xf32>
    %555 = arith.addf %553, %554 : vector<16x128xf32>
    %cst_167 = arith.constant dense<0.000000e+00> : vector<16x128xf32>
    %556 = tpu.matmul %377, %53, %cst_167 {dimension_numbers = #tpu.dot_dimension_numbers<[1], [0], [0], [1], [0, 0, 1, 1], [], []>} : vector<16x32xf32>, vector<32x128xf32>, vector<16x128xf32> -> vector<16x128xf32>
    %557 = arith.addf %555, %556 : vector<16x128xf32>
    %558 = vector.broadcast %54 : vector<1x128xf32> to vector<16x128xf32>
    %559 = arith.addf %557, %558 : vector<16x128xf32>
    %560 = vector.extract_strided_slice %559 {offsets = [0, 0], sizes = [16, 32], strides = [1, 1]} : vector<16x128xf32> to vector<16x32xf32>
    %561 = vector.extract_strided_slice %55 {offsets = [0, 0], sizes = [1, 32], strides = [1, 1]} : vector<1x128xf32> to vector<1x32xf32>
    %562 = vector.extract_strided_slice %56 {offsets = [0, 0], sizes = [1, 32], strides = [1, 1]} : vector<1x128xf32> to vector<1x32xf32>
    %cst_168 = arith.constant dense<0.000000e+00> : vector<16xf32>
    %563 = vector.multi_reduction <add>, %560, %cst_168 [1] : vector<16x32xf32> to vector<16xf32>
    %564 = vector.shape_cast %563 : vector<16xf32> to vector<16x1xf32>
    %cst_169 = arith.constant 3.200000e+01 : f32
    %565 = vector.broadcast %cst_169 : f32 to vector<16x1xf32>
    %566 = arith.divf %564, %565 : vector<16x1xf32>
    %567 = vector.broadcast %566 : vector<16x1xf32> to vector<16x32xf32>
    %568 = arith.subf %560, %567 : vector<16x32xf32>
    %569 = arith.mulf %568, %568 : vector<16x32xf32>
    %cst_170 = arith.constant dense<0.000000e+00> : vector<16xf32>
    %570 = vector.multi_reduction <add>, %569, %cst_170 [1] : vector<16x32xf32> to vector<16xf32>
    %571 = vector.shape_cast %570 : vector<16xf32> to vector<16x1xf32>
    %cst_171 = arith.constant 3.200000e+01 : f32
    %572 = vector.broadcast %cst_171 : f32 to vector<16x1xf32>
    %573 = arith.divf %571, %572 : vector<16x1xf32>
    %cst_172 = arith.constant 9.99999974E-6 : f32
    %574 = vector.broadcast %cst_172 : f32 to vector<16x1xf32>
    %575 = arith.addf %573, %574 : vector<16x1xf32>
    %576 = math.rsqrt %575 : vector<16x1xf32>
    %577 = vector.broadcast %576 : vector<16x1xf32> to vector<16x32xf32>
    %578 = arith.mulf %568, %577 : vector<16x32xf32>
    %579 = vector.broadcast %561 : vector<1x32xf32> to vector<16x32xf32>
    %580 = arith.mulf %578, %579 : vector<16x32xf32>
    %581 = vector.broadcast %562 : vector<1x32xf32> to vector<16x32xf32>
    %582 = arith.addf %580, %581 : vector<16x32xf32>
    %583 = vector.extract_strided_slice %559 {offsets = [0, 32], sizes = [16, 32], strides = [1, 1]} : vector<16x128xf32> to vector<16x32xf32>
    %584 = vector.extract_strided_slice %55 {offsets = [0, 32], sizes = [1, 32], strides = [1, 1]} : vector<1x128xf32> to vector<1x32xf32>
    %585 = vector.extract_strided_slice %56 {offsets = [0, 32], sizes = [1, 32], strides = [1, 1]} : vector<1x128xf32> to vector<1x32xf32>
    %cst_173 = arith.constant dense<0.000000e+00> : vector<16xf32>
    %586 = vector.multi_reduction <add>, %583, %cst_173 [1] : vector<16x32xf32> to vector<16xf32>
    %587 = vector.shape_cast %586 : vector<16xf32> to vector<16x1xf32>
    %cst_174 = arith.constant 3.200000e+01 : f32
    %588 = vector.broadcast %cst_174 : f32 to vector<16x1xf32>
    %589 = arith.divf %587, %588 : vector<16x1xf32>
    %590 = vector.broadcast %589 : vector<16x1xf32> to vector<16x32xf32>
    %591 = arith.subf %583, %590 : vector<16x32xf32>
    %592 = arith.mulf %591, %591 : vector<16x32xf32>
    %cst_175 = arith.constant dense<0.000000e+00> : vector<16xf32>
    %593 = vector.multi_reduction <add>, %592, %cst_175 [1] : vector<16x32xf32> to vector<16xf32>
    %594 = vector.shape_cast %593 : vector<16xf32> to vector<16x1xf32>
    %cst_176 = arith.constant 3.200000e+01 : f32
    %595 = vector.broadcast %cst_176 : f32 to vector<16x1xf32>
    %596 = arith.divf %594, %595 : vector<16x1xf32>
    %cst_177 = arith.constant 9.99999974E-6 : f32
    %597 = vector.broadcast %cst_177 : f32 to vector<16x1xf32>
    %598 = arith.addf %596, %597 : vector<16x1xf32>
    %599 = math.rsqrt %598 : vector<16x1xf32>
    %600 = vector.broadcast %599 : vector<16x1xf32> to vector<16x32xf32>
    %601 = arith.mulf %591, %600 : vector<16x32xf32>
    %602 = vector.broadcast %584 : vector<1x32xf32> to vector<16x32xf32>
    %603 = arith.mulf %601, %602 : vector<16x32xf32>
    %604 = vector.broadcast %585 : vector<1x32xf32> to vector<16x32xf32>
    %605 = arith.addf %603, %604 : vector<16x32xf32>
    %606 = vector.extract_strided_slice %559 {offsets = [0, 64], sizes = [16, 32], strides = [1, 1]} : vector<16x128xf32> to vector<16x32xf32>
    %607 = vector.extract_strided_slice %55 {offsets = [0, 64], sizes = [1, 32], strides = [1, 1]} : vector<1x128xf32> to vector<1x32xf32>
    %608 = vector.extract_strided_slice %56 {offsets = [0, 64], sizes = [1, 32], strides = [1, 1]} : vector<1x128xf32> to vector<1x32xf32>
    %cst_178 = arith.constant dense<0.000000e+00> : vector<16xf32>
    %609 = vector.multi_reduction <add>, %606, %cst_178 [1] : vector<16x32xf32> to vector<16xf32>
    %610 = vector.shape_cast %609 : vector<16xf32> to vector<16x1xf32>
    %cst_179 = arith.constant 3.200000e+01 : f32
    %611 = vector.broadcast %cst_179 : f32 to vector<16x1xf32>
    %612 = arith.divf %610, %611 : vector<16x1xf32>
    %613 = vector.broadcast %612 : vector<16x1xf32> to vector<16x32xf32>
    %614 = arith.subf %606, %613 : vector<16x32xf32>
    %615 = arith.mulf %614, %614 : vector<16x32xf32>
    %cst_180 = arith.constant dense<0.000000e+00> : vector<16xf32>
    %616 = vector.multi_reduction <add>, %615, %cst_180 [1] : vector<16x32xf32> to vector<16xf32>
    %617 = vector.shape_cast %616 : vector<16xf32> to vector<16x1xf32>
    %cst_181 = arith.constant 3.200000e+01 : f32
    %618 = vector.broadcast %cst_181 : f32 to vector<16x1xf32>
    %619 = arith.divf %617, %618 : vector<16x1xf32>
    %cst_182 = arith.constant 9.99999974E-6 : f32
    %620 = vector.broadcast %cst_182 : f32 to vector<16x1xf32>
    %621 = arith.addf %619, %620 : vector<16x1xf32>
    %622 = math.rsqrt %621 : vector<16x1xf32>
    %623 = vector.broadcast %622 : vector<16x1xf32> to vector<16x32xf32>
    %624 = arith.mulf %614, %623 : vector<16x32xf32>
    %625 = vector.broadcast %607 : vector<1x32xf32> to vector<16x32xf32>
    %626 = arith.mulf %624, %625 : vector<16x32xf32>
    %627 = vector.broadcast %608 : vector<1x32xf32> to vector<16x32xf32>
    %628 = arith.addf %626, %627 : vector<16x32xf32>
    %629 = vector.extract_strided_slice %559 {offsets = [0, 96], sizes = [16, 32], strides = [1, 1]} : vector<16x128xf32> to vector<16x32xf32>
    %630 = vector.extract_strided_slice %55 {offsets = [0, 96], sizes = [1, 32], strides = [1, 1]} : vector<1x128xf32> to vector<1x32xf32>
    %631 = vector.extract_strided_slice %56 {offsets = [0, 96], sizes = [1, 32], strides = [1, 1]} : vector<1x128xf32> to vector<1x32xf32>
    %cst_183 = arith.constant dense<0.000000e+00> : vector<16xf32>
    %632 = vector.multi_reduction <add>, %629, %cst_183 [1] : vector<16x32xf32> to vector<16xf32>
    %633 = vector.shape_cast %632 : vector<16xf32> to vector<16x1xf32>
    %cst_184 = arith.constant 3.200000e+01 : f32
    %634 = vector.broadcast %cst_184 : f32 to vector<16x1xf32>
    %635 = arith.divf %633, %634 : vector<16x1xf32>
    %636 = vector.broadcast %635 : vector<16x1xf32> to vector<16x32xf32>
    %637 = arith.subf %629, %636 : vector<16x32xf32>
    %638 = arith.mulf %637, %637 : vector<16x32xf32>
    %cst_185 = arith.constant dense<0.000000e+00> : vector<16xf32>
    %639 = vector.multi_reduction <add>, %638, %cst_185 [1] : vector<16x32xf32> to vector<16xf32>
    %640 = vector.shape_cast %639 : vector<16xf32> to vector<16x1xf32>
    %cst_186 = arith.constant 3.200000e+01 : f32
    %641 = vector.broadcast %cst_186 : f32 to vector<16x1xf32>
    %642 = arith.divf %640, %641 : vector<16x1xf32>
    %cst_187 = arith.constant 9.99999974E-6 : f32
    %643 = vector.broadcast %cst_187 : f32 to vector<16x1xf32>
    %644 = arith.addf %642, %643 : vector<16x1xf32>
    %645 = math.rsqrt %644 : vector<16x1xf32>
    %646 = vector.broadcast %645 : vector<16x1xf32> to vector<16x32xf32>
    %647 = arith.mulf %637, %646 : vector<16x32xf32>
    %648 = vector.broadcast %630 : vector<1x32xf32> to vector<16x32xf32>
    %649 = arith.mulf %647, %648 : vector<16x32xf32>
    %650 = vector.broadcast %631 : vector<1x32xf32> to vector<16x32xf32>
    %651 = arith.addf %649, %650 : vector<16x32xf32>
    %652 = arith.negf %582 : vector<16x32xf32>
    %653 = math.exp %652 : vector<16x32xf32>
    %cst_188 = arith.constant 1.000000e+00 : f32
    %654 = vector.broadcast %cst_188 : f32 to vector<16x32xf32>
    %655 = arith.addf %654, %653 : vector<16x32xf32>
    %656 = arith.divf %654, %655 : vector<16x32xf32>
    %cst_189 = arith.constant 1.000000e+00 : f32
    %657 = vector.broadcast %cst_189 : f32 to vector<16x32xf32>
    %658 = arith.addf %605, %657 : vector<16x32xf32>
    %659 = arith.negf %658 : vector<16x32xf32>
    %660 = math.exp %659 : vector<16x32xf32>
    %cst_190 = arith.constant 1.000000e+00 : f32
    %661 = vector.broadcast %cst_190 : f32 to vector<16x32xf32>
    %662 = arith.addf %661, %660 : vector<16x32xf32>
    %663 = arith.divf %661, %662 : vector<16x32xf32>
    %664 = math.tanh %628 : vector<16x32xf32>
    %665 = arith.negf %651 : vector<16x32xf32>
    %666 = math.exp %665 : vector<16x32xf32>
    %cst_191 = arith.constant 1.000000e+00 : f32
    %667 = vector.broadcast %cst_191 : f32 to vector<16x32xf32>
    %668 = arith.addf %667, %666 : vector<16x32xf32>
    %669 = arith.divf %667, %668 : vector<16x32xf32>
    %670 = arith.mulf %663, %355 : vector<16x32xf32>
    %671 = arith.mulf %656, %664 : vector<16x32xf32>
    %672 = arith.addf %670, %671 : vector<16x32xf32>
    %cst_192 = arith.constant dense<0.000000e+00> : vector<16xf32>
    %673 = vector.multi_reduction <add>, %672, %cst_192 [1] : vector<16x32xf32> to vector<16xf32>
    %674 = vector.shape_cast %673 : vector<16xf32> to vector<16x1xf32>
    %cst_193 = arith.constant 3.200000e+01 : f32
    %675 = vector.broadcast %cst_193 : f32 to vector<16x1xf32>
    %676 = arith.divf %674, %675 : vector<16x1xf32>
    %677 = vector.broadcast %676 : vector<16x1xf32> to vector<16x32xf32>
    %678 = arith.subf %672, %677 : vector<16x32xf32>
    %679 = arith.mulf %678, %678 : vector<16x32xf32>
    %cst_194 = arith.constant dense<0.000000e+00> : vector<16xf32>
    %680 = vector.multi_reduction <add>, %679, %cst_194 [1] : vector<16x32xf32> to vector<16xf32>
    %681 = vector.shape_cast %680 : vector<16xf32> to vector<16x1xf32>
    %cst_195 = arith.constant 3.200000e+01 : f32
    %682 = vector.broadcast %cst_195 : f32 to vector<16x1xf32>
    %683 = arith.divf %681, %682 : vector<16x1xf32>
    %cst_196 = arith.constant 9.99999974E-6 : f32
    %684 = vector.broadcast %cst_196 : f32 to vector<16x1xf32>
    %685 = arith.addf %683, %684 : vector<16x1xf32>
    %686 = math.rsqrt %685 : vector<16x1xf32>
    %687 = vector.broadcast %686 : vector<16x1xf32> to vector<16x32xf32>
    %688 = arith.mulf %678, %687 : vector<16x32xf32>
    %689 = vector.broadcast %57 : vector<1x32xf32> to vector<16x32xf32>
    %690 = arith.mulf %688, %689 : vector<16x32xf32>
    %691 = vector.broadcast %58 : vector<1x32xf32> to vector<16x32xf32>
    %692 = arith.addf %690, %691 : vector<16x32xf32>
    %693 = math.tanh %692 : vector<16x32xf32>
    %694 = arith.mulf %669, %693 : vector<16x32xf32>
    %695 = vector.extract_strided_slice %41 {offsets = [0, 0, 0], sizes = [1, 32, 32], strides = [1, 1, 1]} : vector<2x32x32xf32> to vector<1x32x32xf32>
    %696 = vector.shape_cast %695 : vector<1x32x32xf32> to vector<32x32xf32>
    %cst_197 = arith.constant dense<0.000000e+00> : vector<16x32xf32>
    %697 = tpu.matmul %694, %696, %cst_197 {dimension_numbers = #tpu.dot_dimension_numbers<[1], [0], [0], [1], [0, 0, 1, 1], [], []>} : vector<16x32xf32>, vector<32x32xf32>, vector<16x32xf32> -> vector<16x32xf32>
    %698 = vector.extract_strided_slice %42 {offsets = [0, 0], sizes = [1, 32], strides = [1, 1]} : vector<2x32xf32> to vector<1x32xf32>
    %699 = vector.broadcast %698 : vector<1x32xf32> to vector<16x32xf32>
    %700 = arith.addf %697, %699 : vector<16x32xf32>
    %cst_198 = arith.constant 0.000000e+00 : f32
    %701 = vector.broadcast %cst_198 : f32 to vector<16x32xf32>
    %702 = arith.maximumf %700, %701 : vector<16x32xf32>
    %703 = vector.extract_strided_slice %41 {offsets = [1, 0, 0], sizes = [1, 32, 32], strides = [1, 1, 1]} : vector<2x32x32xf32> to vector<1x32x32xf32>
    %704 = vector.shape_cast %703 : vector<1x32x32xf32> to vector<32x32xf32>
    %cst_199 = arith.constant dense<0.000000e+00> : vector<16x32xf32>
    %705 = tpu.matmul %702, %704, %cst_199 {dimension_numbers = #tpu.dot_dimension_numbers<[1], [0], [0], [1], [0, 0, 1, 1], [], []>} : vector<16x32xf32>, vector<32x32xf32>, vector<16x32xf32> -> vector<16x32xf32>
    %706 = vector.extract_strided_slice %42 {offsets = [1, 0], sizes = [1, 32], strides = [1, 1]} : vector<2x32xf32> to vector<1x32xf32>
    %707 = vector.broadcast %706 : vector<1x32xf32> to vector<16x32xf32>
    %708 = arith.addf %705, %707 : vector<16x32xf32>
    %cst_200 = arith.constant 0.000000e+00 : f32
    %709 = vector.broadcast %cst_200 : f32 to vector<16x32xf32>
    %710 = arith.maximumf %708, %709 : vector<16x32xf32>
    %cst_201 = arith.constant dense<0.000000e+00> : vector<8x32xf32>
    %711 = tpu.matmul %4, %710, %cst_201 {dimension_numbers = #tpu.dot_dimension_numbers<[0], [0], [1], [1], [0, 1, 1, 1], [], []>} : vector<16x8xf32>, vector<16x32xf32>, vector<8x32xf32> -> vector<8x32xf32>
    %cst_202 = arith.constant dense<0.000000e+00> : vector<8x128xf32>
    %712 = tpu.matmul %711, %45, %cst_202 {dimension_numbers = #tpu.dot_dimension_numbers<[1], [0], [0], [1], [0, 0, 1, 1], [], []>} : vector<8x32xf32>, vector<32x128xf32>, vector<8x128xf32> -> vector<8x128xf32>
    %cst_203 = arith.constant dense<0.000000e+00> : vector<8x128xf32>
    %713 = tpu.matmul %534, %46, %cst_203 {dimension_numbers = #tpu.dot_dimension_numbers<[1], [0], [0], [1], [0, 0, 1, 1], [], []>} : vector<8x32xf32>, vector<32x128xf32>, vector<8x128xf32> -> vector<8x128xf32>
    %714 = arith.addf %712, %713 : vector<8x128xf32>
    %715 = vector.broadcast %47 : vector<1x128xf32> to vector<8x128xf32>
    %716 = arith.addf %714, %715 : vector<8x128xf32>
    %717 = vector.extract_strided_slice %716 {offsets = [0, 0], sizes = [8, 32], strides = [1, 1]} : vector<8x128xf32> to vector<8x32xf32>
    %718 = vector.extract_strided_slice %48 {offsets = [0, 0], sizes = [1, 32], strides = [1, 1]} : vector<1x128xf32> to vector<1x32xf32>
    %719 = vector.extract_strided_slice %49 {offsets = [0, 0], sizes = [1, 32], strides = [1, 1]} : vector<1x128xf32> to vector<1x32xf32>
    %cst_204 = arith.constant dense<0.000000e+00> : vector<8xf32>
    %720 = vector.multi_reduction <add>, %717, %cst_204 [1] : vector<8x32xf32> to vector<8xf32>
    %721 = vector.shape_cast %720 : vector<8xf32> to vector<8x1xf32>
    %cst_205 = arith.constant 3.200000e+01 : f32
    %722 = vector.broadcast %cst_205 : f32 to vector<8x1xf32>
    %723 = arith.divf %721, %722 : vector<8x1xf32>
    %724 = vector.broadcast %723 : vector<8x1xf32> to vector<8x32xf32>
    %725 = arith.subf %717, %724 : vector<8x32xf32>
    %726 = arith.mulf %725, %725 : vector<8x32xf32>
    %cst_206 = arith.constant dense<0.000000e+00> : vector<8xf32>
    %727 = vector.multi_reduction <add>, %726, %cst_206 [1] : vector<8x32xf32> to vector<8xf32>
    %728 = vector.shape_cast %727 : vector<8xf32> to vector<8x1xf32>
    %cst_207 = arith.constant 3.200000e+01 : f32
    %729 = vector.broadcast %cst_207 : f32 to vector<8x1xf32>
    %730 = arith.divf %728, %729 : vector<8x1xf32>
    %cst_208 = arith.constant 9.99999974E-6 : f32
    %731 = vector.broadcast %cst_208 : f32 to vector<8x1xf32>
    %732 = arith.addf %730, %731 : vector<8x1xf32>
    %733 = math.rsqrt %732 : vector<8x1xf32>
    %734 = vector.broadcast %733 : vector<8x1xf32> to vector<8x32xf32>
    %735 = arith.mulf %725, %734 : vector<8x32xf32>
    %736 = vector.broadcast %718 : vector<1x32xf32> to vector<8x32xf32>
    %737 = arith.mulf %735, %736 : vector<8x32xf32>
    %738 = vector.broadcast %719 : vector<1x32xf32> to vector<8x32xf32>
    %739 = arith.addf %737, %738 : vector<8x32xf32>
    %740 = vector.extract_strided_slice %716 {offsets = [0, 32], sizes = [8, 32], strides = [1, 1]} : vector<8x128xf32> to vector<8x32xf32>
    %741 = vector.extract_strided_slice %48 {offsets = [0, 32], sizes = [1, 32], strides = [1, 1]} : vector<1x128xf32> to vector<1x32xf32>
    %742 = vector.extract_strided_slice %49 {offsets = [0, 32], sizes = [1, 32], strides = [1, 1]} : vector<1x128xf32> to vector<1x32xf32>
    %cst_209 = arith.constant dense<0.000000e+00> : vector<8xf32>
    %743 = vector.multi_reduction <add>, %740, %cst_209 [1] : vector<8x32xf32> to vector<8xf32>
    %744 = vector.shape_cast %743 : vector<8xf32> to vector<8x1xf32>
    %cst_210 = arith.constant 3.200000e+01 : f32
    %745 = vector.broadcast %cst_210 : f32 to vector<8x1xf32>
    %746 = arith.divf %744, %745 : vector<8x1xf32>
    %747 = vector.broadcast %746 : vector<8x1xf32> to vector<8x32xf32>
    %748 = arith.subf %740, %747 : vector<8x32xf32>
    %749 = arith.mulf %748, %748 : vector<8x32xf32>
    %cst_211 = arith.constant dense<0.000000e+00> : vector<8xf32>
    %750 = vector.multi_reduction <add>, %749, %cst_211 [1] : vector<8x32xf32> to vector<8xf32>
    %751 = vector.shape_cast %750 : vector<8xf32> to vector<8x1xf32>
    %cst_212 = arith.constant 3.200000e+01 : f32
    %752 = vector.broadcast %cst_212 : f32 to vector<8x1xf32>
    %753 = arith.divf %751, %752 : vector<8x1xf32>
    %cst_213 = arith.constant 9.99999974E-6 : f32
    %754 = vector.broadcast %cst_213 : f32 to vector<8x1xf32>
    %755 = arith.addf %753, %754 : vector<8x1xf32>
    %756 = math.rsqrt %755 : vector<8x1xf32>
    %757 = vector.broadcast %756 : vector<8x1xf32> to vector<8x32xf32>
    %758 = arith.mulf %748, %757 : vector<8x32xf32>
    %759 = vector.broadcast %741 : vector<1x32xf32> to vector<8x32xf32>
    %760 = arith.mulf %758, %759 : vector<8x32xf32>
    %761 = vector.broadcast %742 : vector<1x32xf32> to vector<8x32xf32>
    %762 = arith.addf %760, %761 : vector<8x32xf32>
    %763 = vector.extract_strided_slice %716 {offsets = [0, 64], sizes = [8, 32], strides = [1, 1]} : vector<8x128xf32> to vector<8x32xf32>
    %764 = vector.extract_strided_slice %48 {offsets = [0, 64], sizes = [1, 32], strides = [1, 1]} : vector<1x128xf32> to vector<1x32xf32>
    %765 = vector.extract_strided_slice %49 {offsets = [0, 64], sizes = [1, 32], strides = [1, 1]} : vector<1x128xf32> to vector<1x32xf32>
    %cst_214 = arith.constant dense<0.000000e+00> : vector<8xf32>
    %766 = vector.multi_reduction <add>, %763, %cst_214 [1] : vector<8x32xf32> to vector<8xf32>
    %767 = vector.shape_cast %766 : vector<8xf32> to vector<8x1xf32>
    %cst_215 = arith.constant 3.200000e+01 : f32
    %768 = vector.broadcast %cst_215 : f32 to vector<8x1xf32>
    %769 = arith.divf %767, %768 : vector<8x1xf32>
    %770 = vector.broadcast %769 : vector<8x1xf32> to vector<8x32xf32>
    %771 = arith.subf %763, %770 : vector<8x32xf32>
    %772 = arith.mulf %771, %771 : vector<8x32xf32>
    %cst_216 = arith.constant dense<0.000000e+00> : vector<8xf32>
    %773 = vector.multi_reduction <add>, %772, %cst_216 [1] : vector<8x32xf32> to vector<8xf32>
    %774 = vector.shape_cast %773 : vector<8xf32> to vector<8x1xf32>
    %cst_217 = arith.constant 3.200000e+01 : f32
    %775 = vector.broadcast %cst_217 : f32 to vector<8x1xf32>
    %776 = arith.divf %774, %775 : vector<8x1xf32>
    %cst_218 = arith.constant 9.99999974E-6 : f32
    %777 = vector.broadcast %cst_218 : f32 to vector<8x1xf32>
    %778 = arith.addf %776, %777 : vector<8x1xf32>
    %779 = math.rsqrt %778 : vector<8x1xf32>
    %780 = vector.broadcast %779 : vector<8x1xf32> to vector<8x32xf32>
    %781 = arith.mulf %771, %780 : vector<8x32xf32>
    %782 = vector.broadcast %764 : vector<1x32xf32> to vector<8x32xf32>
    %783 = arith.mulf %781, %782 : vector<8x32xf32>
    %784 = vector.broadcast %765 : vector<1x32xf32> to vector<8x32xf32>
    %785 = arith.addf %783, %784 : vector<8x32xf32>
    %786 = vector.extract_strided_slice %716 {offsets = [0, 96], sizes = [8, 32], strides = [1, 1]} : vector<8x128xf32> to vector<8x32xf32>
    %787 = vector.extract_strided_slice %48 {offsets = [0, 96], sizes = [1, 32], strides = [1, 1]} : vector<1x128xf32> to vector<1x32xf32>
    %788 = vector.extract_strided_slice %49 {offsets = [0, 96], sizes = [1, 32], strides = [1, 1]} : vector<1x128xf32> to vector<1x32xf32>
    %cst_219 = arith.constant dense<0.000000e+00> : vector<8xf32>
    %789 = vector.multi_reduction <add>, %786, %cst_219 [1] : vector<8x32xf32> to vector<8xf32>
    %790 = vector.shape_cast %789 : vector<8xf32> to vector<8x1xf32>
    %cst_220 = arith.constant 3.200000e+01 : f32
    %791 = vector.broadcast %cst_220 : f32 to vector<8x1xf32>
    %792 = arith.divf %790, %791 : vector<8x1xf32>
    %793 = vector.broadcast %792 : vector<8x1xf32> to vector<8x32xf32>
    %794 = arith.subf %786, %793 : vector<8x32xf32>
    %795 = arith.mulf %794, %794 : vector<8x32xf32>
    %cst_221 = arith.constant dense<0.000000e+00> : vector<8xf32>
    %796 = vector.multi_reduction <add>, %795, %cst_221 [1] : vector<8x32xf32> to vector<8xf32>
    %797 = vector.shape_cast %796 : vector<8xf32> to vector<8x1xf32>
    %cst_222 = arith.constant 3.200000e+01 : f32
    %798 = vector.broadcast %cst_222 : f32 to vector<8x1xf32>
    %799 = arith.divf %797, %798 : vector<8x1xf32>
    %cst_223 = arith.constant 9.99999974E-6 : f32
    %800 = vector.broadcast %cst_223 : f32 to vector<8x1xf32>
    %801 = arith.addf %799, %800 : vector<8x1xf32>
    %802 = math.rsqrt %801 : vector<8x1xf32>
    %803 = vector.broadcast %802 : vector<8x1xf32> to vector<8x32xf32>
    %804 = arith.mulf %794, %803 : vector<8x32xf32>
    %805 = vector.broadcast %787 : vector<1x32xf32> to vector<8x32xf32>
    %806 = arith.mulf %804, %805 : vector<8x32xf32>
    %807 = vector.broadcast %788 : vector<1x32xf32> to vector<8x32xf32>
    %808 = arith.addf %806, %807 : vector<8x32xf32>
    %809 = arith.negf %739 : vector<8x32xf32>
    %810 = math.exp %809 : vector<8x32xf32>
    %cst_224 = arith.constant 1.000000e+00 : f32
    %811 = vector.broadcast %cst_224 : f32 to vector<8x32xf32>
    %812 = arith.addf %811, %810 : vector<8x32xf32>
    %813 = arith.divf %811, %812 : vector<8x32xf32>
    %cst_225 = arith.constant 1.000000e+00 : f32
    %814 = vector.broadcast %cst_225 : f32 to vector<8x32xf32>
    %815 = arith.addf %762, %814 : vector<8x32xf32>
    %816 = arith.negf %815 : vector<8x32xf32>
    %817 = math.exp %816 : vector<8x32xf32>
    %cst_226 = arith.constant 1.000000e+00 : f32
    %818 = vector.broadcast %cst_226 : f32 to vector<8x32xf32>
    %819 = arith.addf %818, %817 : vector<8x32xf32>
    %820 = arith.divf %818, %819 : vector<8x32xf32>
    %821 = math.tanh %785 : vector<8x32xf32>
    %822 = arith.negf %808 : vector<8x32xf32>
    %823 = math.exp %822 : vector<8x32xf32>
    %cst_227 = arith.constant 1.000000e+00 : f32
    %824 = vector.broadcast %cst_227 : f32 to vector<8x32xf32>
    %825 = arith.addf %824, %823 : vector<8x32xf32>
    %826 = arith.divf %824, %825 : vector<8x32xf32>
    %827 = arith.mulf %820, %512 : vector<8x32xf32>
    %828 = arith.mulf %813, %821 : vector<8x32xf32>
    %829 = arith.addf %827, %828 : vector<8x32xf32>
    %cst_228 = arith.constant dense<0.000000e+00> : vector<8xf32>
    %830 = vector.multi_reduction <add>, %829, %cst_228 [1] : vector<8x32xf32> to vector<8xf32>
    %831 = vector.shape_cast %830 : vector<8xf32> to vector<8x1xf32>
    %cst_229 = arith.constant 3.200000e+01 : f32
    %832 = vector.broadcast %cst_229 : f32 to vector<8x1xf32>
    %833 = arith.divf %831, %832 : vector<8x1xf32>
    %834 = vector.broadcast %833 : vector<8x1xf32> to vector<8x32xf32>
    %835 = arith.subf %829, %834 : vector<8x32xf32>
    %836 = arith.mulf %835, %835 : vector<8x32xf32>
    %cst_230 = arith.constant dense<0.000000e+00> : vector<8xf32>
    %837 = vector.multi_reduction <add>, %836, %cst_230 [1] : vector<8x32xf32> to vector<8xf32>
    %838 = vector.shape_cast %837 : vector<8xf32> to vector<8x1xf32>
    %cst_231 = arith.constant 3.200000e+01 : f32
    %839 = vector.broadcast %cst_231 : f32 to vector<8x1xf32>
    %840 = arith.divf %838, %839 : vector<8x1xf32>
    %cst_232 = arith.constant 9.99999974E-6 : f32
    %841 = vector.broadcast %cst_232 : f32 to vector<8x1xf32>
    %842 = arith.addf %840, %841 : vector<8x1xf32>
    %843 = math.rsqrt %842 : vector<8x1xf32>
    %844 = vector.broadcast %843 : vector<8x1xf32> to vector<8x32xf32>
    %845 = arith.mulf %835, %844 : vector<8x32xf32>
    %846 = vector.broadcast %50 : vector<1x32xf32> to vector<8x32xf32>
    %847 = arith.mulf %845, %846 : vector<8x32xf32>
    %848 = vector.broadcast %51 : vector<1x32xf32> to vector<8x32xf32>
    %849 = arith.addf %847, %848 : vector<8x32xf32>
    %850 = math.tanh %849 : vector<8x32xf32>
    %851 = arith.mulf %826, %850 : vector<8x32xf32>
    %852 = vector.extract_strided_slice %43 {offsets = [0, 0, 0], sizes = [1, 32, 32], strides = [1, 1, 1]} : vector<2x32x32xf32> to vector<1x32x32xf32>
    %853 = vector.shape_cast %852 : vector<1x32x32xf32> to vector<32x32xf32>
    %cst_233 = arith.constant dense<0.000000e+00> : vector<8x32xf32>
    %854 = tpu.matmul %851, %853, %cst_233 {dimension_numbers = #tpu.dot_dimension_numbers<[1], [0], [0], [1], [0, 0, 1, 1], [], []>} : vector<8x32xf32>, vector<32x32xf32>, vector<8x32xf32> -> vector<8x32xf32>
    %855 = vector.extract_strided_slice %44 {offsets = [0, 0], sizes = [1, 32], strides = [1, 1]} : vector<2x32xf32> to vector<1x32xf32>
    %856 = vector.broadcast %855 : vector<1x32xf32> to vector<8x32xf32>
    %857 = arith.addf %854, %856 : vector<8x32xf32>
    %cst_234 = arith.constant 0.000000e+00 : f32
    %858 = vector.broadcast %cst_234 : f32 to vector<8x32xf32>
    %859 = arith.maximumf %857, %858 : vector<8x32xf32>
    %860 = vector.extract_strided_slice %43 {offsets = [1, 0, 0], sizes = [1, 32, 32], strides = [1, 1, 1]} : vector<2x32x32xf32> to vector<1x32x32xf32>
    %861 = vector.shape_cast %860 : vector<1x32x32xf32> to vector<32x32xf32>
    %cst_235 = arith.constant dense<0.000000e+00> : vector<8x32xf32>
    %862 = tpu.matmul %859, %861, %cst_235 {dimension_numbers = #tpu.dot_dimension_numbers<[1], [0], [0], [1], [0, 0, 1, 1], [], []>} : vector<8x32xf32>, vector<32x32xf32>, vector<8x32xf32> -> vector<8x32xf32>
    %863 = vector.extract_strided_slice %44 {offsets = [1, 0], sizes = [1, 32], strides = [1, 1]} : vector<2x32xf32> to vector<1x32xf32>
    %864 = vector.broadcast %863 : vector<1x32xf32> to vector<8x32xf32>
    %865 = arith.addf %862, %864 : vector<8x32xf32>
    %cst_236 = arith.constant 0.000000e+00 : f32
    %866 = vector.broadcast %cst_236 : f32 to vector<8x32xf32>
    %867 = arith.maximumf %865, %866 : vector<8x32xf32>
    %cst_237 = arith.constant dense<0.000000e+00> : vector<16x32xf32>
    %868 = tpu.matmul %4, %867, %cst_237 {dimension_numbers = #tpu.dot_dimension_numbers<[1], [0], [0], [1], [0, 0, 1, 1], [], []>} : vector<16x8xf32>, vector<8x32xf32>, vector<16x32xf32> -> vector<16x32xf32>
    %cst_238 = arith.constant dense<0.000000e+00> : vector<16x32xf32>
    %869 = tpu.matmul %40, %694, %cst_238 {dimension_numbers = #tpu.dot_dimension_numbers<[1], [0], [0], [1], [0, 0, 1, 1], [], []>} : vector<16x16xf32>, vector<16x32xf32>, vector<16x32xf32> -> vector<16x32xf32>
    %cst_239 = arith.constant dense<0.000000e+00> : vector<16x128xf32>
    %870 = tpu.matmul %868, %59, %cst_239 {dimension_numbers = #tpu.dot_dimension_numbers<[1], [0], [0], [1], [0, 0, 1, 1], [], []>} : vector<16x32xf32>, vector<32x128xf32>, vector<16x128xf32> -> vector<16x128xf32>
    %cst_240 = arith.constant dense<0.000000e+00> : vector<16x128xf32>
    %871 = tpu.matmul %869, %60, %cst_240 {dimension_numbers = #tpu.dot_dimension_numbers<[1], [0], [0], [1], [0, 0, 1, 1], [], []>} : vector<16x32xf32>, vector<32x128xf32>, vector<16x128xf32> -> vector<16x128xf32>
    %872 = arith.addf %870, %871 : vector<16x128xf32>
    %cst_241 = arith.constant dense<0.000000e+00> : vector<16x128xf32>
    %873 = tpu.matmul %694, %53, %cst_241 {dimension_numbers = #tpu.dot_dimension_numbers<[1], [0], [0], [1], [0, 0, 1, 1], [], []>} : vector<16x32xf32>, vector<32x128xf32>, vector<16x128xf32> -> vector<16x128xf32>
    %874 = arith.addf %872, %873 : vector<16x128xf32>
    %875 = vector.broadcast %54 : vector<1x128xf32> to vector<16x128xf32>
    %876 = arith.addf %874, %875 : vector<16x128xf32>
    %877 = vector.extract_strided_slice %876 {offsets = [0, 0], sizes = [16, 32], strides = [1, 1]} : vector<16x128xf32> to vector<16x32xf32>
    %878 = vector.extract_strided_slice %55 {offsets = [0, 0], sizes = [1, 32], strides = [1, 1]} : vector<1x128xf32> to vector<1x32xf32>
    %879 = vector.extract_strided_slice %56 {offsets = [0, 0], sizes = [1, 32], strides = [1, 1]} : vector<1x128xf32> to vector<1x32xf32>
    %cst_242 = arith.constant dense<0.000000e+00> : vector<16xf32>
    %880 = vector.multi_reduction <add>, %877, %cst_242 [1] : vector<16x32xf32> to vector<16xf32>
    %881 = vector.shape_cast %880 : vector<16xf32> to vector<16x1xf32>
    %cst_243 = arith.constant 3.200000e+01 : f32
    %882 = vector.broadcast %cst_243 : f32 to vector<16x1xf32>
    %883 = arith.divf %881, %882 : vector<16x1xf32>
    %884 = vector.broadcast %883 : vector<16x1xf32> to vector<16x32xf32>
    %885 = arith.subf %877, %884 : vector<16x32xf32>
    %886 = arith.mulf %885, %885 : vector<16x32xf32>
    %cst_244 = arith.constant dense<0.000000e+00> : vector<16xf32>
    %887 = vector.multi_reduction <add>, %886, %cst_244 [1] : vector<16x32xf32> to vector<16xf32>
    %888 = vector.shape_cast %887 : vector<16xf32> to vector<16x1xf32>
    %cst_245 = arith.constant 3.200000e+01 : f32
    %889 = vector.broadcast %cst_245 : f32 to vector<16x1xf32>
    %890 = arith.divf %888, %889 : vector<16x1xf32>
    %cst_246 = arith.constant 9.99999974E-6 : f32
    %891 = vector.broadcast %cst_246 : f32 to vector<16x1xf32>
    %892 = arith.addf %890, %891 : vector<16x1xf32>
    %893 = math.rsqrt %892 : vector<16x1xf32>
    %894 = vector.broadcast %893 : vector<16x1xf32> to vector<16x32xf32>
    %895 = arith.mulf %885, %894 : vector<16x32xf32>
    %896 = vector.broadcast %878 : vector<1x32xf32> to vector<16x32xf32>
    %897 = arith.mulf %895, %896 : vector<16x32xf32>
    %898 = vector.broadcast %879 : vector<1x32xf32> to vector<16x32xf32>
    %899 = arith.addf %897, %898 : vector<16x32xf32>
    %900 = vector.extract_strided_slice %876 {offsets = [0, 32], sizes = [16, 32], strides = [1, 1]} : vector<16x128xf32> to vector<16x32xf32>
    %901 = vector.extract_strided_slice %55 {offsets = [0, 32], sizes = [1, 32], strides = [1, 1]} : vector<1x128xf32> to vector<1x32xf32>
    %902 = vector.extract_strided_slice %56 {offsets = [0, 32], sizes = [1, 32], strides = [1, 1]} : vector<1x128xf32> to vector<1x32xf32>
    %cst_247 = arith.constant dense<0.000000e+00> : vector<16xf32>
    %903 = vector.multi_reduction <add>, %900, %cst_247 [1] : vector<16x32xf32> to vector<16xf32>
    %904 = vector.shape_cast %903 : vector<16xf32> to vector<16x1xf32>
    %cst_248 = arith.constant 3.200000e+01 : f32
    %905 = vector.broadcast %cst_248 : f32 to vector<16x1xf32>
    %906 = arith.divf %904, %905 : vector<16x1xf32>
    %907 = vector.broadcast %906 : vector<16x1xf32> to vector<16x32xf32>
    %908 = arith.subf %900, %907 : vector<16x32xf32>
    %909 = arith.mulf %908, %908 : vector<16x32xf32>
    %cst_249 = arith.constant dense<0.000000e+00> : vector<16xf32>
    %910 = vector.multi_reduction <add>, %909, %cst_249 [1] : vector<16x32xf32> to vector<16xf32>
    %911 = vector.shape_cast %910 : vector<16xf32> to vector<16x1xf32>
    %cst_250 = arith.constant 3.200000e+01 : f32
    %912 = vector.broadcast %cst_250 : f32 to vector<16x1xf32>
    %913 = arith.divf %911, %912 : vector<16x1xf32>
    %cst_251 = arith.constant 9.99999974E-6 : f32
    %914 = vector.broadcast %cst_251 : f32 to vector<16x1xf32>
    %915 = arith.addf %913, %914 : vector<16x1xf32>
    %916 = math.rsqrt %915 : vector<16x1xf32>
    %917 = vector.broadcast %916 : vector<16x1xf32> to vector<16x32xf32>
    %918 = arith.mulf %908, %917 : vector<16x32xf32>
    %919 = vector.broadcast %901 : vector<1x32xf32> to vector<16x32xf32>
    %920 = arith.mulf %918, %919 : vector<16x32xf32>
    %921 = vector.broadcast %902 : vector<1x32xf32> to vector<16x32xf32>
    %922 = arith.addf %920, %921 : vector<16x32xf32>
    %923 = vector.extract_strided_slice %876 {offsets = [0, 64], sizes = [16, 32], strides = [1, 1]} : vector<16x128xf32> to vector<16x32xf32>
    %924 = vector.extract_strided_slice %55 {offsets = [0, 64], sizes = [1, 32], strides = [1, 1]} : vector<1x128xf32> to vector<1x32xf32>
    %925 = vector.extract_strided_slice %56 {offsets = [0, 64], sizes = [1, 32], strides = [1, 1]} : vector<1x128xf32> to vector<1x32xf32>
    %cst_252 = arith.constant dense<0.000000e+00> : vector<16xf32>
    %926 = vector.multi_reduction <add>, %923, %cst_252 [1] : vector<16x32xf32> to vector<16xf32>
    %927 = vector.shape_cast %926 : vector<16xf32> to vector<16x1xf32>
    %cst_253 = arith.constant 3.200000e+01 : f32
    %928 = vector.broadcast %cst_253 : f32 to vector<16x1xf32>
    %929 = arith.divf %927, %928 : vector<16x1xf32>
    %930 = vector.broadcast %929 : vector<16x1xf32> to vector<16x32xf32>
    %931 = arith.subf %923, %930 : vector<16x32xf32>
    %932 = arith.mulf %931, %931 : vector<16x32xf32>
    %cst_254 = arith.constant dense<0.000000e+00> : vector<16xf32>
    %933 = vector.multi_reduction <add>, %932, %cst_254 [1] : vector<16x32xf32> to vector<16xf32>
    %934 = vector.shape_cast %933 : vector<16xf32> to vector<16x1xf32>
    %cst_255 = arith.constant 3.200000e+01 : f32
    %935 = vector.broadcast %cst_255 : f32 to vector<16x1xf32>
    %936 = arith.divf %934, %935 : vector<16x1xf32>
    %cst_256 = arith.constant 9.99999974E-6 : f32
    %937 = vector.broadcast %cst_256 : f32 to vector<16x1xf32>
    %938 = arith.addf %936, %937 : vector<16x1xf32>
    %939 = math.rsqrt %938 : vector<16x1xf32>
    %940 = vector.broadcast %939 : vector<16x1xf32> to vector<16x32xf32>
    %941 = arith.mulf %931, %940 : vector<16x32xf32>
    %942 = vector.broadcast %924 : vector<1x32xf32> to vector<16x32xf32>
    %943 = arith.mulf %941, %942 : vector<16x32xf32>
    %944 = vector.broadcast %925 : vector<1x32xf32> to vector<16x32xf32>
    %945 = arith.addf %943, %944 : vector<16x32xf32>
    %946 = vector.extract_strided_slice %876 {offsets = [0, 96], sizes = [16, 32], strides = [1, 1]} : vector<16x128xf32> to vector<16x32xf32>
    %947 = vector.extract_strided_slice %55 {offsets = [0, 96], sizes = [1, 32], strides = [1, 1]} : vector<1x128xf32> to vector<1x32xf32>
    %948 = vector.extract_strided_slice %56 {offsets = [0, 96], sizes = [1, 32], strides = [1, 1]} : vector<1x128xf32> to vector<1x32xf32>
    %cst_257 = arith.constant dense<0.000000e+00> : vector<16xf32>
    %949 = vector.multi_reduction <add>, %946, %cst_257 [1] : vector<16x32xf32> to vector<16xf32>
    %950 = vector.shape_cast %949 : vector<16xf32> to vector<16x1xf32>
    %cst_258 = arith.constant 3.200000e+01 : f32
    %951 = vector.broadcast %cst_258 : f32 to vector<16x1xf32>
    %952 = arith.divf %950, %951 : vector<16x1xf32>
    %953 = vector.broadcast %952 : vector<16x1xf32> to vector<16x32xf32>
    %954 = arith.subf %946, %953 : vector<16x32xf32>
    %955 = arith.mulf %954, %954 : vector<16x32xf32>
    %cst_259 = arith.constant dense<0.000000e+00> : vector<16xf32>
    %956 = vector.multi_reduction <add>, %955, %cst_259 [1] : vector<16x32xf32> to vector<16xf32>
    %957 = vector.shape_cast %956 : vector<16xf32> to vector<16x1xf32>
    %cst_260 = arith.constant 3.200000e+01 : f32
    %958 = vector.broadcast %cst_260 : f32 to vector<16x1xf32>
    %959 = arith.divf %957, %958 : vector<16x1xf32>
    %cst_261 = arith.constant 9.99999974E-6 : f32
    %960 = vector.broadcast %cst_261 : f32 to vector<16x1xf32>
    %961 = arith.addf %959, %960 : vector<16x1xf32>
    %962 = math.rsqrt %961 : vector<16x1xf32>
    %963 = vector.broadcast %962 : vector<16x1xf32> to vector<16x32xf32>
    %964 = arith.mulf %954, %963 : vector<16x32xf32>
    %965 = vector.broadcast %947 : vector<1x32xf32> to vector<16x32xf32>
    %966 = arith.mulf %964, %965 : vector<16x32xf32>
    %967 = vector.broadcast %948 : vector<1x32xf32> to vector<16x32xf32>
    %968 = arith.addf %966, %967 : vector<16x32xf32>
    %969 = arith.negf %899 : vector<16x32xf32>
    %970 = math.exp %969 : vector<16x32xf32>
    %cst_262 = arith.constant 1.000000e+00 : f32
    %971 = vector.broadcast %cst_262 : f32 to vector<16x32xf32>
    %972 = arith.addf %971, %970 : vector<16x32xf32>
    %973 = arith.divf %971, %972 : vector<16x32xf32>
    %cst_263 = arith.constant 1.000000e+00 : f32
    %974 = vector.broadcast %cst_263 : f32 to vector<16x32xf32>
    %975 = arith.addf %922, %974 : vector<16x32xf32>
    %976 = arith.negf %975 : vector<16x32xf32>
    %977 = math.exp %976 : vector<16x32xf32>
    %cst_264 = arith.constant 1.000000e+00 : f32
    %978 = vector.broadcast %cst_264 : f32 to vector<16x32xf32>
    %979 = arith.addf %978, %977 : vector<16x32xf32>
    %980 = arith.divf %978, %979 : vector<16x32xf32>
    %981 = math.tanh %945 : vector<16x32xf32>
    %982 = arith.negf %968 : vector<16x32xf32>
    %983 = math.exp %982 : vector<16x32xf32>
    %cst_265 = arith.constant 1.000000e+00 : f32
    %984 = vector.broadcast %cst_265 : f32 to vector<16x32xf32>
    %985 = arith.addf %984, %983 : vector<16x32xf32>
    %986 = arith.divf %984, %985 : vector<16x32xf32>
    %987 = arith.mulf %980, %672 : vector<16x32xf32>
    %988 = arith.mulf %973, %981 : vector<16x32xf32>
    %989 = arith.addf %987, %988 : vector<16x32xf32>
    %cst_266 = arith.constant dense<0.000000e+00> : vector<16xf32>
    %990 = vector.multi_reduction <add>, %989, %cst_266 [1] : vector<16x32xf32> to vector<16xf32>
    %991 = vector.shape_cast %990 : vector<16xf32> to vector<16x1xf32>
    %cst_267 = arith.constant 3.200000e+01 : f32
    %992 = vector.broadcast %cst_267 : f32 to vector<16x1xf32>
    %993 = arith.divf %991, %992 : vector<16x1xf32>
    %994 = vector.broadcast %993 : vector<16x1xf32> to vector<16x32xf32>
    %995 = arith.subf %989, %994 : vector<16x32xf32>
    %996 = arith.mulf %995, %995 : vector<16x32xf32>
    %cst_268 = arith.constant dense<0.000000e+00> : vector<16xf32>
    %997 = vector.multi_reduction <add>, %996, %cst_268 [1] : vector<16x32xf32> to vector<16xf32>
    %998 = vector.shape_cast %997 : vector<16xf32> to vector<16x1xf32>
    %cst_269 = arith.constant 3.200000e+01 : f32
    %999 = vector.broadcast %cst_269 : f32 to vector<16x1xf32>
    %1000 = arith.divf %998, %999 : vector<16x1xf32>
    %cst_270 = arith.constant 9.99999974E-6 : f32
    %1001 = vector.broadcast %cst_270 : f32 to vector<16x1xf32>
    %1002 = arith.addf %1000, %1001 : vector<16x1xf32>
    %1003 = math.rsqrt %1002 : vector<16x1xf32>
    %1004 = vector.broadcast %1003 : vector<16x1xf32> to vector<16x32xf32>
    %1005 = arith.mulf %995, %1004 : vector<16x32xf32>
    %1006 = vector.broadcast %57 : vector<1x32xf32> to vector<16x32xf32>
    %1007 = arith.mulf %1005, %1006 : vector<16x32xf32>
    %1008 = vector.broadcast %58 : vector<1x32xf32> to vector<16x32xf32>
    %1009 = arith.addf %1007, %1008 : vector<16x32xf32>
    %1010 = math.tanh %1009 : vector<16x32xf32>
    %1011 = arith.mulf %986, %1010 : vector<16x32xf32>
    %1012 = vector.extract_strided_slice %41 {offsets = [0, 0, 0], sizes = [1, 32, 32], strides = [1, 1, 1]} : vector<2x32x32xf32> to vector<1x32x32xf32>
    %1013 = vector.shape_cast %1012 : vector<1x32x32xf32> to vector<32x32xf32>
    %cst_271 = arith.constant dense<0.000000e+00> : vector<16x32xf32>
    %1014 = tpu.matmul %1011, %1013, %cst_271 {dimension_numbers = #tpu.dot_dimension_numbers<[1], [0], [0], [1], [0, 0, 1, 1], [], []>} : vector<16x32xf32>, vector<32x32xf32>, vector<16x32xf32> -> vector<16x32xf32>
    %1015 = vector.extract_strided_slice %42 {offsets = [0, 0], sizes = [1, 32], strides = [1, 1]} : vector<2x32xf32> to vector<1x32xf32>
    %1016 = vector.broadcast %1015 : vector<1x32xf32> to vector<16x32xf32>
    %1017 = arith.addf %1014, %1016 : vector<16x32xf32>
    %cst_272 = arith.constant 0.000000e+00 : f32
    %1018 = vector.broadcast %cst_272 : f32 to vector<16x32xf32>
    %1019 = arith.maximumf %1017, %1018 : vector<16x32xf32>
    %1020 = vector.extract_strided_slice %41 {offsets = [1, 0, 0], sizes = [1, 32, 32], strides = [1, 1, 1]} : vector<2x32x32xf32> to vector<1x32x32xf32>
    %1021 = vector.shape_cast %1020 : vector<1x32x32xf32> to vector<32x32xf32>
    %cst_273 = arith.constant dense<0.000000e+00> : vector<16x32xf32>
    %1022 = tpu.matmul %1019, %1021, %cst_273 {dimension_numbers = #tpu.dot_dimension_numbers<[1], [0], [0], [1], [0, 0, 1, 1], [], []>} : vector<16x32xf32>, vector<32x32xf32>, vector<16x32xf32> -> vector<16x32xf32>
    %1023 = vector.extract_strided_slice %42 {offsets = [1, 0], sizes = [1, 32], strides = [1, 1]} : vector<2x32xf32> to vector<1x32xf32>
    %1024 = vector.broadcast %1023 : vector<1x32xf32> to vector<16x32xf32>
    %1025 = arith.addf %1022, %1024 : vector<16x32xf32>
    %cst_274 = arith.constant 0.000000e+00 : f32
    %1026 = vector.broadcast %cst_274 : f32 to vector<16x32xf32>
    %1027 = arith.maximumf %1025, %1026 : vector<16x32xf32>
    %cst_275 = arith.constant dense<0.000000e+00> : vector<8x32xf32>
    %1028 = tpu.matmul %4, %1027, %cst_275 {dimension_numbers = #tpu.dot_dimension_numbers<[0], [0], [1], [1], [0, 1, 1, 1], [], []>} : vector<16x8xf32>, vector<16x32xf32>, vector<8x32xf32> -> vector<8x32xf32>
    %cst_276 = arith.constant dense<0.000000e+00> : vector<8x128xf32>
    %1029 = tpu.matmul %1028, %45, %cst_276 {dimension_numbers = #tpu.dot_dimension_numbers<[1], [0], [0], [1], [0, 0, 1, 1], [], []>} : vector<8x32xf32>, vector<32x128xf32>, vector<8x128xf32> -> vector<8x128xf32>
    %cst_277 = arith.constant dense<0.000000e+00> : vector<8x128xf32>
    %1030 = tpu.matmul %851, %46, %cst_277 {dimension_numbers = #tpu.dot_dimension_numbers<[1], [0], [0], [1], [0, 0, 1, 1], [], []>} : vector<8x32xf32>, vector<32x128xf32>, vector<8x128xf32> -> vector<8x128xf32>
    %1031 = arith.addf %1029, %1030 : vector<8x128xf32>
    %1032 = vector.broadcast %47 : vector<1x128xf32> to vector<8x128xf32>
    %1033 = arith.addf %1031, %1032 : vector<8x128xf32>
    %1034 = vector.extract_strided_slice %1033 {offsets = [0, 0], sizes = [8, 32], strides = [1, 1]} : vector<8x128xf32> to vector<8x32xf32>
    %1035 = vector.extract_strided_slice %48 {offsets = [0, 0], sizes = [1, 32], strides = [1, 1]} : vector<1x128xf32> to vector<1x32xf32>
    %1036 = vector.extract_strided_slice %49 {offsets = [0, 0], sizes = [1, 32], strides = [1, 1]} : vector<1x128xf32> to vector<1x32xf32>
    %cst_278 = arith.constant dense<0.000000e+00> : vector<8xf32>
    %1037 = vector.multi_reduction <add>, %1034, %cst_278 [1] : vector<8x32xf32> to vector<8xf32>
    %1038 = vector.shape_cast %1037 : vector<8xf32> to vector<8x1xf32>
    %cst_279 = arith.constant 3.200000e+01 : f32
    %1039 = vector.broadcast %cst_279 : f32 to vector<8x1xf32>
    %1040 = arith.divf %1038, %1039 : vector<8x1xf32>
    %1041 = vector.broadcast %1040 : vector<8x1xf32> to vector<8x32xf32>
    %1042 = arith.subf %1034, %1041 : vector<8x32xf32>
    %1043 = arith.mulf %1042, %1042 : vector<8x32xf32>
    %cst_280 = arith.constant dense<0.000000e+00> : vector<8xf32>
    %1044 = vector.multi_reduction <add>, %1043, %cst_280 [1] : vector<8x32xf32> to vector<8xf32>
    %1045 = vector.shape_cast %1044 : vector<8xf32> to vector<8x1xf32>
    %cst_281 = arith.constant 3.200000e+01 : f32
    %1046 = vector.broadcast %cst_281 : f32 to vector<8x1xf32>
    %1047 = arith.divf %1045, %1046 : vector<8x1xf32>
    %cst_282 = arith.constant 9.99999974E-6 : f32
    %1048 = vector.broadcast %cst_282 : f32 to vector<8x1xf32>
    %1049 = arith.addf %1047, %1048 : vector<8x1xf32>
    %1050 = math.rsqrt %1049 : vector<8x1xf32>
    %1051 = vector.broadcast %1050 : vector<8x1xf32> to vector<8x32xf32>
    %1052 = arith.mulf %1042, %1051 : vector<8x32xf32>
    %1053 = vector.broadcast %1035 : vector<1x32xf32> to vector<8x32xf32>
    %1054 = arith.mulf %1052, %1053 : vector<8x32xf32>
    %1055 = vector.broadcast %1036 : vector<1x32xf32> to vector<8x32xf32>
    %1056 = arith.addf %1054, %1055 : vector<8x32xf32>
    %1057 = vector.extract_strided_slice %1033 {offsets = [0, 32], sizes = [8, 32], strides = [1, 1]} : vector<8x128xf32> to vector<8x32xf32>
    %1058 = vector.extract_strided_slice %48 {offsets = [0, 32], sizes = [1, 32], strides = [1, 1]} : vector<1x128xf32> to vector<1x32xf32>
    %1059 = vector.extract_strided_slice %49 {offsets = [0, 32], sizes = [1, 32], strides = [1, 1]} : vector<1x128xf32> to vector<1x32xf32>
    %cst_283 = arith.constant dense<0.000000e+00> : vector<8xf32>
    %1060 = vector.multi_reduction <add>, %1057, %cst_283 [1] : vector<8x32xf32> to vector<8xf32>
    %1061 = vector.shape_cast %1060 : vector<8xf32> to vector<8x1xf32>
    %cst_284 = arith.constant 3.200000e+01 : f32
    %1062 = vector.broadcast %cst_284 : f32 to vector<8x1xf32>
    %1063 = arith.divf %1061, %1062 : vector<8x1xf32>
    %1064 = vector.broadcast %1063 : vector<8x1xf32> to vector<8x32xf32>
    %1065 = arith.subf %1057, %1064 : vector<8x32xf32>
    %1066 = arith.mulf %1065, %1065 : vector<8x32xf32>
    %cst_285 = arith.constant dense<0.000000e+00> : vector<8xf32>
    %1067 = vector.multi_reduction <add>, %1066, %cst_285 [1] : vector<8x32xf32> to vector<8xf32>
    %1068 = vector.shape_cast %1067 : vector<8xf32> to vector<8x1xf32>
    %cst_286 = arith.constant 3.200000e+01 : f32
    %1069 = vector.broadcast %cst_286 : f32 to vector<8x1xf32>
    %1070 = arith.divf %1068, %1069 : vector<8x1xf32>
    %cst_287 = arith.constant 9.99999974E-6 : f32
    %1071 = vector.broadcast %cst_287 : f32 to vector<8x1xf32>
    %1072 = arith.addf %1070, %1071 : vector<8x1xf32>
    %1073 = math.rsqrt %1072 : vector<8x1xf32>
    %1074 = vector.broadcast %1073 : vector<8x1xf32> to vector<8x32xf32>
    %1075 = arith.mulf %1065, %1074 : vector<8x32xf32>
    %1076 = vector.broadcast %1058 : vector<1x32xf32> to vector<8x32xf32>
    %1077 = arith.mulf %1075, %1076 : vector<8x32xf32>
    %1078 = vector.broadcast %1059 : vector<1x32xf32> to vector<8x32xf32>
    %1079 = arith.addf %1077, %1078 : vector<8x32xf32>
    %1080 = vector.extract_strided_slice %1033 {offsets = [0, 64], sizes = [8, 32], strides = [1, 1]} : vector<8x128xf32> to vector<8x32xf32>
    %1081 = vector.extract_strided_slice %48 {offsets = [0, 64], sizes = [1, 32], strides = [1, 1]} : vector<1x128xf32> to vector<1x32xf32>
    %1082 = vector.extract_strided_slice %49 {offsets = [0, 64], sizes = [1, 32], strides = [1, 1]} : vector<1x128xf32> to vector<1x32xf32>
    %cst_288 = arith.constant dense<0.000000e+00> : vector<8xf32>
    %1083 = vector.multi_reduction <add>, %1080, %cst_288 [1] : vector<8x32xf32> to vector<8xf32>
    %1084 = vector.shape_cast %1083 : vector<8xf32> to vector<8x1xf32>
    %cst_289 = arith.constant 3.200000e+01 : f32
    %1085 = vector.broadcast %cst_289 : f32 to vector<8x1xf32>
    %1086 = arith.divf %1084, %1085 : vector<8x1xf32>
    %1087 = vector.broadcast %1086 : vector<8x1xf32> to vector<8x32xf32>
    %1088 = arith.subf %1080, %1087 : vector<8x32xf32>
    %1089 = arith.mulf %1088, %1088 : vector<8x32xf32>
    %cst_290 = arith.constant dense<0.000000e+00> : vector<8xf32>
    %1090 = vector.multi_reduction <add>, %1089, %cst_290 [1] : vector<8x32xf32> to vector<8xf32>
    %1091 = vector.shape_cast %1090 : vector<8xf32> to vector<8x1xf32>
    %cst_291 = arith.constant 3.200000e+01 : f32
    %1092 = vector.broadcast %cst_291 : f32 to vector<8x1xf32>
    %1093 = arith.divf %1091, %1092 : vector<8x1xf32>
    %cst_292 = arith.constant 9.99999974E-6 : f32
    %1094 = vector.broadcast %cst_292 : f32 to vector<8x1xf32>
    %1095 = arith.addf %1093, %1094 : vector<8x1xf32>
    %1096 = math.rsqrt %1095 : vector<8x1xf32>
    %1097 = vector.broadcast %1096 : vector<8x1xf32> to vector<8x32xf32>
    %1098 = arith.mulf %1088, %1097 : vector<8x32xf32>
    %1099 = vector.broadcast %1081 : vector<1x32xf32> to vector<8x32xf32>
    %1100 = arith.mulf %1098, %1099 : vector<8x32xf32>
    %1101 = vector.broadcast %1082 : vector<1x32xf32> to vector<8x32xf32>
    %1102 = arith.addf %1100, %1101 : vector<8x32xf32>
    %1103 = vector.extract_strided_slice %1033 {offsets = [0, 96], sizes = [8, 32], strides = [1, 1]} : vector<8x128xf32> to vector<8x32xf32>
    %1104 = vector.extract_strided_slice %48 {offsets = [0, 96], sizes = [1, 32], strides = [1, 1]} : vector<1x128xf32> to vector<1x32xf32>
    %1105 = vector.extract_strided_slice %49 {offsets = [0, 96], sizes = [1, 32], strides = [1, 1]} : vector<1x128xf32> to vector<1x32xf32>
    %cst_293 = arith.constant dense<0.000000e+00> : vector<8xf32>
    %1106 = vector.multi_reduction <add>, %1103, %cst_293 [1] : vector<8x32xf32> to vector<8xf32>
    %1107 = vector.shape_cast %1106 : vector<8xf32> to vector<8x1xf32>
    %cst_294 = arith.constant 3.200000e+01 : f32
    %1108 = vector.broadcast %cst_294 : f32 to vector<8x1xf32>
    %1109 = arith.divf %1107, %1108 : vector<8x1xf32>
    %1110 = vector.broadcast %1109 : vector<8x1xf32> to vector<8x32xf32>
    %1111 = arith.subf %1103, %1110 : vector<8x32xf32>
    %1112 = arith.mulf %1111, %1111 : vector<8x32xf32>
    %cst_295 = arith.constant dense<0.000000e+00> : vector<8xf32>
    %1113 = vector.multi_reduction <add>, %1112, %cst_295 [1] : vector<8x32xf32> to vector<8xf32>
    %1114 = vector.shape_cast %1113 : vector<8xf32> to vector<8x1xf32>
    %cst_296 = arith.constant 3.200000e+01 : f32
    %1115 = vector.broadcast %cst_296 : f32 to vector<8x1xf32>
    %1116 = arith.divf %1114, %1115 : vector<8x1xf32>
    %cst_297 = arith.constant 9.99999974E-6 : f32
    %1117 = vector.broadcast %cst_297 : f32 to vector<8x1xf32>
    %1118 = arith.addf %1116, %1117 : vector<8x1xf32>
    %1119 = math.rsqrt %1118 : vector<8x1xf32>
    %1120 = vector.broadcast %1119 : vector<8x1xf32> to vector<8x32xf32>
    %1121 = arith.mulf %1111, %1120 : vector<8x32xf32>
    %1122 = vector.broadcast %1104 : vector<1x32xf32> to vector<8x32xf32>
    %1123 = arith.mulf %1121, %1122 : vector<8x32xf32>
    %1124 = vector.broadcast %1105 : vector<1x32xf32> to vector<8x32xf32>
    %1125 = arith.addf %1123, %1124 : vector<8x32xf32>
    %1126 = arith.negf %1056 : vector<8x32xf32>
    %1127 = math.exp %1126 : vector<8x32xf32>
    %cst_298 = arith.constant 1.000000e+00 : f32
    %1128 = vector.broadcast %cst_298 : f32 to vector<8x32xf32>
    %1129 = arith.addf %1128, %1127 : vector<8x32xf32>
    %1130 = arith.divf %1128, %1129 : vector<8x32xf32>
    %cst_299 = arith.constant 1.000000e+00 : f32
    %1131 = vector.broadcast %cst_299 : f32 to vector<8x32xf32>
    %1132 = arith.addf %1079, %1131 : vector<8x32xf32>
    %1133 = arith.negf %1132 : vector<8x32xf32>
    %1134 = math.exp %1133 : vector<8x32xf32>
    %cst_300 = arith.constant 1.000000e+00 : f32
    %1135 = vector.broadcast %cst_300 : f32 to vector<8x32xf32>
    %1136 = arith.addf %1135, %1134 : vector<8x32xf32>
    %1137 = arith.divf %1135, %1136 : vector<8x32xf32>
    %1138 = math.tanh %1102 : vector<8x32xf32>
    %1139 = arith.negf %1125 : vector<8x32xf32>
    %1140 = math.exp %1139 : vector<8x32xf32>
    %cst_301 = arith.constant 1.000000e+00 : f32
    %1141 = vector.broadcast %cst_301 : f32 to vector<8x32xf32>
    %1142 = arith.addf %1141, %1140 : vector<8x32xf32>
    %1143 = arith.divf %1141, %1142 : vector<8x32xf32>
    %1144 = arith.mulf %1137, %829 : vector<8x32xf32>
    %1145 = arith.mulf %1130, %1138 : vector<8x32xf32>
    %1146 = arith.addf %1144, %1145 : vector<8x32xf32>
    %cst_302 = arith.constant dense<0.000000e+00> : vector<8xf32>
    %1147 = vector.multi_reduction <add>, %1146, %cst_302 [1] : vector<8x32xf32> to vector<8xf32>
    %1148 = vector.shape_cast %1147 : vector<8xf32> to vector<8x1xf32>
    %cst_303 = arith.constant 3.200000e+01 : f32
    %1149 = vector.broadcast %cst_303 : f32 to vector<8x1xf32>
    %1150 = arith.divf %1148, %1149 : vector<8x1xf32>
    %1151 = vector.broadcast %1150 : vector<8x1xf32> to vector<8x32xf32>
    %1152 = arith.subf %1146, %1151 : vector<8x32xf32>
    %1153 = arith.mulf %1152, %1152 : vector<8x32xf32>
    %cst_304 = arith.constant dense<0.000000e+00> : vector<8xf32>
    %1154 = vector.multi_reduction <add>, %1153, %cst_304 [1] : vector<8x32xf32> to vector<8xf32>
    %1155 = vector.shape_cast %1154 : vector<8xf32> to vector<8x1xf32>
    %cst_305 = arith.constant 3.200000e+01 : f32
    %1156 = vector.broadcast %cst_305 : f32 to vector<8x1xf32>
    %1157 = arith.divf %1155, %1156 : vector<8x1xf32>
    %cst_306 = arith.constant 9.99999974E-6 : f32
    %1158 = vector.broadcast %cst_306 : f32 to vector<8x1xf32>
    %1159 = arith.addf %1157, %1158 : vector<8x1xf32>
    %1160 = math.rsqrt %1159 : vector<8x1xf32>
    %1161 = vector.broadcast %1160 : vector<8x1xf32> to vector<8x32xf32>
    %1162 = arith.mulf %1152, %1161 : vector<8x32xf32>
    %1163 = vector.broadcast %50 : vector<1x32xf32> to vector<8x32xf32>
    %1164 = arith.mulf %1162, %1163 : vector<8x32xf32>
    %1165 = vector.broadcast %51 : vector<1x32xf32> to vector<8x32xf32>
    %1166 = arith.addf %1164, %1165 : vector<8x32xf32>
    %1167 = math.tanh %1166 : vector<8x32xf32>
    %1168 = arith.mulf %1143, %1167 : vector<8x32xf32>
    %1169 = vector.extract_strided_slice %43 {offsets = [0, 0, 0], sizes = [1, 32, 32], strides = [1, 1, 1]} : vector<2x32x32xf32> to vector<1x32x32xf32>
    %1170 = vector.shape_cast %1169 : vector<1x32x32xf32> to vector<32x32xf32>
    %cst_307 = arith.constant dense<0.000000e+00> : vector<8x32xf32>
    %1171 = tpu.matmul %1168, %1170, %cst_307 {dimension_numbers = #tpu.dot_dimension_numbers<[1], [0], [0], [1], [0, 0, 1, 1], [], []>} : vector<8x32xf32>, vector<32x32xf32>, vector<8x32xf32> -> vector<8x32xf32>
    %1172 = vector.extract_strided_slice %44 {offsets = [0, 0], sizes = [1, 32], strides = [1, 1]} : vector<2x32xf32> to vector<1x32xf32>
    %1173 = vector.broadcast %1172 : vector<1x32xf32> to vector<8x32xf32>
    %1174 = arith.addf %1171, %1173 : vector<8x32xf32>
    %cst_308 = arith.constant 0.000000e+00 : f32
    %1175 = vector.broadcast %cst_308 : f32 to vector<8x32xf32>
    %1176 = arith.maximumf %1174, %1175 : vector<8x32xf32>
    %1177 = vector.extract_strided_slice %43 {offsets = [1, 0, 0], sizes = [1, 32, 32], strides = [1, 1, 1]} : vector<2x32x32xf32> to vector<1x32x32xf32>
    %1178 = vector.shape_cast %1177 : vector<1x32x32xf32> to vector<32x32xf32>
    %cst_309 = arith.constant dense<0.000000e+00> : vector<8x32xf32>
    %1179 = tpu.matmul %1176, %1178, %cst_309 {dimension_numbers = #tpu.dot_dimension_numbers<[1], [0], [0], [1], [0, 0, 1, 1], [], []>} : vector<8x32xf32>, vector<32x32xf32>, vector<8x32xf32> -> vector<8x32xf32>
    %1180 = vector.extract_strided_slice %44 {offsets = [1, 0], sizes = [1, 32], strides = [1, 1]} : vector<2x32xf32> to vector<1x32xf32>
    %1181 = vector.broadcast %1180 : vector<1x32xf32> to vector<8x32xf32>
    %1182 = arith.addf %1179, %1181 : vector<8x32xf32>
    %cst_310 = arith.constant 0.000000e+00 : f32
    %1183 = vector.broadcast %cst_310 : f32 to vector<8x32xf32>
    %1184 = arith.maximumf %1182, %1183 : vector<8x32xf32>
    %cst_311 = arith.constant dense<0.000000e+00> : vector<16x32xf32>
    %1185 = tpu.matmul %4, %1184, %cst_311 {dimension_numbers = #tpu.dot_dimension_numbers<[1], [0], [0], [1], [0, 0, 1, 1], [], []>} : vector<16x8xf32>, vector<8x32xf32>, vector<16x32xf32> -> vector<16x32xf32>
    %cst_312 = arith.constant dense<0.000000e+00> : vector<16x32xf32>
    %1186 = tpu.matmul %40, %1011, %cst_312 {dimension_numbers = #tpu.dot_dimension_numbers<[1], [0], [0], [1], [0, 0, 1, 1], [], []>} : vector<16x16xf32>, vector<16x32xf32>, vector<16x32xf32> -> vector<16x32xf32>
    %cst_313 = arith.constant dense<0.000000e+00> : vector<16x128xf32>
    %1187 = tpu.matmul %1185, %59, %cst_313 {dimension_numbers = #tpu.dot_dimension_numbers<[1], [0], [0], [1], [0, 0, 1, 1], [], []>} : vector<16x32xf32>, vector<32x128xf32>, vector<16x128xf32> -> vector<16x128xf32>
    %cst_314 = arith.constant dense<0.000000e+00> : vector<16x128xf32>
    %1188 = tpu.matmul %1186, %60, %cst_314 {dimension_numbers = #tpu.dot_dimension_numbers<[1], [0], [0], [1], [0, 0, 1, 1], [], []>} : vector<16x32xf32>, vector<32x128xf32>, vector<16x128xf32> -> vector<16x128xf32>
    %1189 = arith.addf %1187, %1188 : vector<16x128xf32>
    %cst_315 = arith.constant dense<0.000000e+00> : vector<16x128xf32>
    %1190 = tpu.matmul %1011, %53, %cst_315 {dimension_numbers = #tpu.dot_dimension_numbers<[1], [0], [0], [1], [0, 0, 1, 1], [], []>} : vector<16x32xf32>, vector<32x128xf32>, vector<16x128xf32> -> vector<16x128xf32>
    %1191 = arith.addf %1189, %1190 : vector<16x128xf32>
    %1192 = vector.broadcast %54 : vector<1x128xf32> to vector<16x128xf32>
    %1193 = arith.addf %1191, %1192 : vector<16x128xf32>
    %1194 = vector.extract_strided_slice %1193 {offsets = [0, 0], sizes = [16, 32], strides = [1, 1]} : vector<16x128xf32> to vector<16x32xf32>
    %1195 = vector.extract_strided_slice %55 {offsets = [0, 0], sizes = [1, 32], strides = [1, 1]} : vector<1x128xf32> to vector<1x32xf32>
    %1196 = vector.extract_strided_slice %56 {offsets = [0, 0], sizes = [1, 32], strides = [1, 1]} : vector<1x128xf32> to vector<1x32xf32>
    %cst_316 = arith.constant dense<0.000000e+00> : vector<16xf32>
    %1197 = vector.multi_reduction <add>, %1194, %cst_316 [1] : vector<16x32xf32> to vector<16xf32>
    %1198 = vector.shape_cast %1197 : vector<16xf32> to vector<16x1xf32>
    %cst_317 = arith.constant 3.200000e+01 : f32
    %1199 = vector.broadcast %cst_317 : f32 to vector<16x1xf32>
    %1200 = arith.divf %1198, %1199 : vector<16x1xf32>
    %1201 = vector.broadcast %1200 : vector<16x1xf32> to vector<16x32xf32>
    %1202 = arith.subf %1194, %1201 : vector<16x32xf32>
    %1203 = arith.mulf %1202, %1202 : vector<16x32xf32>
    %cst_318 = arith.constant dense<0.000000e+00> : vector<16xf32>
    %1204 = vector.multi_reduction <add>, %1203, %cst_318 [1] : vector<16x32xf32> to vector<16xf32>
    %1205 = vector.shape_cast %1204 : vector<16xf32> to vector<16x1xf32>
    %cst_319 = arith.constant 3.200000e+01 : f32
    %1206 = vector.broadcast %cst_319 : f32 to vector<16x1xf32>
    %1207 = arith.divf %1205, %1206 : vector<16x1xf32>
    %cst_320 = arith.constant 9.99999974E-6 : f32
    %1208 = vector.broadcast %cst_320 : f32 to vector<16x1xf32>
    %1209 = arith.addf %1207, %1208 : vector<16x1xf32>
    %1210 = math.rsqrt %1209 : vector<16x1xf32>
    %1211 = vector.broadcast %1210 : vector<16x1xf32> to vector<16x32xf32>
    %1212 = arith.mulf %1202, %1211 : vector<16x32xf32>
    %1213 = vector.broadcast %1195 : vector<1x32xf32> to vector<16x32xf32>
    %1214 = arith.mulf %1212, %1213 : vector<16x32xf32>
    %1215 = vector.broadcast %1196 : vector<1x32xf32> to vector<16x32xf32>
    %1216 = arith.addf %1214, %1215 : vector<16x32xf32>
    %1217 = vector.extract_strided_slice %1193 {offsets = [0, 32], sizes = [16, 32], strides = [1, 1]} : vector<16x128xf32> to vector<16x32xf32>
    %1218 = vector.extract_strided_slice %55 {offsets = [0, 32], sizes = [1, 32], strides = [1, 1]} : vector<1x128xf32> to vector<1x32xf32>
    %1219 = vector.extract_strided_slice %56 {offsets = [0, 32], sizes = [1, 32], strides = [1, 1]} : vector<1x128xf32> to vector<1x32xf32>
    %cst_321 = arith.constant dense<0.000000e+00> : vector<16xf32>
    %1220 = vector.multi_reduction <add>, %1217, %cst_321 [1] : vector<16x32xf32> to vector<16xf32>
    %1221 = vector.shape_cast %1220 : vector<16xf32> to vector<16x1xf32>
    %cst_322 = arith.constant 3.200000e+01 : f32
    %1222 = vector.broadcast %cst_322 : f32 to vector<16x1xf32>
    %1223 = arith.divf %1221, %1222 : vector<16x1xf32>
    %1224 = vector.broadcast %1223 : vector<16x1xf32> to vector<16x32xf32>
    %1225 = arith.subf %1217, %1224 : vector<16x32xf32>
    %1226 = arith.mulf %1225, %1225 : vector<16x32xf32>
    %cst_323 = arith.constant dense<0.000000e+00> : vector<16xf32>
    %1227 = vector.multi_reduction <add>, %1226, %cst_323 [1] : vector<16x32xf32> to vector<16xf32>
    %1228 = vector.shape_cast %1227 : vector<16xf32> to vector<16x1xf32>
    %cst_324 = arith.constant 3.200000e+01 : f32
    %1229 = vector.broadcast %cst_324 : f32 to vector<16x1xf32>
    %1230 = arith.divf %1228, %1229 : vector<16x1xf32>
    %cst_325 = arith.constant 9.99999974E-6 : f32
    %1231 = vector.broadcast %cst_325 : f32 to vector<16x1xf32>
    %1232 = arith.addf %1230, %1231 : vector<16x1xf32>
    %1233 = math.rsqrt %1232 : vector<16x1xf32>
    %1234 = vector.broadcast %1233 : vector<16x1xf32> to vector<16x32xf32>
    %1235 = arith.mulf %1225, %1234 : vector<16x32xf32>
    %1236 = vector.broadcast %1218 : vector<1x32xf32> to vector<16x32xf32>
    %1237 = arith.mulf %1235, %1236 : vector<16x32xf32>
    %1238 = vector.broadcast %1219 : vector<1x32xf32> to vector<16x32xf32>
    %1239 = arith.addf %1237, %1238 : vector<16x32xf32>
    %1240 = vector.extract_strided_slice %1193 {offsets = [0, 64], sizes = [16, 32], strides = [1, 1]} : vector<16x128xf32> to vector<16x32xf32>
    %1241 = vector.extract_strided_slice %55 {offsets = [0, 64], sizes = [1, 32], strides = [1, 1]} : vector<1x128xf32> to vector<1x32xf32>
    %1242 = vector.extract_strided_slice %56 {offsets = [0, 64], sizes = [1, 32], strides = [1, 1]} : vector<1x128xf32> to vector<1x32xf32>
    %cst_326 = arith.constant dense<0.000000e+00> : vector<16xf32>
    %1243 = vector.multi_reduction <add>, %1240, %cst_326 [1] : vector<16x32xf32> to vector<16xf32>
    %1244 = vector.shape_cast %1243 : vector<16xf32> to vector<16x1xf32>
    %cst_327 = arith.constant 3.200000e+01 : f32
    %1245 = vector.broadcast %cst_327 : f32 to vector<16x1xf32>
    %1246 = arith.divf %1244, %1245 : vector<16x1xf32>
    %1247 = vector.broadcast %1246 : vector<16x1xf32> to vector<16x32xf32>
    %1248 = arith.subf %1240, %1247 : vector<16x32xf32>
    %1249 = arith.mulf %1248, %1248 : vector<16x32xf32>
    %cst_328 = arith.constant dense<0.000000e+00> : vector<16xf32>
    %1250 = vector.multi_reduction <add>, %1249, %cst_328 [1] : vector<16x32xf32> to vector<16xf32>
    %1251 = vector.shape_cast %1250 : vector<16xf32> to vector<16x1xf32>
    %cst_329 = arith.constant 3.200000e+01 : f32
    %1252 = vector.broadcast %cst_329 : f32 to vector<16x1xf32>
    %1253 = arith.divf %1251, %1252 : vector<16x1xf32>
    %cst_330 = arith.constant 9.99999974E-6 : f32
    %1254 = vector.broadcast %cst_330 : f32 to vector<16x1xf32>
    %1255 = arith.addf %1253, %1254 : vector<16x1xf32>
    %1256 = math.rsqrt %1255 : vector<16x1xf32>
    %1257 = vector.broadcast %1256 : vector<16x1xf32> to vector<16x32xf32>
    %1258 = arith.mulf %1248, %1257 : vector<16x32xf32>
    %1259 = vector.broadcast %1241 : vector<1x32xf32> to vector<16x32xf32>
    %1260 = arith.mulf %1258, %1259 : vector<16x32xf32>
    %1261 = vector.broadcast %1242 : vector<1x32xf32> to vector<16x32xf32>
    %1262 = arith.addf %1260, %1261 : vector<16x32xf32>
    %1263 = vector.extract_strided_slice %1193 {offsets = [0, 96], sizes = [16, 32], strides = [1, 1]} : vector<16x128xf32> to vector<16x32xf32>
    %1264 = vector.extract_strided_slice %55 {offsets = [0, 96], sizes = [1, 32], strides = [1, 1]} : vector<1x128xf32> to vector<1x32xf32>
    %1265 = vector.extract_strided_slice %56 {offsets = [0, 96], sizes = [1, 32], strides = [1, 1]} : vector<1x128xf32> to vector<1x32xf32>
    %cst_331 = arith.constant dense<0.000000e+00> : vector<16xf32>
    %1266 = vector.multi_reduction <add>, %1263, %cst_331 [1] : vector<16x32xf32> to vector<16xf32>
    %1267 = vector.shape_cast %1266 : vector<16xf32> to vector<16x1xf32>
    %cst_332 = arith.constant 3.200000e+01 : f32
    %1268 = vector.broadcast %cst_332 : f32 to vector<16x1xf32>
    %1269 = arith.divf %1267, %1268 : vector<16x1xf32>
    %1270 = vector.broadcast %1269 : vector<16x1xf32> to vector<16x32xf32>
    %1271 = arith.subf %1263, %1270 : vector<16x32xf32>
    %1272 = arith.mulf %1271, %1271 : vector<16x32xf32>
    %cst_333 = arith.constant dense<0.000000e+00> : vector<16xf32>
    %1273 = vector.multi_reduction <add>, %1272, %cst_333 [1] : vector<16x32xf32> to vector<16xf32>
    %1274 = vector.shape_cast %1273 : vector<16xf32> to vector<16x1xf32>
    %cst_334 = arith.constant 3.200000e+01 : f32
    %1275 = vector.broadcast %cst_334 : f32 to vector<16x1xf32>
    %1276 = arith.divf %1274, %1275 : vector<16x1xf32>
    %cst_335 = arith.constant 9.99999974E-6 : f32
    %1277 = vector.broadcast %cst_335 : f32 to vector<16x1xf32>
    %1278 = arith.addf %1276, %1277 : vector<16x1xf32>
    %1279 = math.rsqrt %1278 : vector<16x1xf32>
    %1280 = vector.broadcast %1279 : vector<16x1xf32> to vector<16x32xf32>
    %1281 = arith.mulf %1271, %1280 : vector<16x32xf32>
    %1282 = vector.broadcast %1264 : vector<1x32xf32> to vector<16x32xf32>
    %1283 = arith.mulf %1281, %1282 : vector<16x32xf32>
    %1284 = vector.broadcast %1265 : vector<1x32xf32> to vector<16x32xf32>
    %1285 = arith.addf %1283, %1284 : vector<16x32xf32>
    %1286 = arith.negf %1216 : vector<16x32xf32>
    %1287 = math.exp %1286 : vector<16x32xf32>
    %cst_336 = arith.constant 1.000000e+00 : f32
    %1288 = vector.broadcast %cst_336 : f32 to vector<16x32xf32>
    %1289 = arith.addf %1288, %1287 : vector<16x32xf32>
    %1290 = arith.divf %1288, %1289 : vector<16x32xf32>
    %cst_337 = arith.constant 1.000000e+00 : f32
    %1291 = vector.broadcast %cst_337 : f32 to vector<16x32xf32>
    %1292 = arith.addf %1239, %1291 : vector<16x32xf32>
    %1293 = arith.negf %1292 : vector<16x32xf32>
    %1294 = math.exp %1293 : vector<16x32xf32>
    %cst_338 = arith.constant 1.000000e+00 : f32
    %1295 = vector.broadcast %cst_338 : f32 to vector<16x32xf32>
    %1296 = arith.addf %1295, %1294 : vector<16x32xf32>
    %1297 = arith.divf %1295, %1296 : vector<16x32xf32>
    %1298 = math.tanh %1262 : vector<16x32xf32>
    %1299 = arith.negf %1285 : vector<16x32xf32>
    %1300 = math.exp %1299 : vector<16x32xf32>
    %cst_339 = arith.constant 1.000000e+00 : f32
    %1301 = vector.broadcast %cst_339 : f32 to vector<16x32xf32>
    %1302 = arith.addf %1301, %1300 : vector<16x32xf32>
    %1303 = arith.divf %1301, %1302 : vector<16x32xf32>
    %1304 = arith.mulf %1297, %989 : vector<16x32xf32>
    %1305 = arith.mulf %1290, %1298 : vector<16x32xf32>
    %1306 = arith.addf %1304, %1305 : vector<16x32xf32>
    %cst_340 = arith.constant dense<0.000000e+00> : vector<16xf32>
    %1307 = vector.multi_reduction <add>, %1306, %cst_340 [1] : vector<16x32xf32> to vector<16xf32>
    %1308 = vector.shape_cast %1307 : vector<16xf32> to vector<16x1xf32>
    %cst_341 = arith.constant 3.200000e+01 : f32
    %1309 = vector.broadcast %cst_341 : f32 to vector<16x1xf32>
    %1310 = arith.divf %1308, %1309 : vector<16x1xf32>
    %1311 = vector.broadcast %1310 : vector<16x1xf32> to vector<16x32xf32>
    %1312 = arith.subf %1306, %1311 : vector<16x32xf32>
    %1313 = arith.mulf %1312, %1312 : vector<16x32xf32>
    %cst_342 = arith.constant dense<0.000000e+00> : vector<16xf32>
    %1314 = vector.multi_reduction <add>, %1313, %cst_342 [1] : vector<16x32xf32> to vector<16xf32>
    %1315 = vector.shape_cast %1314 : vector<16xf32> to vector<16x1xf32>
    %cst_343 = arith.constant 3.200000e+01 : f32
    %1316 = vector.broadcast %cst_343 : f32 to vector<16x1xf32>
    %1317 = arith.divf %1315, %1316 : vector<16x1xf32>
    %cst_344 = arith.constant 9.99999974E-6 : f32
    %1318 = vector.broadcast %cst_344 : f32 to vector<16x1xf32>
    %1319 = arith.addf %1317, %1318 : vector<16x1xf32>
    %1320 = math.rsqrt %1319 : vector<16x1xf32>
    %1321 = vector.broadcast %1320 : vector<16x1xf32> to vector<16x32xf32>
    %1322 = arith.mulf %1312, %1321 : vector<16x32xf32>
    %1323 = vector.broadcast %57 : vector<1x32xf32> to vector<16x32xf32>
    %1324 = arith.mulf %1322, %1323 : vector<16x32xf32>
    %1325 = vector.broadcast %58 : vector<1x32xf32> to vector<16x32xf32>
    %1326 = arith.addf %1324, %1325 : vector<16x32xf32>
    %1327 = math.tanh %1326 : vector<16x32xf32>
    %1328 = arith.mulf %1303, %1327 : vector<16x32xf32>
    %1329 = tpu.iota {dimensions = array<i32: 0>} : vector<8x32xi32>
    %1330 = vector.broadcast %2 : i32 to vector<8x32xi32>
    %1331 = arith.cmpi slt, %1329, %1330 : vector<8x32xi32>
    %1332 = arith.extui %1331 : vector<8x32xi1> to vector<8x32xi32>
    %1333 = arith.sitofp %1332 : vector<8x32xi32> to vector<8x32xf32>
    %1334 = vector.broadcast %2 : i32 to vector<8x32xi32>
    %1335 = arith.cmpi sge, %1329, %1334 : vector<8x32xi32>
    %1336 = vector.broadcast %1 : i32 to vector<8x32xi32>
    %1337 = arith.cmpi slt, %1329, %1336 : vector<8x32xi32>
    %1338 = arith.andi %1335, %1337 : vector<8x32xi1>
    %1339 = arith.extui %1338 : vector<8x32xi1> to vector<8x32xi32>
    %1340 = arith.sitofp %1339 : vector<8x32xi32> to vector<8x32xf32>
    %1341 = vector.extract_strided_slice %1328 {offsets = [0, 0], sizes = [8, 32], strides = [1, 1]} : vector<16x32xf32> to vector<8x32xf32>
    %c0_345 = arith.constant 0 : index
    %c0_346 = arith.constant 0 : index
    %1342 = vector.load %arg24[%c0_345, %c0_346] : memref<1x32xf32, #tpu.memory_space<vmem>>, vector<1x32xf32>
    %1343 = arith.mulf %1341, %1333 : vector<8x32xf32>
    %1344 = vector.broadcast %1342 : vector<1x32xf32> to vector<8x32xf32>
    %1345 = arith.mulf %1343, %1344 : vector<8x32xf32>
    %cst_347 = arith.constant dense<0.000000e+00> : vector<8xf32>
    %1346 = vector.multi_reduction <add>, %1345, %cst_347 [1] : vector<8x32xf32> to vector<8xf32>
    %1347 = vector.shape_cast %1346 : vector<8xf32> to vector<8x1xf32>
    %1348 = arith.mulf %1341, %1340 : vector<8x32xf32>
    %1349 = vector.broadcast %1342 : vector<1x32xf32> to vector<8x32xf32>
    %1350 = arith.mulf %1348, %1349 : vector<8x32xf32>
    %cst_348 = arith.constant dense<0.000000e+00> : vector<8xf32>
    %1351 = vector.multi_reduction <add>, %1350, %cst_348 [1] : vector<8x32xf32> to vector<8xf32>
    %1352 = vector.shape_cast %1351 : vector<8xf32> to vector<8x1xf32>
    %1353 = vector.extract_strided_slice %1333 {offsets = [0, 0], sizes = [8, 1], strides = [1, 1]} : vector<8x32xf32> to vector<8x1xf32>
    %1354 = arith.subf %1347, %1352 : vector<8x1xf32>
    %cst_349 = arith.constant 5.000000e-01 : f32
    %1355 = vector.broadcast %cst_349 : f32 to vector<8x1xf32>
    %1356 = arith.mulf %1355, %1354 : vector<8x1xf32>
    %1357 = math.tanh %1356 : vector<8x1xf32>
    %1358 = arith.mulf %1357, %1353 : vector<8x1xf32>
    %1359 = arith.mulf %1347, %1353 : vector<8x1xf32>
    %1360 = tpu.iota {dimensions = array<i32: 1>} : vector<8x2xi32>
    %c0_i32 = arith.constant 0 : i32
    %1361 = vector.broadcast %c0_i32 : i32 to vector<8x2xi32>
    %1362 = arith.cmpi eq, %1360, %1361 : vector<8x2xi32>
    %1363 = vector.shape_cast %1358 : vector<8x1xf32> to vector<8x1xf32>
    %1364 = vector.broadcast %1363 : vector<8x1xf32> to vector<8x2xf32>
    %1365 = vector.shape_cast %1359 : vector<8x1xf32> to vector<8x1xf32>
    %1366 = vector.broadcast %1365 : vector<8x1xf32> to vector<8x2xf32>
    %1367 = arith.select %1362, %1364, %1366 : vector<8x2xi1>, vector<8x2xf32>
    %c0_350 = arith.constant 0 : index
    %c0_351 = arith.constant 0 : index
    %c0_352 = arith.constant 0 : index
    %1368 = vector.load %arg25[%c0_350, %c0_351, %c0_352] : memref<1x8x2xf32, #tpu.memory_space<vmem>>, vector<1x8x2xf32>
    %1369 = vector.shape_cast %1368 : vector<1x8x2xf32> to vector<8x2xf32>
    %1370 = vector.shape_cast %1367 : vector<8x2xf32> to vector<1x8x2xf32>
    tpu.vector_store %arg25[%c0_350, %c0_351, %c0_352], %1370 {strides = array<i32>} : memref<1x8x2xf32, #tpu.memory_space<vmem>>, vector<1x8x2xf32>,
    return
  }
  func.func @transform_0(%arg0: i32, %arg1: memref<2xi32, #tpu.memory_space<smem>>) -> (i32, i32, i32) {
    %c0_i32 = arith.constant 0 : i32
    %c0_i32_0 = arith.constant 0 : i32
    %c0_i32_1 = arith.constant 0 : i32
    return %arg0, %c0_i32, %c0_i32_0 : i32, i32, i32
  }
  func.func @transform_1(%arg0: i32, %arg1: memref<2xi32, #tpu.memory_space<smem>>) -> (i32, i32) {
    %c0_i32 = arith.constant 0 : i32
    %c0_i32_0 = arith.constant 0 : i32
    %c0_i32_1 = arith.constant 0 : i32
    return %c0_i32, %c0_i32_0 : i32, i32
  }
  func.func @transform_2(%arg0: i32, %arg1: memref<2xi32, #tpu.memory_space<smem>>) -> (i32, i32) {
    %c0_i32 = arith.constant 0 : i32
    %c0_i32_0 = arith.constant 0 : i32
    %c0_i32_1 = arith.constant 0 : i32
    return %c0_i32, %c0_i32_0 : i32, i32
  }
  func.func @transform_3(%arg0: i32, %arg1: memref<2xi32, #tpu.memory_space<smem>>) -> (i32, i32) {
    %c0_i32 = arith.constant 0 : i32
    %c0_i32_0 = arith.constant 0 : i32
    %c0_i32_1 = arith.constant 0 : i32
    return %c0_i32, %c0_i32_0 : i32, i32
  }
  func.func @transform_4(%arg0: i32, %arg1: memref<2xi32, #tpu.memory_space<smem>>) -> (i32, i32, i32) {
    %c0_i32 = arith.constant 0 : i32
    %c0_i32_0 = arith.constant 0 : i32
    %c0_i32_1 = arith.constant 0 : i32
    %c0_i32_2 = arith.constant 0 : i32
    return %c0_i32, %c0_i32_0, %c0_i32_1 : i32, i32, i32
  }
  func.func @transform_5(%arg0: i32, %arg1: memref<2xi32, #tpu.memory_space<smem>>) -> (i32, i32) {
    %c0_i32 = arith.constant 0 : i32
    %c0_i32_0 = arith.constant 0 : i32
    %c0_i32_1 = arith.constant 0 : i32
    return %c0_i32, %c0_i32_0 : i32, i32
  }
  func.func @transform_6(%arg0: i32, %arg1: memref<2xi32, #tpu.memory_space<smem>>) -> (i32, i32, i32) {
    %c0_i32 = arith.constant 0 : i32
    %c0_i32_0 = arith.constant 0 : i32
    %c0_i32_1 = arith.constant 0 : i32
    %c0_i32_2 = arith.constant 0 : i32
    return %c0_i32, %c0_i32_0, %c0_i32_1 : i32, i32, i32
  }
  func.func @transform_7(%arg0: i32, %arg1: memref<2xi32, #tpu.memory_space<smem>>) -> (i32, i32) {
    %c0_i32 = arith.constant 0 : i32
    %c0_i32_0 = arith.constant 0 : i32
    %c0_i32_1 = arith.constant 0 : i32
    return %c0_i32, %c0_i32_0 : i32, i32
  }
  func.func @transform_8(%arg0: i32, %arg1: memref<2xi32, #tpu.memory_space<smem>>) -> (i32, i32) {
    %c0_i32 = arith.constant 0 : i32
    %c0_i32_0 = arith.constant 0 : i32
    %c0_i32_1 = arith.constant 0 : i32
    return %c0_i32, %c0_i32_0 : i32, i32
  }
  func.func @transform_9(%arg0: i32, %arg1: memref<2xi32, #tpu.memory_space<smem>>) -> (i32, i32) {
    %c0_i32 = arith.constant 0 : i32
    %c0_i32_0 = arith.constant 0 : i32
    %c0_i32_1 = arith.constant 0 : i32
    return %c0_i32, %c0_i32_0 : i32, i32
  }
  func.func @transform_10(%arg0: i32, %arg1: memref<2xi32, #tpu.memory_space<smem>>) -> (i32, i32) {
    %c0_i32 = arith.constant 0 : i32
    %c0_i32_0 = arith.constant 0 : i32
    %c0_i32_1 = arith.constant 0 : i32
    return %c0_i32, %c0_i32_0 : i32, i32
  }
  func.func @transform_11(%arg0: i32, %arg1: memref<2xi32, #tpu.memory_space<smem>>) -> (i32, i32) {
    %c0_i32 = arith.constant 0 : i32
    %c0_i32_0 = arith.constant 0 : i32
    %c0_i32_1 = arith.constant 0 : i32
    return %c0_i32, %c0_i32_0 : i32, i32
  }
  func.func @transform_12(%arg0: i32, %arg1: memref<2xi32, #tpu.memory_space<smem>>) -> (i32, i32) {
    %c0_i32 = arith.constant 0 : i32
    %c0_i32_0 = arith.constant 0 : i32
    %c0_i32_1 = arith.constant 0 : i32
    return %c0_i32, %c0_i32_0 : i32, i32
  }
  func.func @transform_13(%arg0: i32, %arg1: memref<2xi32, #tpu.memory_space<smem>>) -> (i32, i32) {
    %c0_i32 = arith.constant 0 : i32
    %c0_i32_0 = arith.constant 0 : i32
    %c0_i32_1 = arith.constant 0 : i32
    return %c0_i32, %c0_i32_0 : i32, i32
  }
  func.func @transform_14(%arg0: i32, %arg1: memref<2xi32, #tpu.memory_space<smem>>) -> (i32, i32) {
    %c0_i32 = arith.constant 0 : i32
    %c0_i32_0 = arith.constant 0 : i32
    %c0_i32_1 = arith.constant 0 : i32
    return %c0_i32, %c0_i32_0 : i32, i32
  }
  func.func @transform_15(%arg0: i32, %arg1: memref<2xi32, #tpu.memory_space<smem>>) -> (i32, i32) {
    %c0_i32 = arith.constant 0 : i32
    %c0_i32_0 = arith.constant 0 : i32
    %c0_i32_1 = arith.constant 0 : i32
    return %c0_i32, %c0_i32_0 : i32, i32
  }
  func.func @transform_16(%arg0: i32, %arg1: memref<2xi32, #tpu.memory_space<smem>>) -> (i32, i32) {
    %c0_i32 = arith.constant 0 : i32
    %c0_i32_0 = arith.constant 0 : i32
    %c0_i32_1 = arith.constant 0 : i32
    return %c0_i32, %c0_i32_0 : i32, i32
  }
  func.func @transform_17(%arg0: i32, %arg1: memref<2xi32, #tpu.memory_space<smem>>) -> (i32, i32) {
    %c0_i32 = arith.constant 0 : i32
    %c0_i32_0 = arith.constant 0 : i32
    %c0_i32_1 = arith.constant 0 : i32
    return %c0_i32, %c0_i32_0 : i32, i32
  }
  func.func @transform_18(%arg0: i32, %arg1: memref<2xi32, #tpu.memory_space<smem>>) -> (i32, i32) {
    %c0_i32 = arith.constant 0 : i32
    %c0_i32_0 = arith.constant 0 : i32
    %c0_i32_1 = arith.constant 0 : i32
    return %c0_i32, %c0_i32_0 : i32, i32
  }
  func.func @transform_19(%arg0: i32, %arg1: memref<2xi32, #tpu.memory_space<smem>>) -> (i32, i32) {
    %c0_i32 = arith.constant 0 : i32
    %c0_i32_0 = arith.constant 0 : i32
    %c0_i32_1 = arith.constant 0 : i32
    return %c0_i32, %c0_i32_0 : i32, i32
  }
  func.func @transform_20(%arg0: i32, %arg1: memref<2xi32, #tpu.memory_space<smem>>) -> (i32, i32) {
    %c0_i32 = arith.constant 0 : i32
    %c0_i32_0 = arith.constant 0 : i32
    %c0_i32_1 = arith.constant 0 : i32
    return %c0_i32, %c0_i32_0 : i32, i32
  }
  func.func @transform_21(%arg0: i32, %arg1: memref<2xi32, #tpu.memory_space<smem>>) -> (i32, i32) {
    %c0_i32 = arith.constant 0 : i32
    %c0_i32_0 = arith.constant 0 : i32
    %c0_i32_1 = arith.constant 0 : i32
    return %c0_i32, %c0_i32_0 : i32, i32
  }
  func.func @transform_22(%arg0: i32, %arg1: memref<2xi32, #tpu.memory_space<smem>>) -> (i32, i32) {
    %c0_i32 = arith.constant 0 : i32
    %c0_i32_0 = arith.constant 0 : i32
    %c0_i32_1 = arith.constant 0 : i32
    return %c0_i32, %c0_i32_0 : i32, i32
  }
  func.func @transform_23(%arg0: i32, %arg1: memref<2xi32, #tpu.memory_space<smem>>) -> (i32, i32, i32) {
    %c0_i32 = arith.constant 0 : i32
    %c0_i32_0 = arith.constant 0 : i32
    %c0_i32_1 = arith.constant 0 : i32
    return %arg0, %c0_i32, %c0_i32_0 : i32, i32, i32
  }
}

</mosaic_0001>

<llo_original>
// kernel: tpu_custom_call.1
$region0: #{tpu_custom_call.1}
  #allocation0 [shape = 'u32[]', space=smem, size = 0x4, offset = 0x4, fixed_abs, tag = 'smem constant byte address 0x4 - core index']
  #allocation1 [shape = 'u32[144,128]{1,0:T(1,128)}', space=vmem, size = 0x12000, scoped, tag = 'internal scratch']
  #allocation2 [shape = 's32[1]{0}', space=sflag, size = 0x4, scoped, tag = 'scoped memory for tpu_custom_call.1']
  #allocation3 [shape = 'u8[512]{0}', space=smem, size = 0x200, scoped, tag = 'prefetched SMEM operand 0']
  %s0 = inlined_call_operand.vmem [shape: s32[2], index: 0, kind: input, shape index: {}]
  %s1 = inlined_call_operand.vmem [shape: f32[2,16,8], index: 1, kind: input, shape index: {}]
  %s2 = inlined_call_operand.vmem [shape: f32[1,32], index: 2, kind: input, shape index: {}]
  %s3 = inlined_call_operand.vmem [shape: f32[1,32], index: 3, kind: input, shape index: {}]
  %s4 = inlined_call_operand.vmem [shape: f32[1,32], index: 4, kind: input, shape index: {}]
  %s5 = inlined_call_operand.hbm [shape: f32[2,32,32], index: 5, kind: input, shape index: {}]
  %s6 = inlined_call_operand.vmem [shape: f32[2,32], index: 6, kind: input, shape index: {}]
  %s7 = inlined_call_operand.hbm [shape: f32[2,32,32], index: 7, kind: input, shape index: {}]
  %s8 = inlined_call_operand.vmem [shape: f32[2,32], index: 8, kind: input, shape index: {}]
  %s9 = inlined_call_operand.hbm [shape: f32[32,128], index: 9, kind: input, shape index: {}]
  %s10 = inlined_call_operand.hbm [shape: f32[32,128], index: 10, kind: input, shape index: {}]
  %s11 = inlined_call_operand.vmem [shape: f32[1,128], index: 11, kind: input, shape index: {}]
  %s12 = inlined_call_operand.vmem [shape: f32[1,128], index: 12, kind: input, shape index: {}]
  %s13 = inlined_call_operand.vmem [shape: f32[1,128], index: 13, kind: input, shape index: {}]
  %s14 = inlined_call_operand.vmem [shape: f32[1,32], index: 14, kind: input, shape index: {}]
  %s15 = inlined_call_operand.vmem [shape: f32[1,32], index: 15, kind: input, shape index: {}]
  %s16 = inlined_call_operand.vmem [shape: f32[64,128], index: 16, kind: input, shape index: {}]
  %s17 = inlined_call_operand.hbm [shape: f32[32,128], index: 17, kind: input, shape index: {}]
  %s18 = inlined_call_operand.vmem [shape: f32[1,128], index: 18, kind: input, shape index: {}]
  %s19 = inlined_call_operand.vmem [shape: f32[1,128], index: 19, kind: input, shape index: {}]
  %s20 = inlined_call_operand.vmem [shape: f32[1,128], index: 20, kind: input, shape index: {}]
  %s21 = inlined_call_operand.vmem [shape: f32[1,32], index: 21, kind: input, shape index: {}]
  %s22 = inlined_call_operand.vmem [shape: f32[1,32], index: 22, kind: input, shape index: {}]
  %s23 = inlined_call_operand.vmem [shape: f32[1,32], index: 23, kind: input, shape index: {}]
  %s24 = inlined_call_operand.vmem [shape: f32[2,8,2], index: 24, kind: output, shape index: {}]
  %s25 = sld [smem:[#allocation0]]
  $region145: #{tpu_custom_call.1} parent=0
    _
  %s27 = ssub.s32 1, %s25
  %s28 = scalar_select 0, %s27, %s25
  %s29 = sshll.u32 %s0, 4
  %s30 = int_to_ptr.vmem [resolvable:$true] %s29
  %32 = dma.vmem_to_smem %s30, 16, [#allocation3], [#allocation2]
  %33 = dma.done [#allocation2], 16
  %34 = sfence
  $region1: #{tpu_custom_call.1} parent=0
    #allocation4 [shape = 'u8[32768]{0}', space=vmem, size = 0x8000, scoped, tag = 'input window, operand 5, single buffered']
    #allocation5 [shape = 's32[2]{0}', space=sflag, size = 0x8, scoped, tag = 'scoped memory for tpu_custom_call.1']
    #allocation6 [shape = 'u8[32768]{0}', space=vmem, size = 0x8000, scoped, tag = 'input window, operand 7, single buffered']
    #allocation7 [shape = 's32[1]{0}', space=sflag, size = 0x4, scoped, tag = 'scoped memory for tpu_custom_call.1']
    #allocation8 [shape = 'u8[16384]{0}', space=vmem, size = 0x4000, scoped, tag = 'input window, operand 9, single buffered']
    #allocation9 [shape = 'u8[16384]{0}', space=vmem, size = 0x4000, scoped, tag = 'input window, operand 10, single buffered']
    #allocation10 [shape = 's32[1]{0}', space=sflag, size = 0x4, scoped, tag = 'scoped memory for tpu_custom_call.1']
    #allocation11 [shape = 'u8[16384]{0}', space=vmem, size = 0x4000, scoped, tag = 'input window, operand 17, single buffered']
    %35 = vsyncpa [#allocation5], 0
    %36 = vsyncpa [#allocation7], 0
    %37 = vsyncpa [#allocation10], 0
    loop: start=0, step=1, limit=4
    $region2: #{tpu_custom_call.1} parent=1 // loop_pre_header
      _
    $region3: #{tpu_custom_call.1} parent=1 // loop_header
      %s39 = sphi 0, %s43
      %p40 = scmp.ge.s32.totalorder %s39, 4
      %s49 = sphi 0, %s51
      %s52 = sphi 0, %s49
      %s53 = sphi 0, %s52
      %s69 = sphi 0, %s53
      %s73 = sphi 0, %s73
      %s75 = sphi 0, %s73
      %s76 = sphi 0, %s75
      %s90 = sphi 0, %s76
      %s94 = sphi 0, %s94
      %s96 = sphi 0, %s94
      %s97 = sphi 0, %s96
      %s111 = sphi 0, %s97
      %s115 = sphi 0, %s115
      %s117 = sphi 0, %s115
      %s118 = sphi 0, %s117
      %s132 = sphi 0, %s118
      %s136 = sphi 0, %s136
      %s138 = sphi 0, %s136
      %s139 = sphi 0, %s138
      %s153 = sphi 0, %s139
      %s157 = sphi 0, %s157
      %s159 = sphi 0, %s157
      %s160 = sphi 0, %s159
      %s174 = sphi 0, %s160
      %s178 = sphi 0, %s178
      %s180 = sphi 0, %s178
      %s181 = sphi 0, %s180
      %s195 = sphi 0, %s181
      %s199 = sphi 0, %s199
      %s201 = sphi 0, %s199
      %s202 = sphi 0, %s201
      %s216 = sphi 0, %s202
      %s220 = sphi 0, %s220
      %s222 = sphi 0, %s220
      %s223 = sphi 0, %s222
      %s237 = sphi 0, %s223
      %s241 = sphi 0, %s241
      %s243 = sphi 0, %s241
      %s244 = sphi 0, %s243
      %s258 = sphi 0, %s244
      %s262 = sphi 0, %s262
      %s264 = sphi 0, %s262
      %s265 = sphi 0, %s264
      %s279 = sphi 0, %s265
      %s283 = sphi 0, %s283
      %s285 = sphi 0, %s283
      %s286 = sphi 0, %s285
      %s300 = sphi 0, %s286
      %s304 = sphi 0, %s304
      %s306 = sphi 0, %s304
      %s307 = sphi 0, %s306
      %s321 = sphi 0, %s307
      %s325 = sphi 0, %s325
      %s327 = sphi 0, %s325
      %s328 = sphi 0, %s327
      %s342 = sphi 0, %s328
      %s346 = sphi 0, %s346
      %s348 = sphi 0, %s346
      %s349 = sphi 0, %s348
      %s363 = sphi 0, %s349
      %s367 = sphi 0, %s367
      %s369 = sphi 0, %s367
      %s370 = sphi 0, %s369
      %s384 = sphi 0, %s370
      %s388 = sphi 0, %s388
      %s390 = sphi 0, %s388
      %s391 = sphi 0, %s390
      %s405 = sphi 0, %s391
      %s409 = sphi 0, %s409
      %s411 = sphi 0, %s409
      %s412 = sphi 0, %s411
      %s426 = sphi 0, %s412
      %s430 = sphi 0, %s430
      %s432 = sphi 0, %s430
      %s433 = sphi 0, %s432
      %s447 = sphi 0, %s433
      %s451 = sphi 0, %s451
      %s453 = sphi 0, %s451
      %s454 = sphi 0, %s453
      %s468 = sphi 0, %s454
      %s472 = sphi 0, %s472
      %s474 = sphi 0, %s472
      %s475 = sphi 0, %s474
      %s489 = sphi 0, %s475
      %s493 = sphi 0, %s493
      %s495 = sphi 0, %s493
      %s496 = sphi 0, %s495
      %s510 = sphi 0, %s496
      %s514 = sphi 0, %s514
      %s516 = sphi 0, %s514
      %s517 = sphi 0, %s516
      %s531 = sphi 0, %s517
      %s537 = sphi 0, %s539
      %s540 = sphi 0, %s537
      %s541 = sphi 0, %s540
      %s557 = sphi 0, %s541
    $region4: #{tpu_custom_call.1} parent=1 // loop_header_branch
      %42 = sbr.rel (%p40) target = $region8
    $region5: #{tpu_custom_call.1} parent=1 // loop_body
      %s44 = ssub.s32 %s39, 1
      %s45 = ssub.s32 %s39, 2
      %s46 = sadd.s32 %s39, 1
      %s47 = ssub.s32 %s39, %s46
      %p48 = scmp.eq.s32.totalorder %s47, 0
      %s50 = sadd.s32 %s49, 1
      %s51 = scalar_select %p48, %s49, %s50
      %p54 = pneg %p48
      %p55 = scmp.eq.s32.totalorder %s39, 1
      %p56 = por %p54, %p55
      %p57 = scmp.ne.s32.totalorder %s49, %s52
      %p58 = scmp.eq.s32.totalorder %s39, 0
      %p59 = por %p57, %p58
      %p60 = scmp.ne.s32.totalorder %s49, %s52
      %p61 = scmp.eq.s32.totalorder %s44, 1
      %p62 = por %p60, %p61
      %p63 = scmp.ne.s32.totalorder %s52, %s53
      %p64 = scmp.eq.s32.totalorder %s44, 0
      %p65 = por %p63, %p64
      %p66 = scmp.ne.s32.totalorder %s52, %s53
      %p67 = scmp.eq.s32.totalorder %s45, 1
      %p68 = por %p66, %p67
      %p70 = scmp.ne.s32.totalorder %s53, %s69
      %p71 = scmp.eq.s32.totalorder %s45, 0
      %p72 = por %p70, %p71
      %s74 = sadd.s32 %s73, 1
      %p77 = scmp.eq.s32.totalorder %s39, 1
      %p78 = scmp.ne.s32.totalorder %s73, %s75
      %p79 = scmp.eq.s32.totalorder %s39, 0
      %p80 = por %p78, %p79
      %p81 = scmp.ne.s32.totalorder %s73, %s75
      %p82 = scmp.eq.s32.totalorder %s44, 1
      %p83 = por %p81, %p82
      %p84 = scmp.ne.s32.totalorder %s75, %s76
      %p85 = scmp.eq.s32.totalorder %s44, 0
      %p86 = por %p84, %p85
      %p87 = scmp.ne.s32.totalorder %s75, %s76
      %p88 = scmp.eq.s32.totalorder %s45, 1
      %p89 = por %p87, %p88
      %p91 = scmp.ne.s32.totalorder %s76, %s90
      %p92 = scmp.eq.s32.totalorder %s45, 0
      %p93 = por %p91, %p92
      %s95 = sadd.s32 %s94, 1
      %p98 = scmp.eq.s32.totalorder %s39, 1
      %p99 = scmp.ne.s32.totalorder %s94, %s96
      %p100 = scmp.eq.s32.totalorder %s39, 0
      %p101 = por %p99, %p100
      %p102 = scmp.ne.s32.totalorder %s94, %s96
      %p103 = scmp.eq.s32.totalorder %s44, 1
      %p104 = por %p102, %p103
      %p105 = scmp.ne.s32.totalorder %s96, %s97
      %p106 = scmp.eq.s32.totalorder %s44, 0
      %p107 = por %p105, %p106
      %p108 = scmp.ne.s32.totalorder %s96, %s97
      %p109 = scmp.eq.s32.totalorder %s45, 1
      %p110 = por %p108, %p109
      %p112 = scmp.ne.s32.totalorder %s97, %s111
      %p113 = scmp.eq.s32.totalorder %s45, 0
      %p114 = por %p112, %p113
      %s116 = sadd.s32 %s115, 1
      %p119 = scmp.eq.s32.totalorder %s39, 1
      %p120 = scmp.ne.s32.totalorder %s115, %s117
      %p121 = scmp.eq.s32.totalorder %s39, 0
      %p122 = por %p120, %p121
      %p123 = scmp.ne.s32.totalorder %s115, %s117
      %p124 = scmp.eq.s32.totalorder %s44, 1
      %p125 = por %p123, %p124
      %p126 = scmp.ne.s32.totalorder %s117, %s118
      %p127 = scmp.eq.s32.totalorder %s44, 0
      %p128 = por %p126, %p127
      %p129 = scmp.ne.s32.totalorder %s117, %s118
      %p130 = scmp.eq.s32.totalorder %s45, 1
      %p131 = por %p129, %p130
      %p133 = scmp.ne.s32.totalorder %s118, %s132
      %p134 = scmp.eq.s32.totalorder %s45, 0
      %p135 = por %p133, %p134
      %s137 = sadd.s32 %s136, 1
      %p140 = scmp.eq.s32.totalorder %s39, 1
      %p141 = scmp.ne.s32.totalorder %s136, %s138
      %p142 = scmp.eq.s32.totalorder %s39, 0
      %p143 = por %p141, %p142
      %p144 = scmp.ne.s32.totalorder %s136, %s138
      %p145 = scmp.eq.s32.totalorder %s44, 1
      %p146 = por %p144, %p145
      %p147 = scmp.ne.s32.totalorder %s138, %s139
      %p148 = scmp.eq.s32.totalorder %s44, 0
      %p149 = por %p147, %p148
      %p150 = scmp.ne.s32.totalorder %s138, %s139
      %p151 = scmp.eq.s32.totalorder %s45, 1
      %p152 = por %p150, %p151
      %p154 = scmp.ne.s32.totalorder %s139, %s153
      %p155 = scmp.eq.s32.totalorder %s45, 0
      %p156 = por %p154, %p155
      %s158 = sadd.s32 %s157, 1
      %p161 = scmp.eq.s32.totalorder %s39, 1
      %p162 = scmp.ne.s32.totalorder %s157, %s159
      %p163 = scmp.eq.s32.totalorder %s39, 0
      %p164 = por %p162, %p163
      %p165 = scmp.ne.s32.totalorder %s157, %s159
      %p166 = scmp.eq.s32.totalorder %s44, 1
      %p167 = por %p165, %p166
      %p168 = scmp.ne.s32.totalorder %s159, %s160
      %p169 = scmp.eq.s32.totalorder %s44, 0
      %p170 = por %p168, %p169
      %p171 = scmp.ne.s32.totalorder %s159, %s160
      %p172 = scmp.eq.s32.totalorder %s45, 1
      %p173 = por %p171, %p172
      %p175 = scmp.ne.s32.totalorder %s160, %s174
      %p176 = scmp.eq.s32.totalorder %s45, 0
      %p177 = por %p175, %p176
      %s179 = sadd.s32 %s178, 1
      %p182 = scmp.eq.s32.totalorder %s39, 1
      %p183 = scmp.ne.s32.totalorder %s178, %s180
      %p184 = scmp.eq.s32.totalorder %s39, 0
      %p185 = por %p183, %p184
      %p186 = scmp.ne.s32.totalorder %s178, %s180
      %p187 = scmp.eq.s32.totalorder %s44, 1
      %p188 = por %p186, %p187
      %p189 = scmp.ne.s32.totalorder %s180, %s181
      %p190 = scmp.eq.s32.totalorder %s44, 0
      %p191 = por %p189, %p190
      %p192 = scmp.ne.s32.totalorder %s180, %s181
      %p193 = scmp.eq.s32.totalorder %s45, 1
      %p194 = por %p192, %p193
      %p196 = scmp.ne.s32.totalorder %s181, %s195
      %p197 = scmp.eq.s32.totalorder %s45, 0
      %p198 = por %p196, %p197
      %s200 = sadd.s32 %s199, 1
      %p203 = scmp.eq.s32.totalorder %s39, 1
      %p204 = scmp.ne.s32.totalorder %s199, %s201
      %p205 = scmp.eq.s32.totalorder %s39, 0
      %p206 = por %p204, %p205
      %p207 = scmp.ne.s32.totalorder %s199, %s201
      %p208 = scmp.eq.s32.totalorder %s44, 1
      %p209 = por %p207, %p208
      %p210 = scmp.ne.s32.totalorder %s201, %s202
      %p211 = scmp.eq.s32.totalorder %s44, 0
      %p212 = por %p210, %p211
      %p213 = scmp.ne.s32.totalorder %s201, %s202
      %p214 = scmp.eq.s32.totalorder %s45, 1
      %p215 = por %p213, %p214
      %p217 = scmp.ne.s32.totalorder %s202, %s216
      %p218 = scmp.eq.s32.totalorder %s45, 0
      %p219 = por %p217, %p218
      %s221 = sadd.s32 %s220, 1
      %p224 = scmp.eq.s32.totalorder %s39, 1
      %p225 = scmp.ne.s32.totalorder %s220, %s222
      %p226 = scmp.eq.s32.totalorder %s39, 0
      %p227 = por %p225, %p226
      %p228 = scmp.ne.s32.totalorder %s220, %s222
      %p229 = scmp.eq.s32.totalorder %s44, 1
      %p230 = por %p228, %p229
      %p231 = scmp.ne.s32.totalorder %s222, %s223
      %p232 = scmp.eq.s32.totalorder %s44, 0
      %p233 = por %p231, %p232
      %p234 = scmp.ne.s32.totalorder %s222, %s223
      %p235 = scmp.eq.s32.totalorder %s45, 1
      %p236 = por %p234, %p235
      %p238 = scmp.ne.s32.totalorder %s223, %s237
      %p239 = scmp.eq.s32.totalorder %s45, 0
      %p240 = por %p238, %p239
      %s242 = sadd.s32 %s241, 1
      %p245 = scmp.eq.s32.totalorder %s39, 1
      %p246 = scmp.ne.s32.totalorder %s241, %s243
      %p247 = scmp.eq.s32.totalorder %s39, 0
      %p248 = por %p246, %p247
      %p249 = scmp.ne.s32.totalorder %s241, %s243
      %p250 = scmp.eq.s32.totalorder %s44, 1
      %p251 = por %p249, %p250
      %p252 = scmp.ne.s32.totalorder %s243, %s244
      %p253 = scmp.eq.s32.totalorder %s44, 0
      %p254 = por %p252, %p253
      %p255 = scmp.ne.s32.totalorder %s243, %s244
      %p256 = scmp.eq.s32.totalorder %s45, 1
      %p257 = por %p255, %p256
      %p259 = scmp.ne.s32.totalorder %s244, %s258
      %p260 = scmp.eq.s32.totalorder %s45, 0
      %p261 = por %p259, %p260
      %s263 = sadd.s32 %s262, 1
      %p266 = scmp.eq.s32.totalorder %s39, 1
      %p267 = scmp.ne.s32.totalorder %s262, %s264
      %p268 = scmp.eq.s32.totalorder %s39, 0
      %p269 = por %p267, %p268
      %p270 = scmp.ne.s32.totalorder %s262, %s264
      %p271 = scmp.eq.s32.totalorder %s44, 1
      %p272 = por %p270, %p271
      %p273 = scmp.ne.s32.totalorder %s264, %s265
      %p274 = scmp.eq.s32.totalorder %s44, 0
      %p275 = por %p273, %p274
      %p276 = scmp.ne.s32.totalorder %s264, %s265
      %p277 = scmp.eq.s32.totalorder %s45, 1
      %p278 = por %p276, %p277
      %p280 = scmp.ne.s32.totalorder %s265, %s279
      %p281 = scmp.eq.s32.totalorder %s45, 0
      %p282 = por %p280, %p281
      %s284 = sadd.s32 %s283, 1
      %p287 = scmp.eq.s32.totalorder %s39, 1
      %p288 = scmp.ne.s32.totalorder %s283, %s285
      %p289 = scmp.eq.s32.totalorder %s39, 0
      %p290 = por %p288, %p289
      %p291 = scmp.ne.s32.totalorder %s283, %s285
      %p292 = scmp.eq.s32.totalorder %s44, 1
      %p293 = por %p291, %p292
      %p294 = scmp.ne.s32.totalorder %s285, %s286
      %p295 = scmp.eq.s32.totalorder %s44, 0
      %p296 = por %p294, %p295
      %p297 = scmp.ne.s32.totalorder %s285, %s286
      %p298 = scmp.eq.s32.totalorder %s45, 1
      %p299 = por %p297, %p298
      %p301 = scmp.ne.s32.totalorder %s286, %s300
      %p302 = scmp.eq.s32.totalorder %s45, 0
      %p303 = por %p301, %p302
      %s305 = sadd.s32 %s304, 1
      %p308 = scmp.eq.s32.totalorder %s39, 1
      %p309 = scmp.ne.s32.totalorder %s304, %s306
      %p310 = scmp.eq.s32.totalorder %s39, 0
      %p311 = por %p309, %p310
      %p312 = scmp.ne.s32.totalorder %s304, %s306
      %p313 = scmp.eq.s32.totalorder %s44, 1
      %p314 = por %p312, %p313
      %p315 = scmp.ne.s32.totalorder %s306, %s307
      %p316 = scmp.eq.s32.totalorder %s44, 0
      %p317 = por %p315, %p316
      %p318 = scmp.ne.s32.totalorder %s306, %s307
      %p319 = scmp.eq.s32.totalorder %s45, 1
      %p320 = por %p318, %p319
      %p322 = scmp.ne.s32.totalorder %s307, %s321
      %p323 = scmp.eq.s32.totalorder %s45, 0
      %p324 = por %p322, %p323
      %s326 = sadd.s32 %s325, 1
      %p329 = scmp.eq.s32.totalorder %s39, 1
      %p330 = scmp.ne.s32.totalorder %s325, %s327
      %p331 = scmp.eq.s32.totalorder %s39, 0
      %p332 = por %p330, %p331
      %p333 = scmp.ne.s32.totalorder %s325, %s327
      %p334 = scmp.eq.s32.totalorder %s44, 1
      %p335 = por %p333, %p334
      %p336 = scmp.ne.s32.totalorder %s327, %s328
      %p337 = scmp.eq.s32.totalorder %s44, 0
      %p338 = por %p336, %p337
      %p339 = scmp.ne.s32.totalorder %s327, %s328
      %p340 = scmp.eq.s32.totalorder %s45, 1
      %p341 = por %p339, %p340
      %p343 = scmp.ne.s32.totalorder %s328, %s342
      %p344 = scmp.eq.s32.totalorder %s45, 0
      %p345 = por %p343, %p344
      %s347 = sadd.s32 %s346, 1
      %p350 = scmp.eq.s32.totalorder %s39, 1
      %p351 = scmp.ne.s32.totalorder %s346, %s348
      %p352 = scmp.eq.s32.totalorder %s39, 0
      %p353 = por %p351, %p352
      %p354 = scmp.ne.s32.totalorder %s346, %s348
      %p355 = scmp.eq.s32.totalorder %s44, 1
      %p356 = por %p354, %p355
      %p357 = scmp.ne.s32.totalorder %s348, %s349
      %p358 = scmp.eq.s32.totalorder %s44, 0
      %p359 = por %p357, %p358
      %p360 = scmp.ne.s32.totalorder %s348, %s349
      %p361 = scmp.eq.s32.totalorder %s45, 1
      %p362 = por %p360, %p361
      %p364 = scmp.ne.s32.totalorder %s349, %s363
      %p365 = scmp.eq.s32.totalorder %s45, 0
      %p366 = por %p364, %p365
      %s368 = sadd.s32 %s367, 1
      %p371 = scmp.eq.s32.totalorder %s39, 1
      %p372 = scmp.ne.s32.totalorder %s367, %s369
      %p373 = scmp.eq.s32.totalorder %s39, 0
      %p374 = por %p372, %p373
      %p375 = scmp.ne.s32.totalorder %s367, %s369
      %p376 = scmp.eq.s32.totalorder %s44, 1
      %p377 = por %p375, %p376
      %p378 = scmp.ne.s32.totalorder %s369, %s370
      %p379 = scmp.eq.s32.totalorder %s44, 0
      %p380 = por %p378, %p379
      %p381 = scmp.ne.s32.totalorder %s369, %s370
      %p382 = scmp.eq.s32.totalorder %s45, 1
      %p383 = por %p381, %p382
      %p385 = scmp.ne.s32.totalorder %s370, %s384
      %p386 = scmp.eq.s32.totalorder %s45, 0
      %p387 = por %p385, %p386
      %s389 = sadd.s32 %s388, 1
      %p392 = scmp.eq.s32.totalorder %s39, 1
      %p393 = scmp.ne.s32.totalorder %s388, %s390
      %p394 = scmp.eq.s32.totalorder %s39, 0
      %p395 = por %p393, %p394
      %p396 = scmp.ne.s32.totalorder %s388, %s390
      %p397 = scmp.eq.s32.totalorder %s44, 1
      %p398 = por %p396, %p397
      %p399 = scmp.ne.s32.totalorder %s390, %s391
      %p400 = scmp.eq.s32.totalorder %s44, 0
      %p401 = por %p399, %p400
      %p402 = scmp.ne.s32.totalorder %s390, %s391
      %p403 = scmp.eq.s32.totalorder %s45, 1
      %p404 = por %p402, %p403
      %p406 = scmp.ne.s32.totalorder %s391, %s405
      %p407 = scmp.eq.s32.totalorder %s45, 0
      %p408 = por %p406, %p407
      %s410 = sadd.s32 %s409, 1
      %p413 = scmp.eq.s32.totalorder %s39, 1
      %p414 = scmp.ne.s32.totalorder %s409, %s411
      %p415 = scmp.eq.s32.totalorder %s39, 0
      %p416 = por %p414, %p415
      %p417 = scmp.ne.s32.totalorder %s409, %s411
      %p418 = scmp.eq.s32.totalorder %s44, 1
      %p419 = por %p417, %p418
      %p420 = scmp.ne.s32.totalorder %s411, %s412
      %p421 = scmp.eq.s32.totalorder %s44, 0
      %p422 = por %p420, %p421
      %p423 = scmp.ne.s32.totalorder %s411, %s412
      %p424 = scmp.eq.s32.totalorder %s45, 1
      %p425 = por %p423, %p424
      %p427 = scmp.ne.s32.totalorder %s412, %s426
      %p428 = scmp.eq.s32.totalorder %s45, 0
      %p429 = por %p427, %p428
      %s431 = sadd.s32 %s430, 1
      %p434 = scmp.eq.s32.totalorder %s39, 1
      %p435 = scmp.ne.s32.totalorder %s430, %s432
      %p436 = scmp.eq.s32.totalorder %s39, 0
      %p437 = por %p435, %p436
      %p438 = scmp.ne.s32.totalorder %s430, %s432
      %p439 = scmp.eq.s32.totalorder %s44, 1
      %p440 = por %p438, %p439
      %p441 = scmp.ne.s32.totalorder %s432, %s433
      %p442 = scmp.eq.s32.totalorder %s44, 0
      %p443 = por %p441, %p442
      %p444 = scmp.ne.s32.totalorder %s432, %s433
      %p445 = scmp.eq.s32.totalorder %s45, 1
      %p446 = por %p444, %p445
      %p448 = scmp.ne.s32.totalorder %s433, %s447
      %p449 = scmp.eq.s32.totalorder %s45, 0
      %p450 = por %p448, %p449
      %s452 = sadd.s32 %s451, 1
      %p455 = scmp.eq.s32.totalorder %s39, 1
      %p456 = scmp.ne.s32.totalorder %s451, %s453
      %p457 = scmp.eq.s32.totalorder %s39, 0
      %p458 = por %p456, %p457
      %p459 = scmp.ne.s32.totalorder %s451, %s453
      %p460 = scmp.eq.s32.totalorder %s44, 1
      %p461 = por %p459, %p460
      %p462 = scmp.ne.s32.totalorder %s453, %s454
      %p463 = scmp.eq.s32.totalorder %s44, 0
      %p464 = por %p462, %p463
      %p465 = scmp.ne.s32.totalorder %s453, %s454
      %p466 = scmp.eq.s32.totalorder %s45, 1
      %p467 = por %p465, %p466
      %p469 = scmp.ne.s32.totalorder %s454, %s468
      %p470 = scmp.eq.s32.totalorder %s45, 0
      %p471 = por %p469, %p470
      %s473 = sadd.s32 %s472, 1
      %p476 = scmp.eq.s32.totalorder %s39, 1
      %p477 = scmp.ne.s32.totalorder %s472, %s474
      %p478 = scmp.eq.s32.totalorder %s39, 0
      %p479 = por %p477, %p478
      %p480 = scmp.ne.s32.totalorder %s472, %s474
      %p481 = scmp.eq.s32.totalorder %s44, 1
      %p482 = por %p480, %p481
      %p483 = scmp.ne.s32.totalorder %s474, %s475
      %p484 = scmp.eq.s32.totalorder %s44, 0
      %p485 = por %p483, %p484
      %p486 = scmp.ne.s32.totalorder %s474, %s475
      %p487 = scmp.eq.s32.totalorder %s45, 1
      %p488 = por %p486, %p487
      %p490 = scmp.ne.s32.totalorder %s475, %s489
      %p491 = scmp.eq.s32.totalorder %s45, 0
      %p492 = por %p490, %p491
      %s494 = sadd.s32 %s493, 1
      %p497 = scmp.eq.s32.totalorder %s39, 1
      %p498 = scmp.ne.s32.totalorder %s493, %s495
      %p499 = scmp.eq.s32.totalorder %s39, 0
      %p500 = por %p498, %p499
      %p501 = scmp.ne.s32.totalorder %s493, %s495
      %p502 = scmp.eq.s32.totalorder %s44, 1
      %p503 = por %p501, %p502
      %p504 = scmp.ne.s32.totalorder %s495, %s496
      %p505 = scmp.eq.s32.totalorder %s44, 0
      %p506 = por %p504, %p505
      %p507 = scmp.ne.s32.totalorder %s495, %s496
      %p508 = scmp.eq.s32.totalorder %s45, 1
      %p509 = por %p507, %p508
      %p511 = scmp.ne.s32.totalorder %s496, %s510
      %p512 = scmp.eq.s32.totalorder %s45, 0
      %p513 = por %p511, %p512
      %s515 = sadd.s32 %s514, 1
      %p518 = scmp.eq.s32.totalorder %s39, 1
      %p519 = scmp.ne.s32.totalorder %s514, %s516
      %p520 = scmp.eq.s32.totalorder %s39, 0
      %p521 = por %p519, %p520
      %p522 = scmp.ne.s32.totalorder %s514, %s516
      %p523 = scmp.eq.s32.totalorder %s44, 1
      %p524 = por %p522, %p523
      %p525 = scmp.ne.s32.totalorder %s516, %s517
      %p526 = scmp.eq.s32.totalorder %s44, 0
      %p527 = por %p525, %p526
      %p528 = scmp.ne.s32.totalorder %s516, %s517
      %p529 = scmp.eq.s32.totalorder %s45, 1
      %p530 = por %p528, %p529
      %p532 = scmp.ne.s32.totalorder %s517, %s531
      %p533 = scmp.eq.s32.totalorder %s45, 0
      %p534 = por %p532, %p533
      %s535 = ssub.s32 %s39, %s46
      %p536 = scmp.eq.s32.totalorder %s535, 0
      %s538 = sadd.s32 %s537, 1
      %s539 = scalar_select %p536, %s537, %s538
      %p542 = pneg %p536
      %p543 = scmp.eq.s32.totalorder %s39, 1
      %p544 = por %p542, %p543
      %p545 = scmp.ne.s32.totalorder %s537, %s540
      %p546 = scmp.eq.s32.totalorder %s39, 0
      %p547 = por %p545, %p546
      %p548 = scmp.ne.s32.totalorder %s537, %s540
      %p549 = scmp.eq.s32.totalorder %s44, 1
      %p550 = por %p548, %p549
      %p551 = scmp.ne.s32.totalorder %s540, %s541
      %p552 = scmp.eq.s32.totalorder %s44, 0
      %p553 = por %p551, %p552
      %p554 = scmp.ne.s32.totalorder %s540, %s541
      %p555 = scmp.eq.s32.totalorder %s45, 1
      %p556 = por %p554, %p555
      %p558 = scmp.ne.s32.totalorder %s541, %s557
      %p559 = scmp.eq.s32.totalorder %s45, 0
      %p560 = por %p558, %p559
      %p561 = scmp.le.s32.totalorder 1, %s39
      %p562 = scmp.lt.s32.totalorder %s39, 3
      %p563 = pnand %p561, %p562
      %p564 = pneg %p563
      // Predicated region
      $region9: #{tpu_custom_call.1} parent=5 // pred_check
        _
      $region10: #{tpu_custom_call.1} parent=5 // pred_check_branch
        %566 = sbr.rel (%p563) target = $region12
      $region11: #{tpu_custom_call.1} parent=5 // pred_region
        %s567 = ssub.s32 %s39, 1
        // Predicated region
        $region13: #{tpu_custom_call.1} parent=11 // pred_check
          %p568 = pneg %p86
        $region14: #{tpu_custom_call.1} parent=11 // pred_check_branch
          %570 = sbr.rel (%p568) target = $region16
        $region15: #{tpu_custom_call.1} parent=11 // pred_region
          _
        $region16: #{tpu_custom_call.1} parent=11 // pred_fallthru
          _
        // Predicated region
        $region17: #{tpu_custom_call.1} parent=11 // pred_check
          %p571 = pneg %p107
        $region18: #{tpu_custom_call.1} parent=11 // pred_check_branch
          %573 = sbr.rel (%p571) target = $region20
        $region19: #{tpu_custom_call.1} parent=11 // pred_region
          _
        $region20: #{tpu_custom_call.1} parent=11 // pred_fallthru
          _
        // Predicated region
        $region21: #{tpu_custom_call.1} parent=11 // pred_check
          %p574 = pneg %p128
        $region22: #{tpu_custom_call.1} parent=11 // pred_check_branch
          %576 = sbr.rel (%p574) target = $region24
        $region23: #{tpu_custom_call.1} parent=11 // pred_region
          _
        $region24: #{tpu_custom_call.1} parent=11 // pred_fallthru
          _
        // Predicated region
        $region25: #{tpu_custom_call.1} parent=11 // pred_check
          %p577 = pneg %p149
        $region26: #{tpu_custom_call.1} parent=11 // pred_check_branch
          %579 = sbr.rel (%p577) target = $region28
        $region27: #{tpu_custom_call.1} parent=11 // pred_region
          %s581 = ssub.s32 1024, 1024
          %582 = vsyncadd [#allocation5], %s581
          %s583 = sshll.u32 [#allocation4], 4
          %s584 = int_to_ptr.vmem [resolvable:$true] %s583
          %589 = dma.hbm_to_vmem [thread:$0]  %s5, 1024, %s584, [#allocation5], 128, 128, 8
        $region28: #{tpu_custom_call.1} parent=11 // pred_fallthru
          _
        // Predicated region
        $region29: #{tpu_custom_call.1} parent=11 // pred_check
          %p590 = pneg %p170
        $region30: #{tpu_custom_call.1} parent=11 // pred_check_branch
          %592 = sbr.rel (%p590) target = $region32
        $region31: #{tpu_custom_call.1} parent=11 // pred_region
          _
        $region32: #{tpu_custom_call.1} parent=11 // pred_fallthru
          _
        // Predicated region
        $region33: #{tpu_custom_call.1} parent=11 // pred_check
          %p593 = pneg %p191
        $region34: #{tpu_custom_call.1} parent=11 // pred_check_branch
          %595 = sbr.rel (%p593) target = $region36
        $region35: #{tpu_custom_call.1} parent=11 // pred_region
          %s597 = ssub.s32 1024, 1024
          %598 = vsyncadd [#allocation7], %s597
          %s599 = sshll.u32 [#allocation6], 4
          %s600 = int_to_ptr.vmem [resolvable:$true] %s599
          %605 = dma.hbm_to_vmem [thread:$0]  %s7, 1024, %s600, [#allocation7], 128, 128, 8
        $region36: #{tpu_custom_call.1} parent=11 // pred_fallthru
          _
        // Predicated region
        $region37: #{tpu_custom_call.1} parent=11 // pred_check
          %p606 = pneg %p212
        $region38: #{tpu_custom_call.1} parent=11 // pred_check_branch
          %608 = sbr.rel (%p606) target = $region40
        $region39: #{tpu_custom_call.1} parent=11 // pred_region
          _
        $region40: #{tpu_custom_call.1} parent=11 // pred_fallthru
          _
        // Predicated region
        $region41: #{tpu_custom_call.1} parent=11 // pred_check
          %p609 = pneg %p233
        $region42: #{tpu_custom_call.1} parent=11 // pred_check_branch
          %611 = sbr.rel (%p609) target = $region44
        $region43: #{tpu_custom_call.1} parent=11 // pred_region
          %s613 = ssub.s32 512, 512
          %614 = vsyncadd [#allocation7], %s613
          %s615 = sshll.u32 [#allocation8], 4
          %s616 = int_to_ptr.vmem [resolvable:$true] %s615
          %621 = dma.hbm_to_vmem [thread:$0]  %s9, 512, %s616, [#allocation7], 128, 128, 8
        $region44: #{tpu_custom_call.1} parent=11 // pred_fallthru
          _
        // Predicated region
        $region45: #{tpu_custom_call.1} parent=11 // pred_check
          %p622 = pneg %p254
        $region46: #{tpu_custom_call.1} parent=11 // pred_check_branch
          %624 = sbr.rel (%p622) target = $region48
        $region47: #{tpu_custom_call.1} parent=11 // pred_region
          %s626 = ssub.s32 512, 512
          %627 = vsyncadd [#allocation10], %s626
          %s628 = sshll.u32 [#allocation9], 4
          %s629 = int_to_ptr.vmem [resolvable:$true] %s628
          %634 = dma.hbm_to_vmem [thread:$0]  %s10, 512, %s629, [#allocation10], 128, 128, 8
        $region48: #{tpu_custom_call.1} parent=11 // pred_fallthru
          _
        // Predicated region
        $region49: #{tpu_custom_call.1} parent=11 // pred_check
          %p635 = pneg %p275
        $region50: #{tpu_custom_call.1} parent=11 // pred_check_branch
          %637 = sbr.rel (%p635) target = $region52
        $region51: #{tpu_custom_call.1} parent=11 // pred_region
          _
        $region52: #{tpu_custom_call.1} parent=11 // pred_fallthru
          _
        // Predicated region
        $region53: #{tpu_custom_call.1} parent=11 // pred_check
          %p638 = pneg %p296
        $region54: #{tpu_custom_call.1} parent=11 // pred_check_branch
          %640 = sbr.rel (%p638) target = $region56
        $region55: #{tpu_custom_call.1} parent=11 // pred_region
          _
        $region56: #{tpu_custom_call.1} parent=11 // pred_fallthru
          _
        // Predicated region
        $region57: #{tpu_custom_call.1} parent=11 // pred_check
          %p641 = pneg %p317
        $region58: #{tpu_custom_call.1} parent=11 // pred_check_branch
          %643 = sbr.rel (%p641) target = $region60
        $region59: #{tpu_custom_call.1} parent=11 // pred_region
          _
        $region60: #{tpu_custom_call.1} parent=11 // pred_fallthru
          _
        // Predicated region
        $region61: #{tpu_custom_call.1} parent=11 // pred_check
          %p644 = pneg %p338
        $region62: #{tpu_custom_call.1} parent=11 // pred_check_branch
          %646 = sbr.rel (%p644) target = $region64
        $region63: #{tpu_custom_call.1} parent=11 // pred_region
          _
        $region64: #{tpu_custom_call.1} parent=11 // pred_fallthru
          _
        // Predicated region
        $region65: #{tpu_custom_call.1} parent=11 // pred_check
          %p647 = pneg %p359
        $region66: #{tpu_custom_call.1} parent=11 // pred_check_branch
          %649 = sbr.rel (%p647) target = $region68
        $region67: #{tpu_custom_call.1} parent=11 // pred_region
          _
        $region68: #{tpu_custom_call.1} parent=11 // pred_fallthru
          _
        // Predicated region
        $region69: #{tpu_custom_call.1} parent=11 // pred_check
          %p650 = pneg %p380
        $region70: #{tpu_custom_call.1} parent=11 // pred_check_branch
          %652 = sbr.rel (%p650) target = $region72
        $region71: #{tpu_custom_call.1} parent=11 // pred_region
          _
        $region72: #{tpu_custom_call.1} parent=11 // pred_fallthru
          _
        // Predicated region
        $region73: #{tpu_custom_call.1} parent=11 // pred_check
          %p653 = pneg %p401
        $region74: #{tpu_custom_call.1} parent=11 // pred_check_branch
          %655 = sbr.rel (%p653) target = $region76
        $region75: #{tpu_custom_call.1} parent=11 // pred_region
          %s657 = ssub.s32 512, 512
          %658 = vsyncadd [#allocation10], %s657
          %s659 = sshll.u32 [#allocation11], 4
          %s660 = int_to_ptr.vmem [resolvable:$true] %s659
          %665 = dma.hbm_to_vmem [thread:$0]  %s17, 512, %s660, [#allocation10], 128, 128, 8
        $region76: #{tpu_custom_call.1} parent=11 // pred_fallthru
          _
        // Predicated region
        $region77: #{tpu_custom_call.1} parent=11 // pred_check
          %p666 = pneg %p422
        $region78: #{tpu_custom_call.1} parent=11 // pred_check_branch
          %668 = sbr.rel (%p666) target = $region80
        $region79: #{tpu_custom_call.1} parent=11 // pred_region
          _
        $region80: #{tpu_custom_call.1} parent=11 // pred_fallthru
          _
        // Predicated region
        $region81: #{tpu_custom_call.1} parent=11 // pred_check
          %p669 = pneg %p443
        $region82: #{tpu_custom_call.1} parent=11 // pred_check_branch
          %671 = sbr.rel (%p669) target = $region84
        $region83: #{tpu_custom_call.1} parent=11 // pred_region
          _
        $region84: #{tpu_custom_call.1} parent=11 // pred_fallthru
          _
        // Predicated region
        $region85: #{tpu_custom_call.1} parent=11 // pred_check
          %p672 = pneg %p464
        $region86: #{tpu_custom_call.1} parent=11 // pred_check_branch
          %674 = sbr.rel (%p672) target = $region88
        $region87: #{tpu_custom_call.1} parent=11 // pred_region
          _
        $region88: #{tpu_custom_call.1} parent=11 // pred_fallthru
          _
        // Predicated region
        $region89: #{tpu_custom_call.1} parent=11 // pred_check
          %p675 = pneg %p485
        $region90: #{tpu_custom_call.1} parent=11 // pred_check_branch
          %677 = sbr.rel (%p675) target = $region92
        $region91: #{tpu_custom_call.1} parent=11 // pred_region
          _
        $region92: #{tpu_custom_call.1} parent=11 // pred_fallthru
          _
        // Predicated region
        $region93: #{tpu_custom_call.1} parent=11 // pred_check
          %p678 = pneg %p506
        $region94: #{tpu_custom_call.1} parent=11 // pred_check_branch
          %680 = sbr.rel (%p678) target = $region96
        $region95: #{tpu_custom_call.1} parent=11 // pred_region
          _
        $region96: #{tpu_custom_call.1} parent=11 // pred_fallthru
          _
        // Predicated region
        $region97: #{tpu_custom_call.1} parent=11 // pred_check
          %p681 = pneg %p527
        $region98: #{tpu_custom_call.1} parent=11 // pred_check_branch
          %683 = sbr.rel (%p681) target = $region100
        $region99: #{tpu_custom_call.1} parent=11 // pred_region
          _
        $region100: #{tpu_custom_call.1} parent=11 // pred_fallthru
          _
      $region12: #{tpu_custom_call.1} parent=5 // pred_fallthru
        _
      %p684 = scmp.lt.s32.totalorder %s39, 2
      // Predicated region
      $region101: #{tpu_custom_call.1} parent=5 // pred_check
        %p685 = pneg %p684
      $region102: #{tpu_custom_call.1} parent=5 // pred_check_branch
        %687 = sbr.rel (%p685) target = $region104
      $region103: #{tpu_custom_call.1} parent=5 // pred_region
        // Predicated region
        $region105: #{tpu_custom_call.1} parent=103 // pred_check
          %p688 = pneg %p59
        $region106: #{tpu_custom_call.1} parent=103 // pred_check_branch
          %690 = sbr.rel (%p688) target = $region108
        $region107: #{tpu_custom_call.1} parent=103 // pred_region
          %p691 = scmp.lt.s32.totalorder %s39, 1
          %s692 = scalar_select %p691, %s39, 1
          %s693 = smul.addr %s692, 2
          %s694 = smul.addr %s693, 8
          %s695 = scalar_lea.vmem %s1, %s694
        $region108: #{tpu_custom_call.1} parent=103 // pred_fallthru
          _
      $region104: #{tpu_custom_call.1} parent=5 // pred_fallthru
        _
      %p696 = scmp.le.s32.totalorder 1, %s39
      %p697 = scmp.lt.s32.totalorder %s39, 3
      %p698 = pnand %p696, %p697
      %p699 = pneg %p698
      // Predicated region
      $region109: #{tpu_custom_call.1} parent=5 // pred_check
        _
      $region110: #{tpu_custom_call.1} parent=5 // pred_check_branch
        %701 = sbr.rel (%p698) target = $region112
      $region111: #{tpu_custom_call.1} parent=5 // pred_region
        %s702 = ssub.s32 %s39, 1
        // Predicated region
        $region113: #{tpu_custom_call.1} parent=111 // pred_check
          %p703 = pneg %p149
        $region114: #{tpu_custom_call.1} parent=111 // pred_check_branch
          %705 = sbr.rel (%p703) target = $region116
        $region115: #{tpu_custom_call.1} parent=111 // pred_region
          %706 = dma.done [#allocation5], 1024
        $region116: #{tpu_custom_call.1} parent=111 // pred_fallthru
          _
        // Predicated region
        $region117: #{tpu_custom_call.1} parent=111 // pred_check
          %p707 = pneg %p191
        $region118: #{tpu_custom_call.1} parent=111 // pred_check_branch
          %709 = sbr.rel (%p707) target = $region120
        $region119: #{tpu_custom_call.1} parent=111 // pred_region
          %710 = dma.done [#allocation7], 1024
        $region120: #{tpu_custom_call.1} parent=111 // pred_fallthru
          _
        // Predicated region
        $region121: #{tpu_custom_call.1} parent=111 // pred_check
          %p711 = pneg %p233
        $region122: #{tpu_custom_call.1} parent=111 // pred_check_branch
          %713 = sbr.rel (%p711) target = $region124
        $region123: #{tpu_custom_call.1} parent=111 // pred_region
          %714 = dma.done [#allocation7], 512
        $region124: #{tpu_custom_call.1} parent=111 // pred_fallthru
          _
        // Predicated region
        $region125: #{tpu_custom_call.1} parent=111 // pred_check
          %p715 = pneg %p254
        $region126: #{tpu_custom_call.1} parent=111 // pred_check_branch
          %717 = sbr.rel (%p715) target = $region128
        $region127: #{tpu_custom_call.1} parent=111 // pred_region
          %718 = dma.done [#allocation10], 512
        $region128: #{tpu_custom_call.1} parent=111 // pred_fallthru
          _
        // Predicated region
        $region129: #{tpu_custom_call.1} parent=111 // pred_check
          %p719 = pneg %p401
        $region130: #{tpu_custom_call.1} parent=111 // pred_check_branch
          %721 = sbr.rel (%p719) target = $region132
        $region131: #{tpu_custom_call.1} parent=111 // pred_region
          %722 = dma.done [#allocation10], 512
        $region132: #{tpu_custom_call.1} parent=111 // pred_fallthru
          _
        %p723 = scmp.lt.s32.totalorder %s44, 1
        %s724 = scalar_select %p723, %s44, 1
        %s725 = smul.addr %s724, 2
        %s726 = smul.addr %s725, 8
        %s727 = scalar_lea.vmem %s1, %s726
        %p728 = pneg %p65
        %p729 = pneg %p62
        %p730 = pneg %p86
        %p731 = pneg %p83
        %p732 = pneg %p107
        %p733 = pneg %p104
        %p734 = pneg %p128
        %p735 = pneg %p125
        %p736 = pneg %p149
        %p737 = pneg %p146
        %p738 = pneg %p170
        %p739 = pneg %p167
        %p740 = pneg %p191
        %p741 = pneg %p188
        %p742 = pneg %p212
        %p743 = pneg %p209
        %p744 = pneg %p233
        %p745 = pneg %p230
        %p746 = pneg %p254
        %p747 = pneg %p251
        %p748 = pneg %p275
        %p749 = pneg %p272
        %p750 = pneg %p296
        %p751 = pneg %p293
        %p752 = pneg %p317
        %p753 = pneg %p314
        %p754 = pneg %p338
        %p755 = pneg %p335
        %p756 = pneg %p359
        %p757 = pneg %p356
        %p758 = pneg %p380
        %p759 = pneg %p377
        %p760 = pneg %p401
        %p761 = pneg %p398
        %p762 = pneg %p422
        %p763 = pneg %p419
        %p764 = pneg %p443
        %p765 = pneg %p440
        %p766 = pneg %p464
        %p767 = pneg %p461
        %p768 = pneg %p485
        %p769 = pneg %p482
        %p770 = pneg %p506
        %p771 = pneg %p503
        %p772 = pneg %p527
        %p773 = pneg %p524
        %p774 = pneg %p553
        %p775 = pneg %p550
        %p776 = scmp.lt.s32.totalorder %s44, 1
        %s777 = scalar_select %p776, %s44, 1
        %s778 = smul.addr %s777, 8
        %s779 = scalar_lea.vmem %s24, %s778
        %p780 = scmp.lt.s32.totalorder %s44, 1
        %s781 = scalar_select %p780, %s44, 1
        %s782 = smul.addr %s781, 2
        %s783 = smul.addr %s782, 8
        %s784 = scalar_lea.vmem %s1, %s783
        %p785 = scmp.lt.s32.totalorder %s44, 1
        %s786 = scalar_select %p785, %s44, 1
        %s787 = smul.addr %s786, 8
        %s788 = scalar_lea.vmem %s24, %s787
        %s789 = sld [smem:[#allocation3 + %s44]]
        %p790 = scmp.lt.s32.totalorder %s789, 0
        %s791 = ssub.s32 0, %s789
        %s792 = scalar_select %p790, %s791, %s789
        %s793 = sshrl.u32 %s792, 1
        %s794 = ssub.s32 0, %s793
        %s795 = scalar_select %p790, %s794, %s793
        %v796 = vld [vmem:[%s784] sm:$0xff]
        %v797 = vld [vmem:[%s784 + $0x8] sm:$0xff]
        %v798 = vlaneseq
        %v799 = vshrl.u32 %v798, 7
        %v800 = vadd.s32 %v799, 8
        %vm801 = vcmp.lt.s32.totalorder %v799, 8
        %vm802 = vcmp.lt.s32.totalorder %v800, 8
        %v803 = vld [vmem:[%s2] sm:$0x1]
        %v805 = vlaneseq
        %v806 = vshrl.u32 %v805, 7
        %v807 = vsub.s32 0, %v806
        %v808 = vrot.slane %v803, %v807
        %v810 = vld [vmem:[%s3] sm:$0x1]
        %v812 = vlaneseq
        %v813 = vshrl.u32 %v812, 7
        %v814 = vsub.s32 0, %v813
        %v815 = vrot.slane %v810, %v814
        %v817 = vsel %vm801, %v808, %v815
        %v818 = vsel %vm802, %v808, %v815
        %v819 = vld [vmem:[%s4] sm:$0x1]
        %v821 = vlaneseq
        %v822 = vshrl.u32 %v821, 7
        %v823 = vsub.s32 0, %v822
        %v824 = vrot.slane %v819, %v823
        %v825 = vlaneseq
        %v826 = vand.u32 %v825, 127
        %v827 = vstv %s795
        %vm828 = vcmp.lt.s32.totalorder %v799, %v827
        %vm829 = vcmp.lt.s32.totalorder %v800, %v827
        %v830 = vadd.s32 %v799, %v827
        %v831 = vadd.s32 %v800, %v827
        %vm832 = vcmp.eq.s32.totalorder %v826, %v830
        %vm833 = vcmp.eq.s32.totalorder %v826, %v831
        %vm834 = vmand %vm828, %vm832
        %vm835 = vmand %vm829, %vm833
        %vm836 = vcmp.ge.s32.totalorder %v799, %v827
        %vm837 = vcmp.ge.s32.totalorder %v800, %v827
        %v838 = vstv %s789
        %vm839 = vcmp.lt.s32.totalorder %v799, %v838
        %vm840 = vcmp.lt.s32.totalorder %v800, %v838
        %vm841 = vmand %vm836, %vm839
        %vm842 = vmand %vm837, %vm840
        %v843 = vsub.s32 %v799, %v827
        %v844 = vsub.s32 %v800, %v827
        %vm845 = vcmp.eq.s32.totalorder %v826, %v843
        %vm846 = vcmp.eq.s32.totalorder %v826, %v844
        %vm847 = vmand %vm841, %vm845
        %vm848 = vmand %vm842, %vm846
        %vm849 = vmor %vm834, %vm847
        %vm850 = vmor %vm835, %vm848
        %v851 = vsel %vm849, 1.0, 0.0
        %v852 = vsel %vm850, 1.0, 0.0
        %v853 = vld [vmem:[#allocation4] sm:$0xff]
        %v854 = vld [vmem:[#allocation4 + $0x8] sm:$0xff]
        %v855 = vld [vmem:[#allocation4 + $0x10] sm:$0xff]
        %v856 = vld [vmem:[#allocation4 + $0x18] sm:$0xff]
        %v857 = vld [vmem:[#allocation4 + $0x20] sm:$0xff]
        %v858 = vld [vmem:[#allocation4 + $0x28] sm:$0xff]
        %v859 = vld [vmem:[#allocation4 + $0x30] sm:$0xff]
        %v860 = vld [vmem:[#allocation4 + $0x38] sm:$0xff]
        %v861 = vld [vmem:[%s6] sm:$0x3]
        %v862 = vld [vmem:[#allocation6] sm:$0xff]
        %v863 = vld [vmem:[#allocation6 + $0x8] sm:$0xff]
        %v864 = vld [vmem:[#allocation6 + $0x10] sm:$0xff]
        %v865 = vld [vmem:[#allocation6 + $0x18] sm:$0xff]
        %v866 = vld [vmem:[#allocation6 + $0x20] sm:$0xff]
        %v867 = vld [vmem:[#allocation6 + $0x28] sm:$0xff]
        %v868 = vld [vmem:[#allocation6 + $0x30] sm:$0xff]
        %v869 = vld [vmem:[#allocation6 + $0x38] sm:$0xff]
        %v870 = vld [vmem:[%s8] sm:$0x3]
        %v871 = vld [vmem:[#allocation8] sm:$0xff]
        %v872 = vld [vmem:[#allocation8 + $0x8] sm:$0xff]
        %v873 = vld [vmem:[#allocation8 + $0x10] sm:$0xff]
        %v874 = vld [vmem:[#allocation8 + $0x18] sm:$0xff]
        %v875 = vld [vmem:[#allocation9] sm:$0xff]
        %v876 = vld [vmem:[#allocation9 + $0x8] sm:$0xff]
        %v877 = vld [vmem:[#allocation9 + $0x10] sm:$0xff]
        %v878 = vld [vmem:[#allocation9 + $0x18] sm:$0xff]
        %v879 = vld [vmem:[%s11] sm:$0x1]
        %v880 = vld [vmem:[%s12] sm:$0x1]
        %v881 = vld [vmem:[%s13] sm:$0x1]
        %v882 = vld [vmem:[%s14] sm:$0x1]
        %v883 = vld [vmem:[%s15] sm:$0x1]
        %v884 = vld [vmem:[%s16] sm:$0xff]
        %v885 = vld [vmem:[%s16 + $0x8] sm:$0xff]
        %v886 = vld [vmem:[%s16 + $0x10] sm:$0xff]
        %v887 = vld [vmem:[%s16 + $0x18] sm:$0xff]
        %v888 = vld [vmem:[%s16 + $0x20] sm:$0xff]
        %v889 = vld [vmem:[%s16 + $0x28] sm:$0xff]
        %v890 = vld [vmem:[%s16 + $0x30] sm:$0xff]
        %v891 = vld [vmem:[%s16 + $0x38] sm:$0xff]
        %v892 = vld [vmem:[#allocation11] sm:$0xff]
        %v893 = vld [vmem:[#allocation11 + $0x8] sm:$0xff]
        %v894 = vld [vmem:[#allocation11 + $0x10] sm:$0xff]
        %v895 = vld [vmem:[#allocation11 + $0x18] sm:$0xff]
        %v896 = vld [vmem:[%s18] sm:$0x1]
        %v897 = vld [vmem:[%s19] sm:$0x1]
        %v898 = vld [vmem:[%s20] sm:$0x1]
        %v899 = vld [vmem:[%s21] sm:$0x1]
        %v900 = vld [vmem:[%s22] sm:$0x1]
        %v901 = vlaneseq
        %v902 = vshrl.u32 %v901, 7
        %v903 = vsub.s32 0, %v902
        %v904 = vrot.slane %v861, %v903
        %vm905 = vcmask 261120
        %v907 = vsel %vm905, %v817, 0
        %v910 = vsel %vm905, %v818, 0
        %912 = vmatprep.subr.mxu0 0.0
        %913 = vmatpush1.msra.mxu0 0.0
        %914 = vmatprep.subr.mxu0 0.0
        %915 = vmatpush1.msra.mxu0 0.0
        %916 = vmatprep.subr.mxu0 0.0
        %917 = vmatpush1.msra.mxu0 0.0
        %918 = vmatprep.subr.mxu0 0.0
        %919 = vmatpush1.msra.mxu0 0.0
        %920 = vmatprep.subr.mxu0 0.0
        %921 = vmatpush1.msra.mxu0 0.0
        %922 = vmatprep.subr.mxu0 0.0
        %923 = vmatpush1.msra.mxu0 0.0
        %924 = vmatprep.subr.mxu0 0.0
        %925 = vmatpush1.msra.mxu0 0.0
        %926 = vmatprep.subr.mxu0 0.0
        %927 = vmatpush1.msra.mxu0 0.0
        %928 = vmatprep.subr.mxu0 0.0
        %929 = vmatpush1.msra.mxu0 0.0
        %930 = vmatprep.subr.mxu0 0.0
        %931 = vmatpush1.msra.mxu0 0.0
        %932 = vmatprep.subr.mxu0 0.0
        %933 = vmatpush1.msra.mxu0 0.0
        %934 = vmatprep.subr.mxu0 0.0
        %935 = vmatpush1.msra.mxu0 0.0
        %936 = vmatprep.subr.mxu0 0.0
        %937 = vmatpush1.msra.mxu0 %v856
        %938 = vmatprep.subr.mxu0 0.0
        %939 = vmatpush1.msra.mxu0 %v855
        %940 = vmatprep.subr.mxu0 0.0
        %941 = vmatpush1.msra.mxu0 %v854
        %942 = vmatprep.subr.mxu0 0.0
        %943 = vmatpush1.msra.mxu0 %v853
        %944 = vmatprep.subr.mxu0 0.0
        %945 = vmatpush2.msra.mxu0 0.0
        %946 = vmatprep.subr.mxu0 0.0
        %947 = vmatpush2.msra.mxu0 0.0
        %948 = vmatprep.subr.mxu0 0.0
        %949 = vmatpush2.msra.mxu0 0.0
        %950 = vmatprep.subr.mxu0 0.0
        %951 = vmatpush2.msra.mxu0 0.0
        %952 = vmatprep.subr.mxu0 0.0
        %953 = vmatpush2.msra.mxu0 0.0
        %954 = vmatprep.subr.mxu0 0.0
        %955 = vmatpush2.msra.mxu0 0.0
        %956 = vmatprep.subr.mxu0 0.0
        %957 = vmatpush2.msra.mxu0 0.0
        %958 = vmatprep.subr.mxu0 0.0
        %959 = vmatpush2.msra.mxu0 0.0
        %960 = vmatprep.subr.mxu0 0.0
        %961 = vmatpush2.msra.mxu0 0.0
        %962 = vmatprep.subr.mxu0 0.0
        %963 = vmatpush2.msra.mxu0 0.0
        %964 = vmatprep.subr.mxu0 0.0
        %965 = vmatpush2.msra.mxu0 0.0
        %966 = vmatprep.subr.mxu0 0.0
        %967 = vmatpush2.msra.mxu0 0.0
        %968 = vmatprep.subr.mxu0 0.0
        %969 = vmatpush2.msra.mxu0 0.0
        %970 = vmatprep.subr.mxu0 0.0
        %971 = vmatpush2.msra.mxu0 0.0
        %972 = vmatprep.subr.mxu0 0.0
        %973 = vmatpush2.msra.mxu0 0.0
        %974 = vmatprep.subr.mxu0 0.0
        %975 = vmatpush2.msra.mxu0 0.0
        %976 = vmatprep.mubr.f32.mxu0 0.0
        %977 = vmatmul.mubr.f32.gmra.mxu0 %v907
        %v978 = vpop.f32.mrf.mxu0
        %v979 = vadd.f32 %v904, %v978
        %v980 = vpop.f32.mrf.mxu0
        %981 = vmatprep.mubr.f32.mxu0 0.0
        %982 = vmatmul.mubr.f32.gmra.mxu0 %v910
        %v983 = vpop.f32.mrf.mxu0
        %v984 = vadd.f32 %v904, %v983
        %v985 = vpop.f32.mrf.mxu0
        %986 = vdwg.mxu0
        %v987 = vmax.f32 %v979, 0.0
        %v988 = vmax.f32 %v984, 0.0
        %v989 = vlaneseq
        %v990 = vshrl.u32 %v989, 7
        %v991 = vsub.s32 1, %v990
        %v992 = vrot.slane %v861, %v991
        %v994 = vsel %vm905, %v987, 0
        %v997 = vsel %vm905, %v988, 0
        %999 = vmatprep.subr.mxu0 0.0
        %1000 = vmatpush1.msra.mxu0 0.0
        %1001 = vmatprep.subr.mxu0 0.0
        %1002 = vmatpush1.msra.mxu0 0.0
        %1003 = vmatprep.subr.mxu0 0.0
        %1004 = vmatpush1.msra.mxu0 0.0
        %1005 = vmatprep.subr.mxu0 0.0
        %1006 = vmatpush1.msra.mxu0 0.0
        %1007 = vmatprep.subr.mxu0 0.0
        %1008 = vmatpush1.msra.mxu0 0.0
        %1009 = vmatprep.subr.mxu0 0.0
        %1010 = vmatpush1.msra.mxu0 0.0
        %1011 = vmatprep.subr.mxu0 0.0
        %1012 = vmatpush1.msra.mxu0 0.0
        %1013 = vmatprep.subr.mxu0 0.0
        %1014 = vmatpush1.msra.mxu0 0.0
        %1015 = vmatprep.subr.mxu0 0.0
        %1016 = vmatpush1.msra.mxu0 0.0
        %1017 = vmatprep.subr.mxu0 0.0
        %1018 = vmatpush1.msra.mxu0 0.0
        %1019 = vmatprep.subr.mxu0 0.0
        %1020 = vmatpush1.msra.mxu0 0.0
        %1021 = vmatprep.subr.mxu0 0.0
        %1022 = vmatpush1.msra.mxu0 0.0
        %1023 = vmatprep.subr.mxu0 0.0
        %1024 = vmatpush1.msra.mxu0 %v860
        %1025 = vmatprep.subr.mxu0 0.0
        %1026 = vmatpush1.msra.mxu0 %v859
        %1027 = vmatprep.subr.mxu0 0.0
        %1028 = vmatpush1.msra.mxu0 %v858
        %1029 = vmatprep.subr.mxu0 0.0
        %1030 = vmatpush1.msra.mxu0 %v857
        %1031 = vmatprep.subr.mxu0 0.0
        %1032 = vmatpush2.msra.mxu0 0.0
        %1033 = vmatprep.subr.mxu0 0.0
        %1034 = vmatpush2.msra.mxu0 0.0
        %1035 = vmatprep.subr.mxu0 0.0
        %1036 = vmatpush2.msra.mxu0 0.0
        %1037 = vmatprep.subr.mxu0 0.0
        %1038 = vmatpush2.msra.mxu0 0.0
        %1039 = vmatprep.subr.mxu0 0.0
        %1040 = vmatpush2.msra.mxu0 0.0
        %1041 = vmatprep.subr.mxu0 0.0
        %1042 = vmatpush2.msra.mxu0 0.0
        %1043 = vmatprep.subr.mxu0 0.0
        %1044 = vmatpush2.msra.mxu0 0.0
        %1045 = vmatprep.subr.mxu0 0.0
        %1046 = vmatpush2.msra.mxu0 0.0
        %1047 = vmatprep.subr.mxu0 0.0
        %1048 = vmatpush2.msra.mxu0 0.0
        %1049 = vmatprep.subr.mxu0 0.0
        %1050 = vmatpush2.msra.mxu0 0.0
        %1051 = vmatprep.subr.mxu0 0.0
        %1052 = vmatpush2.msra.mxu0 0.0
        %1053 = vmatprep.subr.mxu0 0.0
        %1054 = vmatpush2.msra.mxu0 0.0
        %1055 = vmatprep.subr.mxu0 0.0
        %1056 = vmatpush2.msra.mxu0 0.0
        %1057 = vmatprep.subr.mxu0 0.0
        %1058 = vmatpush2.msra.mxu0 0.0
        %1059 = vmatprep.subr.mxu0 0.0
        %1060 = vmatpush2.msra.mxu0 0.0
        %1061 = vmatprep.subr.mxu0 0.0
        %1062 = vmatpush2.msra.mxu0 0.0
        %1063 = vmatprep.mubr.f32.mxu0 0.0
        %1064 = vmatmul.mubr.f32.gmra.mxu0 %v994
        %v1065 = vpop.f32.mrf.mxu0
        %v1066 = vadd.f32 %v992, %v1065
        %v1067 = vpop.f32.mrf.mxu0
        %1068 = vmatprep.mubr.f32.mxu0 0.0
        %1069 = vmatmul.mubr.f32.gmra.mxu0 %v997
        %v1070 = vpop.f32.mrf.mxu0
        %v1071 = vadd.f32 %v992, %v1070
        %v1072 = vpop.f32.mrf.mxu0
        %1073 = vdwg.mxu0
        %v1074 = vmax.f32 %v1066, 0.0
        %v1075 = vmax.f32 %v1071, 0.0
        %1076 = vxpose.xlu0.b32.start [1/16] %v796, 128
        %1077 = vxpose.xlu0.b32.cont [2/16] %v797, 128
        %1078 = vxpose.xlu0.b32.cont [3/16] 0.0, 128
        %1079 = vxpose.xlu0.b32.cont [4/16] 0.0, 128
        %1080 = vxpose.xlu0.b32.cont [5/16] 0.0, 128
        %1081 = vxpose.xlu0.b32.cont [6/16] 0.0, 128
        %1082 = vxpose.xlu0.b32.cont [7/16] 0.0, 128
        %1083 = vxpose.xlu0.b32.cont [8/16] 0.0, 128
        %1084 = vxpose.xlu0.b32.cont [9/16] 0.0, 128
        %1085 = vxpose.xlu0.b32.cont [10/16] 0.0, 128
        %1086 = vxpose.xlu0.b32.cont [11/16] 0.0, 128
        %1087 = vxpose.xlu0.b32.cont [12/16] 0.0, 128
        %1088 = vxpose.xlu0.b32.cont [13/16] 0.0, 128
        %1089 = vxpose.xlu0.b32.cont [14/16] 0.0, 128
        %1090 = vxpose.xlu0.b32.cont [15/16] 0.0, 128
        %1091 = vxpose.xlu0.b32.end [16/16] 0.0, 128
        %v1092 = vpop.trf.xlu0
        %v1093 = vpop.trf.xlu0
        %v1094 = vpop.trf.xlu0
        %v1095 = vpop.trf.xlu0
        %v1096 = vpop.trf.xlu0
        %v1097 = vpop.trf.xlu0
        %v1098 = vpop.trf.xlu0
        %v1099 = vpop.trf.xlu0
        %v1100 = vpop.trf.xlu0
        %v1101 = vpop.trf.xlu0
        %v1102 = vpop.trf.xlu0
        %v1103 = vpop.trf.xlu0
        %v1104 = vpop.trf.xlu0
        %v1105 = vpop.trf.xlu0
        %v1106 = vpop.trf.xlu0
        %v1107 = vpop.trf.xlu0
        %vm1108 = vcmask 130048
        %v1110 = vsel %vm1108, %v1092, 0
        %1112 = vmatprep.subr.mxu0 0.0
        %1113 = vmatpush1.msra.mxu0 0.0
        %1114 = vmatprep.subr.mxu0 0.0
        %1115 = vmatpush1.msra.mxu0 0.0
        %1116 = vmatprep.subr.mxu0 0.0
        %1117 = vmatpush1.msra.mxu0 0.0
        %1118 = vmatprep.subr.mxu0 0.0
        %1119 = vmatpush1.msra.mxu0 0.0
        %1120 = vmatprep.subr.mxu0 0.0
        %1121 = vmatpush1.msra.mxu0 0.0
        %1122 = vmatprep.subr.mxu0 0.0
        %1123 = vmatpush1.msra.mxu0 0.0
        %1124 = vmatprep.subr.mxu0 0.0
        %1125 = vmatpush1.msra.mxu0 0.0
        %1126 = vmatprep.subr.mxu0 0.0
        %1127 = vmatpush1.msra.mxu0 0.0
        %1128 = vmatprep.subr.mxu0 0.0
        %1129 = vmatpush1.msra.mxu0 0.0
        %1130 = vmatprep.subr.mxu0 0.0
        %1131 = vmatpush1.msra.mxu0 0.0
        %1132 = vmatprep.subr.mxu0 0.0
        %1133 = vmatpush1.msra.mxu0 0.0
        %1134 = vmatprep.subr.mxu0 0.0
        %1135 = vmatpush1.msra.mxu0 0.0
        %1136 = vmatprep.subr.mxu0 0.0
        %1137 = vmatpush1.msra.mxu0 0.0
        %1138 = vmatprep.subr.mxu0 0.0
        %1139 = vmatpush1.msra.mxu0 0.0
        %1140 = vmatprep.subr.mxu0 0.0
        %1141 = vmatpush1.msra.mxu0 %v1075
        %1142 = vmatprep.subr.mxu0 0.0
        %1143 = vmatpush1.msra.mxu0 %v1074
        %1144 = vmatprep.subr.mxu0 0.0
        %1145 = vmatpush2.msra.mxu0 0.0
        %1146 = vmatprep.subr.mxu0 0.0
        %1147 = vmatpush2.msra.mxu0 0.0
        %1148 = vmatprep.subr.mxu0 0.0
        %1149 = vmatpush2.msra.mxu0 0.0
        %1150 = vmatprep.subr.mxu0 0.0
        %1151 = vmatpush2.msra.mxu0 0.0
        %1152 = vmatprep.subr.mxu0 0.0
        %1153 = vmatpush2.msra.mxu0 0.0
        %1154 = vmatprep.subr.mxu0 0.0
        %1155 = vmatpush2.msra.mxu0 0.0
        %1156 = vmatprep.subr.mxu0 0.0
        %1157 = vmatpush2.msra.mxu0 0.0
        %1158 = vmatprep.subr.mxu0 0.0
        %1159 = vmatpush2.msra.mxu0 0.0
        %1160 = vmatprep.subr.mxu0 0.0
        %1161 = vmatpush2.msra.mxu0 0.0
        %1162 = vmatprep.subr.mxu0 0.0
        %1163 = vmatpush2.msra.mxu0 0.0
        %1164 = vmatprep.subr.mxu0 0.0
        %1165 = vmatpush2.msra.mxu0 0.0
        %1166 = vmatprep.subr.mxu0 0.0
        %1167 = vmatpush2.msra.mxu0 0.0
        %1168 = vmatprep.subr.mxu0 0.0
        %1169 = vmatpush2.msra.mxu0 0.0
        %1170 = vmatprep.subr.mxu0 0.0
        %1171 = vmatpush2.msra.mxu0 0.0
        %1172 = vmatprep.subr.mxu0 0.0
        %1173 = vmatpush2.msra.mxu0 0.0
        %1174 = vmatprep.subr.mxu0 0.0
        %1175 = vmatpush2.msra.mxu0 0.0
        %1176 = vmatprep.mubr.f32.mxu0 0.0
        %1177 = vmatmul.mubr.f32.gmra.mxu0 %v1110
        %v1178 = vpop.f32.mrf.mxu0
        %v1179 = vadd.f32 0.0, %v1178
        %v1180 = vpop.f32.mrf.mxu0
        %1181 = vdwg.mxu0
        %v1182 = vsel %vm905, %v824, 0
        %1184 = vmatprep.subr.mxu0 0.0
        %1185 = vmatpush1.msra.mxu0 0.0
        %1186 = vmatprep.subr.mxu0 0.0
        %1187 = vmatpush1.msra.mxu0 0.0
        %1188 = vmatprep.subr.mxu0 0.0
        %1189 = vmatpush1.msra.mxu0 0.0
        %1190 = vmatprep.subr.mxu0 0.0
        %1191 = vmatpush1.msra.mxu0 0.0
        %1192 = vmatprep.subr.mxu0 0.0
        %1193 = vmatpush1.msra.mxu0 0.0
        %1194 = vmatprep.subr.mxu0 0.0
        %1195 = vmatpush1.msra.mxu0 0.0
        %1196 = vmatprep.subr.mxu0 0.0
        %1197 = vmatpush1.msra.mxu0 0.0
        %1198 = vmatprep.subr.mxu0 0.0
        %1199 = vmatpush1.msra.mxu0 0.0
        %1200 = vmatprep.subr.mxu0 0.0
        %1201 = vmatpush1.msra.mxu0 0.0
        %1202 = vmatprep.subr.mxu0 0.0
        %1203 = vmatpush1.msra.mxu0 0.0
        %1204 = vmatprep.subr.mxu0 0.0
        %1205 = vmatpush1.msra.mxu0 0.0
        %1206 = vmatprep.subr.mxu0 0.0
        %1207 = vmatpush1.msra.mxu0 0.0
        %1208 = vmatprep.subr.mxu0 0.0
        %1209 = vmatpush1.msra.mxu0 %v878
        %1210 = vmatprep.subr.mxu0 0.0
        %1211 = vmatpush1.msra.mxu0 %v877
        %1212 = vmatprep.subr.mxu0 0.0
        %1213 = vmatpush1.msra.mxu0 %v876
        %1214 = vmatprep.subr.mxu0 0.0
        %1215 = vmatpush1.msra.mxu0 %v875
        %1216 = vmatprep.subr.mxu0 0.0
        %1217 = vmatpush2.msra.mxu0 0.0
        %1218 = vmatprep.subr.mxu0 0.0
        %1219 = vmatpush2.msra.mxu0 0.0
        %1220 = vmatprep.subr.mxu0 0.0
        %1221 = vmatpush2.msra.mxu0 0.0
        %1222 = vmatprep.subr.mxu0 0.0
        %1223 = vmatpush2.msra.mxu0 0.0
        %1224 = vmatprep.subr.mxu0 0.0
        %1225 = vmatpush2.msra.mxu0 0.0
        %1226 = vmatprep.subr.mxu0 0.0
        %1227 = vmatpush2.msra.mxu0 0.0
        %1228 = vmatprep.subr.mxu0 0.0
        %1229 = vmatpush2.msra.mxu0 0.0
        %1230 = vmatprep.subr.mxu0 0.0
        %1231 = vmatpush2.msra.mxu0 0.0
        %1232 = vmatprep.subr.mxu0 0.0
        %1233 = vmatpush2.msra.mxu0 0.0
        %1234 = vmatprep.subr.mxu0 0.0
        %1235 = vmatpush2.msra.mxu0 0.0
        %1236 = vmatprep.subr.mxu0 0.0
        %1237 = vmatpush2.msra.mxu0 0.0
        %1238 = vmatprep.subr.mxu0 0.0
        %1239 = vmatpush2.msra.mxu0 0.0
        %1240 = vmatprep.subr.mxu0 0.0
        %1241 = vmatpush2.msra.mxu0 0.0
        %1242 = vmatprep.subr.mxu0 0.0
        %1243 = vmatpush2.msra.mxu0 0.0
        %1244 = vmatprep.subr.mxu0 0.0
        %1245 = vmatpush2.msra.mxu0 0.0
        %1246 = vmatprep.subr.mxu0 0.0
        %1247 = vmatpush2.msra.mxu0 0.0
        %1248 = vmatprep.mubr.f32.mxu0 0.0
        %1249 = vmatmul.mubr.f32.gmra.mxu0 %v1182
        %v1250 = vpop.f32.mrf.mxu0
        %v1251 = vadd.f32 0.0, %v1250
        %v1252 = vpop.f32.mrf.mxu0
        %1253 = vdwg.mxu0
        %v1255 = vsel %vm905, %v1179, 0
        %1257 = vmatprep.subr.mxu0 0.0
        %1258 = vmatpush1.msra.mxu0 0.0
        %1259 = vmatprep.subr.mxu0 0.0
        %1260 = vmatpush1.msra.mxu0 0.0
        %1261 = vmatprep.subr.mxu0 0.0
        %1262 = vmatpush1.msra.mxu0 0.0
        %1263 = vmatprep.subr.mxu0 0.0
        %1264 = vmatpush1.msra.mxu0 0.0
        %1265 = vmatprep.subr.mxu0 0.0
        %1266 = vmatpush1.msra.mxu0 0.0
        %1267 = vmatprep.subr.mxu0 0.0
        %1268 = vmatpush1.msra.mxu0 0.0
        %1269 = vmatprep.subr.mxu0 0.0
        %1270 = vmatpush1.msra.mxu0 0.0
        %1271 = vmatprep.subr.mxu0 0.0
        %1272 = vmatpush1.msra.mxu0 0.0
        %1273 = vmatprep.subr.mxu0 0.0
        %1274 = vmatpush1.msra.mxu0 0.0
        %1275 = vmatprep.subr.mxu0 0.0
        %1276 = vmatpush1.msra.mxu0 0.0
        %1277 = vmatprep.subr.mxu0 0.0
        %1278 = vmatpush1.msra.mxu0 0.0
        %1279 = vmatprep.subr.mxu0 0.0
        %1280 = vmatpush1.msra.mxu0 0.0
        %1281 = vmatprep.subr.mxu0 0.0
        %1282 = vmatpush1.msra.mxu0 %v874
        %1283 = vmatprep.subr.mxu0 0.0
        %1284 = vmatpush1.msra.mxu0 %v873
        %1285 = vmatprep.subr.mxu0 0.0
        %1286 = vmatpush1.msra.mxu0 %v872
        %1287 = vmatprep.subr.mxu0 0.0
        %1288 = vmatpush1.msra.mxu0 %v871
        %1289 = vmatprep.subr.mxu0 0.0
        %1290 = vmatpush2.msra.mxu0 0.0
        %1291 = vmatprep.subr.mxu0 0.0
        %1292 = vmatpush2.msra.mxu0 0.0
        %1293 = vmatprep.subr.mxu0 0.0
        %1294 = vmatpush2.msra.mxu0 0.0
        %1295 = vmatprep.subr.mxu0 0.0
        %1296 = vmatpush2.msra.mxu0 0.0
        %1297 = vmatprep.subr.mxu0 0.0
        %1298 = vmatpush2.msra.mxu0 0.0
        %1299 = vmatprep.subr.mxu0 0.0
        %1300 = vmatpush2.msra.mxu0 0.0
        %1301 = vmatprep.subr.mxu0 0.0
        %1302 = vmatpush2.msra.mxu0 0.0
        %1303 = vmatprep.subr.mxu0 0.0
        %1304 = vmatpush2.msra.mxu0 0.0
        %1305 = vmatprep.subr.mxu0 0.0
        %1306 = vmatpush2.msra.mxu0 0.0
        %1307 = vmatprep.subr.mxu0 0.0
        %1308 = vmatpush2.msra.mxu0 0.0
        %1309 = vmatprep.subr.mxu0 0.0
        %1310 = vmatpush2.msra.mxu0 0.0
        %1311 = vmatprep.subr.mxu0 0.0
        %1312 = vmatpush2.msra.mxu0 0.0
        %1313 = vmatprep.subr.mxu0 0.0
        %1314 = vmatpush2.msra.mxu0 0.0
        %1315 = vmatprep.subr.mxu0 0.0
        %1316 = vmatpush2.msra.mxu0 0.0
        %1317 = vmatprep.subr.mxu0 0.0
        %1318 = vmatpush2.msra.mxu0 0.0
        %1319 = vmatprep.subr.mxu0 0.0
        %1320 = vmatpush2.msra.mxu0 0.0
        %1321 = vmatprep.mubr.f32.mxu0 0.0
        %1322 = vmatmul.mubr.f32.gmra.mxu0 %v1255
        %v1323 = vpop.f32.mrf.mxu0
        %v1324 = vadd.f32 %v1251, %v1323
        %v1325 = vpop.f32.mrf.mxu0
        %1326 = vdwg.mxu0
        %v1328 = vlaneseq
        %v1329 = vshrl.u32 %v1328, 7
        %v1330 = vsub.s32 0, %v1329
        %v1331 = vrot.slane %v879, %v1330
        %v1333 = vadd.f32 %v1324, %v1331
        %v1334 = vsel %vm905, %v1333, 0.0
        %1335 = vadd.xlane.f32.xlu0 %v1334
        %v1336 = vpop.xlane.xlu0 %1335
        %v1337 = vrcp.pop 32.0
        %v1338 = vmul.f32 %v1336, %v1337
        %v1339 = vsub.f32 %v1333, %v1338
        %v1340 = vmul.f32 %v1339, %v1339
        %v1341 = vsel %vm905, %v1340, 0.0
        %1342 = vadd.xlane.f32.xlu0 %v1341
        %v1343 = vpop.xlane.xlu0 %1342
        %v1344 = vmul.f32 %v1343, %v1337
        %v1345 = vadd.f32 %v1344, 1e-05
        %v1346 = vrsqrt.pop %v1345
        %v1347 = vmul.f32 %v1339, %v1346
        %v1349 = vlaneseq
        %v1350 = vshrl.u32 %v1349, 7
        %v1351 = vsub.s32 0, %v1350
        %v1352 = vrot.slane %v880, %v1351
        %v1354 = vmul.f32 %v1347, %v1352
        %v1356 = vlaneseq
        %v1357 = vshrl.u32 %v1356, 7
        %v1358 = vsub.s32 0, %v1357
        %v1359 = vrot.slane %v881, %v1358
        %v1361 = vadd.f32 %v1354, %v1359
        %1363 = vrot.lane.b32.xlu0 %v1333, 96
        %v1364 = vpop.permute.xlu0 %1363
        %v1366 = vsel %vm905, %v1364, 0.0
        %1367 = vadd.xlane.f32.xlu0 %v1366
        %v1368 = vpop.xlane.xlu0 %1367
        %v1369 = vmul.f32 %v1368, %v1337
        %v1370 = vsub.f32 %v1333, %v1369
        %v1371 = vmul.f32 %v1370, %v1370
        %1373 = vrot.lane.b32.xlu0 %v1371, 96
        %v1374 = vpop.permute.xlu0 %1373
        %v1376 = vsel %vm905, %v1374, 0.0
        %1377 = vadd.xlane.f32.xlu0 %v1376
        %v1378 = vpop.xlane.xlu0 %1377
        %v1379 = vmul.f32 %v1378, %v1337
        %v1380 = vadd.f32 %v1379, 1e-05
        %v1381 = vrsqrt.pop %v1380
        %v1382 = vmul.f32 %v1370, %v1381
        %v1383 = vmul.f32 %v1382, %v1352
        %v1384 = vadd.f32 %v1383, %v1359
        %1385 = vrot.lane.b32.xlu0 %v1333, 64
        %v1386 = vpop.permute.xlu0 %1385
        %v1388 = vsel %vm905, %v1386, 0.0
        %1389 = vadd.xlane.f32.xlu0 %v1388
        %v1390 = vpop.xlane.xlu0 %1389
        %v1391 = vmul.f32 %v1390, %v1337
        %v1392 = vsub.f32 %v1333, %v1391
        %v1393 = vmul.f32 %v1392, %v1392
        %1395 = vrot.lane.b32.xlu0 %v1393, 64
        %v1396 = vpop.permute.xlu0 %1395
        %v1398 = vsel %vm905, %v1396, 0.0
        %1399 = vadd.xlane.f32.xlu0 %v1398
        %v1400 = vpop.xlane.xlu0 %1399
        %v1401 = vmul.f32 %v1400, %v1337
        %v1402 = vadd.f32 %v1401, 1e-05
        %v1403 = vrsqrt.pop %v1402
        %v1404 = vmul.f32 %v1392, %v1403
        %v1405 = vmul.f32 %v1404, %v1352
        %v1406 = vadd.f32 %v1405, %v1359
        %1407 = vrot.lane.b32.xlu0 %v1333, 32
        %v1408 = vpop.permute.xlu0 %1407
        %v1410 = vsel %vm905, %v1408, 0.0
        %1411 = vadd.xlane.f32.xlu0 %v1410
        %v1412 = vpop.xlane.xlu0 %1411
        %v1413 = vmul.f32 %v1412, %v1337
        %v1414 = vsub.f32 %v1333, %v1413
        %v1415 = vmul.f32 %v1414, %v1414
        %1417 = vrot.lane.b32.xlu0 %v1415, 32
        %v1418 = vpop.permute.xlu0 %1417
        %v1420 = vsel %vm905, %v1418, 0.0
        %1421 = vadd.xlane.f32.xlu0 %v1420
        %v1422 = vpop.xlane.xlu0 %1421
        %v1423 = vmul.f32 %v1422, %v1337
        %v1424 = vadd.f32 %v1423, 1e-05
        %v1425 = vrsqrt.pop %v1424
        %v1426 = vmul.f32 %v1414, %v1425
        %v1427 = vmul.f32 %v1426, %v1352
        %v1428 = vadd.f32 %v1427, %v1359
        %v1429 = vxor.u32 %v1361, 2147483648
        %v1430 = vmul.f32 %v1429, 1.442695
        %v1431 = vpow.pop %v1430
        %v1432 = vadd.f32 %v1431, 1.0
        %v1433 = vrcp.pop %v1432
        %v1434 = vmul.f32 1.0, %v1433
        %v1435 = vadd.f32 %v1384, 1.0
        %v1436 = vxor.u32 %v1435, 2147483648
        %v1437 = vmul.f32 %v1436, 1.442695
        %v1438 = vpow.pop %v1437
        %v1439 = vadd.f32 %v1438, 1.0
        %v1440 = vrcp.pop %v1439
        %v1441 = vmul.f32 1.0, %v1440
        %v1442 = vtanh.pop %v1406
        %v1443 = vxor.u32 %v1428, 2147483648
        %v1444 = vmul.f32 %v1443, 1.442695
        %v1445 = vpow.pop %v1444
        %v1446 = vadd.f32 %v1445, 1.0
        %v1447 = vrcp.pop %v1446
        %v1448 = vmul.f32 1.0, %v1447
        %v1449 = vmul.f32 %v1441, 0.0
        %1451 = vrot.lane.b32.xlu0 %v1442, 64
        %v1452 = vpop.permute.xlu0 %1451
        %v1454 = vmul.f32 %v1434, %v1452
        %1456 = vrot.lane.b32.xlu0 %v1454, 32
        %v1457 = vpop.permute.xlu0 %1456
        %v1459 = vadd.f32 %v1449, %v1457
        %1461 = vrot.lane.b32.xlu0 %v1459, 96
        %v1462 = vpop.permute.xlu0 %1461
        %v1464 = vsel %vm905, %v1462, 0.0
        %1465 = vadd.xlane.f32.xlu0 %v1464
        %v1466 = vpop.xlane.xlu0 %1465
        %v1467 = vmul.f32 %v1466, %v1337
        %v1468 = vsub.f32 %v1459, %v1467
        %v1469 = vmul.f32 %v1468, %v1468
        %1471 = vrot.lane.b32.xlu0 %v1469, 96
        %v1472 = vpop.permute.xlu0 %1471
        %v1474 = vsel %vm905, %v1472, 0.0
        %1475 = vadd.xlane.f32.xlu0 %v1474
        %v1476 = vpop.xlane.xlu0 %1475
        %v1477 = vmul.f32 %v1476, %v1337
        %v1478 = vadd.f32 %v1477, 1e-05
        %v1479 = vrsqrt.pop %v1478
        %v1480 = vmul.f32 %v1468, %v1479
        %v1482 = vlaneseq
        %v1483 = vshrl.u32 %v1482, 7
        %v1484 = vsub.s32 0, %v1483
        %v1485 = vrot.slane %v882, %v1484
        %1486 = vrot.lane.b32.xlu0 %v1485, 32
        %v1487 = vpop.permute.xlu0 %1486
        %v1489 = vmul.f32 %v1480, %v1487
        %v1491 = vlaneseq
        %v1492 = vshrl.u32 %v1491, 7
        %v1493 = vsub.s32 0, %v1492
        %v1494 = vrot.slane %v883, %v1493
        %1495 = vrot.lane.b32.xlu0 %v1494, 32
        %v1496 = vpop.permute.xlu0 %1495
        %v1498 = vadd.f32 %v1489, %v1496
        %v1499 = vtanh.pop %v1498
        %1501 = vrot.lane.b32.xlu0 %v1499, 64
        %v1502 = vpop.permute.xlu0 %1501
        %v1504 = vmul.f32 %v1448, %v1502
        %v1505 = vlaneseq
        %v1506 = vshrl.u32 %v1505, 7
        %v1507 = vsub.s32 0, %v1506
        %v1508 = vrot.slane %v870, %v1507
        %1510 = vrot.lane.b32.xlu0 %v1504, 32
        %v1511 = vpop.permute.xlu0 %1510
        %v1512 = vsel %vm905, %v1511, 0
        %1514 = vmatprep.subr.mxu0 0.0
        %1515 = vmatpush1.msra.mxu0 0.0
        %1516 = vmatprep.subr.mxu0 0.0
        %1517 = vmatpush1.msra.mxu0 0.0
        %1518 = vmatprep.subr.mxu0 0.0
        %1519 = vmatpush1.msra.mxu0 0.0
        %1520 = vmatprep.subr.mxu0 0.0
        %1521 = vmatpush1.msra.mxu0 0.0
        %1522 = vmatprep.subr.mxu0 0.0
        %1523 = vmatpush1.msra.mxu0 0.0
        %1524 = vmatprep.subr.mxu0 0.0
        %1525 = vmatpush1.msra.mxu0 0.0
        %1526 = vmatprep.subr.mxu0 0.0
        %1527 = vmatpush1.msra.mxu0 0.0
        %1528 = vmatprep.subr.mxu0 0.0
        %1529 = vmatpush1.msra.mxu0 0.0
        %1530 = vmatprep.subr.mxu0 0.0
        %1531 = vmatpush1.msra.mxu0 0.0
        %1532 = vmatprep.subr.mxu0 0.0
        %1533 = vmatpush1.msra.mxu0 0.0
        %1534 = vmatprep.subr.mxu0 0.0
        %1535 = vmatpush1.msra.mxu0 0.0
        %1536 = vmatprep.subr.mxu0 0.0
        %1537 = vmatpush1.msra.mxu0 0.0
        %1538 = vmatprep.subr.mxu0 0.0
        %1539 = vmatpush1.msra.mxu0 %v865
        %1540 = vmatprep.subr.mxu0 0.0
        %1541 = vmatpush1.msra.mxu0 %v864
        %1542 = vmatprep.subr.mxu0 0.0
        %1543 = vmatpush1.msra.mxu0 %v863
        %1544 = vmatprep.subr.mxu0 0.0
        %1545 = vmatpush1.msra.mxu0 %v862
        %1546 = vmatprep.subr.mxu0 0.0
        %1547 = vmatpush2.msra.mxu0 0.0
        %1548 = vmatprep.subr.mxu0 0.0
        %1549 = vmatpush2.msra.mxu0 0.0
        %1550 = vmatprep.subr.mxu0 0.0
        %1551 = vmatpush2.msra.mxu0 0.0
        %1552 = vmatprep.subr.mxu0 0.0
        %1553 = vmatpush2.msra.mxu0 0.0
        %1554 = vmatprep.subr.mxu0 0.0
        %1555 = vmatpush2.msra.mxu0 0.0
        %1556 = vmatprep.subr.mxu0 0.0
        %1557 = vmatpush2.msra.mxu0 0.0
        %1558 = vmatprep.subr.mxu0 0.0
        %1559 = vmatpush2.msra.mxu0 0.0
        %1560 = vmatprep.subr.mxu0 0.0
        %1561 = vmatpush2.msra.mxu0 0.0
        %1562 = vmatprep.subr.mxu0 0.0
        %1563 = vmatpush2.msra.mxu0 0.0
        %1564 = vmatprep.subr.mxu0 0.0
        %1565 = vmatpush2.msra.mxu0 0.0
        %1566 = vmatprep.subr.mxu0 0.0
        %1567 = vmatpush2.msra.mxu0 0.0
        %1568 = vmatprep.subr.mxu0 0.0
        %1569 = vmatpush2.msra.mxu0 0.0
        %1570 = vmatprep.subr.mxu0 0.0
        %1571 = vmatpush2.msra.mxu0 0.0
        %1572 = vmatprep.subr.mxu0 0.0
        %1573 = vmatpush2.msra.mxu0 0.0
        %1574 = vmatprep.subr.mxu0 0.0
        %1575 = vmatpush2.msra.mxu0 0.0
        %1576 = vmatprep.subr.mxu0 0.0
        %1577 = vmatpush2.msra.mxu0 0.0
        %1578 = vmatprep.mubr.f32.mxu0 0.0
        %1579 = vmatmul.mubr.f32.gmra.mxu0 %v1512
        %v1580 = vpop.f32.mrf.mxu0
        %v1581 = vadd.f32 %v1508, %v1580
        %v1582 = vpop.f32.mrf.mxu0
        %1583 = vdwg.mxu0
        %v1584 = vmax.f32 %v1581, 0.0
        %v1585 = vlaneseq
        %v1586 = vshrl.u32 %v1585, 7
        %v1587 = vsub.s32 1, %v1586
        %v1588 = vrot.slane %v870, %v1587
        %v1590 = vsel %vm905, %v1584, 0
        %1592 = vmatprep.subr.mxu0 0.0
        %1593 = vmatpush1.msra.mxu0 0.0
        %1594 = vmatprep.subr.mxu0 0.0
        %1595 = vmatpush1.msra.mxu0 0.0
        %1596 = vmatprep.subr.mxu0 0.0
        %1597 = vmatpush1.msra.mxu0 0.0
        %1598 = vmatprep.subr.mxu0 0.0
        %1599 = vmatpush1.msra.mxu0 0.0
        %1600 = vmatprep.subr.mxu0 0.0
        %1601 = vmatpush1.msra.mxu0 0.0
        %1602 = vmatprep.subr.mxu0 0.0
        %1603 = vmatpush1.msra.mxu0 0.0
        %1604 = vmatprep.subr.mxu0 0.0
        %1605 = vmatpush1.msra.mxu0 0.0
        %1606 = vmatprep.subr.mxu0 0.0
        %1607 = vmatpush1.msra.mxu0 0.0
        %1608 = vmatprep.subr.mxu0 0.0
        %1609 = vmatpush1.msra.mxu0 0.0
        %1610 = vmatprep.subr.mxu0 0.0
        %1611 = vmatpush1.msra.mxu0 0.0
        %1612 = vmatprep.subr.mxu0 0.0
        %1613 = vmatpush1.msra.mxu0 0.0
        %1614 = vmatprep.subr.mxu0 0.0
        %1615 = vmatpush1.msra.mxu0 0.0
        %1616 = vmatprep.subr.mxu0 0.0
        %1617 = vmatpush1.msra.mxu0 %v869
        %1618 = vmatprep.subr.mxu0 0.0
        %1619 = vmatpush1.msra.mxu0 %v868
        %1620 = vmatprep.subr.mxu0 0.0
        %1621 = vmatpush1.msra.mxu0 %v867
        %1622 = vmatprep.subr.mxu0 0.0
        %1623 = vmatpush1.msra.mxu0 %v866
        %1624 = vmatprep.subr.mxu0 0.0
        %1625 = vmatpush2.msra.mxu0 0.0
        %1626 = vmatprep.subr.mxu0 0.0
        %1627 = vmatpush2.msra.mxu0 0.0
        %1628 = vmatprep.subr.mxu0 0.0
        %1629 = vmatpush2.msra.mxu0 0.0
        %1630 = vmatprep.subr.mxu0 0.0
        %1631 = vmatpush2.msra.mxu0 0.0
        %1632 = vmatprep.subr.mxu0 0.0
        %1633 = vmatpush2.msra.mxu0 0.0
        %1634 = vmatprep.subr.mxu0 0.0
        %1635 = vmatpush2.msra.mxu0 0.0
        %1636 = vmatprep.subr.mxu0 0.0
        %1637 = vmatpush2.msra.mxu0 0.0
        %1638 = vmatprep.subr.mxu0 0.0
        %1639 = vmatpush2.msra.mxu0 0.0
        %1640 = vmatprep.subr.mxu0 0.0
        %1641 = vmatpush2.msra.mxu0 0.0
        %1642 = vmatprep.subr.mxu0 0.0
        %1643 = vmatpush2.msra.mxu0 0.0
        %1644 = vmatprep.subr.mxu0 0.0
        %1645 = vmatpush2.msra.mxu0 0.0
        %1646 = vmatprep.subr.mxu0 0.0
        %1647 = vmatpush2.msra.mxu0 0.0
        %1648 = vmatprep.subr.mxu0 0.0
        %1649 = vmatpush2.msra.mxu0 0.0
        %1650 = vmatprep.subr.mxu0 0.0
        %1651 = vmatpush2.msra.mxu0 0.0
        %1652 = vmatprep.subr.mxu0 0.0
        %1653 = vmatpush2.msra.mxu0 0.0
        %1654 = vmatprep.subr.mxu0 0.0
        %1655 = vmatpush2.msra.mxu0 0.0
        %1656 = vmatprep.mubr.f32.mxu0 0.0
        %1657 = vmatmul.mubr.f32.gmra.mxu0 %v1590
        %v1658 = vpop.f32.mrf.mxu0
        %v1659 = vadd.f32 %v1588, %v1658
        %v1660 = vpop.f32.mrf.mxu0
        %1661 = vdwg.mxu0
        %v1662 = vmax.f32 %v1659, 0.0
        %vm1663 = vcmask 64512
        %v1665 = vsel %vm1663, %v796, 0
        %v1668 = vsel %vm1663, %v797, 0
        %1670 = vmatprep.subr.mxu0 0.0
        %1671 = vmatpush1.msra.mxu0 0.0
        %1672 = vmatprep.subr.mxu0 0.0
        %1673 = vmatpush1.msra.mxu0 0.0
        %1674 = vmatprep.subr.mxu0 0.0
        %1675 = vmatpush1.msra.mxu0 0.0
        %1676 = vmatprep.subr.mxu0 0.0
        %1677 = vmatpush1.msra.mxu0 0.0
        %1678 = vmatprep.subr.mxu0 0.0
        %1679 = vmatpush1.msra.mxu0 0.0
        %1680 = vmatprep.subr.mxu0 0.0
        %1681 = vmatpush1.msra.mxu0 0.0
        %1682 = vmatprep.subr.mxu0 0.0
        %1683 = vmatpush1.msra.mxu0 0.0
        %1684 = vmatprep.subr.mxu0 0.0
        %1685 = vmatpush1.msra.mxu0 0.0
        %1686 = vmatprep.subr.mxu0 0.0
        %1687 = vmatpush1.msra.mxu0 0.0
        %1688 = vmatprep.subr.mxu0 0.0
        %1689 = vmatpush1.msra.mxu0 0.0
        %1690 = vmatprep.subr.mxu0 0.0
        %1691 = vmatpush1.msra.mxu0 0.0
        %1692 = vmatprep.subr.mxu0 0.0
        %1693 = vmatpush1.msra.mxu0 0.0
        %1694 = vmatprep.subr.mxu0 0.0
        %1695 = vmatpush1.msra.mxu0 0.0
        %1696 = vmatprep.subr.mxu0 0.0
        %1697 = vmatpush1.msra.mxu0 0.0
        %1698 = vmatprep.subr.mxu0 0.0
        %1699 = vmatpush1.msra.mxu0 0.0
        %1700 = vmatprep.subr.mxu0 0.0
        %1701 = vmatpush1.msra.mxu0 %v1662
        %1702 = vmatprep.subr.mxu0 0.0
        %1703 = vmatpush2.msra.mxu0 0.0
        %1704 = vmatprep.subr.mxu0 0.0
        %1705 = vmatpush2.msra.mxu0 0.0
        %1706 = vmatprep.subr.mxu0 0.0
        %1707 = vmatpush2.msra.mxu0 0.0
        %1708 = vmatprep.subr.mxu0 0.0
        %1709 = vmatpush2.msra.mxu0 0.0
        %1710 = vmatprep.subr.mxu0 0.0
        %1711 = vmatpush2.msra.mxu0 0.0
        %1712 = vmatprep.subr.mxu0 0.0
        %1713 = vmatpush2.msra.mxu0 0.0
        %1714 = vmatprep.subr.mxu0 0.0
        %1715 = vmatpush2.msra.mxu0 0.0
        %1716 = vmatprep.subr.mxu0 0.0
        %1717 = vmatpush2.msra.mxu0 0.0
        %1718 = vmatprep.subr.mxu0 0.0
        %1719 = vmatpush2.msra.mxu0 0.0
        %1720 = vmatprep.subr.mxu0 0.0
        %1721 = vmatpush2.msra.mxu0 0.0
        %1722 = vmatprep.subr.mxu0 0.0
        %1723 = vmatpush2.msra.mxu0 0.0
        %1724 = vmatprep.subr.mxu0 0.0
        %1725 = vmatpush2.msra.mxu0 0.0
        %1726 = vmatprep.subr.mxu0 0.0
        %1727 = vmatpush2.msra.mxu0 0.0
        %1728 = vmatprep.subr.mxu0 0.0
        %1729 = vmatpush2.msra.mxu0 0.0
        %1730 = vmatprep.subr.mxu0 0.0
        %1731 = vmatpush2.msra.mxu0 0.0
        %1732 = vmatprep.subr.mxu0 0.0
        %1733 = vmatpush2.msra.mxu0 0.0
        %1734 = vmatprep.mubr.f32.mxu0 0.0
        %1735 = vmatmul.mubr.f32.gmra.mxu0 %v1665
        %v1736 = vpop.f32.mrf.mxu0
        %v1737 = vadd.f32 0.0, %v1736
        %v1738 = vpop.f32.mrf.mxu0
        %1739 = vmatprep.mubr.f32.mxu0 0.0
        %1740 = vmatmul.mubr.f32.gmra.mxu0 %v1668
        %v1741 = vpop.f32.mrf.mxu0
        %v1742 = vadd.f32 0.0, %v1741
        %v1743 = vpop.f32.mrf.mxu0
        %1744 = vdwg.mxu0
        %v1746 = vsel %vm1108, %v851, 0
        %v1749 = vsel %vm1108, %v852, 0
        %1751 = vmatprep.subr.mxu0 0.0
        %1752 = vmatpush1.msra.mxu0 0.0
        %1753 = vmatprep.subr.mxu0 0.0
        %1754 = vmatpush1.msra.mxu0 0.0
        %1755 = vmatprep.subr.mxu0 0.0
        %1756 = vmatpush1.msra.mxu0 0.0
        %1757 = vmatprep.subr.mxu0 0.0
        %1758 = vmatpush1.msra.mxu0 0.0
        %1759 = vmatprep.subr.mxu0 0.0
        %1760 = vmatpush1.msra.mxu0 0.0
        %1761 = vmatprep.subr.mxu0 0.0
        %1762 = vmatpush1.msra.mxu0 0.0
        %1763 = vmatprep.subr.mxu0 0.0
        %1764 = vmatpush1.msra.mxu0 0.0
        %1765 = vmatprep.subr.mxu0 0.0
        %1766 = vmatpush1.msra.mxu0 0.0
        %1767 = vmatprep.subr.mxu0 0.0
        %1768 = vmatpush1.msra.mxu0 0.0
        %1769 = vmatprep.subr.mxu0 0.0
        %1770 = vmatpush1.msra.mxu0 0.0
        %1771 = vmatprep.subr.mxu0 0.0
        %1772 = vmatpush1.msra.mxu0 0.0
        %1773 = vmatprep.subr.mxu0 0.0
        %1774 = vmatpush1.msra.mxu0 0.0
        %1775 = vmatprep.subr.mxu0 0.0
        %1776 = vmatpush1.msra.mxu0 0.0
        %1777 = vmatprep.subr.mxu0 0.0
        %1778 = vmatpush1.msra.mxu0 0.0
        %1779 = vmatprep.subr.mxu0 0.0
        %1780 = vmatpush1.msra.mxu0 %v818
        %1781 = vmatprep.subr.mxu0 0.0
        %1782 = vmatpush1.msra.mxu0 %v817
        %1783 = vmatprep.subr.mxu0 0.0
        %1784 = vmatpush2.msra.mxu0 0.0
        %1785 = vmatprep.subr.mxu0 0.0
        %1786 = vmatpush2.msra.mxu0 0.0
        %1787 = vmatprep.subr.mxu0 0.0
        %1788 = vmatpush2.msra.mxu0 0.0
        %1789 = vmatprep.subr.mxu0 0.0
        %1790 = vmatpush2.msra.mxu0 0.0
        %1791 = vmatprep.subr.mxu0 0.0
        %1792 = vmatpush2.msra.mxu0 0.0
        %1793 = vmatprep.subr.mxu0 0.0
        %1794 = vmatpush2.msra.mxu0 0.0
        %1795 = vmatprep.subr.mxu0 0.0
        %1796 = vmatpush2.msra.mxu0 0.0
        %1797 = vmatprep.subr.mxu0 0.0
        %1798 = vmatpush2.msra.mxu0 0.0
        %1799 = vmatprep.subr.mxu0 0.0
        %1800 = vmatpush2.msra.mxu0 0.0
        %1801 = vmatprep.subr.mxu0 0.0
        %1802 = vmatpush2.msra.mxu0 0.0
        %1803 = vmatprep.subr.mxu0 0.0
        %1804 = vmatpush2.msra.mxu0 0.0
        %1805 = vmatprep.subr.mxu0 0.0
        %1806 = vmatpush2.msra.mxu0 0.0
        %1807 = vmatprep.subr.mxu0 0.0
        %1808 = vmatpush2.msra.mxu0 0.0
        %1809 = vmatprep.subr.mxu0 0.0
        %1810 = vmatpush2.msra.mxu0 0.0
        %1811 = vmatprep.subr.mxu0 0.0
        %1812 = vmatpush2.msra.mxu0 0.0
        %1813 = vmatprep.subr.mxu0 0.0
        %1814 = vmatpush2.msra.mxu0 0.0
        %1815 = vmatprep.mubr.f32.mxu0 0.0
        %1816 = vmatmul.mubr.f32.gmra.mxu0 %v1746
        %v1817 = vpop.f32.mrf.mxu0
        %v1818 = vadd.f32 0.0, %v1817
        %v1819 = vpop.f32.mrf.mxu0
        %1820 = vmatprep.mubr.f32.mxu0 0.0
        %1821 = vmatmul.mubr.f32.gmra.mxu0 %v1749
        %v1822 = vpop.f32.mrf.mxu0
        %v1823 = vadd.f32 0.0, %v1822
        %v1824 = vpop.f32.mrf.mxu0
        %1825 = vdwg.mxu0
        %v1827 = vsel %vm905, %v1818, 0
        %v1830 = vsel %vm905, %v1823, 0
        %1832 = vmatprep.subr.mxu0 0.0
        %1833 = vmatpush1.msra.mxu0 0.0
        %1834 = vmatprep.subr.mxu0 0.0
        %1835 = vmatpush1.msra.mxu0 0.0
        %1836 = vmatprep.subr.mxu0 0.0
        %1837 = vmatpush1.msra.mxu0 0.0
        %1838 = vmatprep.subr.mxu0 0.0
        %1839 = vmatpush1.msra.mxu0 0.0
        %1840 = vmatprep.subr.mxu0 0.0
        %1841 = vmatpush1.msra.mxu0 0.0
        %1842 = vmatprep.subr.mxu0 0.0
        %1843 = vmatpush1.msra.mxu0 0.0
        %1844 = vmatprep.subr.mxu0 0.0
        %1845 = vmatpush1.msra.mxu0 0.0
        %1846 = vmatprep.subr.mxu0 0.0
        %1847 = vmatpush1.msra.mxu0 0.0
        %1848 = vmatprep.subr.mxu0 0.0
        %1849 = vmatpush1.msra.mxu0 0.0
        %1850 = vmatprep.subr.mxu0 0.0
        %1851 = vmatpush1.msra.mxu0 0.0
        %1852 = vmatprep.subr.mxu0 0.0
        %1853 = vmatpush1.msra.mxu0 0.0
        %1854 = vmatprep.subr.mxu0 0.0
        %1855 = vmatpush1.msra.mxu0 0.0
        %1856 = vmatprep.subr.mxu0 0.0
        %1857 = vmatpush1.msra.mxu0 %v891
        %1858 = vmatprep.subr.mxu0 0.0
        %1859 = vmatpush1.msra.mxu0 %v890
        %1860 = vmatprep.subr.mxu0 0.0
        %1861 = vmatpush1.msra.mxu0 %v889
        %1862 = vmatprep.subr.mxu0 0.0
        %1863 = vmatpush1.msra.mxu0 %v888
        %1864 = vmatprep.subr.mxu0 0.0
        %1865 = vmatpush2.msra.mxu0 0.0
        %1866 = vmatprep.subr.mxu0 0.0
        %1867 = vmatpush2.msra.mxu0 0.0
        %1868 = vmatprep.subr.mxu0 0.0
        %1869 = vmatpush2.msra.mxu0 0.0
        %1870 = vmatprep.subr.mxu0 0.0
        %1871 = vmatpush2.msra.mxu0 0.0
        %1872 = vmatprep.subr.mxu0 0.0
        %1873 = vmatpush2.msra.mxu0 0.0
        %1874 = vmatprep.subr.mxu0 0.0
        %1875 = vmatpush2.msra.mxu0 0.0
        %1876 = vmatprep.subr.mxu0 0.0
        %1877 = vmatpush2.msra.mxu0 0.0
        %1878 = vmatprep.subr.mxu0 0.0
        %1879 = vmatpush2.msra.mxu0 0.0
        %1880 = vmatprep.subr.mxu0 0.0
        %1881 = vmatpush2.msra.mxu0 0.0
        %1882 = vmatprep.subr.mxu0 0.0
        %1883 = vmatpush2.msra.mxu0 0.0
        %1884 = vmatprep.subr.mxu0 0.0
        %1885 = vmatpush2.msra.mxu0 0.0
        %1886 = vmatprep.subr.mxu0 0.0
        %1887 = vmatpush2.msra.mxu0 0.0
        %1888 = vmatprep.subr.mxu0 0.0
        %1889 = vmatpush2.msra.mxu0 0.0
        %1890 = vmatprep.subr.mxu0 0.0
        %1891 = vmatpush2.msra.mxu0 0.0
        %1892 = vmatprep.subr.mxu0 0.0
        %1893 = vmatpush2.msra.mxu0 0.0
        %1894 = vmatprep.subr.mxu0 0.0
        %1895 = vmatpush2.msra.mxu0 0.0
        %1896 = vmatprep.mubr.f32.mxu0 0.0
        %1897 = vmatmul.mubr.f32.gmra.mxu0 %v1827
        %v1898 = vpop.f32.mrf.mxu0
        %v1899 = vadd.f32 0.0, %v1898
        %v1900 = vpop.f32.mrf.mxu0
        %1901 = vmatprep.mubr.f32.mxu0 0.0
        %1902 = vmatmul.mubr.f32.gmra.mxu0 %v1830
        %v1903 = vpop.f32.mrf.mxu0
        %v1904 = vadd.f32 0.0, %v1903
        %v1905 = vpop.f32.mrf.mxu0
        %1906 = vdwg.mxu0
        %v1908 = vsel %vm905, %v1737, 0
        %v1911 = vsel %vm905, %v1742, 0
        %1913 = vmatprep.subr.mxu0 0.0
        %1914 = vmatpush1.msra.mxu0 0.0
        %1915 = vmatprep.subr.mxu0 0.0
        %1916 = vmatpush1.msra.mxu0 0.0
        %1917 = vmatprep.subr.mxu0 0.0
        %1918 = vmatpush1.msra.mxu0 0.0
        %1919 = vmatprep.subr.mxu0 0.0
        %1920 = vmatpush1.msra.mxu0 0.0
        %1921 = vmatprep.subr.mxu0 0.0
        %1922 = vmatpush1.msra.mxu0 0.0
        %1923 = vmatprep.subr.mxu0 0.0
        %1924 = vmatpush1.msra.mxu0 0.0
        %1925 = vmatprep.subr.mxu0 0.0
        %1926 = vmatpush1.msra.mxu0 0.0
        %1927 = vmatprep.subr.mxu0 0.0
        %1928 = vmatpush1.msra.mxu0 0.0
        %1929 = vmatprep.subr.mxu0 0.0
        %1930 = vmatpush1.msra.mxu0 0.0
        %1931 = vmatprep.subr.mxu0 0.0
        %1932 = vmatpush1.msra.mxu0 0.0
        %1933 = vmatprep.subr.mxu0 0.0
        %1934 = vmatpush1.msra.mxu0 0.0
        %1935 = vmatprep.subr.mxu0 0.0
        %1936 = vmatpush1.msra.mxu0 0.0
        %1937 = vmatprep.subr.mxu0 0.0
        %1938 = vmatpush1.msra.mxu0 %v887
        %1939 = vmatprep.subr.mxu0 0.0
        %1940 = vmatpush1.msra.mxu0 %v886
        %1941 = vmatprep.subr.mxu0 0.0
        %1942 = vmatpush1.msra.mxu0 %v885
        %1943 = vmatprep.subr.mxu0 0.0
        %1944 = vmatpush1.msra.mxu0 %v884
        %1945 = vmatprep.subr.mxu0 0.0
        %1946 = vmatpush2.msra.mxu0 0.0
        %1947 = vmatprep.subr.mxu0 0.0
        %1948 = vmatpush2.msra.mxu0 0.0
        %1949 = vmatprep.subr.mxu0 0.0
        %1950 = vmatpush2.msra.mxu0 0.0
        %1951 = vmatprep.subr.mxu0 0.0
        %1952 = vmatpush2.msra.mxu0 0.0
        %1953 = vmatprep.subr.mxu0 0.0
        %1954 = vmatpush2.msra.mxu0 0.0
        %1955 = vmatprep.subr.mxu0 0.0
        %1956 = vmatpush2.msra.mxu0 0.0
        %1957 = vmatprep.subr.mxu0 0.0
        %1958 = vmatpush2.msra.mxu0 0.0
        %1959 = vmatprep.subr.mxu0 0.0
        %1960 = vmatpush2.msra.mxu0 0.0
        %1961 = vmatprep.subr.mxu0 0.0
        %1962 = vmatpush2.msra.mxu0 0.0
        %1963 = vmatprep.subr.mxu0 0.0
        %1964 = vmatpush2.msra.mxu0 0.0
        %1965 = vmatprep.subr.mxu0 0.0
        %1966 = vmatpush2.msra.mxu0 0.0
        %1967 = vmatprep.subr.mxu0 0.0
        %1968 = vmatpush2.msra.mxu0 0.0
        %1969 = vmatprep.subr.mxu0 0.0
        %1970 = vmatpush2.msra.mxu0 0.0
        %1971 = vmatprep.subr.mxu0 0.0
        %1972 = vmatpush2.msra.mxu0 0.0
        %1973 = vmatprep.subr.mxu0 0.0
        %1974 = vmatpush2.msra.mxu0 0.0
        %1975 = vmatprep.subr.mxu0 0.0
        %1976 = vmatpush2.msra.mxu0 0.0
        %1977 = vmatprep.mubr.f32.mxu0 0.0
        %1978 = vmatmul.mubr.f32.gmra.mxu0 %v1908
        %v1979 = vpop.f32.mrf.mxu0
        %v1980 = vadd.f32 %v1899, %v1979
        %v1981 = vpop.f32.mrf.mxu0
        %1982 = vmatprep.mubr.f32.mxu0 0.0
        %1983 = vmatmul.mubr.f32.gmra.mxu0 %v1911
        %v1984 = vpop.f32.mrf.mxu0
        %v1985 = vadd.f32 %v1904, %v1984
        %v1986 = vpop.f32.mrf.mxu0
        %1987 = vdwg.mxu0
        %1988 = vmatprep.subr.mxu0 0.0
        %1989 = vmatpush1.msra.mxu0 0.0
        %1990 = vmatprep.subr.mxu0 0.0
        %1991 = vmatpush1.msra.mxu0 0.0
        %1992 = vmatprep.subr.mxu0 0.0
        %1993 = vmatpush1.msra.mxu0 0.0
        %1994 = vmatprep.subr.mxu0 0.0
        %1995 = vmatpush1.msra.mxu0 0.0
        %1996 = vmatprep.subr.mxu0 0.0
        %1997 = vmatpush1.msra.mxu0 0.0
        %1998 = vmatprep.subr.mxu0 0.0
        %1999 = vmatpush1.msra.mxu0 0.0
        %2000 = vmatprep.subr.mxu0 0.0
        %2001 = vmatpush1.msra.mxu0 0.0
        %2002 = vmatprep.subr.mxu0 0.0
        %2003 = vmatpush1.msra.mxu0 0.0
        %2004 = vmatprep.subr.mxu0 0.0
        %2005 = vmatpush1.msra.mxu0 0.0
        %2006 = vmatprep.subr.mxu0 0.0
        %2007 = vmatpush1.msra.mxu0 0.0
        %2008 = vmatprep.subr.mxu0 0.0
        %2009 = vmatpush1.msra.mxu0 0.0
        %2010 = vmatprep.subr.mxu0 0.0
        %2011 = vmatpush1.msra.mxu0 0.0
        %2012 = vmatprep.subr.mxu0 0.0
        %2013 = vmatpush1.msra.mxu0 %v895
        %2014 = vmatprep.subr.mxu0 0.0
        %2015 = vmatpush1.msra.mxu0 %v894
        %2016 = vmatprep.subr.mxu0 0.0
        %2017 = vmatpush1.msra.mxu0 %v893
        %2018 = vmatprep.subr.mxu0 0.0
        %2019 = vmatpush1.msra.mxu0 %v892
        %2020 = vmatprep.subr.mxu0 0.0
        %2021 = vmatpush2.msra.mxu0 0.0
        %2022 = vmatprep.subr.mxu0 0.0
        %2023 = vmatpush2.msra.mxu0 0.0
        %2024 = vmatprep.subr.mxu0 0.0
        %2025 = vmatpush2.msra.mxu0 0.0
        %2026 = vmatprep.subr.mxu0 0.0
        %2027 = vmatpush2.msra.mxu0 0.0
        %2028 = vmatprep.subr.mxu0 0.0
        %2029 = vmatpush2.msra.mxu0 0.0
        %2030 = vmatprep.subr.mxu0 0.0
        %2031 = vmatpush2.msra.mxu0 0.0
        %2032 = vmatprep.subr.mxu0 0.0
        %2033 = vmatpush2.msra.mxu0 0.0
        %2034 = vmatprep.subr.mxu0 0.0
        %2035 = vmatpush2.msra.mxu0 0.0
        %2036 = vmatprep.subr.mxu0 0.0
        %2037 = vmatpush2.msra.mxu0 0.0
        %2038 = vmatprep.subr.mxu0 0.0
        %2039 = vmatpush2.msra.mxu0 0.0
        %2040 = vmatprep.subr.mxu0 0.0
        %2041 = vmatpush2.msra.mxu0 0.0
        %2042 = vmatprep.subr.mxu0 0.0
        %2043 = vmatpush2.msra.mxu0 0.0
        %2044 = vmatprep.subr.mxu0 0.0
        %2045 = vmatpush2.msra.mxu0 0.0
        %2046 = vmatprep.subr.mxu0 0.0
        %2047 = vmatpush2.msra.mxu0 0.0
        %2048 = vmatprep.subr.mxu0 0.0
        %2049 = vmatpush2.msra.mxu0 0.0
        %2050 = vmatprep.subr.mxu0 0.0
        %2051 = vmatpush2.msra.mxu0 0.0
        %2052 = vmatprep.mubr.f32.mxu0 0.0
        %2053 = vmatmul.mubr.f32.gmra.mxu0 %v907
        %v2054 = vpop.f32.mrf.mxu0
        %v2055 = vadd.f32 0.0, %v2054
        %v2056 = vpop.f32.mrf.mxu0
        %2057 = vmatprep.mubr.f32.mxu0 0.0
        %2058 = vmatmul.mubr.f32.gmra.mxu0 %v910
        %v2059 = vpop.f32.mrf.mxu0
        %v2060 = vadd.f32 0.0, %v2059
        %v2061 = vpop.f32.mrf.mxu0
        %2062 = vdwg.mxu0
        %v2063 = vadd.f32 %v1980, %v2055
        %v2064 = vadd.f32 %v1985, %v2060
        %v2066 = vlaneseq
        %v2067 = vshrl.u32 %v2066, 7
        %v2068 = vsub.s32 0, %v2067
        %v2069 = vrot.slane %v896, %v2068
        %v2071 = vadd.f32 %v2063, %v2069
        %v2072 = vadd.f32 %v2064, %v2069
        %v2073 = vsel %vm905, %v2071, 0.0
        %2074 = vadd.xlane.f32.xlu0 %v2073
        %v2075 = vpop.xlane.xlu0 %2074
        %v2076 = vsel %vm905, %v2072, 0.0
        %2077 = vadd.xlane.f32.xlu0 %v2076
        %v2078 = vpop.xlane.xlu0 %2077
        %v2079 = vmul.f32 %v2075, %v1337
        %v2080 = vmul.f32 %v2078, %v1337
        %v2081 = vsub.f32 %v2071, %v2079
        %v2082 = vsub.f32 %v2072, %v2080
        %v2083 = vmul.f32 %v2081, %v2081
        %v2084 = vmul.f32 %v2082, %v2082
        %v2085 = vsel %vm905, %v2083, 0.0
        %2086 = vadd.xlane.f32.xlu0 %v2085
        %v2087 = vpop.xlane.xlu0 %2086
        %v2088 = vsel %vm905, %v2084, 0.0
        %2089 = vadd.xlane.f32.xlu0 %v2088
        %v2090 = vpop.xlane.xlu0 %2089
        %v2091 = vmul.f32 %v2087, %v1337
        %v2092 = vmul.f32 %v2090, %v1337
        %v2093 = vadd.f32 %v2091, 1e-05
        %v2094 = vadd.f32 %v2092, 1e-05
        %v2095 = vrsqrt.pop %v2093
        %v2096 = vrsqrt.pop %v2094
        %v2097 = vmul.f32 %v2081, %v2095
        %v2098 = vmul.f32 %v2082, %v2096
        %v2100 = vlaneseq
        %v2101 = vshrl.u32 %v2100, 7
        %v2102 = vsub.s32 0, %v2101
        %v2103 = vrot.slane %v897, %v2102
        %v2105 = vmul.f32 %v2097, %v2103
        %v2106 = vmul.f32 %v2098, %v2103
        %v2108 = vlaneseq
        %v2109 = vshrl.u32 %v2108, 7
        %v2110 = vsub.s32 0, %v2109
        %v2111 = vrot.slane %v898, %v2110
        %v2113 = vadd.f32 %v2105, %v2111
        %v2114 = vadd.f32 %v2106, %v2111
        %2117 = vrot.lane.b32.xlu0 %v2071, 96
        %v2118 = vpop.permute.xlu0 %2117
        %2119 = vrot.lane.b32.xlu0 %v2072, 96
        %v2120 = vpop.permute.xlu0 %2119
        %v2123 = vsel %vm905, %v2118, 0.0
        %2124 = vadd.xlane.f32.xlu0 %v2123
        %v2125 = vpop.xlane.xlu0 %2124
        %v2126 = vsel %vm905, %v2120, 0.0
        %2127 = vadd.xlane.f32.xlu0 %v2126
        %v2128 = vpop.xlane.xlu0 %2127
        %v2129 = vmul.f32 %v2125, %v1337
        %v2130 = vmul.f32 %v2128, %v1337
        %v2131 = vsub.f32 %v2071, %v2129
        %v2132 = vsub.f32 %v2072, %v2130
        %v2133 = vmul.f32 %v2131, %v2131
        %v2134 = vmul.f32 %v2132, %v2132
        %2137 = vrot.lane.b32.xlu0 %v2133, 96
        %v2138 = vpop.permute.xlu0 %2137
        %2139 = vrot.lane.b32.xlu0 %v2134, 96
        %v2140 = vpop.permute.xlu0 %2139
        %v2143 = vsel %vm905, %v2138, 0.0
        %2144 = vadd.xlane.f32.xlu0 %v2143
        %v2145 = vpop.xlane.xlu0 %2144
        %v2146 = vsel %vm905, %v2140, 0.0
        %2147 = vadd.xlane.f32.xlu0 %v2146
        %v2148 = vpop.xlane.xlu0 %2147
        %v2149 = vmul.f32 %v2145, %v1337
        %v2150 = vmul.f32 %v2148, %v1337
        %v2151 = vadd.f32 %v2149, 1e-05
        %v2152 = vadd.f32 %v2150, 1e-05
        %v2153 = vrsqrt.pop %v2151
        %v2154 = vrsqrt.pop %v2152
        %v2155 = vmul.f32 %v2131, %v2153
        %v2156 = vmul.f32 %v2132, %v2154
        %v2157 = vmul.f32 %v2155, %v2103
        %v2158 = vmul.f32 %v2156, %v2103
        %v2159 = vadd.f32 %v2157, %v2111
        %v2160 = vadd.f32 %v2158, %v2111
        %2161 = vrot.lane.b32.xlu0 %v2071, 64
        %v2162 = vpop.permute.xlu0 %2161
        %2163 = vrot.lane.b32.xlu0 %v2072, 64
        %v2164 = vpop.permute.xlu0 %2163
        %v2167 = vsel %vm905, %v2162, 0.0
        %2168 = vadd.xlane.f32.xlu0 %v2167
        %v2169 = vpop.xlane.xlu0 %2168
        %v2170 = vsel %vm905, %v2164, 0.0
        %2171 = vadd.xlane.f32.xlu0 %v2170
        %v2172 = vpop.xlane.xlu0 %2171
        %v2173 = vmul.f32 %v2169, %v1337
        %v2174 = vmul.f32 %v2172, %v1337
        %v2175 = vsub.f32 %v2071, %v2173
        %v2176 = vsub.f32 %v2072, %v2174
        %v2177 = vmul.f32 %v2175, %v2175
        %v2178 = vmul.f32 %v2176, %v2176
        %2181 = vrot.lane.b32.xlu0 %v2177, 64
        %v2182 = vpop.permute.xlu0 %2181
        %2183 = vrot.lane.b32.xlu0 %v2178, 64
        %v2184 = vpop.permute.xlu0 %2183
        %v2187 = vsel %vm905, %v2182, 0.0
        %2188 = vadd.xlane.f32.xlu0 %v2187
        %v2189 = vpop.xlane.xlu0 %2188
        %v2190 = vsel %vm905, %v2184, 0.0
        %2191 = vadd.xlane.f32.xlu0 %v2190
        %v2192 = vpop.xlane.xlu0 %2191
        %v2193 = vmul.f32 %v2189, %v1337
        %v2194 = vmul.f32 %v2192, %v1337
        %v2195 = vadd.f32 %v2193, 1e-05
        %v2196 = vadd.f32 %v2194, 1e-05
        %v2197 = vrsqrt.pop %v2195
        %v2198 = vrsqrt.pop %v2196
        %v2199 = vmul.f32 %v2175, %v2197
        %v2200 = vmul.f32 %v2176, %v2198
        %v2201 = vmul.f32 %v2199, %v2103
        %v2202 = vmul.f32 %v2200, %v2103
        %v2203 = vadd.f32 %v2201, %v2111
        %v2204 = vadd.f32 %v2202, %v2111
        %2205 = vrot.lane.b32.xlu0 %v2071, 32
        %v2206 = vpop.permute.xlu0 %2205
        %2207 = vrot.lane.b32.xlu0 %v2072, 32
        %v2208 = vpop.permute.xlu0 %2207
        %v2211 = vsel %vm905, %v2206, 0.0
        %2212 = vadd.xlane.f32.xlu0 %v2211
        %v2213 = vpop.xlane.xlu0 %2212
        %v2214 = vsel %vm905, %v2208, 0.0
        %2215 = vadd.xlane.f32.xlu0 %v2214
        %v2216 = vpop.xlane.xlu0 %2215
        %v2217 = vmul.f32 %v2213, %v1337
        %v2218 = vmul.f32 %v2216, %v1337
        %v2219 = vsub.f32 %v2071, %v2217
        %v2220 = vsub.f32 %v2072, %v2218
        %v2221 = vmul.f32 %v2219, %v2219
        %v2222 = vmul.f32 %v2220, %v2220
        %2225 = vrot.lane.b32.xlu0 %v2221, 32
        %v2226 = vpop.permute.xlu0 %2225
        %2227 = vrot.lane.b32.xlu0 %v2222, 32
        %v2228 = vpop.permute.xlu0 %2227
        %v2231 = vsel %vm905, %v2226, 0.0
        %2232 = vadd.xlane.f32.xlu0 %v2231
        %v2233 = vpop.xlane.xlu0 %2232
        %v2234 = vsel %vm905, %v2228, 0.0
        %2235 = vadd.xlane.f32.xlu0 %v2234
        %v2236 = vpop.xlane.xlu0 %2235
        %v2237 = vmul.f32 %v2233, %v1337
        %v2238 = vmul.f32 %v2236, %v1337
        %v2239 = vadd.f32 %v2237, 1e-05
        %v2240 = vadd.f32 %v2238, 1e-05
        %v2241 = vrsqrt.pop %v2239
        %v2242 = vrsqrt.pop %v2240
        %v2243 = vmul.f32 %v2219, %v2241
        %v2244 = vmul.f32 %v2220, %v2242
        %v2245 = vmul.f32 %v2243, %v2103
        %v2246 = vmul.f32 %v2244, %v2103
        %v2247 = vadd.f32 %v2245, %v2111
        %v2248 = vadd.f32 %v2246, %v2111
        %v2249 = vxor.u32 %v2113, 2147483648
        %v2250 = vxor.u32 %v2114, 2147483648
        %v2251 = vmul.f32 %v2249, 1.442695
        %v2252 = vpow.pop %v2251
        %v2253 = vmul.f32 %v2250, 1.442695
        %v2254 = vpow.pop %v2253
        %v2255 = vadd.f32 %v2252, 1.0
        %v2256 = vadd.f32 %v2254, 1.0
        %v2257 = vrcp.pop %v2255
        %v2258 = vmul.f32 1.0, %v2257
        %v2259 = vrcp.pop %v2256
        %v2260 = vmul.f32 1.0, %v2259
        %v2261 = vadd.f32 %v2159, 1.0
        %v2262 = vadd.f32 %v2160, 1.0
        %v2263 = vxor.u32 %v2261, 2147483648
        %v2264 = vxor.u32 %v2262, 2147483648
        %v2265 = vmul.f32 %v2263, 1.442695
        %v2266 = vpow.pop %v2265
        %v2267 = vmul.f32 %v2264, 1.442695
        %v2268 = vpow.pop %v2267
        %v2269 = vadd.f32 %v2266, 1.0
        %v2270 = vadd.f32 %v2268, 1.0
        %v2271 = vrcp.pop %v2269
        %v2272 = vmul.f32 1.0, %v2271
        %v2273 = vrcp.pop %v2270
        %v2274 = vmul.f32 1.0, %v2273
        %v2275 = vtanh.pop %v2203
        %v2276 = vtanh.pop %v2204
        %v2277 = vxor.u32 %v2247, 2147483648
        %v2278 = vxor.u32 %v2248, 2147483648
        %v2279 = vmul.f32 %v2277, 1.442695
        %v2280 = vpow.pop %v2279
        %v2281 = vmul.f32 %v2278, 1.442695
        %v2282 = vpow.pop %v2281
        %v2283 = vadd.f32 %v2280, 1.0
        %v2284 = vadd.f32 %v2282, 1.0
        %v2285 = vrcp.pop %v2283
        %v2286 = vmul.f32 1.0, %v2285
        %v2287 = vrcp.pop %v2284
        %v2288 = vmul.f32 1.0, %v2287
        %v2289 = vmul.f32 %v2272, 0.0
        %v2290 = vmul.f32 %v2274, 0.0
        %2293 = vrot.lane.b32.xlu0 %v2275, 64
        %v2294 = vpop.permute.xlu0 %2293
        %2295 = vrot.lane.b32.xlu0 %v2276, 64
        %v2296 = vpop.permute.xlu0 %2295
        %v2299 = vmul.f32 %v2258, %v2294
        %v2300 = vmul.f32 %v2260, %v2296
        %2303 = vrot.lane.b32.xlu0 %v2299, 32
        %v2304 = vpop.permute.xlu0 %2303
        %2305 = vrot.lane.b32.xlu0 %v2300, 32
        %v2306 = vpop.permute.xlu0 %2305
        %v2309 = vadd.f32 %v2289, %v2304
        %v2310 = vadd.f32 %v2290, %v2306
        %2313 = vrot.lane.b32.xlu0 %v2309, 96
        %v2314 = vpop.permute.xlu0 %2313
        %2315 = vrot.lane.b32.xlu0 %v2310, 96
        %v2316 = vpop.permute.xlu0 %2315
        %v2319 = vsel %vm905, %v2314, 0.0
        %2320 = vadd.xlane.f32.xlu0 %v2319
        %v2321 = vpop.xlane.xlu0 %2320
        %v2322 = vsel %vm905, %v2316, 0.0
        %2323 = vadd.xlane.f32.xlu0 %v2322
        %v2324 = vpop.xlane.xlu0 %2323
        %v2325 = vmul.f32 %v2321, %v1337
        %v2326 = vmul.f32 %v2324, %v1337
        %v2327 = vsub.f32 %v2309, %v2325
        %v2328 = vsub.f32 %v2310, %v2326
        %v2329 = vmul.f32 %v2327, %v2327
        %v2330 = vmul.f32 %v2328, %v2328
        %2333 = vrot.lane.b32.xlu0 %v2329, 96
        %v2334 = vpop.permute.xlu0 %2333
        %2335 = vrot.lane.b32.xlu0 %v2330, 96
        %v2336 = vpop.permute.xlu0 %2335
        %v2339 = vsel %vm905, %v2334, 0.0
        %2340 = vadd.xlane.f32.xlu0 %v2339
        %v2341 = vpop.xlane.xlu0 %2340
        %v2342 = vsel %vm905, %v2336, 0.0
        %2343 = vadd.xlane.f32.xlu0 %v2342
        %v2344 = vpop.xlane.xlu0 %2343
        %v2345 = vmul.f32 %v2341, %v1337
        %v2346 = vmul.f32 %v2344, %v1337
        %v2347 = vadd.f32 %v2345, 1e-05
        %v2348 = vadd.f32 %v2346, 1e-05
        %v2349 = vrsqrt.pop %v2347
        %v2350 = vrsqrt.pop %v2348
        %v2351 = vmul.f32 %v2327, %v2349
        %v2352 = vmul.f32 %v2328, %v2350
        %v2354 = vlaneseq
        %v2355 = vshrl.u32 %v2354, 7
        %v2356 = vsub.s32 0, %v2355
        %v2357 = vrot.slane %v899, %v2356
        %2358 = vrot.lane.b32.xlu0 %v2357, 32
        %v2359 = vpop.permute.xlu0 %2358
        %v2361 = vmul.f32 %v2351, %v2359
        %v2362 = vmul.f32 %v2352, %v2359
        %v2364 = vlaneseq
        %v2365 = vshrl.u32 %v2364, 7
        %v2366 = vsub.s32 0, %v2365
        %v2367 = vrot.slane %v900, %v2366
        %2368 = vrot.lane.b32.xlu0 %v2367, 32
        %v2369 = vpop.permute.xlu0 %2368
        %v2371 = vadd.f32 %v2361, %v2369
        %v2372 = vadd.f32 %v2362, %v2369
        %v2373 = vtanh.pop %v2371
        %v2374 = vtanh.pop %v2372
        %2377 = vrot.lane.b32.xlu0 %v2373, 64
        %v2378 = vpop.permute.xlu0 %2377
        %2379 = vrot.lane.b32.xlu0 %v2374, 64
        %v2380 = vpop.permute.xlu0 %2379
        %v2383 = vmul.f32 %v2286, %v2378
        %v2384 = vmul.f32 %v2288, %v2380
        %2387 = vrot.lane.b32.xlu0 %v2383, 32
        %v2388 = vpop.permute.xlu0 %2387
        %2389 = vrot.lane.b32.xlu0 %v2384, 32
        %v2390 = vpop.permute.xlu0 %2389
        %v2391 = vsel %vm905, %v2388, 0
        %v2393 = vsel %vm905, %v2390, 0
        %2395 = vmatprep.subr.mxu0 0.0
        %2396 = vmatpush1.msra.mxu0 0.0
        %2397 = vmatprep.subr.mxu0 0.0
        %2398 = vmatpush1.msra.mxu0 0.0
        %2399 = vmatprep.subr.mxu0 0.0
        %2400 = vmatpush1.msra.mxu0 0.0
        %2401 = vmatprep.subr.mxu0 0.0
        %2402 = vmatpush1.msra.mxu0 0.0
        %2403 = vmatprep.subr.mxu0 0.0
        %2404 = vmatpush1.msra.mxu0 0.0
        %2405 = vmatprep.subr.mxu0 0.0
        %2406 = vmatpush1.msra.mxu0 0.0
        %2407 = vmatprep.subr.mxu0 0.0
        %2408 = vmatpush1.msra.mxu0 0.0
        %2409 = vmatprep.subr.mxu0 0.0
        %2410 = vmatpush1.msra.mxu0 0.0
        %2411 = vmatprep.subr.mxu0 0.0
        %2412 = vmatpush1.msra.mxu0 0.0
        %2413 = vmatprep.subr.mxu0 0.0
        %2414 = vmatpush1.msra.mxu0 0.0
        %2415 = vmatprep.subr.mxu0 0.0
        %2416 = vmatpush1.msra.mxu0 0.0
        %2417 = vmatprep.subr.mxu0 0.0
        %2418 = vmatpush1.msra.mxu0 0.0
        %2419 = vmatprep.subr.mxu0 0.0
        %2420 = vmatpush1.msra.mxu0 %v856
        %2421 = vmatprep.subr.mxu0 0.0
        %2422 = vmatpush1.msra.mxu0 %v855
        %2423 = vmatprep.subr.mxu0 0.0
        %2424 = vmatpush1.msra.mxu0 %v854
        %2425 = vmatprep.subr.mxu0 0.0
        %2426 = vmatpush1.msra.mxu0 %v853
        %2427 = vmatprep.subr.mxu0 0.0
        %2428 = vmatpush2.msra.mxu0 0.0
        %2429 = vmatprep.subr.mxu0 0.0
        %2430 = vmatpush2.msra.mxu0 0.0
        %2431 = vmatprep.subr.mxu0 0.0
        %2432 = vmatpush2.msra.mxu0 0.0
        %2433 = vmatprep.subr.mxu0 0.0
        %2434 = vmatpush2.msra.mxu0 0.0
        %2435 = vmatprep.subr.mxu0 0.0
        %2436 = vmatpush2.msra.mxu0 0.0
        %2437 = vmatprep.subr.mxu0 0.0
        %2438 = vmatpush2.msra.mxu0 0.0
        %2439 = vmatprep.subr.mxu0 0.0
        %2440 = vmatpush2.msra.mxu0 0.0
        %2441 = vmatprep.subr.mxu0 0.0
        %2442 = vmatpush2.msra.mxu0 0.0
        %2443 = vmatprep.subr.mxu0 0.0
        %2444 = vmatpush2.msra.mxu0 0.0
        %2445 = vmatprep.subr.mxu0 0.0
        %2446 = vmatpush2.msra.mxu0 0.0
        %2447 = vmatprep.subr.mxu0 0.0
        %2448 = vmatpush2.msra.mxu0 0.0
        %2449 = vmatprep.subr.mxu0 0.0
        %2450 = vmatpush2.msra.mxu0 0.0
        %2451 = vmatprep.subr.mxu0 0.0
        %2452 = vmatpush2.msra.mxu0 0.0
        %2453 = vmatprep.subr.mxu0 0.0
        %2454 = vmatpush2.msra.mxu0 0.0
        %2455 = vmatprep.subr.mxu0 0.0
        %2456 = vmatpush2.msra.mxu0 0.0
        %2457 = vmatprep.subr.mxu0 0.0
        %2458 = vmatpush2.msra.mxu0 0.0
        %2459 = vmatprep.mubr.f32.mxu0 0.0
        %2460 = vmatmul.mubr.f32.gmra.mxu0 %v2391
        %v2461 = vpop.f32.mrf.mxu0
        %v2462 = vadd.f32 %v904, %v2461
        %v2463 = vpop.f32.mrf.mxu0
        %2464 = vmatprep.mubr.f32.mxu0 0.0
        %2465 = vmatmul.mubr.f32.gmra.mxu0 %v2393
        %v2466 = vpop.f32.mrf.mxu0
        %v2467 = vadd.f32 %v904, %v2466
        %v2468 = vpop.f32.mrf.mxu0
        %2469 = vdwg.mxu0
        %v2470 = vmax.f32 %v2462, 0.0
        %v2471 = vmax.f32 %v2467, 0.0
        %v2473 = vsel %vm905, %v2470, 0
        %v2476 = vsel %vm905, %v2471, 0
        %2478 = vmatprep.subr.mxu0 0.0
        %2479 = vmatpush1.msra.mxu0 0.0
        %2480 = vmatprep.subr.mxu0 0.0
        %2481 = vmatpush1.msra.mxu0 0.0
        %2482 = vmatprep.subr.mxu0 0.0
        %2483 = vmatpush1.msra.mxu0 0.0
        %2484 = vmatprep.subr.mxu0 0.0
        %2485 = vmatpush1.msra.mxu0 0.0
        %2486 = vmatprep.subr.mxu0 0.0
        %2487 = vmatpush1.msra.mxu0 0.0
        %2488 = vmatprep.subr.mxu0 0.0
        %2489 = vmatpush1.msra.mxu0 0.0
        %2490 = vmatprep.subr.mxu0 0.0
        %2491 = vmatpush1.msra.mxu0 0.0
        %2492 = vmatprep.subr.mxu0 0.0
        %2493 = vmatpush1.msra.mxu0 0.0
        %2494 = vmatprep.subr.mxu0 0.0
        %2495 = vmatpush1.msra.mxu0 0.0
        %2496 = vmatprep.subr.mxu0 0.0
        %2497 = vmatpush1.msra.mxu0 0.0
        %2498 = vmatprep.subr.mxu0 0.0
        %2499 = vmatpush1.msra.mxu0 0.0
        %2500 = vmatprep.subr.mxu0 0.0
        %2501 = vmatpush1.msra.mxu0 0.0
        %2502 = vmatprep.subr.mxu0 0.0
        %2503 = vmatpush1.msra.mxu0 %v860
        %2504 = vmatprep.subr.mxu0 0.0
        %2505 = vmatpush1.msra.mxu0 %v859
        %2506 = vmatprep.subr.mxu0 0.0
        %2507 = vmatpush1.msra.mxu0 %v858
        %2508 = vmatprep.subr.mxu0 0.0
        %2509 = vmatpush1.msra.mxu0 %v857
        %2510 = vmatprep.subr.mxu0 0.0
        %2511 = vmatpush2.msra.mxu0 0.0
        %2512 = vmatprep.subr.mxu0 0.0
        %2513 = vmatpush2.msra.mxu0 0.0
        %2514 = vmatprep.subr.mxu0 0.0
        %2515 = vmatpush2.msra.mxu0 0.0
        %2516 = vmatprep.subr.mxu0 0.0
        %2517 = vmatpush2.msra.mxu0 0.0
        %2518 = vmatprep.subr.mxu0 0.0
        %2519 = vmatpush2.msra.mxu0 0.0
        %2520 = vmatprep.subr.mxu0 0.0
        %2521 = vmatpush2.msra.mxu0 0.0
        %2522 = vmatprep.subr.mxu0 0.0
        %2523 = vmatpush2.msra.mxu0 0.0
        %2524 = vmatprep.subr.mxu0 0.0
        %2525 = vmatpush2.msra.mxu0 0.0
        %2526 = vmatprep.subr.mxu0 0.0
        %2527 = vmatpush2.msra.mxu0 0.0
        %2528 = vmatprep.subr.mxu0 0.0
        %2529 = vmatpush2.msra.mxu0 0.0
        %2530 = vmatprep.subr.mxu0 0.0
        %2531 = vmatpush2.msra.mxu0 0.0
        %2532 = vmatprep.subr.mxu0 0.0
        %2533 = vmatpush2.msra.mxu0 0.0
        %2534 = vmatprep.subr.mxu0 0.0
        %2535 = vmatpush2.msra.mxu0 0.0
        %2536 = vmatprep.subr.mxu0 0.0
        %2537 = vmatpush2.msra.mxu0 0.0
        %2538 = vmatprep.subr.mxu0 0.0
        %2539 = vmatpush2.msra.mxu0 0.0
        %2540 = vmatprep.subr.mxu0 0.0
        %2541 = vmatpush2.msra.mxu0 0.0
        %2542 = vmatprep.mubr.f32.mxu0 0.0
        %2543 = vmatmul.mubr.f32.gmra.mxu0 %v2473
        %v2544 = vpop.f32.mrf.mxu0
        %v2545 = vadd.f32 %v992, %v2544
        %v2546 = vpop.f32.mrf.mxu0
        %2547 = vmatprep.mubr.f32.mxu0 0.0
        %2548 = vmatmul.mubr.f32.gmra.mxu0 %v2476
        %v2549 = vpop.f32.mrf.mxu0
        %v2550 = vadd.f32 %v992, %v2549
        %v2551 = vpop.f32.mrf.mxu0
        %2552 = vdwg.mxu0
        %v2553 = vmax.f32 %v2545, 0.0
        %v2554 = vmax.f32 %v2550, 0.0
        %2555 = vmatprep.subr.mxu0 0.0
        %2556 = vmatpush1.msra.mxu0 0.0
        %2557 = vmatprep.subr.mxu0 0.0
        %2558 = vmatpush1.msra.mxu0 0.0
        %2559 = vmatprep.subr.mxu0 0.0
        %2560 = vmatpush1.msra.mxu0 0.0
        %2561 = vmatprep.subr.mxu0 0.0
        %2562 = vmatpush1.msra.mxu0 0.0
        %2563 = vmatprep.subr.mxu0 0.0
        %2564 = vmatpush1.msra.mxu0 0.0
        %2565 = vmatprep.subr.mxu0 0.0
        %2566 = vmatpush1.msra.mxu0 0.0
        %2567 = vmatprep.subr.mxu0 0.0
        %2568 = vmatpush1.msra.mxu0 0.0
        %2569 = vmatprep.subr.mxu0 0.0
        %2570 = vmatpush1.msra.mxu0 0.0
        %2571 = vmatprep.subr.mxu0 0.0
        %2572 = vmatpush1.msra.mxu0 0.0
        %2573 = vmatprep.subr.mxu0 0.0
        %2574 = vmatpush1.msra.mxu0 0.0
        %2575 = vmatprep.subr.mxu0 0.0
        %2576 = vmatpush1.msra.mxu0 0.0
        %2577 = vmatprep.subr.mxu0 0.0
        %2578 = vmatpush1.msra.mxu0 0.0
        %2579 = vmatprep.subr.mxu0 0.0
        %2580 = vmatpush1.msra.mxu0 0.0
        %2581 = vmatprep.subr.mxu0 0.0
        %2582 = vmatpush1.msra.mxu0 0.0
        %2583 = vmatprep.subr.mxu0 0.0
        %2584 = vmatpush1.msra.mxu0 %v2554
        %2585 = vmatprep.subr.mxu0 0.0
        %2586 = vmatpush1.msra.mxu0 %v2553
        %2587 = vmatprep.subr.mxu0 0.0
        %2588 = vmatpush2.msra.mxu0 0.0
        %2589 = vmatprep.subr.mxu0 0.0
        %2590 = vmatpush2.msra.mxu0 0.0
        %2591 = vmatprep.subr.mxu0 0.0
        %2592 = vmatpush2.msra.mxu0 0.0
        %2593 = vmatprep.subr.mxu0 0.0
        %2594 = vmatpush2.msra.mxu0 0.0
        %2595 = vmatprep.subr.mxu0 0.0
        %2596 = vmatpush2.msra.mxu0 0.0
        %2597 = vmatprep.subr.mxu0 0.0
        %2598 = vmatpush2.msra.mxu0 0.0
        %2599 = vmatprep.subr.mxu0 0.0
        %2600 = vmatpush2.msra.mxu0 0.0
        %2601 = vmatprep.subr.mxu0 0.0
        %2602 = vmatpush2.msra.mxu0 0.0
        %2603 = vmatprep.subr.mxu0 0.0
        %2604 = vmatpush2.msra.mxu0 0.0
        %2605 = vmatprep.subr.mxu0 0.0
        %2606 = vmatpush2.msra.mxu0 0.0
        %2607 = vmatprep.subr.mxu0 0.0
        %2608 = vmatpush2.msra.mxu0 0.0
        %2609 = vmatprep.subr.mxu0 0.0
        %2610 = vmatpush2.msra.mxu0 0.0
        %2611 = vmatprep.subr.mxu0 0.0
        %2612 = vmatpush2.msra.mxu0 0.0
        %2613 = vmatprep.subr.mxu0 0.0
        %2614 = vmatpush2.msra.mxu0 0.0
        %2615 = vmatprep.subr.mxu0 0.0
        %2616 = vmatpush2.msra.mxu0 0.0
        %2617 = vmatprep.subr.mxu0 0.0
        %2618 = vmatpush2.msra.mxu0 0.0
        %2619 = vmatprep.mubr.f32.mxu0 0.0
        %2620 = vmatmul.mubr.f32.gmra.mxu0 %v1110
        %v2621 = vpop.f32.mrf.mxu0
        %v2622 = vadd.f32 0.0, %v2621
        %v2623 = vpop.f32.mrf.mxu0
        %2624 = vdwg.mxu0
        %2625 = vmatprep.subr.mxu0 0.0
        %2626 = vmatpush1.msra.mxu0 0.0
        %2627 = vmatprep.subr.mxu0 0.0
        %2628 = vmatpush1.msra.mxu0 0.0
        %2629 = vmatprep.subr.mxu0 0.0
        %2630 = vmatpush1.msra.mxu0 0.0
        %2631 = vmatprep.subr.mxu0 0.0
        %2632 = vmatpush1.msra.mxu0 0.0
        %2633 = vmatprep.subr.mxu0 0.0
        %2634 = vmatpush1.msra.mxu0 0.0
        %2635 = vmatprep.subr.mxu0 0.0
        %2636 = vmatpush1.msra.mxu0 0.0
        %2637 = vmatprep.subr.mxu0 0.0
        %2638 = vmatpush1.msra.mxu0 0.0
        %2639 = vmatprep.subr.mxu0 0.0
        %2640 = vmatpush1.msra.mxu0 0.0
        %2641 = vmatprep.subr.mxu0 0.0
        %2642 = vmatpush1.msra.mxu0 0.0
        %2643 = vmatprep.subr.mxu0 0.0
        %2644 = vmatpush1.msra.mxu0 0.0
        %2645 = vmatprep.subr.mxu0 0.0
        %2646 = vmatpush1.msra.mxu0 0.0
        %2647 = vmatprep.subr.mxu0 0.0
        %2648 = vmatpush1.msra.mxu0 0.0
        %2649 = vmatprep.subr.mxu0 0.0
        %2650 = vmatpush1.msra.mxu0 %v878
        %2651 = vmatprep.subr.mxu0 0.0
        %2652 = vmatpush1.msra.mxu0 %v877
        %2653 = vmatprep.subr.mxu0 0.0
        %2654 = vmatpush1.msra.mxu0 %v876
        %2655 = vmatprep.subr.mxu0 0.0
        %2656 = vmatpush1.msra.mxu0 %v875
        %2657 = vmatprep.subr.mxu0 0.0
        %2658 = vmatpush2.msra.mxu0 0.0
        %2659 = vmatprep.subr.mxu0 0.0
        %2660 = vmatpush2.msra.mxu0 0.0
        %2661 = vmatprep.subr.mxu0 0.0
        %2662 = vmatpush2.msra.mxu0 0.0
        %2663 = vmatprep.subr.mxu0 0.0
        %2664 = vmatpush2.msra.mxu0 0.0
        %2665 = vmatprep.subr.mxu0 0.0
        %2666 = vmatpush2.msra.mxu0 0.0
        %2667 = vmatprep.subr.mxu0 0.0
        %2668 = vmatpush2.msra.mxu0 0.0
        %2669 = vmatprep.subr.mxu0 0.0
        %2670 = vmatpush2.msra.mxu0 0.0
        %2671 = vmatprep.subr.mxu0 0.0
        %2672 = vmatpush2.msra.mxu0 0.0
        %2673 = vmatprep.subr.mxu0 0.0
        %2674 = vmatpush2.msra.mxu0 0.0
        %2675 = vmatprep.subr.mxu0 0.0
        %2676 = vmatpush2.msra.mxu0 0.0
        %2677 = vmatprep.subr.mxu0 0.0
        %2678 = vmatpush2.msra.mxu0 0.0
        %2679 = vmatprep.subr.mxu0 0.0
        %2680 = vmatpush2.msra.mxu0 0.0
        %2681 = vmatprep.subr.mxu0 0.0
        %2682 = vmatpush2.msra.mxu0 0.0
        %2683 = vmatprep.subr.mxu0 0.0
        %2684 = vmatpush2.msra.mxu0 0.0
        %2685 = vmatprep.subr.mxu0 0.0
        %2686 = vmatpush2.msra.mxu0 0.0
        %2687 = vmatprep.subr.mxu0 0.0
        %2688 = vmatpush2.msra.mxu0 0.0
        %2689 = vmatprep.mubr.f32.mxu0 0.0
        %2690 = vmatmul.mubr.f32.gmra.mxu0 %v1512
        %v2691 = vpop.f32.mrf.mxu0
        %v2692 = vadd.f32 0.0, %v2691
        %v2693 = vpop.f32.mrf.mxu0
        %2694 = vdwg.mxu0
        %v2696 = vsel %vm905, %v2622, 0
        %2698 = vmatprep.subr.mxu0 0.0
        %2699 = vmatpush1.msra.mxu0 0.0
        %2700 = vmatprep.subr.mxu0 0.0
        %2701 = vmatpush1.msra.mxu0 0.0
        %2702 = vmatprep.subr.mxu0 0.0
        %2703 = vmatpush1.msra.mxu0 0.0
        %2704 = vmatprep.subr.mxu0 0.0
        %2705 = vmatpush1.msra.mxu0 0.0
        %2706 = vmatprep.subr.mxu0 0.0
        %2707 = vmatpush1.msra.mxu0 0.0
        %2708 = vmatprep.subr.mxu0 0.0
        %2709 = vmatpush1.msra.mxu0 0.0
        %2710 = vmatprep.subr.mxu0 0.0
        %2711 = vmatpush1.msra.mxu0 0.0
        %2712 = vmatprep.subr.mxu0 0.0
        %2713 = vmatpush1.msra.mxu0 0.0
        %2714 = vmatprep.subr.mxu0 0.0
        %2715 = vmatpush1.msra.mxu0 0.0
        %2716 = vmatprep.subr.mxu0 0.0
        %2717 = vmatpush1.msra.mxu0 0.0
        %2718 = vmatprep.subr.mxu0 0.0
        %2719 = vmatpush1.msra.mxu0 0.0
        %2720 = vmatprep.subr.mxu0 0.0
        %2721 = vmatpush1.msra.mxu0 0.0
        %2722 = vmatprep.subr.mxu0 0.0
        %2723 = vmatpush1.msra.mxu0 %v874
        %2724 = vmatprep.subr.mxu0 0.0
        %2725 = vmatpush1.msra.mxu0 %v873
        %2726 = vmatprep.subr.mxu0 0.0
        %2727 = vmatpush1.msra.mxu0 %v872
        %2728 = vmatprep.subr.mxu0 0.0
        %2729 = vmatpush1.msra.mxu0 %v871
        %2730 = vmatprep.subr.mxu0 0.0
        %2731 = vmatpush2.msra.mxu0 0.0
        %2732 = vmatprep.subr.mxu0 0.0
        %2733 = vmatpush2.msra.mxu0 0.0
        %2734 = vmatprep.subr.mxu0 0.0
        %2735 = vmatpush2.msra.mxu0 0.0
        %2736 = vmatprep.subr.mxu0 0.0
        %2737 = vmatpush2.msra.mxu0 0.0
        %2738 = vmatprep.subr.mxu0 0.0
        %2739 = vmatpush2.msra.mxu0 0.0
        %2740 = vmatprep.subr.mxu0 0.0
        %2741 = vmatpush2.msra.mxu0 0.0
        %2742 = vmatprep.subr.mxu0 0.0
        %2743 = vmatpush2.msra.mxu0 0.0
        %2744 = vmatprep.subr.mxu0 0.0
        %2745 = vmatpush2.msra.mxu0 0.0
        %2746 = vmatprep.subr.mxu0 0.0
        %2747 = vmatpush2.msra.mxu0 0.0
        %2748 = vmatprep.subr.mxu0 0.0
        %2749 = vmatpush2.msra.mxu0 0.0
        %2750 = vmatprep.subr.mxu0 0.0
        %2751 = vmatpush2.msra.mxu0 0.0
        %2752 = vmatprep.subr.mxu0 0.0
        %2753 = vmatpush2.msra.mxu0 0.0
        %2754 = vmatprep.subr.mxu0 0.0
        %2755 = vmatpush2.msra.mxu0 0.0
        %2756 = vmatprep.subr.mxu0 0.0
        %2757 = vmatpush2.msra.mxu0 0.0
        %2758 = vmatprep.subr.mxu0 0.0
        %2759 = vmatpush2.msra.mxu0 0.0
        %2760 = vmatprep.subr.mxu0 0.0
        %2761 = vmatpush2.msra.mxu0 0.0
        %2762 = vmatprep.mubr.f32.mxu0 0.0
        %2763 = vmatmul.mubr.f32.gmra.mxu0 %v2696
        %v2764 = vpop.f32.mrf.mxu0
        %v2765 = vadd.f32 %v2692, %v2764
        %v2766 = vpop.f32.mrf.mxu0
        %2767 = vdwg.mxu0
        %v2768 = vadd.f32 %v2765, %v1331
        %v2769 = vsel %vm905, %v2768, 0.0
        %2770 = vadd.xlane.f32.xlu0 %v2769
        %v2771 = vpop.xlane.xlu0 %2770
        %v2772 = vmul.f32 %v2771, %v1337
        %v2773 = vsub.f32 %v2768, %v2772
        %v2774 = vmul.f32 %v2773, %v2773
        %v2775 = vsel %vm905, %v2774, 0.0
        %2776 = vadd.xlane.f32.xlu0 %v2775
        %v2777 = vpop.xlane.xlu0 %2776
        %v2778 = vmul.f32 %v2777, %v1337
        %v2779 = vadd.f32 %v2778, 1e-05
        %v2780 = vrsqrt.pop %v2779
        %v2781 = vmul.f32 %v2773, %v2780
        %v2782 = vmul.f32 %v2781, %v1352
        %v2783 = vadd.f32 %v2782, %v1359
        %2785 = vrot.lane.b32.xlu0 %v2768, 96
        %v2786 = vpop.permute.xlu0 %2785
        %v2788 = vsel %vm905, %v2786, 0.0
        %2789 = vadd.xlane.f32.xlu0 %v2788
        %v2790 = vpop.xlane.xlu0 %2789
        %v2791 = vmul.f32 %v2790, %v1337
        %v2792 = vsub.f32 %v2768, %v2791
        %v2793 = vmul.f32 %v2792, %v2792
        %2795 = vrot.lane.b32.xlu0 %v2793, 96
        %v2796 = vpop.permute.xlu0 %2795
        %v2798 = vsel %vm905, %v2796, 0.0
        %2799 = vadd.xlane.f32.xlu0 %v2798
        %v2800 = vpop.xlane.xlu0 %2799
        %v2801 = vmul.f32 %v2800, %v1337
        %v2802 = vadd.f32 %v2801, 1e-05
        %v2803 = vrsqrt.pop %v2802
        %v2804 = vmul.f32 %v2792, %v2803
        %v2805 = vmul.f32 %v2804, %v1352
        %v2806 = vadd.f32 %v2805, %v1359
        %2807 = vrot.lane.b32.xlu0 %v2768, 64
        %v2808 = vpop.permute.xlu0 %2807
        %v2810 = vsel %vm905, %v2808, 0.0
        %2811 = vadd.xlane.f32.xlu0 %v2810
        %v2812 = vpop.xlane.xlu0 %2811
        %v2813 = vmul.f32 %v2812, %v1337
        %v2814 = vsub.f32 %v2768, %v2813
        %v2815 = vmul.f32 %v2814, %v2814
        %2817 = vrot.lane.b32.xlu0 %v2815, 64
        %v2818 = vpop.permute.xlu0 %2817
        %v2820 = vsel %vm905, %v2818, 0.0
        %2821 = vadd.xlane.f32.xlu0 %v2820
        %v2822 = vpop.xlane.xlu0 %2821
        %v2823 = vmul.f32 %v2822, %v1337
        %v2824 = vadd.f32 %v2823, 1e-05
        %v2825 = vrsqrt.pop %v2824
        %v2826 = vmul.f32 %v2814, %v2825
        %v2827 = vmul.f32 %v2826, %v1352
        %v2828 = vadd.f32 %v2827, %v1359
        %2829 = vrot.lane.b32.xlu0 %v2768, 32
        %v2830 = vpop.permute.xlu0 %2829
        %v2832 = vsel %vm905, %v2830, 0.0
        %2833 = vadd.xlane.f32.xlu0 %v2832
        %v2834 = vpop.xlane.xlu0 %2833
        %v2835 = vmul.f32 %v2834, %v1337
        %v2836 = vsub.f32 %v2768, %v2835
        %v2837 = vmul.f32 %v2836, %v2836
        %2839 = vrot.lane.b32.xlu0 %v2837, 32
        %v2840 = vpop.permute.xlu0 %2839
        %v2842 = vsel %vm905, %v2840, 0.0
        %2843 = vadd.xlane.f32.xlu0 %v2842
        %v2844 = vpop.xlane.xlu0 %2843
        %v2845 = vmul.f32 %v2844, %v1337
        %v2846 = vadd.f32 %v2845, 1e-05
        %v2847 = vrsqrt.pop %v2846
        %v2848 = vmul.f32 %v2836, %v2847
        %v2849 = vmul.f32 %v2848, %v1352
        %v2850 = vadd.f32 %v2849, %v1359
        %v2851 = vxor.u32 %v2783, 2147483648
        %v2852 = vmul.f32 %v2851, 1.442695
        %v2853 = vpow.pop %v2852
        %v2854 = vadd.f32 %v2853, 1.0
        %v2855 = vrcp.pop %v2854
        %v2856 = vmul.f32 1.0, %v2855
        %v2857 = vadd.f32 %v2806, 1.0
        %v2858 = vxor.u32 %v2857, 2147483648
        %v2859 = vmul.f32 %v2858, 1.442695
        %v2860 = vpow.pop %v2859
        %v2861 = vadd.f32 %v2860, 1.0
        %v2862 = vrcp.pop %v2861
        %v2863 = vmul.f32 1.0, %v2862
        %v2864 = vtanh.pop %v2828
        %v2865 = vxor.u32 %v2850, 2147483648
        %v2866 = vmul.f32 %v2865, 1.442695
        %v2867 = vpow.pop %v2866
        %v2868 = vadd.f32 %v2867, 1.0
        %v2869 = vrcp.pop %v2868
        %v2870 = vmul.f32 1.0, %v2869
        %v2871 = vmul.f32 %v2863, %v1459
        %2873 = vrot.lane.b32.xlu0 %v2864, 64
        %v2874 = vpop.permute.xlu0 %2873
        %v2876 = vmul.f32 %v2856, %v2874
        %2878 = vrot.lane.b32.xlu0 %v2876, 32
        %v2879 = vpop.permute.xlu0 %2878
        %v2881 = vadd.f32 %v2871, %v2879
        %2883 = vrot.lane.b32.xlu0 %v2881, 96
        %v2884 = vpop.permute.xlu0 %2883
        %v2886 = vsel %vm905, %v2884, 0.0
        %2887 = vadd.xlane.f32.xlu0 %v2886
        %v2888 = vpop.xlane.xlu0 %2887
        %v2889 = vmul.f32 %v2888, %v1337
        %v2890 = vsub.f32 %v2881, %v2889
        %v2891 = vmul.f32 %v2890, %v2890
        %2893 = vrot.lane.b32.xlu0 %v2891, 96
        %v2894 = vpop.permute.xlu0 %2893
        %v2896 = vsel %vm905, %v2894, 0.0
        %2897 = vadd.xlane.f32.xlu0 %v2896
        %v2898 = vpop.xlane.xlu0 %2897
        %v2899 = vmul.f32 %v2898, %v1337
        %v2900 = vadd.f32 %v2899, 1e-05
        %v2901 = vrsqrt.pop %v2900
        %v2902 = vmul.f32 %v2890, %v2901
        %v2903 = vmul.f32 %v2902, %v1487
        %v2904 = vadd.f32 %v2903, %v1496
        %v2905 = vtanh.pop %v2904
        %2907 = vrot.lane.b32.xlu0 %v2905, 64
        %v2908 = vpop.permute.xlu0 %2907
        %v2910 = vmul.f32 %v2870, %v2908
        %2912 = vrot.lane.b32.xlu0 %v2910, 32
        %v2913 = vpop.permute.xlu0 %2912
        %v2914 = vsel %vm905, %v2913, 0
        %2916 = vmatprep.subr.mxu0 0.0
        %2917 = vmatpush1.msra.mxu0 0.0
        %2918 = vmatprep.subr.mxu0 0.0
        %2919 = vmatpush1.msra.mxu0 0.0
        %2920 = vmatprep.subr.mxu0 0.0
        %2921 = vmatpush1.msra.mxu0 0.0
        %2922 = vmatprep.subr.mxu0 0.0
        %2923 = vmatpush1.msra.mxu0 0.0
        %2924 = vmatprep.subr.mxu0 0.0
        %2925 = vmatpush1.msra.mxu0 0.0
        %2926 = vmatprep.subr.mxu0 0.0
        %2927 = vmatpush1.msra.mxu0 0.0
        %2928 = vmatprep.subr.mxu0 0.0
        %2929 = vmatpush1.msra.mxu0 0.0
        %2930 = vmatprep.subr.mxu0 0.0
        %2931 = vmatpush1.msra.mxu0 0.0
        %2932 = vmatprep.subr.mxu0 0.0
        %2933 = vmatpush1.msra.mxu0 0.0
        %2934 = vmatprep.subr.mxu0 0.0
        %2935 = vmatpush1.msra.mxu0 0.0
        %2936 = vmatprep.subr.mxu0 0.0
        %2937 = vmatpush1.msra.mxu0 0.0
        %2938 = vmatprep.subr.mxu0 0.0
        %2939 = vmatpush1.msra.mxu0 0.0
        %2940 = vmatprep.subr.mxu0 0.0
        %2941 = vmatpush1.msra.mxu0 %v865
        %2942 = vmatprep.subr.mxu0 0.0
        %2943 = vmatpush1.msra.mxu0 %v864
        %2944 = vmatprep.subr.mxu0 0.0
        %2945 = vmatpush1.msra.mxu0 %v863
        %2946 = vmatprep.subr.mxu0 0.0
        %2947 = vmatpush1.msra.mxu0 %v862
        %2948 = vmatprep.subr.mxu0 0.0
        %2949 = vmatpush2.msra.mxu0 0.0
        %2950 = vmatprep.subr.mxu0 0.0
        %2951 = vmatpush2.msra.mxu0 0.0
        %2952 = vmatprep.subr.mxu0 0.0
        %2953 = vmatpush2.msra.mxu0 0.0
        %2954 = vmatprep.subr.mxu0 0.0
        %2955 = vmatpush2.msra.mxu0 0.0
        %2956 = vmatprep.subr.mxu0 0.0
        %2957 = vmatpush2.msra.mxu0 0.0
        %2958 = vmatprep.subr.mxu0 0.0
        %2959 = vmatpush2.msra.mxu0 0.0
        %2960 = vmatprep.subr.mxu0 0.0
        %2961 = vmatpush2.msra.mxu0 0.0
        %2962 = vmatprep.subr.mxu0 0.0
        %2963 = vmatpush2.msra.mxu0 0.0
        %2964 = vmatprep.subr.mxu0 0.0
        %2965 = vmatpush2.msra.mxu0 0.0
        %2966 = vmatprep.subr.mxu0 0.0
        %2967 = vmatpush2.msra.mxu0 0.0
        %2968 = vmatprep.subr.mxu0 0.0
        %2969 = vmatpush2.msra.mxu0 0.0
        %2970 = vmatprep.subr.mxu0 0.0
        %2971 = vmatpush2.msra.mxu0 0.0
        %2972 = vmatprep.subr.mxu0 0.0
        %2973 = vmatpush2.msra.mxu0 0.0
        %2974 = vmatprep.subr.mxu0 0.0
        %2975 = vmatpush2.msra.mxu0 0.0
        %2976 = vmatprep.subr.mxu0 0.0
        %2977 = vmatpush2.msra.mxu0 0.0
        %2978 = vmatprep.subr.mxu0 0.0
        %2979 = vmatpush2.msra.mxu0 0.0
        %2980 = vmatprep.mubr.f32.mxu0 0.0
        %2981 = vmatmul.mubr.f32.gmra.mxu0 %v2914
        %v2982 = vpop.f32.mrf.mxu0
        %v2983 = vadd.f32 %v1508, %v2982
        %v2984 = vpop.f32.mrf.mxu0
        %2985 = vdwg.mxu0
        %v2986 = vmax.f32 %v2983, 0.0
        %v2988 = vsel %vm905, %v2986, 0
        %2990 = vmatprep.subr.mxu0 0.0
        %2991 = vmatpush1.msra.mxu0 0.0
        %2992 = vmatprep.subr.mxu0 0.0
        %2993 = vmatpush1.msra.mxu0 0.0
        %2994 = vmatprep.subr.mxu0 0.0
        %2995 = vmatpush1.msra.mxu0 0.0
        %2996 = vmatprep.subr.mxu0 0.0
        %2997 = vmatpush1.msra.mxu0 0.0
        %2998 = vmatprep.subr.mxu0 0.0
        %2999 = vmatpush1.msra.mxu0 0.0
        %3000 = vmatprep.subr.mxu0 0.0
        %3001 = vmatpush1.msra.mxu0 0.0
        %3002 = vmatprep.subr.mxu0 0.0
        %3003 = vmatpush1.msra.mxu0 0.0
        %3004 = vmatprep.subr.mxu0 0.0
        %3005 = vmatpush1.msra.mxu0 0.0
        %3006 = vmatprep.subr.mxu0 0.0
        %3007 = vmatpush1.msra.mxu0 0.0
        %3008 = vmatprep.subr.mxu0 0.0
        %3009 = vmatpush1.msra.mxu0 0.0
        %3010 = vmatprep.subr.mxu0 0.0
        %3011 = vmatpush1.msra.mxu0 0.0
        %3012 = vmatprep.subr.mxu0 0.0
        %3013 = vmatpush1.msra.mxu0 0.0
        %3014 = vmatprep.subr.mxu0 0.0
        %3015 = vmatpush1.msra.mxu0 %v869
        %3016 = vmatprep.subr.mxu0 0.0
        %3017 = vmatpush1.msra.mxu0 %v868
        %3018 = vmatprep.subr.mxu0 0.0
        %3019 = vmatpush1.msra.mxu0 %v867
        %3020 = vmatprep.subr.mxu0 0.0
        %3021 = vmatpush1.msra.mxu0 %v866
        %3022 = vmatprep.subr.mxu0 0.0
        %3023 = vmatpush2.msra.mxu0 0.0
        %3024 = vmatprep.subr.mxu0 0.0
        %3025 = vmatpush2.msra.mxu0 0.0
        %3026 = vmatprep.subr.mxu0 0.0
        %3027 = vmatpush2.msra.mxu0 0.0
        %3028 = vmatprep.subr.mxu0 0.0
        %3029 = vmatpush2.msra.mxu0 0.0
        %3030 = vmatprep.subr.mxu0 0.0
        %3031 = vmatpush2.msra.mxu0 0.0
        %3032 = vmatprep.subr.mxu0 0.0
        %3033 = vmatpush2.msra.mxu0 0.0
        %3034 = vmatprep.subr.mxu0 0.0
        %3035 = vmatpush2.msra.mxu0 0.0
        %3036 = vmatprep.subr.mxu0 0.0
        %3037 = vmatpush2.msra.mxu0 0.0
        %3038 = vmatprep.subr.mxu0 0.0
        %3039 = vmatpush2.msra.mxu0 0.0
        %3040 = vmatprep.subr.mxu0 0.0
        %3041 = vmatpush2.msra.mxu0 0.0
        %3042 = vmatprep.subr.mxu0 0.0
        %3043 = vmatpush2.msra.mxu0 0.0
        %3044 = vmatprep.subr.mxu0 0.0
        %3045 = vmatpush2.msra.mxu0 0.0
        %3046 = vmatprep.subr.mxu0 0.0
        %3047 = vmatpush2.msra.mxu0 0.0
        %3048 = vmatprep.subr.mxu0 0.0
        %3049 = vmatpush2.msra.mxu0 0.0
        %3050 = vmatprep.subr.mxu0 0.0
        %3051 = vmatpush2.msra.mxu0 0.0
        %3052 = vmatprep.subr.mxu0 0.0
        %3053 = vmatpush2.msra.mxu0 0.0
        %3054 = vmatprep.mubr.f32.mxu0 0.0
        %3055 = vmatmul.mubr.f32.gmra.mxu0 %v2988
        %v3056 = vpop.f32.mrf.mxu0
        %v3057 = vadd.f32 %v1588, %v3056
        %v3058 = vpop.f32.mrf.mxu0
        %3059 = vdwg.mxu0
        %v3060 = vmax.f32 %v3057, 0.0
        %3061 = vmatprep.subr.mxu0 0.0
        %3062 = vmatpush1.msra.mxu0 0.0
        %3063 = vmatprep.subr.mxu0 0.0
        %3064 = vmatpush1.msra.mxu0 0.0
        %3065 = vmatprep.subr.mxu0 0.0
        %3066 = vmatpush1.msra.mxu0 0.0
        %3067 = vmatprep.subr.mxu0 0.0
        %3068 = vmatpush1.msra.mxu0 0.0
        %3069 = vmatprep.subr.mxu0 0.0
        %3070 = vmatpush1.msra.mxu0 0.0
        %3071 = vmatprep.subr.mxu0 0.0
        %3072 = vmatpush1.msra.mxu0 0.0
        %3073 = vmatprep.subr.mxu0 0.0
        %3074 = vmatpush1.msra.mxu0 0.0
        %3075 = vmatprep.subr.mxu0 0.0
        %3076 = vmatpush1.msra.mxu0 0.0
        %3077 = vmatprep.subr.mxu0 0.0
        %3078 = vmatpush1.msra.mxu0 0.0
        %3079 = vmatprep.subr.mxu0 0.0
        %3080 = vmatpush1.msra.mxu0 0.0
        %3081 = vmatprep.subr.mxu0 0.0
        %3082 = vmatpush1.msra.mxu0 0.0
        %3083 = vmatprep.subr.mxu0 0.0
        %3084 = vmatpush1.msra.mxu0 0.0
        %3085 = vmatprep.subr.mxu0 0.0
        %3086 = vmatpush1.msra.mxu0 0.0
        %3087 = vmatprep.subr.mxu0 0.0
        %3088 = vmatpush1.msra.mxu0 0.0
        %3089 = vmatprep.subr.mxu0 0.0
        %3090 = vmatpush1.msra.mxu0 0.0
        %3091 = vmatprep.subr.mxu0 0.0
        %3092 = vmatpush1.msra.mxu0 %v3060
        %3093 = vmatprep.subr.mxu0 0.0
        %3094 = vmatpush2.msra.mxu0 0.0
        %3095 = vmatprep.subr.mxu0 0.0
        %3096 = vmatpush2.msra.mxu0 0.0
        %3097 = vmatprep.subr.mxu0 0.0
        %3098 = vmatpush2.msra.mxu0 0.0
        %3099 = vmatprep.subr.mxu0 0.0
        %3100 = vmatpush2.msra.mxu0 0.0
        %3101 = vmatprep.subr.mxu0 0.0
        %3102 = vmatpush2.msra.mxu0 0.0
        %3103 = vmatprep.subr.mxu0 0.0
        %3104 = vmatpush2.msra.mxu0 0.0
        %3105 = vmatprep.subr.mxu0 0.0
        %3106 = vmatpush2.msra.mxu0 0.0
        %3107 = vmatprep.subr.mxu0 0.0
        %3108 = vmatpush2.msra.mxu0 0.0
        %3109 = vmatprep.subr.mxu0 0.0
        %3110 = vmatpush2.msra.mxu0 0.0
        %3111 = vmatprep.subr.mxu0 0.0
        %3112 = vmatpush2.msra.mxu0 0.0
        %3113 = vmatprep.subr.mxu0 0.0
        %3114 = vmatpush2.msra.mxu0 0.0
        %3115 = vmatprep.subr.mxu0 0.0
        %3116 = vmatpush2.msra.mxu0 0.0
        %3117 = vmatprep.subr.mxu0 0.0
        %3118 = vmatpush2.msra.mxu0 0.0
        %3119 = vmatprep.subr.mxu0 0.0
        %3120 = vmatpush2.msra.mxu0 0.0
        %3121 = vmatprep.subr.mxu0 0.0
        %3122 = vmatpush2.msra.mxu0 0.0
        %3123 = vmatprep.subr.mxu0 0.0
        %3124 = vmatpush2.msra.mxu0 0.0
        %3125 = vmatprep.mubr.f32.mxu0 0.0
        %3126 = vmatmul.mubr.f32.gmra.mxu0 %v1665
        %v3127 = vpop.f32.mrf.mxu0
        %v3128 = vadd.f32 0.0, %v3127
        %v3129 = vpop.f32.mrf.mxu0
        %3130 = vmatprep.mubr.f32.mxu0 0.0
        %3131 = vmatmul.mubr.f32.gmra.mxu0 %v1668
        %v3132 = vpop.f32.mrf.mxu0
        %v3133 = vadd.f32 0.0, %v3132
        %v3134 = vpop.f32.mrf.mxu0
        %3135 = vdwg.mxu0
        %3138 = vmatprep.subr.mxu0 0.0
        %3139 = vmatpush1.msra.mxu0 0.0
        %3140 = vmatprep.subr.mxu0 0.0
        %3141 = vmatpush1.msra.mxu0 0.0
        %3142 = vmatprep.subr.mxu0 0.0
        %3143 = vmatpush1.msra.mxu0 0.0
        %3144 = vmatprep.subr.mxu0 0.0
        %3145 = vmatpush1.msra.mxu0 0.0
        %3146 = vmatprep.subr.mxu0 0.0
        %3147 = vmatpush1.msra.mxu0 0.0
        %3148 = vmatprep.subr.mxu0 0.0
        %3149 = vmatpush1.msra.mxu0 0.0
        %3150 = vmatprep.subr.mxu0 0.0
        %3151 = vmatpush1.msra.mxu0 0.0
        %3152 = vmatprep.subr.mxu0 0.0
        %3153 = vmatpush1.msra.mxu0 0.0
        %3154 = vmatprep.subr.mxu0 0.0
        %3155 = vmatpush1.msra.mxu0 0.0
        %3156 = vmatprep.subr.mxu0 0.0
        %3157 = vmatpush1.msra.mxu0 0.0
        %3158 = vmatprep.subr.mxu0 0.0
        %3159 = vmatpush1.msra.mxu0 0.0
        %3160 = vmatprep.subr.mxu0 0.0
        %3161 = vmatpush1.msra.mxu0 0.0
        %3162 = vmatprep.subr.mxu0 0.0
        %3163 = vmatpush1.msra.mxu0 0.0
        %3164 = vmatprep.subr.mxu0 0.0
        %3165 = vmatpush1.msra.mxu0 0.0
        %3166 = vmatprep.subr.mxu0 0.0
        %3167 = vmatpush1.msra.mxu0 %v2390
        %3168 = vmatprep.subr.mxu0 0.0
        %3169 = vmatpush1.msra.mxu0 %v2388
        %3170 = vmatprep.subr.mxu0 0.0
        %3171 = vmatpush2.msra.mxu0 0.0
        %3172 = vmatprep.subr.mxu0 0.0
        %3173 = vmatpush2.msra.mxu0 0.0
        %3174 = vmatprep.subr.mxu0 0.0
        %3175 = vmatpush2.msra.mxu0 0.0
        %3176 = vmatprep.subr.mxu0 0.0
        %3177 = vmatpush2.msra.mxu0 0.0
        %3178 = vmatprep.subr.mxu0 0.0
        %3179 = vmatpush2.msra.mxu0 0.0
        %3180 = vmatprep.subr.mxu0 0.0
        %3181 = vmatpush2.msra.mxu0 0.0
        %3182 = vmatprep.subr.mxu0 0.0
        %3183 = vmatpush2.msra.mxu0 0.0
        %3184 = vmatprep.subr.mxu0 0.0
        %3185 = vmatpush2.msra.mxu0 0.0
        %3186 = vmatprep.subr.mxu0 0.0
        %3187 = vmatpush2.msra.mxu0 0.0
        %3188 = vmatprep.subr.mxu0 0.0
        %3189 = vmatpush2.msra.mxu0 0.0
        %3190 = vmatprep.subr.mxu0 0.0
        %3191 = vmatpush2.msra.mxu0 0.0
        %3192 = vmatprep.subr.mxu0 0.0
        %3193 = vmatpush2.msra.mxu0 0.0
        %3194 = vmatprep.subr.mxu0 0.0
        %3195 = vmatpush2.msra.mxu0 0.0
        %3196 = vmatprep.subr.mxu0 0.0
        %3197 = vmatpush2.msra.mxu0 0.0
        %3198 = vmatprep.subr.mxu0 0.0
        %3199 = vmatpush2.msra.mxu0 0.0
        %3200 = vmatprep.subr.mxu0 0.0
        %3201 = vmatpush2.msra.mxu0 0.0
        %3202 = vmatprep.mubr.f32.mxu0 0.0
        %3203 = vmatmul.mubr.f32.gmra.mxu0 %v1746
        %v3204 = vpop.f32.mrf.mxu0
        %v3205 = vadd.f32 0.0, %v3204
        %v3206 = vpop.f32.mrf.mxu0
        %3207 = vmatprep.mubr.f32.mxu0 0.0
        %3208 = vmatmul.mubr.f32.gmra.mxu0 %v1749
        %v3209 = vpop.f32.mrf.mxu0
        %v3210 = vadd.f32 0.0, %v3209
        %v3211 = vpop.f32.mrf.mxu0
        %3212 = vdwg.mxu0
        %v3214 = vsel %vm905, %v3205, 0
        %v3217 = vsel %vm905, %v3210, 0
        %3219 = vmatprep.subr.mxu0 0.0
        %3220 = vmatpush1.msra.mxu0 0.0
        %3221 = vmatprep.subr.mxu0 0.0
        %3222 = vmatpush1.msra.mxu0 0.0
        %3223 = vmatprep.subr.mxu0 0.0
        %3224 = vmatpush1.msra.mxu0 0.0
        %3225 = vmatprep.subr.mxu0 0.0
        %3226 = vmatpush1.msra.mxu0 0.0
        %3227 = vmatprep.subr.mxu0 0.0
        %3228 = vmatpush1.msra.mxu0 0.0
        %3229 = vmatprep.subr.mxu0 0.0
        %3230 = vmatpush1.msra.mxu0 0.0
        %3231 = vmatprep.subr.mxu0 0.0
        %3232 = vmatpush1.msra.mxu0 0.0
        %3233 = vmatprep.subr.mxu0 0.0
        %3234 = vmatpush1.msra.mxu0 0.0
        %3235 = vmatprep.subr.mxu0 0.0
        %3236 = vmatpush1.msra.mxu0 0.0
        %3237 = vmatprep.subr.mxu0 0.0
        %3238 = vmatpush1.msra.mxu0 0.0
        %3239 = vmatprep.subr.mxu0 0.0
        %3240 = vmatpush1.msra.mxu0 0.0
        %3241 = vmatprep.subr.mxu0 0.0
        %3242 = vmatpush1.msra.mxu0 0.0
        %3243 = vmatprep.subr.mxu0 0.0
        %3244 = vmatpush1.msra.mxu0 %v891
        %3245 = vmatprep.subr.mxu0 0.0
        %3246 = vmatpush1.msra.mxu0 %v890
        %3247 = vmatprep.subr.mxu0 0.0
        %3248 = vmatpush1.msra.mxu0 %v889
        %3249 = vmatprep.subr.mxu0 0.0
        %3250 = vmatpush1.msra.mxu0 %v888
        %3251 = vmatprep.subr.mxu0 0.0
        %3252 = vmatpush2.msra.mxu0 0.0
        %3253 = vmatprep.subr.mxu0 0.0
        %3254 = vmatpush2.msra.mxu0 0.0
        %3255 = vmatprep.subr.mxu0 0.0
        %3256 = vmatpush2.msra.mxu0 0.0
        %3257 = vmatprep.subr.mxu0 0.0
        %3258 = vmatpush2.msra.mxu0 0.0
        %3259 = vmatprep.subr.mxu0 0.0
        %3260 = vmatpush2.msra.mxu0 0.0
        %3261 = vmatprep.subr.mxu0 0.0
        %3262 = vmatpush2.msra.mxu0 0.0
        %3263 = vmatprep.subr.mxu0 0.0
        %3264 = vmatpush2.msra.mxu0 0.0
        %3265 = vmatprep.subr.mxu0 0.0
        %3266 = vmatpush2.msra.mxu0 0.0
        %3267 = vmatprep.subr.mxu0 0.0
        %3268 = vmatpush2.msra.mxu0 0.0
        %3269 = vmatprep.subr.mxu0 0.0
        %3270 = vmatpush2.msra.mxu0 0.0
        %3271 = vmatprep.subr.mxu0 0.0
        %3272 = vmatpush2.msra.mxu0 0.0
        %3273 = vmatprep.subr.mxu0 0.0
        %3274 = vmatpush2.msra.mxu0 0.0
        %3275 = vmatprep.subr.mxu0 0.0
        %3276 = vmatpush2.msra.mxu0 0.0
        %3277 = vmatprep.subr.mxu0 0.0
        %3278 = vmatpush2.msra.mxu0 0.0
        %3279 = vmatprep.subr.mxu0 0.0
        %3280 = vmatpush2.msra.mxu0 0.0
        %3281 = vmatprep.subr.mxu0 0.0
        %3282 = vmatpush2.msra.mxu0 0.0
        %3283 = vmatprep.mubr.f32.mxu0 0.0
        %3284 = vmatmul.mubr.f32.gmra.mxu0 %v3214
        %v3285 = vpop.f32.mrf.mxu0
        %v3286 = vadd.f32 0.0, %v3285
        %v3287 = vpop.f32.mrf.mxu0
        %3288 = vmatprep.mubr.f32.mxu0 0.0
        %3289 = vmatmul.mubr.f32.gmra.mxu0 %v3217
        %v3290 = vpop.f32.mrf.mxu0
        %v3291 = vadd.f32 0.0, %v3290
        %v3292 = vpop.f32.mrf.mxu0
        %3293 = vdwg.mxu0
        %v3295 = vsel %vm905, %v3128, 0
        %v3298 = vsel %vm905, %v3133, 0
        %3300 = vmatprep.subr.mxu0 0.0
        %3301 = vmatpush1.msra.mxu0 0.0
        %3302 = vmatprep.subr.mxu0 0.0
        %3303 = vmatpush1.msra.mxu0 0.0
        %3304 = vmatprep.subr.mxu0 0.0
        %3305 = vmatpush1.msra.mxu0 0.0
        %3306 = vmatprep.subr.mxu0 0.0
        %3307 = vmatpush1.msra.mxu0 0.0
        %3308 = vmatprep.subr.mxu0 0.0
        %3309 = vmatpush1.msra.mxu0 0.0
        %3310 = vmatprep.subr.mxu0 0.0
        %3311 = vmatpush1.msra.mxu0 0.0
        %3312 = vmatprep.subr.mxu0 0.0
        %3313 = vmatpush1.msra.mxu0 0.0
        %3314 = vmatprep.subr.mxu0 0.0
        %3315 = vmatpush1.msra.mxu0 0.0
        %3316 = vmatprep.subr.mxu0 0.0
        %3317 = vmatpush1.msra.mxu0 0.0
        %3318 = vmatprep.subr.mxu0 0.0
        %3319 = vmatpush1.msra.mxu0 0.0
        %3320 = vmatprep.subr.mxu0 0.0
        %3321 = vmatpush1.msra.mxu0 0.0
        %3322 = vmatprep.subr.mxu0 0.0
        %3323 = vmatpush1.msra.mxu0 0.0
        %3324 = vmatprep.subr.mxu0 0.0
        %3325 = vmatpush1.msra.mxu0 %v887
        %3326 = vmatprep.subr.mxu0 0.0
        %3327 = vmatpush1.msra.mxu0 %v886
        %3328 = vmatprep.subr.mxu0 0.0
        %3329 = vmatpush1.msra.mxu0 %v885
        %3330 = vmatprep.subr.mxu0 0.0
        %3331 = vmatpush1.msra.mxu0 %v884
        %3332 = vmatprep.subr.mxu0 0.0
        %3333 = vmatpush2.msra.mxu0 0.0
        %3334 = vmatprep.subr.mxu0 0.0
        %3335 = vmatpush2.msra.mxu0 0.0
        %3336 = vmatprep.subr.mxu0 0.0
        %3337 = vmatpush2.msra.mxu0 0.0
        %3338 = vmatprep.subr.mxu0 0.0
        %3339 = vmatpush2.msra.mxu0 0.0
        %3340 = vmatprep.subr.mxu0 0.0
        %3341 = vmatpush2.msra.mxu0 0.0
        %3342 = vmatprep.subr.mxu0 0.0
        %3343 = vmatpush2.msra.mxu0 0.0
        %3344 = vmatprep.subr.mxu0 0.0
        %3345 = vmatpush2.msra.mxu0 0.0
        %3346 = vmatprep.subr.mxu0 0.0
        %3347 = vmatpush2.msra.mxu0 0.0
        %3348 = vmatprep.subr.mxu0 0.0
        %3349 = vmatpush2.msra.mxu0 0.0
        %3350 = vmatprep.subr.mxu0 0.0
        %3351 = vmatpush2.msra.mxu0 0.0
        %3352 = vmatprep.subr.mxu0 0.0
        %3353 = vmatpush2.msra.mxu0 0.0
        %3354 = vmatprep.subr.mxu0 0.0
        %3355 = vmatpush2.msra.mxu0 0.0
        %3356 = vmatprep.subr.mxu0 0.0
        %3357 = vmatpush2.msra.mxu0 0.0
        %3358 = vmatprep.subr.mxu0 0.0
        %3359 = vmatpush2.msra.mxu0 0.0
        %3360 = vmatprep.subr.mxu0 0.0
        %3361 = vmatpush2.msra.mxu0 0.0
        %3362 = vmatprep.subr.mxu0 0.0
        %3363 = vmatpush2.msra.mxu0 0.0
        %3364 = vmatprep.mubr.f32.mxu0 0.0
        %3365 = vmatmul.mubr.f32.gmra.mxu0 %v3295
        %v3366 = vpop.f32.mrf.mxu0
        %v3367 = vadd.f32 %v3286, %v3366
        %v3368 = vpop.f32.mrf.mxu0
        %3369 = vmatprep.mubr.f32.mxu0 0.0
        %3370 = vmatmul.mubr.f32.gmra.mxu0 %v3298
        %v3371 = vpop.f32.mrf.mxu0
        %v3372 = vadd.f32 %v3291, %v3371
        %v3373 = vpop.f32.mrf.mxu0
        %3374 = vdwg.mxu0
        %3375 = vmatprep.subr.mxu0 0.0
        %3376 = vmatpush1.msra.mxu0 0.0
        %3377 = vmatprep.subr.mxu0 0.0
        %3378 = vmatpush1.msra.mxu0 0.0
        %3379 = vmatprep.subr.mxu0 0.0
        %3380 = vmatpush1.msra.mxu0 0.0
        %3381 = vmatprep.subr.mxu0 0.0
        %3382 = vmatpush1.msra.mxu0 0.0
        %3383 = vmatprep.subr.mxu0 0.0
        %3384 = vmatpush1.msra.mxu0 0.0
        %3385 = vmatprep.subr.mxu0 0.0
        %3386 = vmatpush1.msra.mxu0 0.0
        %3387 = vmatprep.subr.mxu0 0.0
        %3388 = vmatpush1.msra.mxu0 0.0
        %3389 = vmatprep.subr.mxu0 0.0
        %3390 = vmatpush1.msra.mxu0 0.0
        %3391 = vmatprep.subr.mxu0 0.0
        %3392 = vmatpush1.msra.mxu0 0.0
        %3393 = vmatprep.subr.mxu0 0.0
        %3394 = vmatpush1.msra.mxu0 0.0
        %3395 = vmatprep.subr.mxu0 0.0
        %3396 = vmatpush1.msra.mxu0 0.0
        %3397 = vmatprep.subr.mxu0 0.0
        %3398 = vmatpush1.msra.mxu0 0.0
        %3399 = vmatprep.subr.mxu0 0.0
        %3400 = vmatpush1.msra.mxu0 %v895
        %3401 = vmatprep.subr.mxu0 0.0
        %3402 = vmatpush1.msra.mxu0 %v894
        %3403 = vmatprep.subr.mxu0 0.0
        %3404 = vmatpush1.msra.mxu0 %v893
        %3405 = vmatprep.subr.mxu0 0.0
        %3406 = vmatpush1.msra.mxu0 %v892
        %3407 = vmatprep.subr.mxu0 0.0
        %3408 = vmatpush2.msra.mxu0 0.0
        %3409 = vmatprep.subr.mxu0 0.0
        %3410 = vmatpush2.msra.mxu0 0.0
        %3411 = vmatprep.subr.mxu0 0.0
        %3412 = vmatpush2.msra.mxu0 0.0
        %3413 = vmatprep.subr.mxu0 0.0
        %3414 = vmatpush2.msra.mxu0 0.0
        %3415 = vmatprep.subr.mxu0 0.0
        %3416 = vmatpush2.msra.mxu0 0.0
        %3417 = vmatprep.subr.mxu0 0.0
        %3418 = vmatpush2.msra.mxu0 0.0
        %3419 = vmatprep.subr.mxu0 0.0
        %3420 = vmatpush2.msra.mxu0 0.0
        %3421 = vmatprep.subr.mxu0 0.0
        %3422 = vmatpush2.msra.mxu0 0.0
        %3423 = vmatprep.subr.mxu0 0.0
        %3424 = vmatpush2.msra.mxu0 0.0
        %3425 = vmatprep.subr.mxu0 0.0
        %3426 = vmatpush2.msra.mxu0 0.0
        %3427 = vmatprep.subr.mxu0 0.0
        %3428 = vmatpush2.msra.mxu0 0.0
        %3429 = vmatprep.subr.mxu0 0.0
        %3430 = vmatpush2.msra.mxu0 0.0
        %3431 = vmatprep.subr.mxu0 0.0
        %3432 = vmatpush2.msra.mxu0 0.0
        %3433 = vmatprep.subr.mxu0 0.0
        %3434 = vmatpush2.msra.mxu0 0.0
        %3435 = vmatprep.subr.mxu0 0.0
        %3436 = vmatpush2.msra.mxu0 0.0
        %3437 = vmatprep.subr.mxu0 0.0
        %3438 = vmatpush2.msra.mxu0 0.0
        %3439 = vmatprep.mubr.f32.mxu0 0.0
        %3440 = vmatmul.mubr.f32.gmra.mxu0 %v2391
        %v3441 = vpop.f32.mrf.mxu0
        %v3442 = vadd.f32 0.0, %v3441
        %v3443 = vpop.f32.mrf.mxu0
        %3444 = vmatprep.mubr.f32.mxu0 0.0
        %3445 = vmatmul.mubr.f32.gmra.mxu0 %v2393
        %v3446 = vpop.f32.mrf.mxu0
        %v3447 = vadd.f32 0.0, %v3446
        %v3448 = vpop.f32.mrf.mxu0
        %3449 = vdwg.mxu0
        %v3450 = vadd.f32 %v3367, %v3442
        %v3451 = vadd.f32 %v3372, %v3447
        %v3452 = vadd.f32 %v3450, %v2069
        %v3453 = vadd.f32 %v3451, %v2069
        %v3454 = vsel %vm905, %v3452, 0.0
        %3455 = vadd.xlane.f32.xlu0 %v3454
        %v3456 = vpop.xlane.xlu0 %3455
        %v3457 = vsel %vm905, %v3453, 0.0
        %3458 = vadd.xlane.f32.xlu0 %v3457
        %v3459 = vpop.xlane.xlu0 %3458
        %v3460 = vmul.f32 %v3456, %v1337
        %v3461 = vmul.f32 %v3459, %v1337
        %v3462 = vsub.f32 %v3452, %v3460
        %v3463 = vsub.f32 %v3453, %v3461
        %v3464 = vmul.f32 %v3462, %v3462
        %v3465 = vmul.f32 %v3463, %v3463
        %v3466 = vsel %vm905, %v3464, 0.0
        %3467 = vadd.xlane.f32.xlu0 %v3466
        %v3468 = vpop.xlane.xlu0 %3467
        %v3469 = vsel %vm905, %v3465, 0.0
        %3470 = vadd.xlane.f32.xlu0 %v3469
        %v3471 = vpop.xlane.xlu0 %3470
        %v3472 = vmul.f32 %v3468, %v1337
        %v3473 = vmul.f32 %v3471, %v1337
        %v3474 = vadd.f32 %v3472, 1e-05
        %v3475 = vadd.f32 %v3473, 1e-05
        %v3476 = vrsqrt.pop %v3474
        %v3477 = vrsqrt.pop %v3475
        %v3478 = vmul.f32 %v3462, %v3476
        %v3479 = vmul.f32 %v3463, %v3477
        %v3480 = vmul.f32 %v3478, %v2103
        %v3481 = vmul.f32 %v3479, %v2103
        %v3482 = vadd.f32 %v3480, %v2111
        %v3483 = vadd.f32 %v3481, %v2111
        %3486 = vrot.lane.b32.xlu0 %v3452, 96
        %v3487 = vpop.permute.xlu0 %3486
        %3488 = vrot.lane.b32.xlu0 %v3453, 96
        %v3489 = vpop.permute.xlu0 %3488
        %v3492 = vsel %vm905, %v3487, 0.0
        %3493 = vadd.xlane.f32.xlu0 %v3492
        %v3494 = vpop.xlane.xlu0 %3493
        %v3495 = vsel %vm905, %v3489, 0.0
        %3496 = vadd.xlane.f32.xlu0 %v3495
        %v3497 = vpop.xlane.xlu0 %3496
        %v3498 = vmul.f32 %v3494, %v1337
        %v3499 = vmul.f32 %v3497, %v1337
        %v3500 = vsub.f32 %v3452, %v3498
        %v3501 = vsub.f32 %v3453, %v3499
        %v3502 = vmul.f32 %v3500, %v3500
        %v3503 = vmul.f32 %v3501, %v3501
        %3506 = vrot.lane.b32.xlu0 %v3502, 96
        %v3507 = vpop.permute.xlu0 %3506
        %3508 = vrot.lane.b32.xlu0 %v3503, 96
        %v3509 = vpop.permute.xlu0 %3508
        %v3512 = vsel %vm905, %v3507, 0.0
        %3513 = vadd.xlane.f32.xlu0 %v3512
        %v3514 = vpop.xlane.xlu0 %3513
        %v3515 = vsel %vm905, %v3509, 0.0
        %3516 = vadd.xlane.f32.xlu0 %v3515
        %v3517 = vpop.xlane.xlu0 %3516
        %v3518 = vmul.f32 %v3514, %v1337
        %v3519 = vmul.f32 %v3517, %v1337
        %v3520 = vadd.f32 %v3518, 1e-05
        %v3521 = vadd.f32 %v3519, 1e-05
        %v3522 = vrsqrt.pop %v3520
        %v3523 = vrsqrt.pop %v3521
        %v3524 = vmul.f32 %v3500, %v3522
        %v3525 = vmul.f32 %v3501, %v3523
        %v3526 = vmul.f32 %v3524, %v2103
        %v3527 = vmul.f32 %v3525, %v2103
        %v3528 = vadd.f32 %v3526, %v2111
        %v3529 = vadd.f32 %v3527, %v2111
        %3530 = vrot.lane.b32.xlu0 %v3452, 64
        %v3531 = vpop.permute.xlu0 %3530
        %3532 = vrot.lane.b32.xlu0 %v3453, 64
        %v3533 = vpop.permute.xlu0 %3532
        %v3536 = vsel %vm905, %v3531, 0.0
        %3537 = vadd.xlane.f32.xlu0 %v3536
        %v3538 = vpop.xlane.xlu0 %3537
        %v3539 = vsel %vm905, %v3533, 0.0
        %3540 = vadd.xlane.f32.xlu0 %v3539
        %v3541 = vpop.xlane.xlu0 %3540
        %v3542 = vmul.f32 %v3538, %v1337
        %v3543 = vmul.f32 %v3541, %v1337
        %v3544 = vsub.f32 %v3452, %v3542
        %v3545 = vsub.f32 %v3453, %v3543
        %v3546 = vmul.f32 %v3544, %v3544
        %v3547 = vmul.f32 %v3545, %v3545
        %3550 = vrot.lane.b32.xlu0 %v3546, 64
        %v3551 = vpop.permute.xlu0 %3550
        %3552 = vrot.lane.b32.xlu0 %v3547, 64
        %v3553 = vpop.permute.xlu0 %3552
        %v3556 = vsel %vm905, %v3551, 0.0
        %3557 = vadd.xlane.f32.xlu0 %v3556
        %v3558 = vpop.xlane.xlu0 %3557
        %v3559 = vsel %vm905, %v3553, 0.0
        %3560 = vadd.xlane.f32.xlu0 %v3559
        %v3561 = vpop.xlane.xlu0 %3560
        %v3562 = vmul.f32 %v3558, %v1337
        %v3563 = vmul.f32 %v3561, %v1337
        %v3564 = vadd.f32 %v3562, 1e-05
        %v3565 = vadd.f32 %v3563, 1e-05
        %v3566 = vrsqrt.pop %v3564
        %v3567 = vrsqrt.pop %v3565
        %v3568 = vmul.f32 %v3544, %v3566
        %v3569 = vmul.f32 %v3545, %v3567
        %v3570 = vmul.f32 %v3568, %v2103
        %v3571 = vmul.f32 %v3569, %v2103
        %v3572 = vadd.f32 %v3570, %v2111
        %v3573 = vadd.f32 %v3571, %v2111
        %3574 = vrot.lane.b32.xlu0 %v3452, 32
        %v3575 = vpop.permute.xlu0 %3574
        %3576 = vrot.lane.b32.xlu0 %v3453, 32
        %v3577 = vpop.permute.xlu0 %3576
        %v3580 = vsel %vm905, %v3575, 0.0
        %3581 = vadd.xlane.f32.xlu0 %v3580
        %v3582 = vpop.xlane.xlu0 %3581
        %v3583 = vsel %vm905, %v3577, 0.0
        %3584 = vadd.xlane.f32.xlu0 %v3583
        %v3585 = vpop.xlane.xlu0 %3584
        %v3586 = vmul.f32 %v3582, %v1337
        %v3587 = vmul.f32 %v3585, %v1337
        %v3588 = vsub.f32 %v3452, %v3586
        %v3589 = vsub.f32 %v3453, %v3587
        %v3590 = vmul.f32 %v3588, %v3588
        %v3591 = vmul.f32 %v3589, %v3589
        %3594 = vrot.lane.b32.xlu0 %v3590, 32
        %v3595 = vpop.permute.xlu0 %3594
        %3596 = vrot.lane.b32.xlu0 %v3591, 32
        %v3597 = vpop.permute.xlu0 %3596
        %v3600 = vsel %vm905, %v3595, 0.0
        %3601 = vadd.xlane.f32.xlu0 %v3600
        %v3602 = vpop.xlane.xlu0 %3601
        %v3603 = vsel %vm905, %v3597, 0.0
        %3604 = vadd.xlane.f32.xlu0 %v3603
        %v3605 = vpop.xlane.xlu0 %3604
        %v3606 = vmul.f32 %v3602, %v1337
        %v3607 = vmul.f32 %v3605, %v1337
        %v3608 = vadd.f32 %v3606, 1e-05
        %v3609 = vadd.f32 %v3607, 1e-05
        %v3610 = vrsqrt.pop %v3608
        %v3611 = vrsqrt.pop %v3609
        %v3612 = vmul.f32 %v3588, %v3610
        %v3613 = vmul.f32 %v3589, %v3611
        %v3614 = vmul.f32 %v3612, %v2103
        %v3615 = vmul.f32 %v3613, %v2103
        %v3616 = vadd.f32 %v3614, %v2111
        %v3617 = vadd.f32 %v3615, %v2111
        %v3618 = vxor.u32 %v3482, 2147483648
        %v3619 = vxor.u32 %v3483, 2147483648
        %v3620 = vmul.f32 %v3618, 1.442695
        %v3621 = vpow.pop %v3620
        %v3622 = vmul.f32 %v3619, 1.442695
        %v3623 = vpow.pop %v3622
        %v3624 = vadd.f32 %v3621, 1.0
        %v3625 = vadd.f32 %v3623, 1.0
        %v3626 = vrcp.pop %v3624
        %v3627 = vmul.f32 1.0, %v3626
        %v3628 = vrcp.pop %v3625
        %v3629 = vmul.f32 1.0, %v3628
        %v3630 = vadd.f32 %v3528, 1.0
        %v3631 = vadd.f32 %v3529, 1.0
        %v3632 = vxor.u32 %v3630, 2147483648
        %v3633 = vxor.u32 %v3631, 2147483648
        %v3634 = vmul.f32 %v3632, 1.442695
        %v3635 = vpow.pop %v3634
        %v3636 = vmul.f32 %v3633, 1.442695
        %v3637 = vpow.pop %v3636
        %v3638 = vadd.f32 %v3635, 1.0
        %v3639 = vadd.f32 %v3637, 1.0
        %v3640 = vrcp.pop %v3638
        %v3641 = vmul.f32 1.0, %v3640
        %v3642 = vrcp.pop %v3639
        %v3643 = vmul.f32 1.0, %v3642
        %v3644 = vtanh.pop %v3572
        %v3645 = vtanh.pop %v3573
        %v3646 = vxor.u32 %v3616, 2147483648
        %v3647 = vxor.u32 %v3617, 2147483648
        %v3648 = vmul.f32 %v3646, 1.442695
        %v3649 = vpow.pop %v3648
        %v3650 = vmul.f32 %v3647, 1.442695
        %v3651 = vpow.pop %v3650
        %v3652 = vadd.f32 %v3649, 1.0
        %v3653 = vadd.f32 %v3651, 1.0
        %v3654 = vrcp.pop %v3652
        %v3655 = vmul.f32 1.0, %v3654
        %v3656 = vrcp.pop %v3653
        %v3657 = vmul.f32 1.0, %v3656
        %v3658 = vmul.f32 %v3641, %v2309
        %v3659 = vmul.f32 %v3643, %v2310
        %3662 = vrot.lane.b32.xlu0 %v3644, 64
        %v3663 = vpop.permute.xlu0 %3662
        %3664 = vrot.lane.b32.xlu0 %v3645, 64
        %v3665 = vpop.permute.xlu0 %3664
        %v3668 = vmul.f32 %v3627, %v3663
        %v3669 = vmul.f32 %v3629, %v3665
        %3672 = vrot.lane.b32.xlu0 %v3668, 32
        %v3673 = vpop.permute.xlu0 %3672
        %3674 = vrot.lane.b32.xlu0 %v3669, 32
        %v3675 = vpop.permute.xlu0 %3674
        %v3678 = vadd.f32 %v3658, %v3673
        %v3679 = vadd.f32 %v3659, %v3675
        %3682 = vrot.lane.b32.xlu0 %v3678, 96
        %v3683 = vpop.permute.xlu0 %3682
        %3684 = vrot.lane.b32.xlu0 %v3679, 96
        %v3685 = vpop.permute.xlu0 %3684
        %v3688 = vsel %vm905, %v3683, 0.0
        %3689 = vadd.xlane.f32.xlu0 %v3688
        %v3690 = vpop.xlane.xlu0 %3689
        %v3691 = vsel %vm905, %v3685, 0.0
        %3692 = vadd.xlane.f32.xlu0 %v3691
        %v3693 = vpop.xlane.xlu0 %3692
        %v3694 = vmul.f32 %v3690, %v1337
        %v3695 = vmul.f32 %v3693, %v1337
        %v3696 = vsub.f32 %v3678, %v3694
        %v3697 = vsub.f32 %v3679, %v3695
        %v3698 = vmul.f32 %v3696, %v3696
        %v3699 = vmul.f32 %v3697, %v3697
        %3702 = vrot.lane.b32.xlu0 %v3698, 96
        %v3703 = vpop.permute.xlu0 %3702
        %3704 = vrot.lane.b32.xlu0 %v3699, 96
        %v3705 = vpop.permute.xlu0 %3704
        %v3708 = vsel %vm905, %v3703, 0.0
        %3709 = vadd.xlane.f32.xlu0 %v3708
        %v3710 = vpop.xlane.xlu0 %3709
        %v3711 = vsel %vm905, %v3705, 0.0
        %3712 = vadd.xlane.f32.xlu0 %v3711
        %v3713 = vpop.xlane.xlu0 %3712
        %v3714 = vmul.f32 %v3710, %v1337
        %v3715 = vmul.f32 %v3713, %v1337
        %v3716 = vadd.f32 %v3714, 1e-05
        %v3717 = vadd.f32 %v3715, 1e-05
        %v3718 = vrsqrt.pop %v3716
        %v3719 = vrsqrt.pop %v3717
        %v3720 = vmul.f32 %v3696, %v3718
        %v3721 = vmul.f32 %v3697, %v3719
        %v3722 = vmul.f32 %v3720, %v2359
        %v3723 = vmul.f32 %v3721, %v2359
        %v3724 = vadd.f32 %v3722, %v2369
        %v3725 = vadd.f32 %v3723, %v2369
        %v3726 = vtanh.pop %v3724
        %v3727 = vtanh.pop %v3725
        %3730 = vrot.lane.b32.xlu0 %v3726, 64
        %v3731 = vpop.permute.xlu0 %3730
        %3732 = vrot.lane.b32.xlu0 %v3727, 64
        %v3733 = vpop.permute.xlu0 %3732
        %v3736 = vmul.f32 %v3655, %v3731
        %v3737 = vmul.f32 %v3657, %v3733
        %3740 = vrot.lane.b32.xlu0 %v3736, 32
        %v3741 = vpop.permute.xlu0 %3740
        %3742 = vrot.lane.b32.xlu0 %v3737, 32
        %v3743 = vpop.permute.xlu0 %3742
        %v3744 = vsel %vm905, %v3741, 0
        %v3746 = vsel %vm905, %v3743, 0
        %3748 = vmatprep.subr.mxu0 0.0
        %3749 = vmatpush1.msra.mxu0 0.0
        %3750 = vmatprep.subr.mxu0 0.0
        %3751 = vmatpush1.msra.mxu0 0.0
        %3752 = vmatprep.subr.mxu0 0.0
        %3753 = vmatpush1.msra.mxu0 0.0
        %3754 = vmatprep.subr.mxu0 0.0
        %3755 = vmatpush1.msra.mxu0 0.0
        %3756 = vmatprep.subr.mxu0 0.0
        %3757 = vmatpush1.msra.mxu0 0.0
        %3758 = vmatprep.subr.mxu0 0.0
        %3759 = vmatpush1.msra.mxu0 0.0
        %3760 = vmatprep.subr.mxu0 0.0
        %3761 = vmatpush1.msra.mxu0 0.0
        %3762 = vmatprep.subr.mxu0 0.0
        %3763 = vmatpush1.msra.mxu0 0.0
        %3764 = vmatprep.subr.mxu0 0.0
        %3765 = vmatpush1.msra.mxu0 0.0
        %3766 = vmatprep.subr.mxu0 0.0
        %3767 = vmatpush1.msra.mxu0 0.0
        %3768 = vmatprep.subr.mxu0 0.0
        %3769 = vmatpush1.msra.mxu0 0.0
        %3770 = vmatprep.subr.mxu0 0.0
        %3771 = vmatpush1.msra.mxu0 0.0
        %3772 = vmatprep.subr.mxu0 0.0
        %3773 = vmatpush1.msra.mxu0 %v856
        %3774 = vmatprep.subr.mxu0 0.0
        %3775 = vmatpush1.msra.mxu0 %v855
        %3776 = vmatprep.subr.mxu0 0.0
        %3777 = vmatpush1.msra.mxu0 %v854
        %3778 = vmatprep.subr.mxu0 0.0
        %3779 = vmatpush1.msra.mxu0 %v853
        %3780 = vmatprep.subr.mxu0 0.0
        %3781 = vmatpush2.msra.mxu0 0.0
        %3782 = vmatprep.subr.mxu0 0.0
        %3783 = vmatpush2.msra.mxu0 0.0
        %3784 = vmatprep.subr.mxu0 0.0
        %3785 = vmatpush2.msra.mxu0 0.0
        %3786 = vmatprep.subr.mxu0 0.0
        %3787 = vmatpush2.msra.mxu0 0.0
        %3788 = vmatprep.subr.mxu0 0.0
        %3789 = vmatpush2.msra.mxu0 0.0
        %3790 = vmatprep.subr.mxu0 0.0
        %3791 = vmatpush2.msra.mxu0 0.0
        %3792 = vmatprep.subr.mxu0 0.0
        %3793 = vmatpush2.msra.mxu0 0.0
        %3794 = vmatprep.subr.mxu0 0.0
        %3795 = vmatpush2.msra.mxu0 0.0
        %3796 = vmatprep.subr.mxu0 0.0
        %3797 = vmatpush2.msra.mxu0 0.0
        %3798 = vmatprep.subr.mxu0 0.0
        %3799 = vmatpush2.msra.mxu0 0.0
        %3800 = vmatprep.subr.mxu0 0.0
        %3801 = vmatpush2.msra.mxu0 0.0
        %3802 = vmatprep.subr.mxu0 0.0
        %3803 = vmatpush2.msra.mxu0 0.0
        %3804 = vmatprep.subr.mxu0 0.0
        %3805 = vmatpush2.msra.mxu0 0.0
        %3806 = vmatprep.subr.mxu0 0.0
        %3807 = vmatpush2.msra.mxu0 0.0
        %3808 = vmatprep.subr.mxu0 0.0
        %3809 = vmatpush2.msra.mxu0 0.0
        %3810 = vmatprep.subr.mxu0 0.0
        %3811 = vmatpush2.msra.mxu0 0.0
        %3812 = vmatprep.mubr.f32.mxu0 0.0
        %3813 = vmatmul.mubr.f32.gmra.mxu0 %v3744
        %v3814 = vpop.f32.mrf.mxu0
        %v3815 = vadd.f32 %v904, %v3814
        %v3816 = vpop.f32.mrf.mxu0
        %3817 = vmatprep.mubr.f32.mxu0 0.0
        %3818 = vmatmul.mubr.f32.gmra.mxu0 %v3746
        %v3819 = vpop.f32.mrf.mxu0
        %v3820 = vadd.f32 %v904, %v3819
        %v3821 = vpop.f32.mrf.mxu0
        %3822 = vdwg.mxu0
        %v3823 = vmax.f32 %v3815, 0.0
        %v3824 = vmax.f32 %v3820, 0.0
        %v3826 = vsel %vm905, %v3823, 0
        %v3829 = vsel %vm905, %v3824, 0
        %3831 = vmatprep.subr.mxu0 0.0
        %3832 = vmatpush1.msra.mxu0 0.0
        %3833 = vmatprep.subr.mxu0 0.0
        %3834 = vmatpush1.msra.mxu0 0.0
        %3835 = vmatprep.subr.mxu0 0.0
        %3836 = vmatpush1.msra.mxu0 0.0
        %3837 = vmatprep.subr.mxu0 0.0
        %3838 = vmatpush1.msra.mxu0 0.0
        %3839 = vmatprep.subr.mxu0 0.0
        %3840 = vmatpush1.msra.mxu0 0.0
        %3841 = vmatprep.subr.mxu0 0.0
        %3842 = vmatpush1.msra.mxu0 0.0
        %3843 = vmatprep.subr.mxu0 0.0
        %3844 = vmatpush1.msra.mxu0 0.0
        %3845 = vmatprep.subr.mxu0 0.0
        %3846 = vmatpush1.msra.mxu0 0.0
        %3847 = vmatprep.subr.mxu0 0.0
        %3848 = vmatpush1.msra.mxu0 0.0
        %3849 = vmatprep.subr.mxu0 0.0
        %3850 = vmatpush1.msra.mxu0 0.0
        %3851 = vmatprep.subr.mxu0 0.0
        %3852 = vmatpush1.msra.mxu0 0.0
        %3853 = vmatprep.subr.mxu0 0.0
        %3854 = vmatpush1.msra.mxu0 0.0
        %3855 = vmatprep.subr.mxu0 0.0
        %3856 = vmatpush1.msra.mxu0 %v860
        %3857 = vmatprep.subr.mxu0 0.0
        %3858 = vmatpush1.msra.mxu0 %v859
        %3859 = vmatprep.subr.mxu0 0.0
        %3860 = vmatpush1.msra.mxu0 %v858
        %3861 = vmatprep.subr.mxu0 0.0
        %3862 = vmatpush1.msra.mxu0 %v857
        %3863 = vmatprep.subr.mxu0 0.0
        %3864 = vmatpush2.msra.mxu0 0.0
        %3865 = vmatprep.subr.mxu0 0.0
        %3866 = vmatpush2.msra.mxu0 0.0
        %3867 = vmatprep.subr.mxu0 0.0
        %3868 = vmatpush2.msra.mxu0 0.0
        %3869 = vmatprep.subr.mxu0 0.0
        %3870 = vmatpush2.msra.mxu0 0.0
        %3871 = vmatprep.subr.mxu0 0.0
        %3872 = vmatpush2.msra.mxu0 0.0
        %3873 = vmatprep.subr.mxu0 0.0
        %3874 = vmatpush2.msra.mxu0 0.0
        %3875 = vmatprep.subr.mxu0 0.0
        %3876 = vmatpush2.msra.mxu0 0.0
        %3877 = vmatprep.subr.mxu0 0.0
        %3878 = vmatpush2.msra.mxu0 0.0
        %3879 = vmatprep.subr.mxu0 0.0
        %3880 = vmatpush2.msra.mxu0 0.0
        %3881 = vmatprep.subr.mxu0 0.0
        %3882 = vmatpush2.msra.mxu0 0.0
        %3883 = vmatprep.subr.mxu0 0.0
        %3884 = vmatpush2.msra.mxu0 0.0
        %3885 = vmatprep.subr.mxu0 0.0
        %3886 = vmatpush2.msra.mxu0 0.0
        %3887 = vmatprep.subr.mxu0 0.0
        %3888 = vmatpush2.msra.mxu0 0.0
        %3889 = vmatprep.subr.mxu0 0.0
        %3890 = vmatpush2.msra.mxu0 0.0
        %3891 = vmatprep.subr.mxu0 0.0
        %3892 = vmatpush2.msra.mxu0 0.0
        %3893 = vmatprep.subr.mxu0 0.0
        %3894 = vmatpush2.msra.mxu0 0.0
        %3895 = vmatprep.mubr.f32.mxu0 0.0
        %3896 = vmatmul.mubr.f32.gmra.mxu0 %v3826
        %v3897 = vpop.f32.mrf.mxu0
        %v3898 = vadd.f32 %v992, %v3897
        %v3899 = vpop.f32.mrf.mxu0
        %3900 = vmatprep.mubr.f32.mxu0 0.0
        %3901 = vmatmul.mubr.f32.gmra.mxu0 %v3829
        %v3902 = vpop.f32.mrf.mxu0
        %v3903 = vadd.f32 %v992, %v3902
        %v3904 = vpop.f32.mrf.mxu0
        %3905 = vdwg.mxu0
        %v3906 = vmax.f32 %v3898, 0.0
        %v3907 = vmax.f32 %v3903, 0.0
        %3908 = vmatprep.subr.mxu0 0.0
        %3909 = vmatpush1.msra.mxu0 0.0
        %3910 = vmatprep.subr.mxu0 0.0
        %3911 = vmatpush1.msra.mxu0 0.0
        %3912 = vmatprep.subr.mxu0 0.0
        %3913 = vmatpush1.msra.mxu0 0.0
        %3914 = vmatprep.subr.mxu0 0.0
        %3915 = vmatpush1.msra.mxu0 0.0
        %3916 = vmatprep.subr.mxu0 0.0
        %3917 = vmatpush1.msra.mxu0 0.0
        %3918 = vmatprep.subr.mxu0 0.0
        %3919 = vmatpush1.msra.mxu0 0.0
        %3920 = vmatprep.subr.mxu0 0.0
        %3921 = vmatpush1.msra.mxu0 0.0
        %3922 = vmatprep.subr.mxu0 0.0
        %3923 = vmatpush1.msra.mxu0 0.0
        %3924 = vmatprep.subr.mxu0 0.0
        %3925 = vmatpush1.msra.mxu0 0.0
        %3926 = vmatprep.subr.mxu0 0.0
        %3927 = vmatpush1.msra.mxu0 0.0
        %3928 = vmatprep.subr.mxu0 0.0
        %3929 = vmatpush1.msra.mxu0 0.0
        %3930 = vmatprep.subr.mxu0 0.0
        %3931 = vmatpush1.msra.mxu0 0.0
        %3932 = vmatprep.subr.mxu0 0.0
        %3933 = vmatpush1.msra.mxu0 0.0
        %3934 = vmatprep.subr.mxu0 0.0
        %3935 = vmatpush1.msra.mxu0 0.0
        %3936 = vmatprep.subr.mxu0 0.0
        %3937 = vmatpush1.msra.mxu0 %v3907
        %3938 = vmatprep.subr.mxu0 0.0
        %3939 = vmatpush1.msra.mxu0 %v3906
        %3940 = vmatprep.subr.mxu0 0.0
        %3941 = vmatpush2.msra.mxu0 0.0
        %3942 = vmatprep.subr.mxu0 0.0
        %3943 = vmatpush2.msra.mxu0 0.0
        %3944 = vmatprep.subr.mxu0 0.0
        %3945 = vmatpush2.msra.mxu0 0.0
        %3946 = vmatprep.subr.mxu0 0.0
        %3947 = vmatpush2.msra.mxu0 0.0
        %3948 = vmatprep.subr.mxu0 0.0
        %3949 = vmatpush2.msra.mxu0 0.0
        %3950 = vmatprep.subr.mxu0 0.0
        %3951 = vmatpush2.msra.mxu0 0.0
        %3952 = vmatprep.subr.mxu0 0.0
        %3953 = vmatpush2.msra.mxu0 0.0
        %3954 = vmatprep.subr.mxu0 0.0
        %3955 = vmatpush2.msra.mxu0 0.0
        %3956 = vmatprep.subr.mxu0 0.0
        %3957 = vmatpush2.msra.mxu0 0.0
        %3958 = vmatprep.subr.mxu0 0.0
        %3959 = vmatpush2.msra.mxu0 0.0
        %3960 = vmatprep.subr.mxu0 0.0
        %3961 = vmatpush2.msra.mxu0 0.0
        %3962 = vmatprep.subr.mxu0 0.0
        %3963 = vmatpush2.msra.mxu0 0.0
        %3964 = vmatprep.subr.mxu0 0.0
        %3965 = vmatpush2.msra.mxu0 0.0
        %3966 = vmatprep.subr.mxu0 0.0
        %3967 = vmatpush2.msra.mxu0 0.0
        %3968 = vmatprep.subr.mxu0 0.0
        %3969 = vmatpush2.msra.mxu0 0.0
        %3970 = vmatprep.subr.mxu0 0.0
        %3971 = vmatpush2.msra.mxu0 0.0
        %3972 = vmatprep.mubr.f32.mxu0 0.0
        %3973 = vmatmul.mubr.f32.gmra.mxu0 %v1110
        %v3974 = vpop.f32.mrf.mxu0
        %v3975 = vadd.f32 0.0, %v3974
        %v3976 = vpop.f32.mrf.mxu0
        %3977 = vdwg.mxu0
        %3978 = vmatprep.subr.mxu0 0.0
        %3979 = vmatpush1.msra.mxu0 0.0
        %3980 = vmatprep.subr.mxu0 0.0
        %3981 = vmatpush1.msra.mxu0 0.0
        %3982 = vmatprep.subr.mxu0 0.0
        %3983 = vmatpush1.msra.mxu0 0.0
        %3984 = vmatprep.subr.mxu0 0.0
        %3985 = vmatpush1.msra.mxu0 0.0
        %3986 = vmatprep.subr.mxu0 0.0
        %3987 = vmatpush1.msra.mxu0 0.0
        %3988 = vmatprep.subr.mxu0 0.0
        %3989 = vmatpush1.msra.mxu0 0.0
        %3990 = vmatprep.subr.mxu0 0.0
        %3991 = vmatpush1.msra.mxu0 0.0
        %3992 = vmatprep.subr.mxu0 0.0
        %3993 = vmatpush1.msra.mxu0 0.0
        %3994 = vmatprep.subr.mxu0 0.0
        %3995 = vmatpush1.msra.mxu0 0.0
        %3996 = vmatprep.subr.mxu0 0.0
        %3997 = vmatpush1.msra.mxu0 0.0
        %3998 = vmatprep.subr.mxu0 0.0
        %3999 = vmatpush1.msra.mxu0 0.0
        %4000 = vmatprep.subr.mxu0 0.0
        %4001 = vmatpush1.msra.mxu0 0.0
        %4002 = vmatprep.subr.mxu0 0.0
        %4003 = vmatpush1.msra.mxu0 %v878
        %4004 = vmatprep.subr.mxu0 0.0
        %4005 = vmatpush1.msra.mxu0 %v877
        %4006 = vmatprep.subr.mxu0 0.0
        %4007 = vmatpush1.msra.mxu0 %v876
        %4008 = vmatprep.subr.mxu0 0.0
        %4009 = vmatpush1.msra.mxu0 %v875
        %4010 = vmatprep.subr.mxu0 0.0
        %4011 = vmatpush2.msra.mxu0 0.0
        %4012 = vmatprep.subr.mxu0 0.0
        %4013 = vmatpush2.msra.mxu0 0.0
        %4014 = vmatprep.subr.mxu0 0.0
        %4015 = vmatpush2.msra.mxu0 0.0
        %4016 = vmatprep.subr.mxu0 0.0
        %4017 = vmatpush2.msra.mxu0 0.0
        %4018 = vmatprep.subr.mxu0 0.0
        %4019 = vmatpush2.msra.mxu0 0.0
        %4020 = vmatprep.subr.mxu0 0.0
        %4021 = vmatpush2.msra.mxu0 0.0
        %4022 = vmatprep.subr.mxu0 0.0
        %4023 = vmatpush2.msra.mxu0 0.0
        %4024 = vmatprep.subr.mxu0 0.0
        %4025 = vmatpush2.msra.mxu0 0.0
        %4026 = vmatprep.subr.mxu0 0.0
        %4027 = vmatpush2.msra.mxu0 0.0
        %4028 = vmatprep.subr.mxu0 0.0
        %4029 = vmatpush2.msra.mxu0 0.0
        %4030 = vmatprep.subr.mxu0 0.0
        %4031 = vmatpush2.msra.mxu0 0.0
        %4032 = vmatprep.subr.mxu0 0.0
        %4033 = vmatpush2.msra.mxu0 0.0
        %4034 = vmatprep.subr.mxu0 0.0
        %4035 = vmatpush2.msra.mxu0 0.0
        %4036 = vmatprep.subr.mxu0 0.0
        %4037 = vmatpush2.msra.mxu0 0.0
        %4038 = vmatprep.subr.mxu0 0.0
        %4039 = vmatpush2.msra.mxu0 0.0
        %4040 = vmatprep.subr.mxu0 0.0
        %4041 = vmatpush2.msra.mxu0 0.0
        %4042 = vmatprep.mubr.f32.mxu0 0.0
        %4043 = vmatmul.mubr.f32.gmra.mxu0 %v2914
        %v4044 = vpop.f32.mrf.mxu0
        %v4045 = vadd.f32 0.0, %v4044
        %v4046 = vpop.f32.mrf.mxu0
        %4047 = vdwg.mxu0
        %v4049 = vsel %vm905, %v3975, 0
        %4051 = vmatprep.subr.mxu0 0.0
        %4052 = vmatpush1.msra.mxu0 0.0
        %4053 = vmatprep.subr.mxu0 0.0
        %4054 = vmatpush1.msra.mxu0 0.0
        %4055 = vmatprep.subr.mxu0 0.0
        %4056 = vmatpush1.msra.mxu0 0.0
        %4057 = vmatprep.subr.mxu0 0.0
        %4058 = vmatpush1.msra.mxu0 0.0
        %4059 = vmatprep.subr.mxu0 0.0
        %4060 = vmatpush1.msra.mxu0 0.0
        %4061 = vmatprep.subr.mxu0 0.0
        %4062 = vmatpush1.msra.mxu0 0.0
        %4063 = vmatprep.subr.mxu0 0.0
        %4064 = vmatpush1.msra.mxu0 0.0
        %4065 = vmatprep.subr.mxu0 0.0
        %4066 = vmatpush1.msra.mxu0 0.0
        %4067 = vmatprep.subr.mxu0 0.0
        %4068 = vmatpush1.msra.mxu0 0.0
        %4069 = vmatprep.subr.mxu0 0.0
        %4070 = vmatpush1.msra.mxu0 0.0
        %4071 = vmatprep.subr.mxu0 0.0
        %4072 = vmatpush1.msra.mxu0 0.0
        %4073 = vmatprep.subr.mxu0 0.0
        %4074 = vmatpush1.msra.mxu0 0.0
        %4075 = vmatprep.subr.mxu0 0.0
        %4076 = vmatpush1.msra.mxu0 %v874
        %4077 = vmatprep.subr.mxu0 0.0
        %4078 = vmatpush1.msra.mxu0 %v873
        %4079 = vmatprep.subr.mxu0 0.0
        %4080 = vmatpush1.msra.mxu0 %v872
        %4081 = vmatprep.subr.mxu0 0.0
        %4082 = vmatpush1.msra.mxu0 %v871
        %4083 = vmatprep.subr.mxu0 0.0
        %4084 = vmatpush2.msra.mxu0 0.0
        %4085 = vmatprep.subr.mxu0 0.0
        %4086 = vmatpush2.msra.mxu0 0.0
        %4087 = vmatprep.subr.mxu0 0.0
        %4088 = vmatpush2.msra.mxu0 0.0
        %4089 = vmatprep.subr.mxu0 0.0
        %4090 = vmatpush2.msra.mxu0 0.0
        %4091 = vmatprep.subr.mxu0 0.0
        %4092 = vmatpush2.msra.mxu0 0.0
        %4093 = vmatprep.subr.mxu0 0.0
        %4094 = vmatpush2.msra.mxu0 0.0
        %4095 = vmatprep.subr.mxu0 0.0
        %4096 = vmatpush2.msra.mxu0 0.0
        %4097 = vmatprep.subr.mxu0 0.0
        %4098 = vmatpush2.msra.mxu0 0.0
        %4099 = vmatprep.subr.mxu0 0.0
        %4100 = vmatpush2.msra.mxu0 0.0
        %4101 = vmatprep.subr.mxu0 0.0
        %4102 = vmatpush2.msra.mxu0 0.0
        %4103 = vmatprep.subr.mxu0 0.0
        %4104 = vmatpush2.msra.mxu0 0.0
        %4105 = vmatprep.subr.mxu0 0.0
        %4106 = vmatpush2.msra.mxu0 0.0
        %4107 = vmatprep.subr.mxu0 0.0
        %4108 = vmatpush2.msra.mxu0 0.0
        %4109 = vmatprep.subr.mxu0 0.0
        %4110 = vmatpush2.msra.mxu0 0.0
        %4111 = vmatprep.subr.mxu0 0.0
        %4112 = vmatpush2.msra.mxu0 0.0
        %4113 = vmatprep.subr.mxu0 0.0
        %4114 = vmatpush2.msra.mxu0 0.0
        %4115 = vmatprep.mubr.f32.mxu0 0.0
        %4116 = vmatmul.mubr.f32.gmra.mxu0 %v4049
        %v4117 = vpop.f32.mrf.mxu0
        %v4118 = vadd.f32 %v4045, %v4117
        %v4119 = vpop.f32.mrf.mxu0
        %4120 = vdwg.mxu0
        %v4121 = vadd.f32 %v4118, %v1331
        %v4122 = vsel %vm905, %v4121, 0.0
        %4123 = vadd.xlane.f32.xlu0 %v4122
        %v4124 = vpop.xlane.xlu0 %4123
        %v4125 = vmul.f32 %v4124, %v1337
        %v4126 = vsub.f32 %v4121, %v4125
        %v4127 = vmul.f32 %v4126, %v4126
        %v4128 = vsel %vm905, %v4127, 0.0
        %4129 = vadd.xlane.f32.xlu0 %v4128
        %v4130 = vpop.xlane.xlu0 %4129
        %v4131 = vmul.f32 %v4130, %v1337
        %v4132 = vadd.f32 %v4131, 1e-05
        %v4133 = vrsqrt.pop %v4132
        %v4134 = vmul.f32 %v4126, %v4133
        %v4135 = vmul.f32 %v4134, %v1352
        %v4136 = vadd.f32 %v4135, %v1359
        %4138 = vrot.lane.b32.xlu0 %v4121, 96
        %v4139 = vpop.permute.xlu0 %4138
        %v4141 = vsel %vm905, %v4139, 0.0
        %4142 = vadd.xlane.f32.xlu0 %v4141
        %v4143 = vpop.xlane.xlu0 %4142
        %v4144 = vmul.f32 %v4143, %v1337
        %v4145 = vsub.f32 %v4121, %v4144
        %v4146 = vmul.f32 %v4145, %v4145
        %4148 = vrot.lane.b32.xlu0 %v4146, 96
        %v4149 = vpop.permute.xlu0 %4148
        %v4151 = vsel %vm905, %v4149, 0.0
        %4152 = vadd.xlane.f32.xlu0 %v4151
        %v4153 = vpop.xlane.xlu0 %4152
        %v4154 = vmul.f32 %v4153, %v1337
        %v4155 = vadd.f32 %v4154, 1e-05
        %v4156 = vrsqrt.pop %v4155
        %v4157 = vmul.f32 %v4145, %v4156
        %v4158 = vmul.f32 %v4157, %v1352
        %v4159 = vadd.f32 %v4158, %v1359
        %4160 = vrot.lane.b32.xlu0 %v4121, 64
        %v4161 = vpop.permute.xlu0 %4160
        %v4163 = vsel %vm905, %v4161, 0.0
        %4164 = vadd.xlane.f32.xlu0 %v4163
        %v4165 = vpop.xlane.xlu0 %4164
        %v4166 = vmul.f32 %v4165, %v1337
        %v4167 = vsub.f32 %v4121, %v4166
        %v4168 = vmul.f32 %v4167, %v4167
        %4170 = vrot.lane.b32.xlu0 %v4168, 64
        %v4171 = vpop.permute.xlu0 %4170
        %v4173 = vsel %vm905, %v4171, 0.0
        %4174 = vadd.xlane.f32.xlu0 %v4173
        %v4175 = vpop.xlane.xlu0 %4174
        %v4176 = vmul.f32 %v4175, %v1337
        %v4177 = vadd.f32 %v4176, 1e-05
        %v4178 = vrsqrt.pop %v4177
        %v4179 = vmul.f32 %v4167, %v4178
        %v4180 = vmul.f32 %v4179, %v1352
        %v4181 = vadd.f32 %v4180, %v1359
        %4182 = vrot.lane.b32.xlu0 %v4121, 32
        %v4183 = vpop.permute.xlu0 %4182
        %v4185 = vsel %vm905, %v4183, 0.0
        %4186 = vadd.xlane.f32.xlu0 %v4185
        %v4187 = vpop.xlane.xlu0 %4186
        %v4188 = vmul.f32 %v4187, %v1337
        %v4189 = vsub.f32 %v4121, %v4188
        %v4190 = vmul.f32 %v4189, %v4189
        %4192 = vrot.lane.b32.xlu0 %v4190, 32
        %v4193 = vpop.permute.xlu0 %4192
        %v4195 = vsel %vm905, %v4193, 0.0
        %4196 = vadd.xlane.f32.xlu0 %v4195
        %v4197 = vpop.xlane.xlu0 %4196
        %v4198 = vmul.f32 %v4197, %v1337
        %v4199 = vadd.f32 %v4198, 1e-05
        %v4200 = vrsqrt.pop %v4199
        %v4201 = vmul.f32 %v4189, %v4200
        %v4202 = vmul.f32 %v4201, %v1352
        %v4203 = vadd.f32 %v4202, %v1359
        %v4204 = vxor.u32 %v4136, 2147483648
        %v4205 = vmul.f32 %v4204, 1.442695
        %v4206 = vpow.pop %v4205
        %v4207 = vadd.f32 %v4206, 1.0
        %v4208 = vrcp.pop %v4207
        %v4209 = vmul.f32 1.0, %v4208
        %v4210 = vadd.f32 %v4159, 1.0
        %v4211 = vxor.u32 %v4210, 2147483648
        %v4212 = vmul.f32 %v4211, 1.442695
        %v4213 = vpow.pop %v4212
        %v4214 = vadd.f32 %v4213, 1.0
        %v4215 = vrcp.pop %v4214
        %v4216 = vmul.f32 1.0, %v4215
        %v4217 = vtanh.pop %v4181
        %v4218 = vxor.u32 %v4203, 2147483648
        %v4219 = vmul.f32 %v4218, 1.442695
        %v4220 = vpow.pop %v4219
        %v4221 = vadd.f32 %v4220, 1.0
        %v4222 = vrcp.pop %v4221
        %v4223 = vmul.f32 1.0, %v4222
        %v4224 = vmul.f32 %v4216, %v2881
        %4226 = vrot.lane.b32.xlu0 %v4217, 64
        %v4227 = vpop.permute.xlu0 %4226
        %v4229 = vmul.f32 %v4209, %v4227
        %4231 = vrot.lane.b32.xlu0 %v4229, 32
        %v4232 = vpop.permute.xlu0 %4231
        %v4234 = vadd.f32 %v4224, %v4232
        %4236 = vrot.lane.b32.xlu0 %v4234, 96
        %v4237 = vpop.permute.xlu0 %4236
        %v4239 = vsel %vm905, %v4237, 0.0
        %4240 = vadd.xlane.f32.xlu0 %v4239
        %v4241 = vpop.xlane.xlu0 %4240
        %v4242 = vmul.f32 %v4241, %v1337
        %v4243 = vsub.f32 %v4234, %v4242
        %v4244 = vmul.f32 %v4243, %v4243
        %4246 = vrot.lane.b32.xlu0 %v4244, 96
        %v4247 = vpop.permute.xlu0 %4246
        %v4249 = vsel %vm905, %v4247, 0.0
        %4250 = vadd.xlane.f32.xlu0 %v4249
        %v4251 = vpop.xlane.xlu0 %4250
        %v4252 = vmul.f32 %v4251, %v1337
        %v4253 = vadd.f32 %v4252, 1e-05
        %v4254 = vrsqrt.pop %v4253
        %v4255 = vmul.f32 %v4243, %v4254
        %v4256 = vmul.f32 %v4255, %v1487
        %v4257 = vadd.f32 %v4256, %v1496
        %v4258 = vtanh.pop %v4257
        %4260 = vrot.lane.b32.xlu0 %v4258, 64
        %v4261 = vpop.permute.xlu0 %4260
        %v4263 = vmul.f32 %v4223, %v4261
        %4265 = vrot.lane.b32.xlu0 %v4263, 32
        %v4266 = vpop.permute.xlu0 %4265
        %v4267 = vsel %vm905, %v4266, 0
        %4269 = vmatprep.subr.mxu0 0.0
        %4270 = vmatpush1.msra.mxu0 0.0
        %4271 = vmatprep.subr.mxu0 0.0
        %4272 = vmatpush1.msra.mxu0 0.0
        %4273 = vmatprep.subr.mxu0 0.0
        %4274 = vmatpush1.msra.mxu0 0.0
        %4275 = vmatprep.subr.mxu0 0.0
        %4276 = vmatpush1.msra.mxu0 0.0
        %4277 = vmatprep.subr.mxu0 0.0
        %4278 = vmatpush1.msra.mxu0 0.0
        %4279 = vmatprep.subr.mxu0 0.0
        %4280 = vmatpush1.msra.mxu0 0.0
        %4281 = vmatprep.subr.mxu0 0.0
        %4282 = vmatpush1.msra.mxu0 0.0
        %4283 = vmatprep.subr.mxu0 0.0
        %4284 = vmatpush1.msra.mxu0 0.0
        %4285 = vmatprep.subr.mxu0 0.0
        %4286 = vmatpush1.msra.mxu0 0.0
        %4287 = vmatprep.subr.mxu0 0.0
        %4288 = vmatpush1.msra.mxu0 0.0
        %4289 = vmatprep.subr.mxu0 0.0
        %4290 = vmatpush1.msra.mxu0 0.0
        %4291 = vmatprep.subr.mxu0 0.0
        %4292 = vmatpush1.msra.mxu0 0.0
        %4293 = vmatprep.subr.mxu0 0.0
        %4294 = vmatpush1.msra.mxu0 %v865
        %4295 = vmatprep.subr.mxu0 0.0
        %4296 = vmatpush1.msra.mxu0 %v864
        %4297 = vmatprep.subr.mxu0 0.0
        %4298 = vmatpush1.msra.mxu0 %v863
        %4299 = vmatprep.subr.mxu0 0.0
        %4300 = vmatpush1.msra.mxu0 %v862
        %4301 = vmatprep.subr.mxu0 0.0
        %4302 = vmatpush2.msra.mxu0 0.0
        %4303 = vmatprep.subr.mxu0 0.0
        %4304 = vmatpush2.msra.mxu0 0.0
        %4305 = vmatprep.subr.mxu0 0.0
        %4306 = vmatpush2.msra.mxu0 0.0
        %4307 = vmatprep.subr.mxu0 0.0
        %4308 = vmatpush2.msra.mxu0 0.0
        %4309 = vmatprep.subr.mxu0 0.0
        %4310 = vmatpush2.msra.mxu0 0.0
        %4311 = vmatprep.subr.mxu0 0.0
        %4312 = vmatpush2.msra.mxu0 0.0
        %4313 = vmatprep.subr.mxu0 0.0
        %4314 = vmatpush2.msra.mxu0 0.0
        %4315 = vmatprep.subr.mxu0 0.0
        %4316 = vmatpush2.msra.mxu0 0.0
        %4317 = vmatprep.subr.mxu0 0.0
        %4318 = vmatpush2.msra.mxu0 0.0
        %4319 = vmatprep.subr.mxu0 0.0
        %4320 = vmatpush2.msra.mxu0 0.0
        %4321 = vmatprep.subr.mxu0 0.0
        %4322 = vmatpush2.msra.mxu0 0.0
        %4323 = vmatprep.subr.mxu0 0.0
        %4324 = vmatpush2.msra.mxu0 0.0
        %4325 = vmatprep.subr.mxu0 0.0
        %4326 = vmatpush2.msra.mxu0 0.0
        %4327 = vmatprep.subr.mxu0 0.0
        %4328 = vmatpush2.msra.mxu0 0.0
        %4329 = vmatprep.subr.mxu0 0.0
        %4330 = vmatpush2.msra.mxu0 0.0
        %4331 = vmatprep.subr.mxu0 0.0
        %4332 = vmatpush2.msra.mxu0 0.0
        %4333 = vmatprep.mubr.f32.mxu0 0.0
        %4334 = vmatmul.mubr.f32.gmra.mxu0 %v4267
        %v4335 = vpop.f32.mrf.mxu0
        %v4336 = vadd.f32 %v1508, %v4335
        %v4337 = vpop.f32.mrf.mxu0
        %4338 = vdwg.mxu0
        %v4339 = vmax.f32 %v4336, 0.0
        %v4341 = vsel %vm905, %v4339, 0
        %4343 = vmatprep.subr.mxu0 0.0
        %4344 = vmatpush1.msra.mxu0 0.0
        %4345 = vmatprep.subr.mxu0 0.0
        %4346 = vmatpush1.msra.mxu0 0.0
        %4347 = vmatprep.subr.mxu0 0.0
        %4348 = vmatpush1.msra.mxu0 0.0
        %4349 = vmatprep.subr.mxu0 0.0
        %4350 = vmatpush1.msra.mxu0 0.0
        %4351 = vmatprep.subr.mxu0 0.0
        %4352 = vmatpush1.msra.mxu0 0.0
        %4353 = vmatprep.subr.mxu0 0.0
        %4354 = vmatpush1.msra.mxu0 0.0
        %4355 = vmatprep.subr.mxu0 0.0
        %4356 = vmatpush1.msra.mxu0 0.0
        %4357 = vmatprep.subr.mxu0 0.0
        %4358 = vmatpush1.msra.mxu0 0.0
        %4359 = vmatprep.subr.mxu0 0.0
        %4360 = vmatpush1.msra.mxu0 0.0
        %4361 = vmatprep.subr.mxu0 0.0
        %4362 = vmatpush1.msra.mxu0 0.0
        %4363 = vmatprep.subr.mxu0 0.0
        %4364 = vmatpush1.msra.mxu0 0.0
        %4365 = vmatprep.subr.mxu0 0.0
        %4366 = vmatpush1.msra.mxu0 0.0
        %4367 = vmatprep.subr.mxu0 0.0
        %4368 = vmatpush1.msra.mxu0 %v869
        %4369 = vmatprep.subr.mxu0 0.0
        %4370 = vmatpush1.msra.mxu0 %v868
        %4371 = vmatprep.subr.mxu0 0.0
        %4372 = vmatpush1.msra.mxu0 %v867
        %4373 = vmatprep.subr.mxu0 0.0
        %4374 = vmatpush1.msra.mxu0 %v866
        %4375 = vmatprep.subr.mxu0 0.0
        %4376 = vmatpush2.msra.mxu0 0.0
        %4377 = vmatprep.subr.mxu0 0.0
        %4378 = vmatpush2.msra.mxu0 0.0
        %4379 = vmatprep.subr.mxu0 0.0
        %4380 = vmatpush2.msra.mxu0 0.0
        %4381 = vmatprep.subr.mxu0 0.0
        %4382 = vmatpush2.msra.mxu0 0.0
        %4383 = vmatprep.subr.mxu0 0.0
        %4384 = vmatpush2.msra.mxu0 0.0
        %4385 = vmatprep.subr.mxu0 0.0
        %4386 = vmatpush2.msra.mxu0 0.0
        %4387 = vmatprep.subr.mxu0 0.0
        %4388 = vmatpush2.msra.mxu0 0.0
        %4389 = vmatprep.subr.mxu0 0.0
        %4390 = vmatpush2.msra.mxu0 0.0
        %4391 = vmatprep.subr.mxu0 0.0
        %4392 = vmatpush2.msra.mxu0 0.0
        %4393 = vmatprep.subr.mxu0 0.0
        %4394 = vmatpush2.msra.mxu0 0.0
        %4395 = vmatprep.subr.mxu0 0.0
        %4396 = vmatpush2.msra.mxu0 0.0
        %4397 = vmatprep.subr.mxu0 0.0
        %4398 = vmatpush2.msra.mxu0 0.0
        %4399 = vmatprep.subr.mxu0 0.0
        %4400 = vmatpush2.msra.mxu0 0.0
        %4401 = vmatprep.subr.mxu0 0.0
        %4402 = vmatpush2.msra.mxu0 0.0
        %4403 = vmatprep.subr.mxu0 0.0
        %4404 = vmatpush2.msra.mxu0 0.0
        %4405 = vmatprep.subr.mxu0 0.0
        %4406 = vmatpush2.msra.mxu0 0.0
        %4407 = vmatprep.mubr.f32.mxu0 0.0
        %4408 = vmatmul.mubr.f32.gmra.mxu0 %v4341
        %v4409 = vpop.f32.mrf.mxu0
        %v4410 = vadd.f32 %v1588, %v4409
        %v4411 = vpop.f32.mrf.mxu0
        %4412 = vdwg.mxu0
        %v4413 = vmax.f32 %v4410, 0.0
        %4414 = vmatprep.subr.mxu0 0.0
        %4415 = vmatpush1.msra.mxu0 0.0
        %4416 = vmatprep.subr.mxu0 0.0
        %4417 = vmatpush1.msra.mxu0 0.0
        %4418 = vmatprep.subr.mxu0 0.0
        %4419 = vmatpush1.msra.mxu0 0.0
        %4420 = vmatprep.subr.mxu0 0.0
        %4421 = vmatpush1.msra.mxu0 0.0
        %4422 = vmatprep.subr.mxu0 0.0
        %4423 = vmatpush1.msra.mxu0 0.0
        %4424 = vmatprep.subr.mxu0 0.0
        %4425 = vmatpush1.msra.mxu0 0.0
        %4426 = vmatprep.subr.mxu0 0.0
        %4427 = vmatpush1.msra.mxu0 0.0
        %4428 = vmatprep.subr.mxu0 0.0
        %4429 = vmatpush1.msra.mxu0 0.0
        %4430 = vmatprep.subr.mxu0 0.0
        %4431 = vmatpush1.msra.mxu0 0.0
        %4432 = vmatprep.subr.mxu0 0.0
        %4433 = vmatpush1.msra.mxu0 0.0
        %4434 = vmatprep.subr.mxu0 0.0
        %4435 = vmatpush1.msra.mxu0 0.0
        %4436 = vmatprep.subr.mxu0 0.0
        %4437 = vmatpush1.msra.mxu0 0.0
        %4438 = vmatprep.subr.mxu0 0.0
        %4439 = vmatpush1.msra.mxu0 0.0
        %4440 = vmatprep.subr.mxu0 0.0
        %4441 = vmatpush1.msra.mxu0 0.0
        %4442 = vmatprep.subr.mxu0 0.0
        %4443 = vmatpush1.msra.mxu0 0.0
        %4444 = vmatprep.subr.mxu0 0.0
        %4445 = vmatpush1.msra.mxu0 %v4413
        %4446 = vmatprep.subr.mxu0 0.0
        %4447 = vmatpush2.msra.mxu0 0.0
        %4448 = vmatprep.subr.mxu0 0.0
        %4449 = vmatpush2.msra.mxu0 0.0
        %4450 = vmatprep.subr.mxu0 0.0
        %4451 = vmatpush2.msra.mxu0 0.0
        %4452 = vmatprep.subr.mxu0 0.0
        %4453 = vmatpush2.msra.mxu0 0.0
        %4454 = vmatprep.subr.mxu0 0.0
        %4455 = vmatpush2.msra.mxu0 0.0
        %4456 = vmatprep.subr.mxu0 0.0
        %4457 = vmatpush2.msra.mxu0 0.0
        %4458 = vmatprep.subr.mxu0 0.0
        %4459 = vmatpush2.msra.mxu0 0.0
        %4460 = vmatprep.subr.mxu0 0.0
        %4461 = vmatpush2.msra.mxu0 0.0
        %4462 = vmatprep.subr.mxu0 0.0
        %4463 = vmatpush2.msra.mxu0 0.0
        %4464 = vmatprep.subr.mxu0 0.0
        %4465 = vmatpush2.msra.mxu0 0.0
        %4466 = vmatprep.subr.mxu0 0.0
        %4467 = vmatpush2.msra.mxu0 0.0
        %4468 = vmatprep.subr.mxu0 0.0
        %4469 = vmatpush2.msra.mxu0 0.0
        %4470 = vmatprep.subr.mxu0 0.0
        %4471 = vmatpush2.msra.mxu0 0.0
        %4472 = vmatprep.subr.mxu0 0.0
        %4473 = vmatpush2.msra.mxu0 0.0
        %4474 = vmatprep.subr.mxu0 0.0
        %4475 = vmatpush2.msra.mxu0 0.0
        %4476 = vmatprep.subr.mxu0 0.0
        %4477 = vmatpush2.msra.mxu0 0.0
        %4478 = vmatprep.mubr.f32.mxu0 0.0
        %4479 = vmatmul.mubr.f32.gmra.mxu0 %v1665
        %v4480 = vpop.f32.mrf.mxu0
        %v4481 = vadd.f32 0.0, %v4480
        %v4482 = vpop.f32.mrf.mxu0
        %4483 = vmatprep.mubr.f32.mxu0 0.0
        %4484 = vmatmul.mubr.f32.gmra.mxu0 %v1668
        %v4485 = vpop.f32.mrf.mxu0
        %v4486 = vadd.f32 0.0, %v4485
        %v4487 = vpop.f32.mrf.mxu0
        %4488 = vdwg.mxu0
        %4491 = vmatprep.subr.mxu0 0.0
        %4492 = vmatpush1.msra.mxu0 0.0
        %4493 = vmatprep.subr.mxu0 0.0
        %4494 = vmatpush1.msra.mxu0 0.0
        %4495 = vmatprep.subr.mxu0 0.0
        %4496 = vmatpush1.msra.mxu0 0.0
        %4497 = vmatprep.subr.mxu0 0.0
        %4498 = vmatpush1.msra.mxu0 0.0
        %4499 = vmatprep.subr.mxu0 0.0
        %4500 = vmatpush1.msra.mxu0 0.0
        %4501 = vmatprep.subr.mxu0 0.0
        %4502 = vmatpush1.msra.mxu0 0.0
        %4503 = vmatprep.subr.mxu0 0.0
        %4504 = vmatpush1.msra.mxu0 0.0
        %4505 = vmatprep.subr.mxu0 0.0
        %4506 = vmatpush1.msra.mxu0 0.0
        %4507 = vmatprep.subr.mxu0 0.0
        %4508 = vmatpush1.msra.mxu0 0.0
        %4509 = vmatprep.subr.mxu0 0.0
        %4510 = vmatpush1.msra.mxu0 0.0
        %4511 = vmatprep.subr.mxu0 0.0
        %4512 = vmatpush1.msra.mxu0 0.0
        %4513 = vmatprep.subr.mxu0 0.0
        %4514 = vmatpush1.msra.mxu0 0.0
        %4515 = vmatprep.subr.mxu0 0.0
        %4516 = vmatpush1.msra.mxu0 0.0
        %4517 = vmatprep.subr.mxu0 0.0
        %4518 = vmatpush1.msra.mxu0 0.0
        %4519 = vmatprep.subr.mxu0 0.0
        %4520 = vmatpush1.msra.mxu0 %v3743
        %4521 = vmatprep.subr.mxu0 0.0
        %4522 = vmatpush1.msra.mxu0 %v3741
        %4523 = vmatprep.subr.mxu0 0.0
        %4524 = vmatpush2.msra.mxu0 0.0
        %4525 = vmatprep.subr.mxu0 0.0
        %4526 = vmatpush2.msra.mxu0 0.0
        %4527 = vmatprep.subr.mxu0 0.0
        %4528 = vmatpush2.msra.mxu0 0.0
        %4529 = vmatprep.subr.mxu0 0.0
        %4530 = vmatpush2.msra.mxu0 0.0
        %4531 = vmatprep.subr.mxu0 0.0
        %4532 = vmatpush2.msra.mxu0 0.0
        %4533 = vmatprep.subr.mxu0 0.0
        %4534 = vmatpush2.msra.mxu0 0.0
        %4535 = vmatprep.subr.mxu0 0.0
        %4536 = vmatpush2.msra.mxu0 0.0
        %4537 = vmatprep.subr.mxu0 0.0
        %4538 = vmatpush2.msra.mxu0 0.0
        %4539 = vmatprep.subr.mxu0 0.0
        %4540 = vmatpush2.msra.mxu0 0.0
        %4541 = vmatprep.subr.mxu0 0.0
        %4542 = vmatpush2.msra.mxu0 0.0
        %4543 = vmatprep.subr.mxu0 0.0
        %4544 = vmatpush2.msra.mxu0 0.0
        %4545 = vmatprep.subr.mxu0 0.0
        %4546 = vmatpush2.msra.mxu0 0.0
        %4547 = vmatprep.subr.mxu0 0.0
        %4548 = vmatpush2.msra.mxu0 0.0
        %4549 = vmatprep.subr.mxu0 0.0
        %4550 = vmatpush2.msra.mxu0 0.0
        %4551 = vmatprep.subr.mxu0 0.0
        %4552 = vmatpush2.msra.mxu0 0.0
        %4553 = vmatprep.subr.mxu0 0.0
        %4554 = vmatpush2.msra.mxu0 0.0
        %4555 = vmatprep.mubr.f32.mxu0 0.0
        %4556 = vmatmul.mubr.f32.gmra.mxu0 %v1746
        %v4557 = vpop.f32.mrf.mxu0
        %v4558 = vadd.f32 0.0, %v4557
        %v4559 = vpop.f32.mrf.mxu0
        %4560 = vmatprep.mubr.f32.mxu0 0.0
        %4561 = vmatmul.mubr.f32.gmra.mxu0 %v1749
        %v4562 = vpop.f32.mrf.mxu0
        %v4563 = vadd.f32 0.0, %v4562
        %v4564 = vpop.f32.mrf.mxu0
        %4565 = vdwg.mxu0
        %v4567 = vsel %vm905, %v4558, 0
        %v4570 = vsel %vm905, %v4563, 0
        %4572 = vmatprep.subr.mxu0 0.0
        %4573 = vmatpush1.msra.mxu0 0.0
        %4574 = vmatprep.subr.mxu0 0.0
        %4575 = vmatpush1.msra.mxu0 0.0
        %4576 = vmatprep.subr.mxu0 0.0
        %4577 = vmatpush1.msra.mxu0 0.0
        %4578 = vmatprep.subr.mxu0 0.0
        %4579 = vmatpush1.msra.mxu0 0.0
        %4580 = vmatprep.subr.mxu0 0.0
        %4581 = vmatpush1.msra.mxu0 0.0
        %4582 = vmatprep.subr.mxu0 0.0
        %4583 = vmatpush1.msra.mxu0 0.0
        %4584 = vmatprep.subr.mxu0 0.0
        %4585 = vmatpush1.msra.mxu0 0.0
        %4586 = vmatprep.subr.mxu0 0.0
        %4587 = vmatpush1.msra.mxu0 0.0
        %4588 = vmatprep.subr.mxu0 0.0
        %4589 = vmatpush1.msra.mxu0 0.0
        %4590 = vmatprep.subr.mxu0 0.0
        %4591 = vmatpush1.msra.mxu0 0.0
        %4592 = vmatprep.subr.mxu0 0.0
        %4593 = vmatpush1.msra.mxu0 0.0
        %4594 = vmatprep.subr.mxu0 0.0
        %4595 = vmatpush1.msra.mxu0 0.0
        %4596 = vmatprep.subr.mxu0 0.0
        %4597 = vmatpush1.msra.mxu0 %v891
        %4598 = vmatprep.subr.mxu0 0.0
        %4599 = vmatpush1.msra.mxu0 %v890
        %4600 = vmatprep.subr.mxu0 0.0
        %4601 = vmatpush1.msra.mxu0 %v889
        %4602 = vmatprep.subr.mxu0 0.0
        %4603 = vmatpush1.msra.mxu0 %v888
        %4604 = vmatprep.subr.mxu0 0.0
        %4605 = vmatpush2.msra.mxu0 0.0
        %4606 = vmatprep.subr.mxu0 0.0
        %4607 = vmatpush2.msra.mxu0 0.0
        %4608 = vmatprep.subr.mxu0 0.0
        %4609 = vmatpush2.msra.mxu0 0.0
        %4610 = vmatprep.subr.mxu0 0.0
        %4611 = vmatpush2.msra.mxu0 0.0
        %4612 = vmatprep.subr.mxu0 0.0
        %4613 = vmatpush2.msra.mxu0 0.0
        %4614 = vmatprep.subr.mxu0 0.0
        %4615 = vmatpush2.msra.mxu0 0.0
        %4616 = vmatprep.subr.mxu0 0.0
        %4617 = vmatpush2.msra.mxu0 0.0
        %4618 = vmatprep.subr.mxu0 0.0
        %4619 = vmatpush2.msra.mxu0 0.0
        %4620 = vmatprep.subr.mxu0 0.0
        %4621 = vmatpush2.msra.mxu0 0.0
        %4622 = vmatprep.subr.mxu0 0.0
        %4623 = vmatpush2.msra.mxu0 0.0
        %4624 = vmatprep.subr.mxu0 0.0
        %4625 = vmatpush2.msra.mxu0 0.0
        %4626 = vmatprep.subr.mxu0 0.0
        %4627 = vmatpush2.msra.mxu0 0.0
        %4628 = vmatprep.subr.mxu0 0.0
        %4629 = vmatpush2.msra.mxu0 0.0
        %4630 = vmatprep.subr.mxu0 0.0
        %4631 = vmatpush2.msra.mxu0 0.0
        %4632 = vmatprep.subr.mxu0 0.0
        %4633 = vmatpush2.msra.mxu0 0.0
        %4634 = vmatprep.subr.mxu0 0.0
        %4635 = vmatpush2.msra.mxu0 0.0
        %4636 = vmatprep.mubr.f32.mxu0 0.0
        %4637 = vmatmul.mubr.f32.gmra.mxu0 %v4567
        %v4638 = vpop.f32.mrf.mxu0
        %v4639 = vadd.f32 0.0, %v4638
        %v4640 = vpop.f32.mrf.mxu0
        %4641 = vmatprep.mubr.f32.mxu0 0.0
        %4642 = vmatmul.mubr.f32.gmra.mxu0 %v4570
        %v4643 = vpop.f32.mrf.mxu0
        %v4644 = vadd.f32 0.0, %v4643
        %v4645 = vpop.f32.mrf.mxu0
        %4646 = vdwg.mxu0
        %v4648 = vsel %vm905, %v4481, 0
        %v4651 = vsel %vm905, %v4486, 0
        %4653 = vmatprep.subr.mxu0 0.0
        %4654 = vmatpush1.msra.mxu0 0.0
        %4655 = vmatprep.subr.mxu0 0.0
        %4656 = vmatpush1.msra.mxu0 0.0
        %4657 = vmatprep.subr.mxu0 0.0
        %4658 = vmatpush1.msra.mxu0 0.0
        %4659 = vmatprep.subr.mxu0 0.0
        %4660 = vmatpush1.msra.mxu0 0.0
        %4661 = vmatprep.subr.mxu0 0.0
        %4662 = vmatpush1.msra.mxu0 0.0
        %4663 = vmatprep.subr.mxu0 0.0
        %4664 = vmatpush1.msra.mxu0 0.0
        %4665 = vmatprep.subr.mxu0 0.0
        %4666 = vmatpush1.msra.mxu0 0.0
        %4667 = vmatprep.subr.mxu0 0.0
        %4668 = vmatpush1.msra.mxu0 0.0
        %4669 = vmatprep.subr.mxu0 0.0
        %4670 = vmatpush1.msra.mxu0 0.0
        %4671 = vmatprep.subr.mxu0 0.0
        %4672 = vmatpush1.msra.mxu0 0.0
        %4673 = vmatprep.subr.mxu0 0.0
        %4674 = vmatpush1.msra.mxu0 0.0
        %4675 = vmatprep.subr.mxu0 0.0
        %4676 = vmatpush1.msra.mxu0 0.0
        %4677 = vmatprep.subr.mxu0 0.0
        %4678 = vmatpush1.msra.mxu0 %v887
        %4679 = vmatprep.subr.mxu0 0.0
        %4680 = vmatpush1.msra.mxu0 %v886
        %4681 = vmatprep.subr.mxu0 0.0
        %4682 = vmatpush1.msra.mxu0 %v885
        %4683 = vmatprep.subr.mxu0 0.0
        %4684 = vmatpush1.msra.mxu0 %v884
        %4685 = vmatprep.subr.mxu0 0.0
        %4686 = vmatpush2.msra.mxu0 0.0
        %4687 = vmatprep.subr.mxu0 0.0
        %4688 = vmatpush2.msra.mxu0 0.0
        %4689 = vmatprep.subr.mxu0 0.0
        %4690 = vmatpush2.msra.mxu0 0.0
        %4691 = vmatprep.subr.mxu0 0.0
        %4692 = vmatpush2.msra.mxu0 0.0
        %4693 = vmatprep.subr.mxu0 0.0
        %4694 = vmatpush2.msra.mxu0 0.0
        %4695 = vmatprep.subr.mxu0 0.0
        %4696 = vmatpush2.msra.mxu0 0.0
        %4697 = vmatprep.subr.mxu0 0.0
        %4698 = vmatpush2.msra.mxu0 0.0
        %4699 = vmatprep.subr.mxu0 0.0
        %4700 = vmatpush2.msra.mxu0 0.0
        %4701 = vmatprep.subr.mxu0 0.0
        %4702 = vmatpush2.msra.mxu0 0.0
        %4703 = vmatprep.subr.mxu0 0.0
        %4704 = vmatpush2.msra.mxu0 0.0
        %4705 = vmatprep.subr.mxu0 0.0
        %4706 = vmatpush2.msra.mxu0 0.0
        %4707 = vmatprep.subr.mxu0 0.0
        %4708 = vmatpush2.msra.mxu0 0.0
        %4709 = vmatprep.subr.mxu0 0.0
        %4710 = vmatpush2.msra.mxu0 0.0
        %4711 = vmatprep.subr.mxu0 0.0
        %4712 = vmatpush2.msra.mxu0 0.0
        %4713 = vmatprep.subr.mxu0 0.0
        %4714 = vmatpush2.msra.mxu0 0.0
        %4715 = vmatprep.subr.mxu0 0.0
        %4716 = vmatpush2.msra.mxu0 0.0
        %4717 = vmatprep.mubr.f32.mxu0 0.0
        %4718 = vmatmul.mubr.f32.gmra.mxu0 %v4648
        %v4719 = vpop.f32.mrf.mxu0
        %v4720 = vadd.f32 %v4639, %v4719
        %v4721 = vpop.f32.mrf.mxu0
        %4722 = vmatprep.mubr.f32.mxu0 0.0
        %4723 = vmatmul.mubr.f32.gmra.mxu0 %v4651
        %v4724 = vpop.f32.mrf.mxu0
        %v4725 = vadd.f32 %v4644, %v4724
        %v4726 = vpop.f32.mrf.mxu0
        %4727 = vdwg.mxu0
        %4728 = vmatprep.subr.mxu0 0.0
        %4729 = vmatpush1.msra.mxu0 0.0
        %4730 = vmatprep.subr.mxu0 0.0
        %4731 = vmatpush1.msra.mxu0 0.0
        %4732 = vmatprep.subr.mxu0 0.0
        %4733 = vmatpush1.msra.mxu0 0.0
        %4734 = vmatprep.subr.mxu0 0.0
        %4735 = vmatpush1.msra.mxu0 0.0
        %4736 = vmatprep.subr.mxu0 0.0
        %4737 = vmatpush1.msra.mxu0 0.0
        %4738 = vmatprep.subr.mxu0 0.0
        %4739 = vmatpush1.msra.mxu0 0.0
        %4740 = vmatprep.subr.mxu0 0.0
        %4741 = vmatpush1.msra.mxu0 0.0
        %4742 = vmatprep.subr.mxu0 0.0
        %4743 = vmatpush1.msra.mxu0 0.0
        %4744 = vmatprep.subr.mxu0 0.0
        %4745 = vmatpush1.msra.mxu0 0.0
        %4746 = vmatprep.subr.mxu0 0.0
        %4747 = vmatpush1.msra.mxu0 0.0
        %4748 = vmatprep.subr.mxu0 0.0
        %4749 = vmatpush1.msra.mxu0 0.0
        %4750 = vmatprep.subr.mxu0 0.0
        %4751 = vmatpush1.msra.mxu0 0.0
        %4752 = vmatprep.subr.mxu0 0.0
        %4753 = vmatpush1.msra.mxu0 %v895
        %4754 = vmatprep.subr.mxu0 0.0
        %4755 = vmatpush1.msra.mxu0 %v894
        %4756 = vmatprep.subr.mxu0 0.0
        %4757 = vmatpush1.msra.mxu0 %v893
        %4758 = vmatprep.subr.mxu0 0.0
        %4759 = vmatpush1.msra.mxu0 %v892
        %4760 = vmatprep.subr.mxu0 0.0
        %4761 = vmatpush2.msra.mxu0 0.0
        %4762 = vmatprep.subr.mxu0 0.0
        %4763 = vmatpush2.msra.mxu0 0.0
        %4764 = vmatprep.subr.mxu0 0.0
        %4765 = vmatpush2.msra.mxu0 0.0
        %4766 = vmatprep.subr.mxu0 0.0
        %4767 = vmatpush2.msra.mxu0 0.0
        %4768 = vmatprep.subr.mxu0 0.0
        %4769 = vmatpush2.msra.mxu0 0.0
        %4770 = vmatprep.subr.mxu0 0.0
        %4771 = vmatpush2.msra.mxu0 0.0
        %4772 = vmatprep.subr.mxu0 0.0
        %4773 = vmatpush2.msra.mxu0 0.0
        %4774 = vmatprep.subr.mxu0 0.0
        %4775 = vmatpush2.msra.mxu0 0.0
        %4776 = vmatprep.subr.mxu0 0.0
        %4777 = vmatpush2.msra.mxu0 0.0
        %4778 = vmatprep.subr.mxu0 0.0
        %4779 = vmatpush2.msra.mxu0 0.0
        %4780 = vmatprep.subr.mxu0 0.0
        %4781 = vmatpush2.msra.mxu0 0.0
        %4782 = vmatprep.subr.mxu0 0.0
        %4783 = vmatpush2.msra.mxu0 0.0
        %4784 = vmatprep.subr.mxu0 0.0
        %4785 = vmatpush2.msra.mxu0 0.0
        %4786 = vmatprep.subr.mxu0 0.0
        %4787 = vmatpush2.msra.mxu0 0.0
        %4788 = vmatprep.subr.mxu0 0.0
        %4789 = vmatpush2.msra.mxu0 0.0
        %4790 = vmatprep.subr.mxu0 0.0
        %4791 = vmatpush2.msra.mxu0 0.0
        %4792 = vmatprep.mubr.f32.mxu0 0.0
        %4793 = vmatmul.mubr.f32.gmra.mxu0 %v3744
        %v4794 = vpop.f32.mrf.mxu0
        %v4795 = vadd.f32 0.0, %v4794
        %v4796 = vpop.f32.mrf.mxu0
        %4797 = vmatprep.mubr.f32.mxu0 0.0
        %4798 = vmatmul.mubr.f32.gmra.mxu0 %v3746
        %v4799 = vpop.f32.mrf.mxu0
        %v4800 = vadd.f32 0.0, %v4799
        %v4801 = vpop.f32.mrf.mxu0
        %4802 = vdwg.mxu0
        %v4803 = vadd.f32 %v4720, %v4795
        %v4804 = vadd.f32 %v4725, %v4800
        %v4805 = vadd.f32 %v4803, %v2069
        %v4806 = vadd.f32 %v4804, %v2069
        %v4807 = vsel %vm905, %v4805, 0.0
        %4808 = vadd.xlane.f32.xlu0 %v4807
        %v4809 = vpop.xlane.xlu0 %4808
        %v4810 = vsel %vm905, %v4806, 0.0
        %4811 = vadd.xlane.f32.xlu0 %v4810
        %v4812 = vpop.xlane.xlu0 %4811
        %v4813 = vmul.f32 %v4809, %v1337
        %v4814 = vmul.f32 %v4812, %v1337
        %v4815 = vsub.f32 %v4805, %v4813
        %v4816 = vsub.f32 %v4806, %v4814
        %v4817 = vmul.f32 %v4815, %v4815
        %v4818 = vmul.f32 %v4816, %v4816
        %v4819 = vsel %vm905, %v4817, 0.0
        %4820 = vadd.xlane.f32.xlu0 %v4819
        %v4821 = vpop.xlane.xlu0 %4820
        %v4822 = vsel %vm905, %v4818, 0.0
        %4823 = vadd.xlane.f32.xlu0 %v4822
        %v4824 = vpop.xlane.xlu0 %4823
        %v4825 = vmul.f32 %v4821, %v1337
        %v4826 = vmul.f32 %v4824, %v1337
        %v4827 = vadd.f32 %v4825, 1e-05
        %v4828 = vadd.f32 %v4826, 1e-05
        %v4829 = vrsqrt.pop %v4827
        %v4830 = vrsqrt.pop %v4828
        %v4831 = vmul.f32 %v4815, %v4829
        %v4832 = vmul.f32 %v4816, %v4830
        %v4833 = vmul.f32 %v4831, %v2103
        %v4834 = vmul.f32 %v4832, %v2103
        %v4835 = vadd.f32 %v4833, %v2111
        %v4836 = vadd.f32 %v4834, %v2111
        %4839 = vrot.lane.b32.xlu0 %v4805, 96
        %v4840 = vpop.permute.xlu0 %4839
        %4841 = vrot.lane.b32.xlu0 %v4806, 96
        %v4842 = vpop.permute.xlu0 %4841
        %v4845 = vsel %vm905, %v4840, 0.0
        %4846 = vadd.xlane.f32.xlu0 %v4845
        %v4847 = vpop.xlane.xlu0 %4846
        %v4848 = vsel %vm905, %v4842, 0.0
        %4849 = vadd.xlane.f32.xlu0 %v4848
        %v4850 = vpop.xlane.xlu0 %4849
        %v4851 = vmul.f32 %v4847, %v1337
        %v4852 = vmul.f32 %v4850, %v1337
        %v4853 = vsub.f32 %v4805, %v4851
        %v4854 = vsub.f32 %v4806, %v4852
        %v4855 = vmul.f32 %v4853, %v4853
        %v4856 = vmul.f32 %v4854, %v4854
        %4859 = vrot.lane.b32.xlu0 %v4855, 96
        %v4860 = vpop.permute.xlu0 %4859
        %4861 = vrot.lane.b32.xlu0 %v4856, 96
        %v4862 = vpop.permute.xlu0 %4861
        %v4865 = vsel %vm905, %v4860, 0.0
        %4866 = vadd.xlane.f32.xlu0 %v4865
        %v4867 = vpop.xlane.xlu0 %4866
        %v4868 = vsel %vm905, %v4862, 0.0
        %4869 = vadd.xlane.f32.xlu0 %v4868
        %v4870 = vpop.xlane.xlu0 %4869
        %v4871 = vmul.f32 %v4867, %v1337
        %v4872 = vmul.f32 %v4870, %v1337
        %v4873 = vadd.f32 %v4871, 1e-05
        %v4874 = vadd.f32 %v4872, 1e-05
        %v4875 = vrsqrt.pop %v4873
        %v4876 = vrsqrt.pop %v4874
        %v4877 = vmul.f32 %v4853, %v4875
        %v4878 = vmul.f32 %v4854, %v4876
        %v4879 = vmul.f32 %v4877, %v2103
        %v4880 = vmul.f32 %v4878, %v2103
        %v4881 = vadd.f32 %v4879, %v2111
        %v4882 = vadd.f32 %v4880, %v2111
        %4883 = vrot.lane.b32.xlu0 %v4805, 64
        %v4884 = vpop.permute.xlu0 %4883
        %4885 = vrot.lane.b32.xlu0 %v4806, 64
        %v4886 = vpop.permute.xlu0 %4885
        %v4889 = vsel %vm905, %v4884, 0.0
        %4890 = vadd.xlane.f32.xlu0 %v4889
        %v4891 = vpop.xlane.xlu0 %4890
        %v4892 = vsel %vm905, %v4886, 0.0
        %4893 = vadd.xlane.f32.xlu0 %v4892
        %v4894 = vpop.xlane.xlu0 %4893
        %v4895 = vmul.f32 %v4891, %v1337
        %v4896 = vmul.f32 %v4894, %v1337
        %v4897 = vsub.f32 %v4805, %v4895
        %v4898 = vsub.f32 %v4806, %v4896
        %v4899 = vmul.f32 %v4897, %v4897
        %v4900 = vmul.f32 %v4898, %v4898
        %4903 = vrot.lane.b32.xlu0 %v4899, 64
        %v4904 = vpop.permute.xlu0 %4903
        %4905 = vrot.lane.b32.xlu0 %v4900, 64
        %v4906 = vpop.permute.xlu0 %4905
        %v4909 = vsel %vm905, %v4904, 0.0
        %4910 = vadd.xlane.f32.xlu0 %v4909
        %v4911 = vpop.xlane.xlu0 %4910
        %v4912 = vsel %vm905, %v4906, 0.0
        %4913 = vadd.xlane.f32.xlu0 %v4912
        %v4914 = vpop.xlane.xlu0 %4913
        %v4915 = vmul.f32 %v4911, %v1337
        %v4916 = vmul.f32 %v4914, %v1337
        %v4917 = vadd.f32 %v4915, 1e-05
        %v4918 = vadd.f32 %v4916, 1e-05
        %v4919 = vrsqrt.pop %v4917
        %v4920 = vrsqrt.pop %v4918
        %v4921 = vmul.f32 %v4897, %v4919
        %v4922 = vmul.f32 %v4898, %v4920
        %v4923 = vmul.f32 %v4921, %v2103
        %v4924 = vmul.f32 %v4922, %v2103
        %v4925 = vadd.f32 %v4923, %v2111
        %v4926 = vadd.f32 %v4924, %v2111
        %4927 = vrot.lane.b32.xlu0 %v4805, 32
        %v4928 = vpop.permute.xlu0 %4927
        %4929 = vrot.lane.b32.xlu0 %v4806, 32
        %v4930 = vpop.permute.xlu0 %4929
        %v4933 = vsel %vm905, %v4928, 0.0
        %4934 = vadd.xlane.f32.xlu0 %v4933
        %v4935 = vpop.xlane.xlu0 %4934
        %v4936 = vsel %vm905, %v4930, 0.0
        %4937 = vadd.xlane.f32.xlu0 %v4936
        %v4938 = vpop.xlane.xlu0 %4937
        %v4939 = vmul.f32 %v4935, %v1337
        %v4940 = vmul.f32 %v4938, %v1337
        %v4941 = vsub.f32 %v4805, %v4939
        %v4942 = vsub.f32 %v4806, %v4940
        %v4943 = vmul.f32 %v4941, %v4941
        %v4944 = vmul.f32 %v4942, %v4942
        %4947 = vrot.lane.b32.xlu0 %v4943, 32
        %v4948 = vpop.permute.xlu0 %4947
        %4949 = vrot.lane.b32.xlu0 %v4944, 32
        %v4950 = vpop.permute.xlu0 %4949
        %v4953 = vsel %vm905, %v4948, 0.0
        %4954 = vadd.xlane.f32.xlu0 %v4953
        %v4955 = vpop.xlane.xlu0 %4954
        %v4956 = vsel %vm905, %v4950, 0.0
        %4957 = vadd.xlane.f32.xlu0 %v4956
        %v4958 = vpop.xlane.xlu0 %4957
        %v4959 = vmul.f32 %v4955, %v1337
        %v4960 = vmul.f32 %v4958, %v1337
        %v4961 = vadd.f32 %v4959, 1e-05
        %v4962 = vadd.f32 %v4960, 1e-05
        %v4963 = vrsqrt.pop %v4961
        %v4964 = vrsqrt.pop %v4962
        %v4965 = vmul.f32 %v4941, %v4963
        %v4966 = vmul.f32 %v4942, %v4964
        %v4967 = vmul.f32 %v4965, %v2103
        %v4968 = vmul.f32 %v4966, %v2103
        %v4969 = vadd.f32 %v4967, %v2111
        %v4970 = vadd.f32 %v4968, %v2111
        %v4971 = vxor.u32 %v4835, 2147483648
        %v4972 = vxor.u32 %v4836, 2147483648
        %v4973 = vmul.f32 %v4971, 1.442695
        %v4974 = vpow.pop %v4973
        %v4975 = vmul.f32 %v4972, 1.442695
        %v4976 = vpow.pop %v4975
        %v4977 = vadd.f32 %v4974, 1.0
        %v4978 = vadd.f32 %v4976, 1.0
        %v4979 = vrcp.pop %v4977
        %v4980 = vmul.f32 1.0, %v4979
        %v4981 = vrcp.pop %v4978
        %v4982 = vmul.f32 1.0, %v4981
        %v4983 = vadd.f32 %v4881, 1.0
        %v4984 = vadd.f32 %v4882, 1.0
        %v4985 = vxor.u32 %v4983, 2147483648
        %v4986 = vxor.u32 %v4984, 2147483648
        %v4987 = vmul.f32 %v4985, 1.442695
        %v4988 = vpow.pop %v4987
        %v4989 = vmul.f32 %v4986, 1.442695
        %v4990 = vpow.pop %v4989
        %v4991 = vadd.f32 %v4988, 1.0
        %v4992 = vadd.f32 %v4990, 1.0
        %v4993 = vrcp.pop %v4991
        %v4994 = vmul.f32 1.0, %v4993
        %v4995 = vrcp.pop %v4992
        %v4996 = vmul.f32 1.0, %v4995
        %v4997 = vtanh.pop %v4925
        %v4998 = vtanh.pop %v4926
        %v4999 = vxor.u32 %v4969, 2147483648
        %v5000 = vxor.u32 %v4970, 2147483648
        %v5001 = vmul.f32 %v4999, 1.442695
        %v5002 = vpow.pop %v5001
        %v5003 = vmul.f32 %v5000, 1.442695
        %v5004 = vpow.pop %v5003
        %v5005 = vadd.f32 %v5002, 1.0
        %v5006 = vadd.f32 %v5004, 1.0
        %v5007 = vrcp.pop %v5005
        %v5008 = vmul.f32 1.0, %v5007
        %v5009 = vrcp.pop %v5006
        %v5010 = vmul.f32 1.0, %v5009
        %v5011 = vmul.f32 %v4994, %v3678
        %v5012 = vmul.f32 %v4996, %v3679
        %5015 = vrot.lane.b32.xlu0 %v4997, 64
        %v5016 = vpop.permute.xlu0 %5015
        %5017 = vrot.lane.b32.xlu0 %v4998, 64
        %v5018 = vpop.permute.xlu0 %5017
        %v5021 = vmul.f32 %v4980, %v5016
        %v5022 = vmul.f32 %v4982, %v5018
        %5025 = vrot.lane.b32.xlu0 %v5021, 32
        %v5026 = vpop.permute.xlu0 %5025
        %5027 = vrot.lane.b32.xlu0 %v5022, 32
        %v5028 = vpop.permute.xlu0 %5027
        %v5031 = vadd.f32 %v5011, %v5026
        %v5032 = vadd.f32 %v5012, %v5028
        %5035 = vrot.lane.b32.xlu0 %v5031, 96
        %v5036 = vpop.permute.xlu0 %5035
        %5037 = vrot.lane.b32.xlu0 %v5032, 96
        %v5038 = vpop.permute.xlu0 %5037
        %v5041 = vsel %vm905, %v5036, 0.0
        %5042 = vadd.xlane.f32.xlu0 %v5041
        %v5043 = vpop.xlane.xlu0 %5042
        %v5044 = vsel %vm905, %v5038, 0.0
        %5045 = vadd.xlane.f32.xlu0 %v5044
        %v5046 = vpop.xlane.xlu0 %5045
        %v5047 = vmul.f32 %v5043, %v1337
        %v5048 = vmul.f32 %v5046, %v1337
        %v5049 = vsub.f32 %v5031, %v5047
        %v5050 = vsub.f32 %v5032, %v5048
        %v5051 = vmul.f32 %v5049, %v5049
        %v5052 = vmul.f32 %v5050, %v5050
        %5055 = vrot.lane.b32.xlu0 %v5051, 96
        %v5056 = vpop.permute.xlu0 %5055
        %5057 = vrot.lane.b32.xlu0 %v5052, 96
        %v5058 = vpop.permute.xlu0 %5057
        %v5061 = vsel %vm905, %v5056, 0.0
        %5062 = vadd.xlane.f32.xlu0 %v5061
        %v5063 = vpop.xlane.xlu0 %5062
        %v5064 = vsel %vm905, %v5058, 0.0
        %5065 = vadd.xlane.f32.xlu0 %v5064
        %v5066 = vpop.xlane.xlu0 %5065
        %v5067 = vmul.f32 %v5063, %v1337
        %v5068 = vmul.f32 %v5066, %v1337
        %v5069 = vadd.f32 %v5067, 1e-05
        %v5070 = vadd.f32 %v5068, 1e-05
        %v5071 = vrsqrt.pop %v5069
        %v5072 = vrsqrt.pop %v5070
        %v5073 = vmul.f32 %v5049, %v5071
        %v5074 = vmul.f32 %v5050, %v5072
        %v5075 = vmul.f32 %v5073, %v2359
        %v5076 = vmul.f32 %v5074, %v2359
        %v5077 = vadd.f32 %v5075, %v2369
        %v5078 = vadd.f32 %v5076, %v2369
        %v5079 = vtanh.pop %v5077
        %v5080 = vtanh.pop %v5078
        %5083 = vrot.lane.b32.xlu0 %v5079, 64
        %v5084 = vpop.permute.xlu0 %5083
        %5085 = vrot.lane.b32.xlu0 %v5080, 64
        %v5086 = vpop.permute.xlu0 %5085
        %v5089 = vmul.f32 %v5008, %v5084
        %v5090 = vmul.f32 %v5010, %v5086
        %5093 = vrot.lane.b32.xlu0 %v5089, 32
        %v5094 = vpop.permute.xlu0 %5093
        %5095 = vrot.lane.b32.xlu0 %v5090, 32
        %v5096 = vpop.permute.xlu0 %5095
        %v5097 = vsel %vm905, %v5094, 0
        %v5099 = vsel %vm905, %v5096, 0
        %5101 = vmatprep.subr.mxu0 0.0
        %5102 = vmatpush1.msra.mxu0 0.0
        %5103 = vmatprep.subr.mxu0 0.0
        %5104 = vmatpush1.msra.mxu0 0.0
        %5105 = vmatprep.subr.mxu0 0.0
        %5106 = vmatpush1.msra.mxu0 0.0
        %5107 = vmatprep.subr.mxu0 0.0
        %5108 = vmatpush1.msra.mxu0 0.0
        %5109 = vmatprep.subr.mxu0 0.0
        %5110 = vmatpush1.msra.mxu0 0.0
        %5111 = vmatprep.subr.mxu0 0.0
        %5112 = vmatpush1.msra.mxu0 0.0
        %5113 = vmatprep.subr.mxu0 0.0
        %5114 = vmatpush1.msra.mxu0 0.0
        %5115 = vmatprep.subr.mxu0 0.0
        %5116 = vmatpush1.msra.mxu0 0.0
        %5117 = vmatprep.subr.mxu0 0.0
        %5118 = vmatpush1.msra.mxu0 0.0
        %5119 = vmatprep.subr.mxu0 0.0
        %5120 = vmatpush1.msra.mxu0 0.0
        %5121 = vmatprep.subr.mxu0 0.0
        %5122 = vmatpush1.msra.mxu0 0.0
        %5123 = vmatprep.subr.mxu0 0.0
        %5124 = vmatpush1.msra.mxu0 0.0
        %5125 = vmatprep.subr.mxu0 0.0
        %5126 = vmatpush1.msra.mxu0 %v856
        %5127 = vmatprep.subr.mxu0 0.0
        %5128 = vmatpush1.msra.mxu0 %v855
        %5129 = vmatprep.subr.mxu0 0.0
        %5130 = vmatpush1.msra.mxu0 %v854
        %5131 = vmatprep.subr.mxu0 0.0
        %5132 = vmatpush1.msra.mxu0 %v853
        %5133 = vmatprep.subr.mxu0 0.0
        %5134 = vmatpush2.msra.mxu0 0.0
        %5135 = vmatprep.subr.mxu0 0.0
        %5136 = vmatpush2.msra.mxu0 0.0
        %5137 = vmatprep.subr.mxu0 0.0
        %5138 = vmatpush2.msra.mxu0 0.0
        %5139 = vmatprep.subr.mxu0 0.0
        %5140 = vmatpush2.msra.mxu0 0.0
        %5141 = vmatprep.subr.mxu0 0.0
        %5142 = vmatpush2.msra.mxu0 0.0
        %5143 = vmatprep.subr.mxu0 0.0
        %5144 = vmatpush2.msra.mxu0 0.0
        %5145 = vmatprep.subr.mxu0 0.0
        %5146 = vmatpush2.msra.mxu0 0.0
        %5147 = vmatprep.subr.mxu0 0.0
        %5148 = vmatpush2.msra.mxu0 0.0
        %5149 = vmatprep.subr.mxu0 0.0
        %5150 = vmatpush2.msra.mxu0 0.0
        %5151 = vmatprep.subr.mxu0 0.0
        %5152 = vmatpush2.msra.mxu0 0.0
        %5153 = vmatprep.subr.mxu0 0.0
        %5154 = vmatpush2.msra.mxu0 0.0
        %5155 = vmatprep.subr.mxu0 0.0
        %5156 = vmatpush2.msra.mxu0 0.0
        %5157 = vmatprep.subr.mxu0 0.0
        %5158 = vmatpush2.msra.mxu0 0.0
        %5159 = vmatprep.subr.mxu0 0.0
        %5160 = vmatpush2.msra.mxu0 0.0
        %5161 = vmatprep.subr.mxu0 0.0
        %5162 = vmatpush2.msra.mxu0 0.0
        %5163 = vmatprep.subr.mxu0 0.0
        %5164 = vmatpush2.msra.mxu0 0.0
        %5165 = vmatprep.mubr.f32.mxu0 0.0
        %5166 = vmatmul.mubr.f32.gmra.mxu0 %v5097
        %v5167 = vpop.f32.mrf.mxu0
        %v5168 = vadd.f32 %v904, %v5167
        %v5169 = vpop.f32.mrf.mxu0
        %5170 = vmatprep.mubr.f32.mxu0 0.0
        %5171 = vmatmul.mubr.f32.gmra.mxu0 %v5099
        %v5172 = vpop.f32.mrf.mxu0
        %v5173 = vadd.f32 %v904, %v5172
        %v5174 = vpop.f32.mrf.mxu0
        %5175 = vdwg.mxu0
        %v5176 = vmax.f32 %v5168, 0.0
        %v5177 = vmax.f32 %v5173, 0.0
        %v5179 = vsel %vm905, %v5176, 0
        %v5182 = vsel %vm905, %v5177, 0
        %5184 = vmatprep.subr.mxu0 0.0
        %5185 = vmatpush1.msra.mxu0 0.0
        %5186 = vmatprep.subr.mxu0 0.0
        %5187 = vmatpush1.msra.mxu0 0.0
        %5188 = vmatprep.subr.mxu0 0.0
        %5189 = vmatpush1.msra.mxu0 0.0
        %5190 = vmatprep.subr.mxu0 0.0
        %5191 = vmatpush1.msra.mxu0 0.0
        %5192 = vmatprep.subr.mxu0 0.0
        %5193 = vmatpush1.msra.mxu0 0.0
        %5194 = vmatprep.subr.mxu0 0.0
        %5195 = vmatpush1.msra.mxu0 0.0
        %5196 = vmatprep.subr.mxu0 0.0
        %5197 = vmatpush1.msra.mxu0 0.0
        %5198 = vmatprep.subr.mxu0 0.0
        %5199 = vmatpush1.msra.mxu0 0.0
        %5200 = vmatprep.subr.mxu0 0.0
        %5201 = vmatpush1.msra.mxu0 0.0
        %5202 = vmatprep.subr.mxu0 0.0
        %5203 = vmatpush1.msra.mxu0 0.0
        %5204 = vmatprep.subr.mxu0 0.0
        %5205 = vmatpush1.msra.mxu0 0.0
        %5206 = vmatprep.subr.mxu0 0.0
        %5207 = vmatpush1.msra.mxu0 0.0
        %5208 = vmatprep.subr.mxu0 0.0
        %5209 = vmatpush1.msra.mxu0 %v860
        %5210 = vmatprep.subr.mxu0 0.0
        %5211 = vmatpush1.msra.mxu0 %v859
        %5212 = vmatprep.subr.mxu0 0.0
        %5213 = vmatpush1.msra.mxu0 %v858
        %5214 = vmatprep.subr.mxu0 0.0
        %5215 = vmatpush1.msra.mxu0 %v857
        %5216 = vmatprep.subr.mxu0 0.0
        %5217 = vmatpush2.msra.mxu0 0.0
        %5218 = vmatprep.subr.mxu0 0.0
        %5219 = vmatpush2.msra.mxu0 0.0
        %5220 = vmatprep.subr.mxu0 0.0
        %5221 = vmatpush2.msra.mxu0 0.0
        %5222 = vmatprep.subr.mxu0 0.0
        %5223 = vmatpush2.msra.mxu0 0.0
        %5224 = vmatprep.subr.mxu0 0.0
        %5225 = vmatpush2.msra.mxu0 0.0
        %5226 = vmatprep.subr.mxu0 0.0
        %5227 = vmatpush2.msra.mxu0 0.0
        %5228 = vmatprep.subr.mxu0 0.0
        %5229 = vmatpush2.msra.mxu0 0.0
        %5230 = vmatprep.subr.mxu0 0.0
        %5231 = vmatpush2.msra.mxu0 0.0
        %5232 = vmatprep.subr.mxu0 0.0
        %5233 = vmatpush2.msra.mxu0 0.0
        %5234 = vmatprep.subr.mxu0 0.0
        %5235 = vmatpush2.msra.mxu0 0.0
        %5236 = vmatprep.subr.mxu0 0.0
        %5237 = vmatpush2.msra.mxu0 0.0
        %5238 = vmatprep.subr.mxu0 0.0
        %5239 = vmatpush2.msra.mxu0 0.0
        %5240 = vmatprep.subr.mxu0 0.0
        %5241 = vmatpush2.msra.mxu0 0.0
        %5242 = vmatprep.subr.mxu0 0.0
        %5243 = vmatpush2.msra.mxu0 0.0
        %5244 = vmatprep.subr.mxu0 0.0
        %5245 = vmatpush2.msra.mxu0 0.0
        %5246 = vmatprep.subr.mxu0 0.0
        %5247 = vmatpush2.msra.mxu0 0.0
        %5248 = vmatprep.mubr.f32.mxu0 0.0
        %5249 = vmatmul.mubr.f32.gmra.mxu0 %v5179
        %v5250 = vpop.f32.mrf.mxu0
        %v5251 = vadd.f32 %v992, %v5250
        %v5252 = vpop.f32.mrf.mxu0
        %5253 = vmatprep.mubr.f32.mxu0 0.0
        %5254 = vmatmul.mubr.f32.gmra.mxu0 %v5182
        %v5255 = vpop.f32.mrf.mxu0
        %v5256 = vadd.f32 %v992, %v5255
        %v5257 = vpop.f32.mrf.mxu0
        %5258 = vdwg.mxu0
        %v5259 = vmax.f32 %v5251, 0.0
        %v5260 = vmax.f32 %v5256, 0.0
        %5261 = vmatprep.subr.mxu0 0.0
        %5262 = vmatpush1.msra.mxu0 0.0
        %5263 = vmatprep.subr.mxu0 0.0
        %5264 = vmatpush1.msra.mxu0 0.0
        %5265 = vmatprep.subr.mxu0 0.0
        %5266 = vmatpush1.msra.mxu0 0.0
        %5267 = vmatprep.subr.mxu0 0.0
        %5268 = vmatpush1.msra.mxu0 0.0
        %5269 = vmatprep.subr.mxu0 0.0
        %5270 = vmatpush1.msra.mxu0 0.0
        %5271 = vmatprep.subr.mxu0 0.0
        %5272 = vmatpush1.msra.mxu0 0.0
        %5273 = vmatprep.subr.mxu0 0.0
        %5274 = vmatpush1.msra.mxu0 0.0
        %5275 = vmatprep.subr.mxu0 0.0
        %5276 = vmatpush1.msra.mxu0 0.0
        %5277 = vmatprep.subr.mxu0 0.0
        %5278 = vmatpush1.msra.mxu0 0.0
        %5279 = vmatprep.subr.mxu0 0.0
        %5280 = vmatpush1.msra.mxu0 0.0
        %5281 = vmatprep.subr.mxu0 0.0
        %5282 = vmatpush1.msra.mxu0 0.0
        %5283 = vmatprep.subr.mxu0 0.0
        %5284 = vmatpush1.msra.mxu0 0.0
        %5285 = vmatprep.subr.mxu0 0.0
        %5286 = vmatpush1.msra.mxu0 0.0
        %5287 = vmatprep.subr.mxu0 0.0
        %5288 = vmatpush1.msra.mxu0 0.0
        %5289 = vmatprep.subr.mxu0 0.0
        %5290 = vmatpush1.msra.mxu0 %v5260
        %5291 = vmatprep.subr.mxu0 0.0
        %5292 = vmatpush1.msra.mxu0 %v5259
        %5293 = vmatprep.subr.mxu0 0.0
        %5294 = vmatpush2.msra.mxu0 0.0
        %5295 = vmatprep.subr.mxu0 0.0
        %5296 = vmatpush2.msra.mxu0 0.0
        %5297 = vmatprep.subr.mxu0 0.0
        %5298 = vmatpush2.msra.mxu0 0.0
        %5299 = vmatprep.subr.mxu0 0.0
        %5300 = vmatpush2.msra.mxu0 0.0
        %5301 = vmatprep.subr.mxu0 0.0
        %5302 = vmatpush2.msra.mxu0 0.0
        %5303 = vmatprep.subr.mxu0 0.0
        %5304 = vmatpush2.msra.mxu0 0.0
        %5305 = vmatprep.subr.mxu0 0.0
        %5306 = vmatpush2.msra.mxu0 0.0
        %5307 = vmatprep.subr.mxu0 0.0
        %5308 = vmatpush2.msra.mxu0 0.0
        %5309 = vmatprep.subr.mxu0 0.0
        %5310 = vmatpush2.msra.mxu0 0.0
        %5311 = vmatprep.subr.mxu0 0.0
        %5312 = vmatpush2.msra.mxu0 0.0
        %5313 = vmatprep.subr.mxu0 0.0
        %5314 = vmatpush2.msra.mxu0 0.0
        %5315 = vmatprep.subr.mxu0 0.0
        %5316 = vmatpush2.msra.mxu0 0.0
        %5317 = vmatprep.subr.mxu0 0.0
        %5318 = vmatpush2.msra.mxu0 0.0
        %5319 = vmatprep.subr.mxu0 0.0
        %5320 = vmatpush2.msra.mxu0 0.0
        %5321 = vmatprep.subr.mxu0 0.0
        %5322 = vmatpush2.msra.mxu0 0.0
        %5323 = vmatprep.subr.mxu0 0.0
        %5324 = vmatpush2.msra.mxu0 0.0
        %5325 = vmatprep.mubr.f32.mxu0 0.0
        %5326 = vmatmul.mubr.f32.gmra.mxu0 %v1110
        %v5327 = vpop.f32.mrf.mxu0
        %v5328 = vadd.f32 0.0, %v5327
        %v5329 = vpop.f32.mrf.mxu0
        %5330 = vdwg.mxu0
        %5331 = vmatprep.subr.mxu0 0.0
        %5332 = vmatpush1.msra.mxu0 0.0
        %5333 = vmatprep.subr.mxu0 0.0
        %5334 = vmatpush1.msra.mxu0 0.0
        %5335 = vmatprep.subr.mxu0 0.0
        %5336 = vmatpush1.msra.mxu0 0.0
        %5337 = vmatprep.subr.mxu0 0.0
        %5338 = vmatpush1.msra.mxu0 0.0
        %5339 = vmatprep.subr.mxu0 0.0
        %5340 = vmatpush1.msra.mxu0 0.0
        %5341 = vmatprep.subr.mxu0 0.0
        %5342 = vmatpush1.msra.mxu0 0.0
        %5343 = vmatprep.subr.mxu0 0.0
        %5344 = vmatpush1.msra.mxu0 0.0
        %5345 = vmatprep.subr.mxu0 0.0
        %5346 = vmatpush1.msra.mxu0 0.0
        %5347 = vmatprep.subr.mxu0 0.0
        %5348 = vmatpush1.msra.mxu0 0.0
        %5349 = vmatprep.subr.mxu0 0.0
        %5350 = vmatpush1.msra.mxu0 0.0
        %5351 = vmatprep.subr.mxu0 0.0
        %5352 = vmatpush1.msra.mxu0 0.0
        %5353 = vmatprep.subr.mxu0 0.0
        %5354 = vmatpush1.msra.mxu0 0.0
        %5355 = vmatprep.subr.mxu0 0.0
        %5356 = vmatpush1.msra.mxu0 %v878
        %5357 = vmatprep.subr.mxu0 0.0
        %5358 = vmatpush1.msra.mxu0 %v877
        %5359 = vmatprep.subr.mxu0 0.0
        %5360 = vmatpush1.msra.mxu0 %v876
        %5361 = vmatprep.subr.mxu0 0.0
        %5362 = vmatpush1.msra.mxu0 %v875
        %5363 = vmatprep.subr.mxu0 0.0
        %5364 = vmatpush2.msra.mxu0 0.0
        %5365 = vmatprep.subr.mxu0 0.0
        %5366 = vmatpush2.msra.mxu0 0.0
        %5367 = vmatprep.subr.mxu0 0.0
        %5368 = vmatpush2.msra.mxu0 0.0
        %5369 = vmatprep.subr.mxu0 0.0
        %5370 = vmatpush2.msra.mxu0 0.0
        %5371 = vmatprep.subr.mxu0 0.0
        %5372 = vmatpush2.msra.mxu0 0.0
        %5373 = vmatprep.subr.mxu0 0.0
        %5374 = vmatpush2.msra.mxu0 0.0
        %5375 = vmatprep.subr.mxu0 0.0
        %5376 = vmatpush2.msra.mxu0 0.0
        %5377 = vmatprep.subr.mxu0 0.0
        %5378 = vmatpush2.msra.mxu0 0.0
        %5379 = vmatprep.subr.mxu0 0.0
        %5380 = vmatpush2.msra.mxu0 0.0
        %5381 = vmatprep.subr.mxu0 0.0
        %5382 = vmatpush2.msra.mxu0 0.0
        %5383 = vmatprep.subr.mxu0 0.0
        %5384 = vmatpush2.msra.mxu0 0.0
        %5385 = vmatprep.subr.mxu0 0.0
        %5386 = vmatpush2.msra.mxu0 0.0
        %5387 = vmatprep.subr.mxu0 0.0
        %5388 = vmatpush2.msra.mxu0 0.0
        %5389 = vmatprep.subr.mxu0 0.0
        %5390 = vmatpush2.msra.mxu0 0.0
        %5391 = vmatprep.subr.mxu0 0.0
        %5392 = vmatpush2.msra.mxu0 0.0
        %5393 = vmatprep.subr.mxu0 0.0
        %5394 = vmatpush2.msra.mxu0 0.0
        %5395 = vmatprep.mubr.f32.mxu0 0.0
        %5396 = vmatmul.mubr.f32.gmra.mxu0 %v4267
        %v5397 = vpop.f32.mrf.mxu0
        %v5398 = vadd.f32 0.0, %v5397
        %v5399 = vpop.f32.mrf.mxu0
        %5400 = vdwg.mxu0
        %v5402 = vsel %vm905, %v5328, 0
        %5404 = vmatprep.subr.mxu0 0.0
        %5405 = vmatpush1.msra.mxu0 0.0
        %5406 = vmatprep.subr.mxu0 0.0
        %5407 = vmatpush1.msra.mxu0 0.0
        %5408 = vmatprep.subr.mxu0 0.0
        %5409 = vmatpush1.msra.mxu0 0.0
        %5410 = vmatprep.subr.mxu0 0.0
        %5411 = vmatpush1.msra.mxu0 0.0
        %5412 = vmatprep.subr.mxu0 0.0
        %5413 = vmatpush1.msra.mxu0 0.0
        %5414 = vmatprep.subr.mxu0 0.0
        %5415 = vmatpush1.msra.mxu0 0.0
        %5416 = vmatprep.subr.mxu0 0.0
        %5417 = vmatpush1.msra.mxu0 0.0
        %5418 = vmatprep.subr.mxu0 0.0
        %5419 = vmatpush1.msra.mxu0 0.0
        %5420 = vmatprep.subr.mxu0 0.0
        %5421 = vmatpush1.msra.mxu0 0.0
        %5422 = vmatprep.subr.mxu0 0.0
        %5423 = vmatpush1.msra.mxu0 0.0
        %5424 = vmatprep.subr.mxu0 0.0
        %5425 = vmatpush1.msra.mxu0 0.0
        %5426 = vmatprep.subr.mxu0 0.0
        %5427 = vmatpush1.msra.mxu0 0.0
        %5428 = vmatprep.subr.mxu0 0.0
        %5429 = vmatpush1.msra.mxu0 %v874
        %5430 = vmatprep.subr.mxu0 0.0
        %5431 = vmatpush1.msra.mxu0 %v873
        %5432 = vmatprep.subr.mxu0 0.0
        %5433 = vmatpush1.msra.mxu0 %v872
        %5434 = vmatprep.subr.mxu0 0.0
        %5435 = vmatpush1.msra.mxu0 %v871
        %5436 = vmatprep.subr.mxu0 0.0
        %5437 = vmatpush2.msra.mxu0 0.0
        %5438 = vmatprep.subr.mxu0 0.0
        %5439 = vmatpush2.msra.mxu0 0.0
        %5440 = vmatprep.subr.mxu0 0.0
        %5441 = vmatpush2.msra.mxu0 0.0
        %5442 = vmatprep.subr.mxu0 0.0
        %5443 = vmatpush2.msra.mxu0 0.0
        %5444 = vmatprep.subr.mxu0 0.0
        %5445 = vmatpush2.msra.mxu0 0.0
        %5446 = vmatprep.subr.mxu0 0.0
        %5447 = vmatpush2.msra.mxu0 0.0
        %5448 = vmatprep.subr.mxu0 0.0
        %5449 = vmatpush2.msra.mxu0 0.0
        %5450 = vmatprep.subr.mxu0 0.0
        %5451 = vmatpush2.msra.mxu0 0.0
        %5452 = vmatprep.subr.mxu0 0.0
        %5453 = vmatpush2.msra.mxu0 0.0
        %5454 = vmatprep.subr.mxu0 0.0
        %5455 = vmatpush2.msra.mxu0 0.0
        %5456 = vmatprep.subr.mxu0 0.0
        %5457 = vmatpush2.msra.mxu0 0.0
        %5458 = vmatprep.subr.mxu0 0.0
        %5459 = vmatpush2.msra.mxu0 0.0
        %5460 = vmatprep.subr.mxu0 0.0
        %5461 = vmatpush2.msra.mxu0 0.0
        %5462 = vmatprep.subr.mxu0 0.0
        %5463 = vmatpush2.msra.mxu0 0.0
        %5464 = vmatprep.subr.mxu0 0.0
        %5465 = vmatpush2.msra.mxu0 0.0
        %5466 = vmatprep.subr.mxu0 0.0
        %5467 = vmatpush2.msra.mxu0 0.0
        %5468 = vmatprep.mubr.f32.mxu0 0.0
        %5469 = vmatmul.mubr.f32.gmra.mxu0 %v5402
        %v5470 = vpop.f32.mrf.mxu0
        %v5471 = vadd.f32 %v5398, %v5470
        %v5472 = vpop.f32.mrf.mxu0
        %5473 = vdwg.mxu0
        %v5474 = vadd.f32 %v5471, %v1331
        %v5475 = vsel %vm905, %v5474, 0.0
        %5476 = vadd.xlane.f32.xlu0 %v5475
        %v5477 = vpop.xlane.xlu0 %5476
        %v5478 = vmul.f32 %v5477, %v1337
        %v5479 = vsub.f32 %v5474, %v5478
        %v5480 = vmul.f32 %v5479, %v5479
        %v5481 = vsel %vm905, %v5480, 0.0
        %5482 = vadd.xlane.f32.xlu0 %v5481
        %v5483 = vpop.xlane.xlu0 %5482
        %v5484 = vmul.f32 %v5483, %v1337
        %v5485 = vadd.f32 %v5484, 1e-05
        %v5486 = vrsqrt.pop %v5485
        %v5487 = vmul.f32 %v5479, %v5486
        %v5488 = vmul.f32 %v5487, %v1352
        %v5489 = vadd.f32 %v5488, %v1359
        %5491 = vrot.lane.b32.xlu0 %v5474, 96
        %v5492 = vpop.permute.xlu0 %5491
        %v5494 = vsel %vm905, %v5492, 0.0
        %5495 = vadd.xlane.f32.xlu0 %v5494
        %v5496 = vpop.xlane.xlu0 %5495
        %v5497 = vmul.f32 %v5496, %v1337
        %v5498 = vsub.f32 %v5474, %v5497
        %v5499 = vmul.f32 %v5498, %v5498
        %5501 = vrot.lane.b32.xlu0 %v5499, 96
        %v5502 = vpop.permute.xlu0 %5501
        %v5504 = vsel %vm905, %v5502, 0.0
        %5505 = vadd.xlane.f32.xlu0 %v5504
        %v5506 = vpop.xlane.xlu0 %5505
        %v5507 = vmul.f32 %v5506, %v1337
        %v5508 = vadd.f32 %v5507, 1e-05
        %v5509 = vrsqrt.pop %v5508
        %v5510 = vmul.f32 %v5498, %v5509
        %v5511 = vmul.f32 %v5510, %v1352
        %v5512 = vadd.f32 %v5511, %v1359
        %5513 = vrot.lane.b32.xlu0 %v5474, 64
        %v5514 = vpop.permute.xlu0 %5513
        %v5516 = vsel %vm905, %v5514, 0.0
        %5517 = vadd.xlane.f32.xlu0 %v5516
        %v5518 = vpop.xlane.xlu0 %5517
        %v5519 = vmul.f32 %v5518, %v1337
        %v5520 = vsub.f32 %v5474, %v5519
        %v5521 = vmul.f32 %v5520, %v5520
        %5523 = vrot.lane.b32.xlu0 %v5521, 64
        %v5524 = vpop.permute.xlu0 %5523
        %v5526 = vsel %vm905, %v5524, 0.0
        %5527 = vadd.xlane.f32.xlu0 %v5526
        %v5528 = vpop.xlane.xlu0 %5527
        %v5529 = vmul.f32 %v5528, %v1337
        %v5530 = vadd.f32 %v5529, 1e-05
        %v5531 = vrsqrt.pop %v5530
        %v5532 = vmul.f32 %v5520, %v5531
        %v5533 = vmul.f32 %v5532, %v1352
        %v5534 = vadd.f32 %v5533, %v1359
        %5535 = vrot.lane.b32.xlu0 %v5474, 32
        %v5536 = vpop.permute.xlu0 %5535
        %v5538 = vsel %vm905, %v5536, 0.0
        %5539 = vadd.xlane.f32.xlu0 %v5538
        %v5540 = vpop.xlane.xlu0 %5539
        %v5541 = vmul.f32 %v5540, %v1337
        %v5542 = vsub.f32 %v5474, %v5541
        %v5543 = vmul.f32 %v5542, %v5542
        %5545 = vrot.lane.b32.xlu0 %v5543, 32
        %v5546 = vpop.permute.xlu0 %5545
        %v5548 = vsel %vm905, %v5546, 0.0
        %5549 = vadd.xlane.f32.xlu0 %v5548
        %v5550 = vpop.xlane.xlu0 %5549
        %v5551 = vmul.f32 %v5550, %v1337
        %v5552 = vadd.f32 %v5551, 1e-05
        %v5553 = vrsqrt.pop %v5552
        %v5554 = vmul.f32 %v5542, %v5553
        %v5555 = vmul.f32 %v5554, %v1352
        %v5556 = vadd.f32 %v5555, %v1359
        %v5557 = vxor.u32 %v5489, 2147483648
        %v5558 = vmul.f32 %v5557, 1.442695
        %v5559 = vpow.pop %v5558
        %v5560 = vadd.f32 %v5559, 1.0
        %v5561 = vrcp.pop %v5560
        %v5562 = vmul.f32 1.0, %v5561
        %v5563 = vadd.f32 %v5512, 1.0
        %v5564 = vxor.u32 %v5563, 2147483648
        %v5565 = vmul.f32 %v5564, 1.442695
        %v5566 = vpow.pop %v5565
        %v5567 = vadd.f32 %v5566, 1.0
        %v5568 = vrcp.pop %v5567
        %v5569 = vmul.f32 1.0, %v5568
        %v5570 = vtanh.pop %v5534
        %v5571 = vxor.u32 %v5556, 2147483648
        %v5572 = vmul.f32 %v5571, 1.442695
        %v5573 = vpow.pop %v5572
        %v5574 = vadd.f32 %v5573, 1.0
        %v5575 = vrcp.pop %v5574
        %v5576 = vmul.f32 1.0, %v5575
        %v5577 = vmul.f32 %v5569, %v4234
        %5579 = vrot.lane.b32.xlu0 %v5570, 64
        %v5580 = vpop.permute.xlu0 %5579
        %v5582 = vmul.f32 %v5562, %v5580
        %5584 = vrot.lane.b32.xlu0 %v5582, 32
        %v5585 = vpop.permute.xlu0 %5584
        %v5587 = vadd.f32 %v5577, %v5585
        %5589 = vrot.lane.b32.xlu0 %v5587, 96
        %v5590 = vpop.permute.xlu0 %5589
        %v5592 = vsel %vm905, %v5590, 0.0
        %5593 = vadd.xlane.f32.xlu0 %v5592
        %v5594 = vpop.xlane.xlu0 %5593
        %v5595 = vmul.f32 %v5594, %v1337
        %v5596 = vsub.f32 %v5587, %v5595
        %v5597 = vmul.f32 %v5596, %v5596
        %5599 = vrot.lane.b32.xlu0 %v5597, 96
        %v5600 = vpop.permute.xlu0 %5599
        %v5602 = vsel %vm905, %v5600, 0.0
        %5603 = vadd.xlane.f32.xlu0 %v5602
        %v5604 = vpop.xlane.xlu0 %5603
        %v5605 = vmul.f32 %v5604, %v1337
        %v5606 = vadd.f32 %v5605, 1e-05
        %v5607 = vrsqrt.pop %v5606
        %v5608 = vmul.f32 %v5596, %v5607
        %v5609 = vmul.f32 %v5608, %v1487
        %v5610 = vadd.f32 %v5609, %v1496
        %v5611 = vtanh.pop %v5610
        %5613 = vrot.lane.b32.xlu0 %v5611, 64
        %v5614 = vpop.permute.xlu0 %5613
        %v5616 = vmul.f32 %v5576, %v5614
        %5618 = vrot.lane.b32.xlu0 %v5616, 32
        %v5619 = vpop.permute.xlu0 %5618
        %v5620 = vsel %vm905, %v5619, 0
        %5622 = vmatprep.subr.mxu0 0.0
        %5623 = vmatpush1.msra.mxu0 0.0
        %5624 = vmatprep.subr.mxu0 0.0
        %5625 = vmatpush1.msra.mxu0 0.0
        %5626 = vmatprep.subr.mxu0 0.0
        %5627 = vmatpush1.msra.mxu0 0.0
        %5628 = vmatprep.subr.mxu0 0.0
        %5629 = vmatpush1.msra.mxu0 0.0
        %5630 = vmatprep.subr.mxu0 0.0
        %5631 = vmatpush1.msra.mxu0 0.0
        %5632 = vmatprep.subr.mxu0 0.0
        %5633 = vmatpush1.msra.mxu0 0.0
        %5634 = vmatprep.subr.mxu0 0.0
        %5635 = vmatpush1.msra.mxu0 0.0
        %5636 = vmatprep.subr.mxu0 0.0
        %5637 = vmatpush1.msra.mxu0 0.0
        %5638 = vmatprep.subr.mxu0 0.0
        %5639 = vmatpush1.msra.mxu0 0.0
        %5640 = vmatprep.subr.mxu0 0.0
        %5641 = vmatpush1.msra.mxu0 0.0
        %5642 = vmatprep.subr.mxu0 0.0
        %5643 = vmatpush1.msra.mxu0 0.0
        %5644 = vmatprep.subr.mxu0 0.0
        %5645 = vmatpush1.msra.mxu0 0.0
        %5646 = vmatprep.subr.mxu0 0.0
        %5647 = vmatpush1.msra.mxu0 %v865
        %5648 = vmatprep.subr.mxu0 0.0
        %5649 = vmatpush1.msra.mxu0 %v864
        %5650 = vmatprep.subr.mxu0 0.0
        %5651 = vmatpush1.msra.mxu0 %v863
        %5652 = vmatprep.subr.mxu0 0.0
        %5653 = vmatpush1.msra.mxu0 %v862
        %5654 = vmatprep.subr.mxu0 0.0
        %5655 = vmatpush2.msra.mxu0 0.0
        %5656 = vmatprep.subr.mxu0 0.0
        %5657 = vmatpush2.msra.mxu0 0.0
        %5658 = vmatprep.subr.mxu0 0.0
        %5659 = vmatpush2.msra.mxu0 0.0
        %5660 = vmatprep.subr.mxu0 0.0
        %5661 = vmatpush2.msra.mxu0 0.0
        %5662 = vmatprep.subr.mxu0 0.0
        %5663 = vmatpush2.msra.mxu0 0.0
        %5664 = vmatprep.subr.mxu0 0.0
        %5665 = vmatpush2.msra.mxu0 0.0
        %5666 = vmatprep.subr.mxu0 0.0
        %5667 = vmatpush2.msra.mxu0 0.0
        %5668 = vmatprep.subr.mxu0 0.0
        %5669 = vmatpush2.msra.mxu0 0.0
        %5670 = vmatprep.subr.mxu0 0.0
        %5671 = vmatpush2.msra.mxu0 0.0
        %5672 = vmatprep.subr.mxu0 0.0
        %5673 = vmatpush2.msra.mxu0 0.0
        %5674 = vmatprep.subr.mxu0 0.0
        %5675 = vmatpush2.msra.mxu0 0.0
        %5676 = vmatprep.subr.mxu0 0.0
        %5677 = vmatpush2.msra.mxu0 0.0
        %5678 = vmatprep.subr.mxu0 0.0
        %5679 = vmatpush2.msra.mxu0 0.0
        %5680 = vmatprep.subr.mxu0 0.0
        %5681 = vmatpush2.msra.mxu0 0.0
        %5682 = vmatprep.subr.mxu0 0.0
        %5683 = vmatpush2.msra.mxu0 0.0
        %5684 = vmatprep.subr.mxu0 0.0
        %5685 = vmatpush2.msra.mxu0 0.0
        %5686 = vmatprep.mubr.f32.mxu0 0.0
        %5687 = vmatmul.mubr.f32.gmra.mxu0 %v5620
        %v5688 = vpop.f32.mrf.mxu0
        %v5689 = vadd.f32 %v1508, %v5688
        %v5690 = vpop.f32.mrf.mxu0
        %5691 = vdwg.mxu0
        %v5692 = vmax.f32 %v5689, 0.0
        %v5694 = vsel %vm905, %v5692, 0
        %5696 = vmatprep.subr.mxu0 0.0
        %5697 = vmatpush1.msra.mxu0 0.0
        %5698 = vmatprep.subr.mxu0 0.0
        %5699 = vmatpush1.msra.mxu0 0.0
        %5700 = vmatprep.subr.mxu0 0.0
        %5701 = vmatpush1.msra.mxu0 0.0
        %5702 = vmatprep.subr.mxu0 0.0
        %5703 = vmatpush1.msra.mxu0 0.0
        %5704 = vmatprep.subr.mxu0 0.0
        %5705 = vmatpush1.msra.mxu0 0.0
        %5706 = vmatprep.subr.mxu0 0.0
        %5707 = vmatpush1.msra.mxu0 0.0
        %5708 = vmatprep.subr.mxu0 0.0
        %5709 = vmatpush1.msra.mxu0 0.0
        %5710 = vmatprep.subr.mxu0 0.0
        %5711 = vmatpush1.msra.mxu0 0.0
        %5712 = vmatprep.subr.mxu0 0.0
        %5713 = vmatpush1.msra.mxu0 0.0
        %5714 = vmatprep.subr.mxu0 0.0
        %5715 = vmatpush1.msra.mxu0 0.0
        %5716 = vmatprep.subr.mxu0 0.0
        %5717 = vmatpush1.msra.mxu0 0.0
        %5718 = vmatprep.subr.mxu0 0.0
        %5719 = vmatpush1.msra.mxu0 0.0
        %5720 = vmatprep.subr.mxu0 0.0
        %5721 = vmatpush1.msra.mxu0 %v869
        %5722 = vmatprep.subr.mxu0 0.0
        %5723 = vmatpush1.msra.mxu0 %v868
        %5724 = vmatprep.subr.mxu0 0.0
        %5725 = vmatpush1.msra.mxu0 %v867
        %5726 = vmatprep.subr.mxu0 0.0
        %5727 = vmatpush1.msra.mxu0 %v866
        %5728 = vmatprep.subr.mxu0 0.0
        %5729 = vmatpush2.msra.mxu0 0.0
        %5730 = vmatprep.subr.mxu0 0.0
        %5731 = vmatpush2.msra.mxu0 0.0
        %5732 = vmatprep.subr.mxu0 0.0
        %5733 = vmatpush2.msra.mxu0 0.0
        %5734 = vmatprep.subr.mxu0 0.0
        %5735 = vmatpush2.msra.mxu0 0.0
        %5736 = vmatprep.subr.mxu0 0.0
        %5737 = vmatpush2.msra.mxu0 0.0
        %5738 = vmatprep.subr.mxu0 0.0
        %5739 = vmatpush2.msra.mxu0 0.0
        %5740 = vmatprep.subr.mxu0 0.0
        %5741 = vmatpush2.msra.mxu0 0.0
        %5742 = vmatprep.subr.mxu0 0.0
        %5743 = vmatpush2.msra.mxu0 0.0
        %5744 = vmatprep.subr.mxu0 0.0
        %5745 = vmatpush2.msra.mxu0 0.0
        %5746 = vmatprep.subr.mxu0 0.0
        %5747 = vmatpush2.msra.mxu0 0.0
        %5748 = vmatprep.subr.mxu0 0.0
        %5749 = vmatpush2.msra.mxu0 0.0
        %5750 = vmatprep.subr.mxu0 0.0
        %5751 = vmatpush2.msra.mxu0 0.0
        %5752 = vmatprep.subr.mxu0 0.0
        %5753 = vmatpush2.msra.mxu0 0.0
        %5754 = vmatprep.subr.mxu0 0.0
        %5755 = vmatpush2.msra.mxu0 0.0
        %5756 = vmatprep.subr.mxu0 0.0
        %5757 = vmatpush2.msra.mxu0 0.0
        %5758 = vmatprep.subr.mxu0 0.0
        %5759 = vmatpush2.msra.mxu0 0.0
        %5760 = vmatprep.mubr.f32.mxu0 0.0
        %5761 = vmatmul.mubr.f32.gmra.mxu0 %v5694
        %v5762 = vpop.f32.mrf.mxu0
        %v5763 = vadd.f32 %v1588, %v5762
        %v5764 = vpop.f32.mrf.mxu0
        %5765 = vdwg.mxu0
        %v5766 = vmax.f32 %v5763, 0.0
        %5767 = vmatprep.subr.mxu0 0.0
        %5768 = vmatpush1.msra.mxu0 0.0
        %5769 = vmatprep.subr.mxu0 0.0
        %5770 = vmatpush1.msra.mxu0 0.0
        %5771 = vmatprep.subr.mxu0 0.0
        %5772 = vmatpush1.msra.mxu0 0.0
        %5773 = vmatprep.subr.mxu0 0.0
        %5774 = vmatpush1.msra.mxu0 0.0
        %5775 = vmatprep.subr.mxu0 0.0
        %5776 = vmatpush1.msra.mxu0 0.0
        %5777 = vmatprep.subr.mxu0 0.0
        %5778 = vmatpush1.msra.mxu0 0.0
        %5779 = vmatprep.subr.mxu0 0.0
        %5780 = vmatpush1.msra.mxu0 0.0
        %5781 = vmatprep.subr.mxu0 0.0
        %5782 = vmatpush1.msra.mxu0 0.0
        %5783 = vmatprep.subr.mxu0 0.0
        %5784 = vmatpush1.msra.mxu0 0.0
        %5785 = vmatprep.subr.mxu0 0.0
        %5786 = vmatpush1.msra.mxu0 0.0
        %5787 = vmatprep.subr.mxu0 0.0
        %5788 = vmatpush1.msra.mxu0 0.0
        %5789 = vmatprep.subr.mxu0 0.0
        %5790 = vmatpush1.msra.mxu0 0.0
        %5791 = vmatprep.subr.mxu0 0.0
        %5792 = vmatpush1.msra.mxu0 0.0
        %5793 = vmatprep.subr.mxu0 0.0
        %5794 = vmatpush1.msra.mxu0 0.0
        %5795 = vmatprep.subr.mxu0 0.0
        %5796 = vmatpush1.msra.mxu0 0.0
        %5797 = vmatprep.subr.mxu0 0.0
        %5798 = vmatpush1.msra.mxu0 %v5766
        %5799 = vmatprep.subr.mxu0 0.0
        %5800 = vmatpush2.msra.mxu0 0.0
        %5801 = vmatprep.subr.mxu0 0.0
        %5802 = vmatpush2.msra.mxu0 0.0
        %5803 = vmatprep.subr.mxu0 0.0
        %5804 = vmatpush2.msra.mxu0 0.0
        %5805 = vmatprep.subr.mxu0 0.0
        %5806 = vmatpush2.msra.mxu0 0.0
        %5807 = vmatprep.subr.mxu0 0.0
        %5808 = vmatpush2.msra.mxu0 0.0
        %5809 = vmatprep.subr.mxu0 0.0
        %5810 = vmatpush2.msra.mxu0 0.0
        %5811 = vmatprep.subr.mxu0 0.0
        %5812 = vmatpush2.msra.mxu0 0.0
        %5813 = vmatprep.subr.mxu0 0.0
        %5814 = vmatpush2.msra.mxu0 0.0
        %5815 = vmatprep.subr.mxu0 0.0
        %5816 = vmatpush2.msra.mxu0 0.0
        %5817 = vmatprep.subr.mxu0 0.0
        %5818 = vmatpush2.msra.mxu0 0.0
        %5819 = vmatprep.subr.mxu0 0.0
        %5820 = vmatpush2.msra.mxu0 0.0
        %5821 = vmatprep.subr.mxu0 0.0
        %5822 = vmatpush2.msra.mxu0 0.0
        %5823 = vmatprep.subr.mxu0 0.0
        %5824 = vmatpush2.msra.mxu0 0.0
        %5825 = vmatprep.subr.mxu0 0.0
        %5826 = vmatpush2.msra.mxu0 0.0
        %5827 = vmatprep.subr.mxu0 0.0
        %5828 = vmatpush2.msra.mxu0 0.0
        %5829 = vmatprep.subr.mxu0 0.0
        %5830 = vmatpush2.msra.mxu0 0.0
        %5831 = vmatprep.mubr.f32.mxu0 0.0
        %5832 = vmatmul.mubr.f32.gmra.mxu0 %v1665
        %v5833 = vpop.f32.mrf.mxu0
        %v5834 = vadd.f32 0.0, %v5833
        %v5835 = vpop.f32.mrf.mxu0
        %5836 = vmatprep.mubr.f32.mxu0 0.0
        %5837 = vmatmul.mubr.f32.gmra.mxu0 %v1668
        %v5838 = vpop.f32.mrf.mxu0
        %v5839 = vadd.f32 0.0, %v5838
        %v5840 = vpop.f32.mrf.mxu0
        %5841 = vdwg.mxu0
        %5844 = vmatprep.subr.mxu0 0.0
        %5845 = vmatpush1.msra.mxu0 0.0
        %5846 = vmatprep.subr.mxu0 0.0
        %5847 = vmatpush1.msra.mxu0 0.0
        %5848 = vmatprep.subr.mxu0 0.0
        %5849 = vmatpush1.msra.mxu0 0.0
        %5850 = vmatprep.subr.mxu0 0.0
        %5851 = vmatpush1.msra.mxu0 0.0
        %5852 = vmatprep.subr.mxu0 0.0
        %5853 = vmatpush1.msra.mxu0 0.0
        %5854 = vmatprep.subr.mxu0 0.0
        %5855 = vmatpush1.msra.mxu0 0.0
        %5856 = vmatprep.subr.mxu0 0.0
        %5857 = vmatpush1.msra.mxu0 0.0
        %5858 = vmatprep.subr.mxu0 0.0
        %5859 = vmatpush1.msra.mxu0 0.0
        %5860 = vmatprep.subr.mxu0 0.0
        %5861 = vmatpush1.msra.mxu0 0.0
        %5862 = vmatprep.subr.mxu0 0.0
        %5863 = vmatpush1.msra.mxu0 0.0
        %5864 = vmatprep.subr.mxu0 0.0
        %5865 = vmatpush1.msra.mxu0 0.0
        %5866 = vmatprep.subr.mxu0 0.0
        %5867 = vmatpush1.msra.mxu0 0.0
        %5868 = vmatprep.subr.mxu0 0.0
        %5869 = vmatpush1.msra.mxu0 0.0
        %5870 = vmatprep.subr.mxu0 0.0
        %5871 = vmatpush1.msra.mxu0 0.0
        %5872 = vmatprep.subr.mxu0 0.0
        %5873 = vmatpush1.msra.mxu0 %v5096
        %5874 = vmatprep.subr.mxu0 0.0
        %5875 = vmatpush1.msra.mxu0 %v5094
        %5876 = vmatprep.subr.mxu0 0.0
        %5877 = vmatpush2.msra.mxu0 0.0
        %5878 = vmatprep.subr.mxu0 0.0
        %5879 = vmatpush2.msra.mxu0 0.0
        %5880 = vmatprep.subr.mxu0 0.0
        %5881 = vmatpush2.msra.mxu0 0.0
        %5882 = vmatprep.subr.mxu0 0.0
        %5883 = vmatpush2.msra.mxu0 0.0
        %5884 = vmatprep.subr.mxu0 0.0
        %5885 = vmatpush2.msra.mxu0 0.0
        %5886 = vmatprep.subr.mxu0 0.0
        %5887 = vmatpush2.msra.mxu0 0.0
        %5888 = vmatprep.subr.mxu0 0.0
        %5889 = vmatpush2.msra.mxu0 0.0
        %5890 = vmatprep.subr.mxu0 0.0
        %5891 = vmatpush2.msra.mxu0 0.0
        %5892 = vmatprep.subr.mxu0 0.0
        %5893 = vmatpush2.msra.mxu0 0.0
        %5894 = vmatprep.subr.mxu0 0.0
        %5895 = vmatpush2.msra.mxu0 0.0
        %5896 = vmatprep.subr.mxu0 0.0
        %5897 = vmatpush2.msra.mxu0 0.0
        %5898 = vmatprep.subr.mxu0 0.0
        %5899 = vmatpush2.msra.mxu0 0.0
        %5900 = vmatprep.subr.mxu0 0.0
        %5901 = vmatpush2.msra.mxu0 0.0
        %5902 = vmatprep.subr.mxu0 0.0
        %5903 = vmatpush2.msra.mxu0 0.0
        %5904 = vmatprep.subr.mxu0 0.0
        %5905 = vmatpush2.msra.mxu0 0.0
        %5906 = vmatprep.subr.mxu0 0.0
        %5907 = vmatpush2.msra.mxu0 0.0
        %5908 = vmatprep.mubr.f32.mxu0 0.0
        %5909 = vmatmul.mubr.f32.gmra.mxu0 %v1746
        %v5910 = vpop.f32.mrf.mxu0
        %v5911 = vadd.f32 0.0, %v5910
        %v5912 = vpop.f32.mrf.mxu0
        %5913 = vmatprep.mubr.f32.mxu0 0.0
        %5914 = vmatmul.mubr.f32.gmra.mxu0 %v1749
        %v5915 = vpop.f32.mrf.mxu0
        %v5916 = vadd.f32 0.0, %v5915
        %v5917 = vpop.f32.mrf.mxu0
        %5918 = vdwg.mxu0
        %v5920 = vsel %vm905, %v5911, 0
        %v5923 = vsel %vm905, %v5916, 0
        %5925 = vmatprep.subr.mxu0 0.0
        %5926 = vmatpush1.msra.mxu0 0.0
        %5927 = vmatprep.subr.mxu0 0.0
        %5928 = vmatpush1.msra.mxu0 0.0
        %5929 = vmatprep.subr.mxu0 0.0
        %5930 = vmatpush1.msra.mxu0 0.0
        %5931 = vmatprep.subr.mxu0 0.0
        %5932 = vmatpush1.msra.mxu0 0.0
        %5933 = vmatprep.subr.mxu0 0.0
        %5934 = vmatpush1.msra.mxu0 0.0
        %5935 = vmatprep.subr.mxu0 0.0
        %5936 = vmatpush1.msra.mxu0 0.0
        %5937 = vmatprep.subr.mxu0 0.0
        %5938 = vmatpush1.msra.mxu0 0.0
        %5939 = vmatprep.subr.mxu0 0.0
        %5940 = vmatpush1.msra.mxu0 0.0
        %5941 = vmatprep.subr.mxu0 0.0
        %5942 = vmatpush1.msra.mxu0 0.0
        %5943 = vmatprep.subr.mxu0 0.0
        %5944 = vmatpush1.msra.mxu0 0.0
        %5945 = vmatprep.subr.mxu0 0.0
        %5946 = vmatpush1.msra.mxu0 0.0
        %5947 = vmatprep.subr.mxu0 0.0
        %5948 = vmatpush1.msra.mxu0 0.0
        %5949 = vmatprep.subr.mxu0 0.0
        %5950 = vmatpush1.msra.mxu0 %v891
        %5951 = vmatprep.subr.mxu0 0.0
        %5952 = vmatpush1.msra.mxu0 %v890
        %5953 = vmatprep.subr.mxu0 0.0
        %5954 = vmatpush1.msra.mxu0 %v889
        %5955 = vmatprep.subr.mxu0 0.0
        %5956 = vmatpush1.msra.mxu0 %v888
        %5957 = vmatprep.subr.mxu0 0.0
        %5958 = vmatpush2.msra.mxu0 0.0
        %5959 = vmatprep.subr.mxu0 0.0
        %5960 = vmatpush2.msra.mxu0 0.0
        %5961 = vmatprep.subr.mxu0 0.0
        %5962 = vmatpush2.msra.mxu0 0.0
        %5963 = vmatprep.subr.mxu0 0.0
        %5964 = vmatpush2.msra.mxu0 0.0
        %5965 = vmatprep.subr.mxu0 0.0
        %5966 = vmatpush2.msra.mxu0 0.0
        %5967 = vmatprep.subr.mxu0 0.0
        %5968 = vmatpush2.msra.mxu0 0.0
        %5969 = vmatprep.subr.mxu0 0.0
        %5970 = vmatpush2.msra.mxu0 0.0
        %5971 = vmatprep.subr.mxu0 0.0
        %5972 = vmatpush2.msra.mxu0 0.0
        %5973 = vmatprep.subr.mxu0 0.0
        %5974 = vmatpush2.msra.mxu0 0.0
        %5975 = vmatprep.subr.mxu0 0.0
        %5976 = vmatpush2.msra.mxu0 0.0
        %5977 = vmatprep.subr.mxu0 0.0
        %5978 = vmatpush2.msra.mxu0 0.0
        %5979 = vmatprep.subr.mxu0 0.0
        %5980 = vmatpush2.msra.mxu0 0.0
        %5981 = vmatprep.subr.mxu0 0.0
        %5982 = vmatpush2.msra.mxu0 0.0
        %5983 = vmatprep.subr.mxu0 0.0
        %5984 = vmatpush2.msra.mxu0 0.0
        %5985 = vmatprep.subr.mxu0 0.0
        %5986 = vmatpush2.msra.mxu0 0.0
        %5987 = vmatprep.subr.mxu0 0.0
        %5988 = vmatpush2.msra.mxu0 0.0
        %5989 = vmatprep.mubr.f32.mxu0 0.0
        %5990 = vmatmul.mubr.f32.gmra.mxu0 %v5920
        %v5991 = vpop.f32.mrf.mxu0
        %v5992 = vadd.f32 0.0, %v5991
        %v5993 = vpop.f32.mrf.mxu0
        %5994 = vmatprep.mubr.f32.mxu0 0.0
        %5995 = vmatmul.mubr.f32.gmra.mxu0 %v5923
        %v5996 = vpop.f32.mrf.mxu0
        %v5997 = vpop.f32.mrf.mxu0
        %5998 = vdwg.mxu0
        %v6000 = vsel %vm905, %v5834, 0
        %v6003 = vsel %vm905, %v5839, 0
        %6005 = vmatprep.subr.mxu0 0.0
        %6006 = vmatpush1.msra.mxu0 0.0
        %6007 = vmatprep.subr.mxu0 0.0
        %6008 = vmatpush1.msra.mxu0 0.0
        %6009 = vmatprep.subr.mxu0 0.0
        %6010 = vmatpush1.msra.mxu0 0.0
        %6011 = vmatprep.subr.mxu0 0.0
        %6012 = vmatpush1.msra.mxu0 0.0
        %6013 = vmatprep.subr.mxu0 0.0
        %6014 = vmatpush1.msra.mxu0 0.0
        %6015 = vmatprep.subr.mxu0 0.0
        %6016 = vmatpush1.msra.mxu0 0.0
        %6017 = vmatprep.subr.mxu0 0.0
        %6018 = vmatpush1.msra.mxu0 0.0
        %6019 = vmatprep.subr.mxu0 0.0
        %6020 = vmatpush1.msra.mxu0 0.0
        %6021 = vmatprep.subr.mxu0 0.0
        %6022 = vmatpush1.msra.mxu0 0.0
        %6023 = vmatprep.subr.mxu0 0.0
        %6024 = vmatpush1.msra.mxu0 0.0
        %6025 = vmatprep.subr.mxu0 0.0
        %6026 = vmatpush1.msra.mxu0 0.0
        %6027 = vmatprep.subr.mxu0 0.0
        %6028 = vmatpush1.msra.mxu0 0.0
        %6029 = vmatprep.subr.mxu0 0.0
        %6030 = vmatpush1.msra.mxu0 %v887
        %6031 = vmatprep.subr.mxu0 0.0
        %6032 = vmatpush1.msra.mxu0 %v886
        %6033 = vmatprep.subr.mxu0 0.0
        %6034 = vmatpush1.msra.mxu0 %v885
        %6035 = vmatprep.subr.mxu0 0.0
        %6036 = vmatpush1.msra.mxu0 %v884
        %6037 = vmatprep.subr.mxu0 0.0
        %6038 = vmatpush2.msra.mxu0 0.0
        %6039 = vmatprep.subr.mxu0 0.0
        %6040 = vmatpush2.msra.mxu0 0.0
        %6041 = vmatprep.subr.mxu0 0.0
        %6042 = vmatpush2.msra.mxu0 0.0
        %6043 = vmatprep.subr.mxu0 0.0
        %6044 = vmatpush2.msra.mxu0 0.0
        %6045 = vmatprep.subr.mxu0 0.0
        %6046 = vmatpush2.msra.mxu0 0.0
        %6047 = vmatprep.subr.mxu0 0.0
        %6048 = vmatpush2.msra.mxu0 0.0
        %6049 = vmatprep.subr.mxu0 0.0
        %6050 = vmatpush2.msra.mxu0 0.0
        %6051 = vmatprep.subr.mxu0 0.0
        %6052 = vmatpush2.msra.mxu0 0.0
        %6053 = vmatprep.subr.mxu0 0.0
        %6054 = vmatpush2.msra.mxu0 0.0
        %6055 = vmatprep.subr.mxu0 0.0
        %6056 = vmatpush2.msra.mxu0 0.0
        %6057 = vmatprep.subr.mxu0 0.0
        %6058 = vmatpush2.msra.mxu0 0.0
        %6059 = vmatprep.subr.mxu0 0.0
        %6060 = vmatpush2.msra.mxu0 0.0
        %6061 = vmatprep.subr.mxu0 0.0
        %6062 = vmatpush2.msra.mxu0 0.0
        %6063 = vmatprep.subr.mxu0 0.0
        %6064 = vmatpush2.msra.mxu0 0.0
        %6065 = vmatprep.subr.mxu0 0.0
        %6066 = vmatpush2.msra.mxu0 0.0
        %6067 = vmatprep.subr.mxu0 0.0
        %6068 = vmatpush2.msra.mxu0 0.0
        %6069 = vmatprep.mubr.f32.mxu0 0.0
        %6070 = vmatmul.mubr.f32.gmra.mxu0 %v6000
        %v6071 = vpop.f32.mrf.mxu0
        %v6072 = vadd.f32 %v5992, %v6071
        %v6073 = vpop.f32.mrf.mxu0
        %6074 = vmatprep.mubr.f32.mxu0 0.0
        %6075 = vmatmul.mubr.f32.gmra.mxu0 %v6003
        %v6076 = vpop.f32.mrf.mxu0
        %v6077 = vpop.f32.mrf.mxu0
        %6078 = vdwg.mxu0
        %6079 = vmatprep.subr.mxu0 0.0
        %6080 = vmatpush1.msra.mxu0 0.0
        %6081 = vmatprep.subr.mxu0 0.0
        %6082 = vmatpush1.msra.mxu0 0.0
        %6083 = vmatprep.subr.mxu0 0.0
        %6084 = vmatpush1.msra.mxu0 0.0
        %6085 = vmatprep.subr.mxu0 0.0
        %6086 = vmatpush1.msra.mxu0 0.0
        %6087 = vmatprep.subr.mxu0 0.0
        %6088 = vmatpush1.msra.mxu0 0.0
        %6089 = vmatprep.subr.mxu0 0.0
        %6090 = vmatpush1.msra.mxu0 0.0
        %6091 = vmatprep.subr.mxu0 0.0
        %6092 = vmatpush1.msra.mxu0 0.0
        %6093 = vmatprep.subr.mxu0 0.0
        %6094 = vmatpush1.msra.mxu0 0.0
        %6095 = vmatprep.subr.mxu0 0.0
        %6096 = vmatpush1.msra.mxu0 0.0
        %6097 = vmatprep.subr.mxu0 0.0
        %6098 = vmatpush1.msra.mxu0 0.0
        %6099 = vmatprep.subr.mxu0 0.0
        %6100 = vmatpush1.msra.mxu0 0.0
        %6101 = vmatprep.subr.mxu0 0.0
        %6102 = vmatpush1.msra.mxu0 0.0
        %6103 = vmatprep.subr.mxu0 0.0
        %6104 = vmatpush1.msra.mxu0 %v895
        %6105 = vmatprep.subr.mxu0 0.0
        %6106 = vmatpush1.msra.mxu0 %v894
        %6107 = vmatprep.subr.mxu0 0.0
        %6108 = vmatpush1.msra.mxu0 %v893
        %6109 = vmatprep.subr.mxu0 0.0
        %6110 = vmatpush1.msra.mxu0 %v892
        %6111 = vmatprep.subr.mxu0 0.0
        %6112 = vmatpush2.msra.mxu0 0.0
        %6113 = vmatprep.subr.mxu0 0.0
        %6114 = vmatpush2.msra.mxu0 0.0
        %6115 = vmatprep.subr.mxu0 0.0
        %6116 = vmatpush2.msra.mxu0 0.0
        %6117 = vmatprep.subr.mxu0 0.0
        %6118 = vmatpush2.msra.mxu0 0.0
        %6119 = vmatprep.subr.mxu0 0.0
        %6120 = vmatpush2.msra.mxu0 0.0
        %6121 = vmatprep.subr.mxu0 0.0
        %6122 = vmatpush2.msra.mxu0 0.0
        %6123 = vmatprep.subr.mxu0 0.0
        %6124 = vmatpush2.msra.mxu0 0.0
        %6125 = vmatprep.subr.mxu0 0.0
        %6126 = vmatpush2.msra.mxu0 0.0
        %6127 = vmatprep.subr.mxu0 0.0
        %6128 = vmatpush2.msra.mxu0 0.0
        %6129 = vmatprep.subr.mxu0 0.0
        %6130 = vmatpush2.msra.mxu0 0.0
        %6131 = vmatprep.subr.mxu0 0.0
        %6132 = vmatpush2.msra.mxu0 0.0
        %6133 = vmatprep.subr.mxu0 0.0
        %6134 = vmatpush2.msra.mxu0 0.0
        %6135 = vmatprep.subr.mxu0 0.0
        %6136 = vmatpush2.msra.mxu0 0.0
        %6137 = vmatprep.subr.mxu0 0.0
        %6138 = vmatpush2.msra.mxu0 0.0
        %6139 = vmatprep.subr.mxu0 0.0
        %6140 = vmatpush2.msra.mxu0 0.0
        %6141 = vmatprep.subr.mxu0 0.0
        %6142 = vmatpush2.msra.mxu0 0.0
        %6143 = vmatprep.mubr.f32.mxu0 0.0
        %6144 = vmatmul.mubr.f32.gmra.mxu0 %v5097
        %v6145 = vpop.f32.mrf.mxu0
        %v6146 = vadd.f32 0.0, %v6145
        %v6147 = vpop.f32.mrf.mxu0
        %6148 = vmatprep.mubr.f32.mxu0 0.0
        %6149 = vmatmul.mubr.f32.gmra.mxu0 %v5099
        %v6150 = vpop.f32.mrf.mxu0
        %v6151 = vpop.f32.mrf.mxu0
        %6152 = vdwg.mxu0
        %v6153 = vadd.f32 %v6072, %v6146
        %v6154 = vadd.f32 %v6153, %v2069
        %v6155 = vsel %vm905, %v6154, 0.0
        %6156 = vadd.xlane.f32.xlu0 %v6155
        %v6157 = vpop.xlane.xlu0 %6156
        %v6158 = vmul.f32 %v6157, %v1337
        %v6159 = vsub.f32 %v6154, %v6158
        %v6160 = vmul.f32 %v6159, %v6159
        %v6161 = vsel %vm905, %v6160, 0.0
        %6162 = vadd.xlane.f32.xlu0 %v6161
        %v6163 = vpop.xlane.xlu0 %6162
        %v6164 = vmul.f32 %v6163, %v1337
        %v6165 = vadd.f32 %v6164, 1e-05
        %v6166 = vrsqrt.pop %v6165
        %v6167 = vmul.f32 %v6159, %v6166
        %v6168 = vmul.f32 %v6167, %v2103
        %v6169 = vadd.f32 %v6168, %v2111
        %6171 = vrot.lane.b32.xlu0 %v6154, 96
        %v6172 = vpop.permute.xlu0 %6171
        %v6174 = vsel %vm905, %v6172, 0.0
        %6175 = vadd.xlane.f32.xlu0 %v6174
        %v6176 = vpop.xlane.xlu0 %6175
        %v6177 = vmul.f32 %v6176, %v1337
        %v6178 = vsub.f32 %v6154, %v6177
        %v6179 = vmul.f32 %v6178, %v6178
        %6181 = vrot.lane.b32.xlu0 %v6179, 96
        %v6182 = vpop.permute.xlu0 %6181
        %v6184 = vsel %vm905, %v6182, 0.0
        %6185 = vadd.xlane.f32.xlu0 %v6184
        %v6186 = vpop.xlane.xlu0 %6185
        %v6187 = vmul.f32 %v6186, %v1337
        %v6188 = vadd.f32 %v6187, 1e-05
        %v6189 = vrsqrt.pop %v6188
        %v6190 = vmul.f32 %v6178, %v6189
        %v6191 = vmul.f32 %v6190, %v2103
        %v6192 = vadd.f32 %v6191, %v2111
        %6193 = vrot.lane.b32.xlu0 %v6154, 64
        %v6194 = vpop.permute.xlu0 %6193
        %v6196 = vsel %vm905, %v6194, 0.0
        %6197 = vadd.xlane.f32.xlu0 %v6196
        %v6198 = vpop.xlane.xlu0 %6197
        %v6199 = vmul.f32 %v6198, %v1337
        %v6200 = vsub.f32 %v6154, %v6199
        %v6201 = vmul.f32 %v6200, %v6200
        %6203 = vrot.lane.b32.xlu0 %v6201, 64
        %v6204 = vpop.permute.xlu0 %6203
        %v6206 = vsel %vm905, %v6204, 0.0
        %6207 = vadd.xlane.f32.xlu0 %v6206
        %v6208 = vpop.xlane.xlu0 %6207
        %v6209 = vmul.f32 %v6208, %v1337
        %v6210 = vadd.f32 %v6209, 1e-05
        %v6211 = vrsqrt.pop %v6210
        %v6212 = vmul.f32 %v6200, %v6211
        %v6213 = vmul.f32 %v6212, %v2103
        %v6214 = vadd.f32 %v6213, %v2111
        %6215 = vrot.lane.b32.xlu0 %v6154, 32
        %v6216 = vpop.permute.xlu0 %6215
        %v6218 = vsel %vm905, %v6216, 0.0
        %6219 = vadd.xlane.f32.xlu0 %v6218
        %v6220 = vpop.xlane.xlu0 %6219
        %v6221 = vmul.f32 %v6220, %v1337
        %v6222 = vsub.f32 %v6154, %v6221
        %v6223 = vmul.f32 %v6222, %v6222
        %6225 = vrot.lane.b32.xlu0 %v6223, 32
        %v6226 = vpop.permute.xlu0 %6225
        %v6228 = vsel %vm905, %v6226, 0.0
        %6229 = vadd.xlane.f32.xlu0 %v6228
        %v6230 = vpop.xlane.xlu0 %6229
        %v6231 = vmul.f32 %v6230, %v1337
        %v6232 = vadd.f32 %v6231, 1e-05
        %v6233 = vrsqrt.pop %v6232
        %v6234 = vmul.f32 %v6222, %v6233
        %v6235 = vmul.f32 %v6234, %v2103
        %v6236 = vadd.f32 %v6235, %v2111
        %v6237 = vxor.u32 %v6169, 2147483648
        %v6238 = vmul.f32 %v6237, 1.442695
        %v6239 = vpow.pop %v6238
        %v6240 = vadd.f32 %v6239, 1.0
        %v6241 = vrcp.pop %v6240
        %v6242 = vmul.f32 1.0, %v6241
        %v6243 = vadd.f32 %v6192, 1.0
        %v6244 = vxor.u32 %v6243, 2147483648
        %v6245 = vmul.f32 %v6244, 1.442695
        %v6246 = vpow.pop %v6245
        %v6247 = vadd.f32 %v6246, 1.0
        %v6248 = vrcp.pop %v6247
        %v6249 = vmul.f32 1.0, %v6248
        %v6250 = vtanh.pop %v6214
        %v6251 = vxor.u32 %v6236, 2147483648
        %v6252 = vmul.f32 %v6251, 1.442695
        %v6253 = vpow.pop %v6252
        %v6254 = vadd.f32 %v6253, 1.0
        %v6255 = vrcp.pop %v6254
        %v6256 = vmul.f32 1.0, %v6255
        %v6257 = vmul.f32 %v6249, %v5031
        %6259 = vrot.lane.b32.xlu0 %v6250, 64
        %v6260 = vpop.permute.xlu0 %6259
        %v6262 = vmul.f32 %v6242, %v6260
        %6264 = vrot.lane.b32.xlu0 %v6262, 32
        %v6265 = vpop.permute.xlu0 %6264
        %v6267 = vadd.f32 %v6257, %v6265
        %6269 = vrot.lane.b32.xlu0 %v6267, 96
        %v6270 = vpop.permute.xlu0 %6269
        %v6272 = vsel %vm905, %v6270, 0.0
        %6273 = vadd.xlane.f32.xlu0 %v6272
        %v6274 = vpop.xlane.xlu0 %6273
        %v6275 = vmul.f32 %v6274, %v1337
        %v6276 = vsub.f32 %v6267, %v6275
        %v6277 = vmul.f32 %v6276, %v6276
        %6279 = vrot.lane.b32.xlu0 %v6277, 96
        %v6280 = vpop.permute.xlu0 %6279
        %v6282 = vsel %vm905, %v6280, 0.0
        %6283 = vadd.xlane.f32.xlu0 %v6282
        %v6284 = vpop.xlane.xlu0 %6283
        %v6285 = vmul.f32 %v6284, %v1337
        %v6286 = vadd.f32 %v6285, 1e-05
        %v6287 = vrsqrt.pop %v6286
        %v6288 = vmul.f32 %v6276, %v6287
        %v6289 = vmul.f32 %v6288, %v2359
        %v6290 = vadd.f32 %v6289, %v2369
        %v6291 = vtanh.pop %v6290
        %6293 = vrot.lane.b32.xlu0 %v6291, 64
        %v6294 = vpop.permute.xlu0 %6293
        %v6296 = vmul.f32 %v6256, %v6294
        %v6297 = vsel %vm828, 1, 0
        %v6298 = vcvt.s32.f32 %v6297
        %v6299 = vsel %vm841, 1, 0
        %v6300 = vcvt.s32.f32 %v6299
        %v6301 = vld [vmem:[%s23] sm:$0x1]
        %v6302 = vmul.f32 %v6296, %v6298
        %v6304 = vlaneseq
        %v6305 = vshrl.u32 %v6304, 7
        %v6306 = vsub.s32 0, %v6305
        %v6307 = vrot.slane %v6301, %v6306
        %6308 = vrot.lane.b32.xlu0 %v6307, 96
        %v6309 = vpop.permute.xlu0 %6308
        %v6311 = vmul.f32 %v6302, %v6309
        %6313 = vrot.lane.b32.xlu0 %v6311, 32
        %v6314 = vpop.permute.xlu0 %6313
        %v6316 = vsel %vm905, %v6314, 0.0
        %6317 = vadd.xlane.f32.xlu0 %v6316
        %v6318 = vpop.xlane.xlu0 %6317
        %v6319 = vmul.f32 %v6296, %v6300
        %v6320 = vmul.f32 %v6319, %v6309
        %6322 = vrot.lane.b32.xlu0 %v6320, 32
        %v6323 = vpop.permute.xlu0 %6322
        %v6325 = vsel %vm905, %v6323, 0.0
        %6326 = vadd.xlane.f32.xlu0 %v6325
        %v6327 = vpop.xlane.xlu0 %6326
        %v6328 = vsub.f32 %v6318, %v6327
        %v6329 = vmul.f32 %v6328, 0.5
        %v6330 = vtanh.pop %v6329
        %v6331 = vmul.f32 %v6330, %v6298
        %v6332 = vmul.f32 %v6318, %v6298
        %vm6333 = vcmp.eq.s32.totalorder %v826, 0
        %v6334 = vsel %vm6333, %v6331, %v6332
        %vm6335 = vcmask 15360
        %6336 = vst.msk [vmem:[%s788] sm:$0xff] %vm6335, %v6334
        %p6337 = scmp.lt.s32.totalorder %s44, 1
        %s6338 = scalar_select %p6337, %s44, 1
        %s6339 = smul.addr %s6338, 8
        %s6340 = scalar_lea.vmem %s24, %s6339
        // Predicated region
        $region133: #{tpu_custom_call.1} parent=111 // pred_check
          %p6341 = pneg %p550
        $region134: #{tpu_custom_call.1} parent=111 // pred_check_branch
          %6343 = sbr.rel (%p6341) target = $region136
        $region135: #{tpu_custom_call.1} parent=111 // pred_region
          _
        $region136: #{tpu_custom_call.1} parent=111 // pred_fallthru
          _
      $region112: #{tpu_custom_call.1} parent=5 // pred_fallthru
        _
      %p6344 = scmp.le.s32.totalorder 2, %s39
      // Predicated region
      $region137: #{tpu_custom_call.1} parent=5 // pred_check
        %p6345 = pneg %p6344
      $region138: #{tpu_custom_call.1} parent=5 // pred_check_branch
        %6347 = sbr.rel (%p6345) target = $region140
      $region139: #{tpu_custom_call.1} parent=5 // pred_region
        %s6348 = ssub.s32 %s39, 2
        // Predicated region
        $region141: #{tpu_custom_call.1} parent=139 // pred_check
          %p6349 = pneg %p556
        $region142: #{tpu_custom_call.1} parent=139 // pred_check_branch
          %6351 = sbr.rel (%p6349) target = $region144
        $region143: #{tpu_custom_call.1} parent=139 // pred_region
          %p6352 = scmp.lt.s32.totalorder %s45, 1
          %s6353 = scalar_select %p6352, %s45, 1
          %s6354 = smul.addr %s6353, 8
          %s6355 = scalar_lea.vmem %s24, %s6354
        $region144: #{tpu_custom_call.1} parent=139 // pred_fallthru
          _
      $region140: #{tpu_custom_call.1} parent=5 // pred_fallthru
        _
    $region6: #{tpu_custom_call.1} parent=1 // loop_footer
      %s43 = sadd.s32 1, %s39
    $region7: #{tpu_custom_call.1} parent=1 // loop_footer_branch
      %38 = sbr.rel target = $region3
    $region8: #{tpu_custom_call.1} parent=1 // loop_exit
      _
    %6356 = vsyncpa [#allocation5], 1
    %s6357 = scalar_lea.sflag [#allocation5], 1
    %6358 = vsyncpa %s6357, 1
    %6359 = vsyncpa [#allocation7], 1
    %6360 = vsyncpa [#allocation10], 1

</llo_original>
